<compile_context>
chip_gen: v7x
topology: tpu7x:2x2x1
jax: 0.10.0
libtpu: 0.0.40
codegen_flags: <defaults>
</compile_context>

<pallas_src>
import functools

import jax
import jax.numpy as jnp
from jax.experimental import pallas as pl
from jax.experimental.pallas import tpu as pltpu

NEG = -1e30   # "minus infinity" that stays NaN-free through exp / softmax


# ---------------------------------------------------------------------------
# Kernel 1: DynamicEdgeConv message MLP (second Linear + LogSoftmax) and
# max-aggregation over the k gathered neighbours of TM target nodes.
# ---------------------------------------------------------------------------
def edge_conv_kernel(pi_ref, pj_ref, w2_ref, b2_ref, hs_ref, *, hid):
    """pi_ref : (TM, Hp)    f32   x_i @ (W1[:Fin]-W1[Fin:]) + b1 (lane padded)
       pj_ref : (k, TM, Hp) bf16  gathered x_j @ W1[Fin:] rows
       w2_ref : (Hp, Hp)    bf16  edge-MLP second Linear
       b2_ref : (1, Hp)     f32   bias, NEG in padded columns
       hs_ref : (TM, Hp)    bf16  max-aggregated log-softmax messages (out)
    """
    pi = pi_ref[...]                                     # (TM, Hp) f32
    pj = pj_ref[...]                                     # (k, TM, Hp) bf16
    k, tm, hp = pj.shape

    # Reassociated first Linear + ReLU: relu(proj_i + proj_j) per edge.
    z1 = jnp.maximum(pj + pi[None, :, :], 0.0)           # (k, TM, Hp) f32

    # One big bf16 MXU matmul for all k neighbours at once (f32 accumulate).
    z1f = z1.astype(jnp.bfloat16).reshape(k * tm, hp)
    z2 = jnp.dot(z1f, w2_ref[...],
                 preferred_element_type=jnp.float32) + b2_ref[...]

    # Row-wise LogSoftmax; padded columns carry a NEG bias -> excluded exactly.
    z2 = z2 - jnp.max(z2, axis=-1, keepdims=True)
    msg = z2 - jnp.log(jnp.sum(jnp.exp(z2), axis=-1, keepdims=True))

    # aggr='max' over the k neighbours of each target node.
    agg = jnp.max(msg.reshape(k, tm, hp), axis=0)        # (TM, Hp)

    # Zero padded columns so downstream matmuls see benign values.
    col = jax.lax.broadcasted_iota(jnp.int32, agg.shape, 1)
    hs_ref[...] = jnp.where(col < hid, agg, 0.0).astype(hs_ref.dtype)


# ---------------------------------------------------------------------------
# Kernel 2: sparse GCN aggregation (mean over the k gathered h rows) fused
# with the GCNConv linear, the GNN softmax head and the GNN_Combo softmax head.
# ---------------------------------------------------------------------------
def gcn_head_kernel(hj_ref, wg_ref, bg_ref, wq_ref, bq_ref, wo_ref, bo_ref,
                    out_ref, *, inv_k):
    """hj_ref : (k, TM, Hp) bf16  gathered h rows of each target's neighbours
       out    : (TM, OUTP)  f32   final softmax probabilities (lane padded)
    """
    hj = hj_ref[...].astype(jnp.float32)                  # (k, TM, Hp)
    # Every node has in-degree k (self-loop included), so the symmetric
    # gcn_norm weight is exactly 1/k: aggregation == mean over the k rows.
    g = jnp.sum(hj, axis=0) * inv_k                       # (TM, Hp) f32

    # GCNConv linear (+ bias).
    g = jnp.dot(g.astype(jnp.bfloat16), wg_ref[...],
                preferred_element_type=jnp.float32) + bg_ref[...]

    # GNN.output head: Linear + Softmax (approx reciprocal -> idle EUP slot).
    s = jnp.dot(g.astype(jnp.bfloat16), wq_ref[...],
                preferred_element_type=jnp.float32) + bq_ref[...]
    s = s - jnp.max(s, axis=-1, keepdims=True)
    e = jnp.exp(s)
    s = e * pl.reciprocal(jnp.sum(e, axis=-1, keepdims=True), approx=True)

    # GNN_Combo.output head: Linear + Softmax (padded columns biased to NEG).
    logits = jnp.dot(s.astype(jnp.bfloat16), wo_ref[...],
                     preferred_element_type=jnp.float32) + bo_ref[...]
    logits = logits - jnp.max(logits, axis=-1, keepdims=True)
    e2 = jnp.exp(logits)
    # Exact divide for the final normalisation so output rows sum to 1.
    out_ref[...] = (e2 / jnp.sum(e2, axis=-1, keepdims=True)).astype(out_ref.dtype)


# ---------------------------------------------------------------------------
# Wrapper
# ---------------------------------------------------------------------------
def _pad_cols(a, width, fill=0.0):
    out = jnp.full((a.shape[0], width), fill, a.dtype)
    return out.at[:, :a.shape[1]].set(a)


def _pad2(a, rows, cols, dtype):
    out = jnp.zeros((rows, cols), dtype)
    return out.at[:a.shape[0], :a.shape[1]].set(a.astype(dtype))


@functools.partial(jax.jit, static_argnames=("k", "tm", "hp", "out_pad"))
def gnn_combo_forward(x, params, *, k, tm=128, hp=128, out_pad=128):
    """GNN_Combo forward (conv='GCN', num_layers=1, no batch_norm/pooling).

    x: (N, Fin) f32 node features. Returns (N, out_dim) softmax probabilities.
    NOTE: with small N, lower `tm` to give v7x's two TensorCores more parallel
    grid steps; tm=128 keeps per-step overhead low for larger N.
    """
    (w1, b1, w2, b2, wg, bg, wq, bq, wo, bo) = params
    n, fin = x.shape
    hid = w2.shape[1]
    out_dim = wo.shape[1]
    tm = min(tm, n)
    assert n % tm == 0, "N must be a multiple of the row tile"  # TODO(synk): ragged-tile masking path
    assert hid <= hp and out_dim <= out_pad and k <= n

    # ---- k-NN graph in feature space (torch_cluster.knn equivalent) --------
    # TODO(synk): top-k neighbour selection stays XLA glue; for large N it
    # should be tiled (running top-k over distance blocks) instead of
    # materialising the full (N, N) f32 distance matrix.
    sq = jnp.sum(x * x, axis=-1)
    d2 = sq[:, None] + sq[None, :] - 2.0 * (x @ x.T)
    d2 = jnp.where(jnp.eye(n, dtype=bool), -jnp.inf, d2)   # self always included
    _, nbr_idx = jax.lax.top_k(-d2, k)                     # (N, k)

    # ---- per-node projections of the edge-MLP first Linear (hoisted) -------
    # cat([x_i, x_j - x_i]) @ W1 == x_i @ (W1[:Fin]-W1[Fin:]) + x_j @ W1[Fin:]
    w1i = _pad_cols(w1[:fin] - w1[fin:], hp)               # (Fin, Hp) f32
    w1j = _pad_cols(w1[fin:], hp)
    proj_i = x @ w1i + _pad_cols(b1, hp)                   # (N, Hp) f32
    proj_j = (x @ w1j).astype(jnp.bfloat16)                # (N, Hp) bf16
    # TODO(synk): neighbour-row gathers stay XLA glue; an in-kernel DMA gather
    # via scalar-prefetched nbr_idx would avoid materialising these copies.
    pj_g = proj_j[nbr_idx.T]                               # (k, N, Hp) bf16

    # Padded weights / biases. Padded logit columns get a NEG bias so every
    # (log-)softmax ignores them exactly; all other padding is zero.
    w2_p = _pad2(w2, hp, hp, jnp.bfloat16)
    b2_p = _pad_cols(b2, hp, fill=NEG)
    wg_p = _pad2(wg, hp, hp, jnp.bfloat16)
    bg_p = _pad_cols(bg, hp)
    wq_p = _pad2(wq, hp, hp, jnp.bfloat16)
    bq_p = _pad_cols(bq, hp, fill=NEG)
    wo_p = _pad2(wo, hp, out_pad, jnp.bfloat16)
    bo_p = _pad_cols(bo, out_pad, fill=NEG)

    def full(shape):   # VMEM-resident block: constant index_map, full extent
        return pl.BlockSpec(shape, lambda i: (0,) * len(shape))

    vmem_cap = 48 * 1024 * 1024   # within v7x's 64 MiB physical VMEM

    # ---- Kernel 1: DynamicEdgeConv messages + max aggregation --------------
    ce1 = pl.CostEstimate(
        flops=2 * n * k * hp * hp,
        transcendentals=n * k * hp,
        bytes_accessed=n * k * hp * 2 + n * hp * 4 + n * hp * 2
                       + hp * hp * 2 + hp * 4)
    hs = pl.pallas_call(
        functools.partial(edge_conv_kernel, hid=hid),
        out_shape=jax.ShapeDtypeStruct((n, hp), jnp.bfloat16),
        grid=(n // tm,),
        in_specs=[
            pl.BlockSpec((tm, hp), lambda i: (i, 0)),         # proj_i tile
            pl.BlockSpec((k, tm, hp), lambda i: (0, i, 0)),   # gathered proj_j
            full((hp, hp)), full((1, hp)),                    # W2, b2
        ],
        out_specs=pl.BlockSpec((tm, hp), lambda i: (i, 0)),
        compiler_params=pltpu.CompilerParams(
            dimension_semantics=("parallel",),
            vmem_limit_bytes=vmem_cap),
        cost_estimate=ce1,
    )(proj_i, pj_g, w2_p, b2_p)

    # ---- Kernel 2: sparse GCN aggregation + fused heads ---------------------
    hj_g = hs[nbr_idx.T]                                    # (k, N, Hp) bf16
    ce2 = pl.CostEstimate(
        flops=2 * n * hp * (2 * hp + out_pad),
        transcendentals=n * (hp + out_pad),
        bytes_accessed=n * k * hp * 2 + n * out_pad * 4 + 3 * hp * hp * 2)
    out_padded = pl.pallas_call(
        functools.partial(gcn_head_kernel, inv_k=1.0 / k),
        out_shape=jax.ShapeDtypeStruct((n, out_pad), jnp.float32),
        grid=(n // tm,),
        in_specs=[
            pl.BlockSpec((k, tm, hp), lambda i: (0, i, 0)),   # gathered h rows
            full((hp, hp)), full((1, hp)),                    # GCNConv W, b
            full((hp, hp)), full((1, hp)),                    # GNN head W, b
            full((hp, out_pad)), full((1, out_pad)),          # Combo head W, b
        ],
        out_specs=pl.BlockSpec((tm, out_pad), lambda i: (i, 0)),
        compiler_params=pltpu.CompilerParams(
            dimension_semantics=("parallel",),
            vmem_limit_bytes=vmem_cap),
        cost_estimate=ce2,
    )(hj_g, wg_p, bg_p, wq_p, bq_p, wo_p, bo_p)

    return out_padded[:, :out_dim]


if __name__ == "__main__":
    N = 256       # nodes
    FIN = 16      # input feature dim
    HID = 64      # GNN_Combo hidden_dim (module default)
    OUT = 8       # output classes
    K = 10        # k-NN neighbours (module default)

    key = jax.random.PRNGKey(0)
    kx, *kp = jax.random.split(key, 11)

    x = jax.random.normal(kx, (N, FIN), jnp.float32)

    def lin(kw, kb, fan_in, fan_out):
        s = 1.0 / jnp.sqrt(fan_in)
        w = jax.random.uniform(kw, (fan_in, fan_out), jnp.float32, -s, s)
        b = jax.random.uniform(kb, (1, fan_out), jnp.float32, -s, s)
        return w, b

    w1, b1 = lin(kp[0], kp[1], 2 * FIN, HID)   # edge-MLP Linear(2*Fin, H)
    w2, b2 = lin(kp[2], kp[3], HID, HID)       # edge-MLP Linear(H, H)
    wg, bg = lin(kp[4], kp[5], HID, HID)       # GCNConv(H, H)
    wq, bq = lin(kp[6], kp[7], HID, HID)       # GNN.output Linear(H, H)
    wo, bo = lin(kp[8], kp[9], HID, OUT)       # GNN_Combo.output Linear(H, out)
    params = (w1, b1, w2, b2, wg, bg, wq, bq, wo, bo)

    out = gnn_combo_forward(x, params, k=K)
    out = jax.block_until_ready(out)

    assert out.shape == (N, OUT)
    assert bool(jnp.all(jnp.isfinite(out)))
    # rows of a softmax must sum to 1
    assert bool(jnp.all(jnp.abs(jnp.sum(out, axis=-1) - 1.0) < 1e-4))
    print("KERNEL_OK")
</pallas_src>

<mosaic_0001>
module attributes {stable_mosaic.version = 11 : i64} {
  func.func @gcn_head_kernel(%arg0: i32, %arg1: memref<10x128x128xbf16, #tpu.memory_space<vmem>>, %arg2: memref<128x128xbf16, #tpu.memory_space<vmem>>, %arg3: memref<1x128xf32, #tpu.memory_space<vmem>>, %arg4: memref<128x128xbf16, #tpu.memory_space<vmem>>, %arg5: memref<1x128xf32, #tpu.memory_space<vmem>>, %arg6: memref<128x128xbf16, #tpu.memory_space<vmem>>, %arg7: memref<1x128xf32, #tpu.memory_space<vmem>>, %arg8: memref<128x128xf32, #tpu.memory_space<vmem>>) attributes {dimension_semantics = [#tpu.dimension_semantics<parallel>], iteration_bounds = array<i64: 2>, scalar_prefetch = 0 : i64, scratch_operands = 0 : i64, tpu.core_type = #tpu.core_type<tc>, window_params = [{transform_indices = @transform_0, window_bounds = array<i64: 10, 128, 128>}, {pipeline_mode = #tpu.pipeline_mode<synchronous>, transform_indices = @transform_1, window_bounds = array<i64: 128, 128>}, {pipeline_mode = #tpu.pipeline_mode<synchronous>, transform_indices = @transform_2, window_bounds = array<i64: 1, 128>}, {pipeline_mode = #tpu.pipeline_mode<synchronous>, transform_indices = @transform_3, window_bounds = array<i64: 128, 128>}, {pipeline_mode = #tpu.pipeline_mode<synchronous>, transform_indices = @transform_4, window_bounds = array<i64: 1, 128>}, {pipeline_mode = #tpu.pipeline_mode<synchronous>, transform_indices = @transform_5, window_bounds = array<i64: 128, 128>}, {pipeline_mode = #tpu.pipeline_mode<synchronous>, transform_indices = @transform_6, window_bounds = array<i64: 1, 128>}, {transform_indices = @transform_7, window_bounds = array<i64: 128, 128>}]} {
    %c0 = arith.constant 0 : index
    %c0_0 = arith.constant 0 : index
    %c0_1 = arith.constant 0 : index
    %0 = vector.load %arg1[%c0, %c0_0, %c0_1] : memref<10x128x128xbf16, #tpu.memory_space<vmem>>, vector<10x128x128xbf16>
    %1 = arith.extf %0 : vector<10x128x128xbf16> to vector<10x128x128xf32>
    %cst = arith.constant dense<0.000000e+00> : vector<128x128xf32>
    %2 = vector.multi_reduction <add>, %1, %cst [0] : vector<10x128x128xf32> to vector<128x128xf32>
    %cst_2 = arith.constant 1.000000e-01 : f32
    %3 = vector.broadcast %cst_2 : f32 to vector<128x128xf32>
    %4 = arith.mulf %2, %3 : vector<128x128xf32>
    %5 = arith.truncf %4 : vector<128x128xf32> to vector<128x128xbf16>
    %c0_3 = arith.constant 0 : index
    %c0_4 = arith.constant 0 : index
    %6 = vector.load %arg2[%c0_3, %c0_4] : memref<128x128xbf16, #tpu.memory_space<vmem>>, vector<128x128xbf16>
    %cst_5 = arith.constant dense<0.000000e+00> : vector<128x128xf32>
    %7 = tpu.matmul %5, %6, %cst_5 {dimension_numbers = #tpu.dot_dimension_numbers<[1], [0], [0], [1], [0, 0, 1, 1], [], []>} : vector<128x128xbf16>, vector<128x128xbf16>, vector<128x128xf32> -> vector<128x128xf32>
    %c0_6 = arith.constant 0 : index
    %c0_7 = arith.constant 0 : index
    %8 = vector.load %arg3[%c0_6, %c0_7] : memref<1x128xf32, #tpu.memory_space<vmem>>, vector<1x128xf32>
    %9 = vector.broadcast %8 : vector<1x128xf32> to vector<128x128xf32>
    %10 = arith.addf %7, %9 : vector<128x128xf32>
    %11 = arith.truncf %10 : vector<128x128xf32> to vector<128x128xbf16>
    %c0_8 = arith.constant 0 : index
    %c0_9 = arith.constant 0 : index
    %12 = vector.load %arg4[%c0_8, %c0_9] : memref<128x128xbf16, #tpu.memory_space<vmem>>, vector<128x128xbf16>
    %cst_10 = arith.constant dense<0.000000e+00> : vector<128x128xf32>
    %13 = tpu.matmul %11, %12, %cst_10 {dimension_numbers = #tpu.dot_dimension_numbers<[1], [0], [0], [1], [0, 0, 1, 1], [], []>} : vector<128x128xbf16>, vector<128x128xbf16>, vector<128x128xf32> -> vector<128x128xf32>
    %c0_11 = arith.constant 0 : index
    %c0_12 = arith.constant 0 : index
    %14 = vector.load %arg5[%c0_11, %c0_12] : memref<1x128xf32, #tpu.memory_space<vmem>>, vector<1x128xf32>
    %15 = vector.broadcast %14 : vector<1x128xf32> to vector<128x128xf32>
    %16 = arith.addf %13, %15 : vector<128x128xf32>
    %cst_13 = arith.constant dense<0xFF800000> : vector<128xf32>
    %17 = vector.multi_reduction <maximumf>, %16, %cst_13 [1] : vector<128x128xf32> to vector<128xf32>
    %18 = vector.shape_cast %17 : vector<128xf32> to vector<128x1xf32>
    %19 = vector.broadcast %18 : vector<128x1xf32> to vector<128x128xf32>
    %20 = arith.subf %16, %19 : vector<128x128xf32>
    %21 = math.exp %20 : vector<128x128xf32>
    %cst_14 = arith.constant dense<0.000000e+00> : vector<128xf32>
    %22 = vector.multi_reduction <add>, %21, %cst_14 [1] : vector<128x128xf32> to vector<128xf32>
    %23 = vector.shape_cast %22 : vector<128xf32> to vector<128x1xf32>
    %24 = tpu.reciprocal %23 {approx = true} : vector<128x1xf32> -> vector<128x1xf32>
    %25 = vector.broadcast %24 : vector<128x1xf32> to vector<128x128xf32>
    %26 = arith.mulf %21, %25 : vector<128x128xf32>
    %27 = arith.truncf %26 : vector<128x128xf32> to vector<128x128xbf16>
    %c0_15 = arith.constant 0 : index
    %c0_16 = arith.constant 0 : index
    %28 = vector.load %arg6[%c0_15, %c0_16] : memref<128x128xbf16, #tpu.memory_space<vmem>>, vector<128x128xbf16>
    %cst_17 = arith.constant dense<0.000000e+00> : vector<128x128xf32>
    %29 = tpu.matmul %27, %28, %cst_17 {dimension_numbers = #tpu.dot_dimension_numbers<[1], [0], [0], [1], [0, 0, 1, 1], [], []>} : vector<128x128xbf16>, vector<128x128xbf16>, vector<128x128xf32> -> vector<128x128xf32>
    %c0_18 = arith.constant 0 : index
    %c0_19 = arith.constant 0 : index
    %30 = vector.load %arg7[%c0_18, %c0_19] : memref<1x128xf32, #tpu.memory_space<vmem>>, vector<1x128xf32>
    %31 = vector.broadcast %30 : vector<1x128xf32> to vector<128x128xf32>
    %32 = arith.addf %29, %31 : vector<128x128xf32>
    %cst_20 = arith.constant dense<0xFF800000> : vector<128xf32>
    %33 = vector.multi_reduction <maximumf>, %32, %cst_20 [1] : vector<128x128xf32> to vector<128xf32>
    %34 = vector.shape_cast %33 : vector<128xf32> to vector<128x1xf32>
    %35 = vector.broadcast %34 : vector<128x1xf32> to vector<128x128xf32>
    %36 = arith.subf %32, %35 : vector<128x128xf32>
    %37 = math.exp %36 : vector<128x128xf32>
    %cst_21 = arith.constant dense<0.000000e+00> : vector<128xf32>
    %38 = vector.multi_reduction <add>, %37, %cst_21 [1] : vector<128x128xf32> to vector<128xf32>
    %39 = vector.shape_cast %38 : vector<128xf32> to vector<128x1xf32>
    %40 = vector.broadcast %39 : vector<128x1xf32> to vector<128x128xf32>
    %41 = arith.divf %37, %40 : vector<128x128xf32>
    %c0_22 = arith.constant 0 : index
    %c0_23 = arith.constant 0 : index
    %42 = vector.load %arg8[%c0_22, %c0_23] : memref<128x128xf32, #tpu.memory_space<vmem>>, vector<128x128xf32>
    tpu.vector_store %arg8[%c0_22, %c0_23], %41 {strides = array<i32>} : memref<128x128xf32, #tpu.memory_space<vmem>>, vector<128x128xf32>,
    return
  }
  func.func @transform_0(%arg0: i32) -> (i32, i32, i32) {
    %c0_i32 = arith.constant 0 : i32
    %c0_i32_0 = arith.constant 0 : i32
    %c0_i32_1 = arith.constant 0 : i32
    return %c0_i32, %arg0, %c0_i32_0 : i32, i32, i32
  }
  func.func @transform_1(%arg0: i32) -> (i32, i32) {
    %c0_i32 = arith.constant 0 : i32
    %c0_i32_0 = arith.constant 0 : i32
    %c0_i32_1 = arith.constant 0 : i32
    return %c0_i32, %c0_i32_0 : i32, i32
  }
  func.func @transform_2(%arg0: i32) -> (i32, i32) {
    %c0_i32 = arith.constant 0 : i32
    %c0_i32_0 = arith.constant 0 : i32
    %c0_i32_1 = arith.constant 0 : i32
    return %c0_i32, %c0_i32_0 : i32, i32
  }
  func.func @transform_3(%arg0: i32) -> (i32, i32) {
    %c0_i32 = arith.constant 0 : i32
    %c0_i32_0 = arith.constant 0 : i32
    %c0_i32_1 = arith.constant 0 : i32
    return %c0_i32, %c0_i32_0 : i32, i32
  }
  func.func @transform_4(%arg0: i32) -> (i32, i32) {
    %c0_i32 = arith.constant 0 : i32
    %c0_i32_0 = arith.constant 0 : i32
    %c0_i32_1 = arith.constant 0 : i32
    return %c0_i32, %c0_i32_0 : i32, i32
  }
  func.func @transform_5(%arg0: i32) -> (i32, i32) {
    %c0_i32 = arith.constant 0 : i32
    %c0_i32_0 = arith.constant 0 : i32
    %c0_i32_1 = arith.constant 0 : i32
    return %c0_i32, %c0_i32_0 : i32, i32
  }
  func.func @transform_6(%arg0: i32) -> (i32, i32) {
    %c0_i32 = arith.constant 0 : i32
    %c0_i32_0 = arith.constant 0 : i32
    %c0_i32_1 = arith.constant 0 : i32
    return %c0_i32, %c0_i32_0 : i32, i32
  }
  func.func @transform_7(%arg0: i32) -> (i32, i32) {
    %c0_i32 = arith.constant 0 : i32
    %c0_i32_0 = arith.constant 0 : i32
    return %arg0, %c0_i32 : i32, i32
  }
}

module attributes {stable_mosaic.version = 11 : i64} {
  func.func @edge_conv_kernel(%arg0: i32, %arg1: memref<128x128xf32, #tpu.memory_space<vmem>>, %arg2: memref<10x128x128xbf16, #tpu.memory_space<vmem>>, %arg3: memref<128x128xbf16, #tpu.memory_space<vmem>>, %arg4: memref<1x128xf32, #tpu.memory_space<vmem>>, %arg5: memref<128x128xbf16, #tpu.memory_space<vmem>>) attributes {dimension_semantics = [#tpu.dimension_semantics<parallel>], iteration_bounds = array<i64: 2>, scalar_prefetch = 0 : i64, scratch_operands = 0 : i64, tpu.core_type = #tpu.core_type<tc>, window_params = [{transform_indices = @transform_0, window_bounds = array<i64: 128, 128>}, {transform_indices = @transform_1, window_bounds = array<i64: 10, 128, 128>}, {pipeline_mode = #tpu.pipeline_mode<synchronous>, transform_indices = @transform_2, window_bounds = array<i64: 128, 128>}, {pipeline_mode = #tpu.pipeline_mode<synchronous>, transform_indices = @transform_3, window_bounds = array<i64: 1, 128>}, {transform_indices = @transform_4, window_bounds = array<i64: 128, 128>}]} {
    %c0 = arith.constant 0 : index
    %c0_0 = arith.constant 0 : index
    %0 = vector.load %arg1[%c0, %c0_0] : memref<128x128xf32, #tpu.memory_space<vmem>>, vector<128x128xf32>
    %c0_1 = arith.constant 0 : index
    %c0_2 = arith.constant 0 : index
    %c0_3 = arith.constant 0 : index
    %1 = vector.load %arg2[%c0_1, %c0_2, %c0_3] : memref<10x128x128xbf16, #tpu.memory_space<vmem>>, vector<10x128x128xbf16>
    %2 = vector.shape_cast %0 : vector<128x128xf32> to vector<1x128x128xf32>
    %3 = arith.extf %1 : vector<10x128x128xbf16> to vector<10x128x128xf32>
    %4 = vector.broadcast %2 : vector<1x128x128xf32> to vector<10x128x128xf32>
    %5 = arith.addf %3, %4 : vector<10x128x128xf32>
    %cst = arith.constant 0.000000e+00 : f32
    %6 = vector.broadcast %cst : f32 to vector<10x128x128xf32>
    %7 = arith.maximumf %5, %6 : vector<10x128x128xf32>
    %8 = arith.truncf %7 : vector<10x128x128xf32> to vector<10x128x128xbf16>
    %9 = vector.shape_cast %8 : vector<10x128x128xbf16> to vector<1280x128xbf16>
    %c0_4 = arith.constant 0 : index
    %c0_5 = arith.constant 0 : index
    %10 = vector.load %arg3[%c0_4, %c0_5] : memref<128x128xbf16, #tpu.memory_space<vmem>>, vector<128x128xbf16>
    %cst_6 = arith.constant dense<0.000000e+00> : vector<1280x128xf32>
    %11 = tpu.matmul %9, %10, %cst_6 {dimension_numbers = #tpu.dot_dimension_numbers<[1], [0], [0], [1], [0, 0, 1, 1], [], []>} : vector<1280x128xbf16>, vector<128x128xbf16>, vector<1280x128xf32> -> vector<1280x128xf32>
    %c0_7 = arith.constant 0 : index
    %c0_8 = arith.constant 0 : index
    %12 = vector.load %arg4[%c0_7, %c0_8] : memref<1x128xf32, #tpu.memory_space<vmem>>, vector<1x128xf32>
    %13 = vector.broadcast %12 : vector<1x128xf32> to vector<1280x128xf32>
    %14 = arith.addf %11, %13 : vector<1280x128xf32>
    %cst_9 = arith.constant dense<0xFF800000> : vector<1280xf32>
    %15 = vector.multi_reduction <maximumf>, %14, %cst_9 [1] : vector<1280x128xf32> to vector<1280xf32>
    %16 = vector.shape_cast %15 : vector<1280xf32> to vector<1280x1xf32>
    %17 = vector.broadcast %16 : vector<1280x1xf32> to vector<1280x128xf32>
    %18 = arith.subf %14, %17 : vector<1280x128xf32>
    %19 = math.exp %18 : vector<1280x128xf32>
    %cst_10 = arith.constant dense<0.000000e+00> : vector<1280xf32>
    %20 = vector.multi_reduction <add>, %19, %cst_10 [1] : vector<1280x128xf32> to vector<1280xf32>
    %21 = vector.shape_cast %20 : vector<1280xf32> to vector<1280x1xf32>
    %22 = math.log %21 : vector<1280x1xf32>
    %23 = vector.broadcast %22 : vector<1280x1xf32> to vector<1280x128xf32>
    %24 = arith.subf %18, %23 : vector<1280x128xf32>
    %25 = vector.shape_cast %24 : vector<1280x128xf32> to vector<10x128x128xf32>
    %cst_11 = arith.constant dense<0xFF800000> : vector<128x128xf32>
    %26 = vector.multi_reduction <maximumf>, %25, %cst_11 [0] : vector<10x128x128xf32> to vector<128x128xf32>
    %27 = tpu.iota {dimensions = array<i32: 1>} : vector<128x128xi32>
    %c64_i32 = arith.constant 64 : i32
    %28 = vector.broadcast %c64_i32 : i32 to vector<128x128xi32>
    %29 = arith.cmpi slt, %27, %28 : vector<128x128xi32>
    %cst_12 = arith.constant 0.000000e+00 : f32
    %30 = vector.broadcast %cst_12 : f32 to vector<128x128xf32>
    %31 = arith.select %29, %26, %30 : vector<128x128xi1>, vector<128x128xf32>
    %32 = arith.truncf %31 : vector<128x128xf32> to vector<128x128xbf16>
    %c0_13 = arith.constant 0 : index
    %c0_14 = arith.constant 0 : index
    %33 = vector.load %arg5[%c0_13, %c0_14] : memref<128x128xbf16, #tpu.memory_space<vmem>>, vector<128x128xbf16>
    tpu.vector_store %arg5[%c0_13, %c0_14], %32 {strides = array<i32>} : memref<128x128xbf16, #tpu.memory_space<vmem>>, vector<128x128xbf16>,
    return
  }
  func.func @transform_0(%arg0: i32) -> (i32, i32) {
    %c0_i32 = arith.constant 0 : i32
    %c0_i32_0 = arith.constant 0 : i32
    return %arg0, %c0_i32 : i32, i32
  }
  func.func @transform_1(%arg0: i32) -> (i32, i32, i32) {
    %c0_i32 = arith.constant 0 : i32
    %c0_i32_0 = arith.constant 0 : i32
    %c0_i32_1 = arith.constant 0 : i32
    return %c0_i32, %arg0, %c0_i32_0 : i32, i32, i32
  }
  func.func @transform_2(%arg0: i32) -> (i32, i32) {
    %c0_i32 = arith.constant 0 : i32
    %c0_i32_0 = arith.constant 0 : i32
    %c0_i32_1 = arith.constant 0 : i32
    return %c0_i32, %c0_i32_0 : i32, i32
  }
  func.func @transform_3(%arg0: i32) -> (i32, i32) {
    %c0_i32 = arith.constant 0 : i32
    %c0_i32_0 = arith.constant 0 : i32
    %c0_i32_1 = arith.constant 0 : i32
    return %c0_i32, %c0_i32_0 : i32, i32
  }
  func.func @transform_4(%arg0: i32) -> (i32, i32) {
    %c0_i32 = arith.constant 0 : i32
    %c0_i32_0 = arith.constant 0 : i32
    return %arg0, %c0_i32 : i32, i32
  }
}

</mosaic_0001>

<llo_original>
// kernel: gnn_combo_forward.3
$region0: #{gnn_combo_forward.3}
  #allocation0 [shape = 'u32[]', space=smem, size = 0x4, offset = 0x4, fixed_abs, tag = 'smem constant byte address 0x4 - core index']
  #allocation1 [shape = 'u32[144,128]{1,0:T(1,128)}', space=vmem, size = 0x12000, scoped, tag = 'internal scratch']
  %s0 = inlined_call_operand.vmem [shape: bf16[10,256,128], index: 0, kind: input, shape index: {}]
  %s1 = inlined_call_operand.vmem [shape: bf16[128,128], index: 1, kind: input, shape index: {}]
  %s2 = inlined_call_operand.vmem [shape: f32[1,128], index: 2, kind: input, shape index: {}]
  %s3 = inlined_call_operand.vmem [shape: bf16[128,128], index: 3, kind: input, shape index: {}]
  %s4 = inlined_call_operand.vmem [shape: f32[1,128], index: 4, kind: input, shape index: {}]
  %s5 = inlined_call_operand.vmem [shape: bf16[128,128], index: 5, kind: input, shape index: {}]
  %s6 = inlined_call_operand.vmem [shape: f32[1,128], index: 6, kind: input, shape index: {}]
  %s7 = inlined_call_operand.vmem [shape: f32[256,128], index: 7, kind: output, shape index: {}]
  %s8 = sld [smem:[#allocation0]]
  $region102: #{gnn_combo_forward.3} parent=0
    _
  %s10 = ssub.s32 1, %s8
  %s11 = scalar_select 0, %s10, %s8
  $region1: #{gnn_combo_forward.3} parent=0
    #allocation2 [shape = 'u8[655360]{0}', space=vmem, size = 0xa0000, scoped, tag = 'input window, operand 0']
    loop: start=0, step=1, limit=4
    $region2: #{gnn_combo_forward.3} parent=1 // loop_pre_header
      _
    $region3: #{gnn_combo_forward.3} parent=1 // loop_header
      %s13 = sphi 0, %s17
      %p14 = scmp.ge.s32.totalorder %s13, 4
      %s23 = sphi 0, %s25
      %s26 = sphi 0, %s23
      %s27 = sphi 0, %s26
      %s43 = sphi 0, %s27
      %s47 = sphi 0, %s47
      %s49 = sphi 0, %s47
      %s50 = sphi 0, %s49
      %s64 = sphi 0, %s50
      %s68 = sphi 0, %s68
      %s70 = sphi 0, %s68
      %s71 = sphi 0, %s70
      %s85 = sphi 0, %s71
      %s89 = sphi 0, %s89
      %s91 = sphi 0, %s89
      %s92 = sphi 0, %s91
      %s106 = sphi 0, %s92
      %s110 = sphi 0, %s110
      %s112 = sphi 0, %s110
      %s113 = sphi 0, %s112
      %s127 = sphi 0, %s113
      %s131 = sphi 0, %s131
      %s133 = sphi 0, %s131
      %s134 = sphi 0, %s133
      %s148 = sphi 0, %s134
      %s152 = sphi 0, %s152
      %s154 = sphi 0, %s152
      %s155 = sphi 0, %s154
      %s169 = sphi 0, %s155
      %s175 = sphi 0, %s177
      %s178 = sphi 0, %s175
      %s179 = sphi 0, %s178
      %s195 = sphi 0, %s179
    $region4: #{gnn_combo_forward.3} parent=1 // loop_header_branch
      %16 = sbr.rel (%p14) target = $region8
    $region5: #{gnn_combo_forward.3} parent=1 // loop_body
      %s18 = ssub.s32 %s13, 1
      %s19 = ssub.s32 %s13, 2
      %s20 = sadd.s32 %s13, 1
      %s21 = ssub.s32 %s13, %s20
      %p22 = scmp.eq.s32.totalorder %s21, 0
      %s24 = sadd.s32 %s23, 1
      %s25 = scalar_select %p22, %s23, %s24
      %p28 = pneg %p22
      %p29 = scmp.eq.s32.totalorder %s13, 1
      %p30 = por %p28, %p29
      %p31 = scmp.ne.s32.totalorder %s23, %s26
      %p32 = scmp.eq.s32.totalorder %s13, 0
      %p33 = por %p31, %p32
      %p34 = scmp.ne.s32.totalorder %s23, %s26
      %p35 = scmp.eq.s32.totalorder %s18, 1
      %p36 = por %p34, %p35
      %p37 = scmp.ne.s32.totalorder %s26, %s27
      %p38 = scmp.eq.s32.totalorder %s18, 0
      %p39 = por %p37, %p38
      %p40 = scmp.ne.s32.totalorder %s26, %s27
      %p41 = scmp.eq.s32.totalorder %s19, 1
      %p42 = por %p40, %p41
      %p44 = scmp.ne.s32.totalorder %s27, %s43
      %p45 = scmp.eq.s32.totalorder %s19, 0
      %p46 = por %p44, %p45
      %s48 = sadd.s32 %s47, 1
      %p51 = scmp.eq.s32.totalorder %s13, 1
      %p52 = scmp.ne.s32.totalorder %s47, %s49
      %p53 = scmp.eq.s32.totalorder %s13, 0
      %p54 = por %p52, %p53
      %p55 = scmp.ne.s32.totalorder %s47, %s49
      %p56 = scmp.eq.s32.totalorder %s18, 1
      %p57 = por %p55, %p56
      %p58 = scmp.ne.s32.totalorder %s49, %s50
      %p59 = scmp.eq.s32.totalorder %s18, 0
      %p60 = por %p58, %p59
      %p61 = scmp.ne.s32.totalorder %s49, %s50
      %p62 = scmp.eq.s32.totalorder %s19, 1
      %p63 = por %p61, %p62
      %p65 = scmp.ne.s32.totalorder %s50, %s64
      %p66 = scmp.eq.s32.totalorder %s19, 0
      %p67 = por %p65, %p66
      %s69 = sadd.s32 %s68, 1
      %p72 = scmp.eq.s32.totalorder %s13, 1
      %p73 = scmp.ne.s32.totalorder %s68, %s70
      %p74 = scmp.eq.s32.totalorder %s13, 0
      %p75 = por %p73, %p74
      %p76 = scmp.ne.s32.totalorder %s68, %s70
      %p77 = scmp.eq.s32.totalorder %s18, 1
      %p78 = por %p76, %p77
      %p79 = scmp.ne.s32.totalorder %s70, %s71
      %p80 = scmp.eq.s32.totalorder %s18, 0
      %p81 = por %p79, %p80
      %p82 = scmp.ne.s32.totalorder %s70, %s71
      %p83 = scmp.eq.s32.totalorder %s19, 1
      %p84 = por %p82, %p83
      %p86 = scmp.ne.s32.totalorder %s71, %s85
      %p87 = scmp.eq.s32.totalorder %s19, 0
      %p88 = por %p86, %p87
      %s90 = sadd.s32 %s89, 1
      %p93 = scmp.eq.s32.totalorder %s13, 1
      %p94 = scmp.ne.s32.totalorder %s89, %s91
      %p95 = scmp.eq.s32.totalorder %s13, 0
      %p96 = por %p94, %p95
      %p97 = scmp.ne.s32.totalorder %s89, %s91
      %p98 = scmp.eq.s32.totalorder %s18, 1
      %p99 = por %p97, %p98
      %p100 = scmp.ne.s32.totalorder %s91, %s92
      %p101 = scmp.eq.s32.totalorder %s18, 0
      %p102 = por %p100, %p101
      %p103 = scmp.ne.s32.totalorder %s91, %s92
      %p104 = scmp.eq.s32.totalorder %s19, 1
      %p105 = por %p103, %p104
      %p107 = scmp.ne.s32.totalorder %s92, %s106
      %p108 = scmp.eq.s32.totalorder %s19, 0
      %p109 = por %p107, %p108
      %s111 = sadd.s32 %s110, 1
      %p114 = scmp.eq.s32.totalorder %s13, 1
      %p115 = scmp.ne.s32.totalorder %s110, %s112
      %p116 = scmp.eq.s32.totalorder %s13, 0
      %p117 = por %p115, %p116
      %p118 = scmp.ne.s32.totalorder %s110, %s112
      %p119 = scmp.eq.s32.totalorder %s18, 1
      %p120 = por %p118, %p119
      %p121 = scmp.ne.s32.totalorder %s112, %s113
      %p122 = scmp.eq.s32.totalorder %s18, 0
      %p123 = por %p121, %p122
      %p124 = scmp.ne.s32.totalorder %s112, %s113
      %p125 = scmp.eq.s32.totalorder %s19, 1
      %p126 = por %p124, %p125
      %p128 = scmp.ne.s32.totalorder %s113, %s127
      %p129 = scmp.eq.s32.totalorder %s19, 0
      %p130 = por %p128, %p129
      %s132 = sadd.s32 %s131, 1
      %p135 = scmp.eq.s32.totalorder %s13, 1
      %p136 = scmp.ne.s32.totalorder %s131, %s133
      %p137 = scmp.eq.s32.totalorder %s13, 0
      %p138 = por %p136, %p137
      %p139 = scmp.ne.s32.totalorder %s131, %s133
      %p140 = scmp.eq.s32.totalorder %s18, 1
      %p141 = por %p139, %p140
      %p142 = scmp.ne.s32.totalorder %s133, %s134
      %p143 = scmp.eq.s32.totalorder %s18, 0
      %p144 = por %p142, %p143
      %p145 = scmp.ne.s32.totalorder %s133, %s134
      %p146 = scmp.eq.s32.totalorder %s19, 1
      %p147 = por %p145, %p146
      %p149 = scmp.ne.s32.totalorder %s134, %s148
      %p150 = scmp.eq.s32.totalorder %s19, 0
      %p151 = por %p149, %p150
      %s153 = sadd.s32 %s152, 1
      %p156 = scmp.eq.s32.totalorder %s13, 1
      %p157 = scmp.ne.s32.totalorder %s152, %s154
      %p158 = scmp.eq.s32.totalorder %s13, 0
      %p159 = por %p157, %p158
      %p160 = scmp.ne.s32.totalorder %s152, %s154
      %p161 = scmp.eq.s32.totalorder %s18, 1
      %p162 = por %p160, %p161
      %p163 = scmp.ne.s32.totalorder %s154, %s155
      %p164 = scmp.eq.s32.totalorder %s18, 0
      %p165 = por %p163, %p164
      %p166 = scmp.ne.s32.totalorder %s154, %s155
      %p167 = scmp.eq.s32.totalorder %s19, 1
      %p168 = por %p166, %p167
      %p170 = scmp.ne.s32.totalorder %s155, %s169
      %p171 = scmp.eq.s32.totalorder %s19, 0
      %p172 = por %p170, %p171
      %s173 = ssub.s32 %s13, %s20
      %p174 = scmp.eq.s32.totalorder %s173, 0
      %s176 = sadd.s32 %s175, 1
      %s177 = scalar_select %p174, %s175, %s176
      %p180 = pneg %p174
      %p181 = scmp.eq.s32.totalorder %s13, 1
      %p182 = por %p180, %p181
      %p183 = scmp.ne.s32.totalorder %s175, %s178
      %p184 = scmp.eq.s32.totalorder %s13, 0
      %p185 = por %p183, %p184
      %p186 = scmp.ne.s32.totalorder %s175, %s178
      %p187 = scmp.eq.s32.totalorder %s18, 1
      %p188 = por %p186, %p187
      %p189 = scmp.ne.s32.totalorder %s178, %s179
      %p190 = scmp.eq.s32.totalorder %s18, 0
      %p191 = por %p189, %p190
      %p192 = scmp.ne.s32.totalorder %s178, %s179
      %p193 = scmp.eq.s32.totalorder %s19, 1
      %p194 = por %p192, %p193
      %p196 = scmp.ne.s32.totalorder %s179, %s195
      %p197 = scmp.eq.s32.totalorder %s19, 0
      %p198 = por %p196, %p197
      %p199 = scmp.le.s32.totalorder 1, %s13
      %p200 = scmp.lt.s32.totalorder %s13, 3
      %p201 = pnand %p199, %p200
      %p202 = pneg %p201
      // Predicated region
      $region9: #{gnn_combo_forward.3} parent=5 // pred_check
        _
      $region10: #{gnn_combo_forward.3} parent=5 // pred_check_branch
        %204 = sbr.rel (%p201) target = $region12
      $region11: #{gnn_combo_forward.3} parent=5 // pred_region
        %s205 = ssub.s32 %s13, 1
        // Predicated region
        $region13: #{gnn_combo_forward.3} parent=11 // pred_check
          %p206 = pneg %p60
        $region14: #{gnn_combo_forward.3} parent=11 // pred_check_branch
          %208 = sbr.rel (%p206) target = $region16
        $region15: #{gnn_combo_forward.3} parent=11 // pred_region
          _
        $region16: #{gnn_combo_forward.3} parent=11 // pred_fallthru
          _
        // Predicated region
        $region17: #{gnn_combo_forward.3} parent=11 // pred_check
          %p209 = pneg %p81
        $region18: #{gnn_combo_forward.3} parent=11 // pred_check_branch
          %211 = sbr.rel (%p209) target = $region20
        $region19: #{gnn_combo_forward.3} parent=11 // pred_region
          _
        $region20: #{gnn_combo_forward.3} parent=11 // pred_fallthru
          _
        // Predicated region
        $region21: #{gnn_combo_forward.3} parent=11 // pred_check
          %p212 = pneg %p102
        $region22: #{gnn_combo_forward.3} parent=11 // pred_check_branch
          %214 = sbr.rel (%p212) target = $region24
        $region23: #{gnn_combo_forward.3} parent=11 // pred_region
          _
        $region24: #{gnn_combo_forward.3} parent=11 // pred_fallthru
          _
        // Predicated region
        $region25: #{gnn_combo_forward.3} parent=11 // pred_check
          %p215 = pneg %p123
        $region26: #{gnn_combo_forward.3} parent=11 // pred_check_branch
          %217 = sbr.rel (%p215) target = $region28
        $region27: #{gnn_combo_forward.3} parent=11 // pred_region
          _
        $region28: #{gnn_combo_forward.3} parent=11 // pred_fallthru
          _
        // Predicated region
        $region29: #{gnn_combo_forward.3} parent=11 // pred_check
          %p218 = pneg %p144
        $region30: #{gnn_combo_forward.3} parent=11 // pred_check_branch
          %220 = sbr.rel (%p218) target = $region32
        $region31: #{gnn_combo_forward.3} parent=11 // pred_region
          _
        $region32: #{gnn_combo_forward.3} parent=11 // pred_fallthru
          _
        // Predicated region
        $region33: #{gnn_combo_forward.3} parent=11 // pred_check
          %p221 = pneg %p165
        $region34: #{gnn_combo_forward.3} parent=11 // pred_check_branch
          %223 = sbr.rel (%p221) target = $region36
        $region35: #{gnn_combo_forward.3} parent=11 // pred_region
          _
        $region36: #{gnn_combo_forward.3} parent=11 // pred_fallthru
          _
      $region12: #{gnn_combo_forward.3} parent=5 // pred_fallthru
        _
      %p224 = scmp.lt.s32.totalorder %s13, 2
      // Predicated region
      $region37: #{gnn_combo_forward.3} parent=5 // pred_check
        %p225 = pneg %p224
      $region38: #{gnn_combo_forward.3} parent=5 // pred_check_branch
        %227 = sbr.rel (%p225) target = $region40
      $region39: #{gnn_combo_forward.3} parent=5 // pred_region
        // Predicated region
        $region41: #{gnn_combo_forward.3} parent=39 // pred_check
          %p228 = pneg %p33
        $region42: #{gnn_combo_forward.3} parent=39 // pred_check_branch
          %230 = sbr.rel (%p228) target = $region44
        $region43: #{gnn_combo_forward.3} parent=39 // pred_region
          %s231 = sand.u32 %s23, 1
          %s232 = sand.u32 %s23, 1
          %s233 = smul.addr %s232, 640
          %s234 = scalar_lea.vmem [#allocation2], %s233
          %s235 = smul.u32 16, %s13
          %s236 = smul.addr %s235, 4
          %s237 = scalar_lea.vmem %s0, %s236
          // Predicated region
          $region45: #{gnn_combo_forward.3} parent=43 // pred_check
            _
          $region46: #{gnn_combo_forward.3} parent=43 // pred_check_branch
            %239 = sbr.rel (0) target = $region48
          $region47: #{gnn_combo_forward.3} parent=43 // pred_region
            // Predicated region
            $region49: #{gnn_combo_forward.3} parent=47 // pred_check
              _
            $region50: #{gnn_combo_forward.3} parent=47 // pred_check_branch
              %241 = sbr.rel target = $region52
            $region51: #{gnn_combo_forward.3} parent=47 // pred_region
              // Predicated region
              $region64: #{gnn_combo_forward.3} parent=51 // pred_check
                _
              $region65: #{gnn_combo_forward.3} parent=51 // pred_check_branch
                %574 = sbr.rel (0) target = $region67
              $region66: #{gnn_combo_forward.3} parent=51 // pred_region
                loop: start=0, step=1, limit=1
                $region68: #{gnn_combo_forward.3} parent=66 // loop_pre_header
                  _
                $region69: #{gnn_combo_forward.3} parent=66 // loop_header
                  %s576 = sphi 0, %s580
                  %p577 = scmp.ge.s32.totalorder %s576, 1
                  %s581 = sphi %s237, %s237
                  %s582 = sphi %s234, %s234
                $region70: #{gnn_combo_forward.3} parent=66 // loop_header_branch
                  %579 = sbr.rel (%p577) target = $region74
                $region71: #{gnn_combo_forward.3} parent=66 // loop_body
                  _
                $region72: #{gnn_combo_forward.3} parent=66 // loop_footer
                  %s580 = sadd.s32 1, %s576
                $region73: #{gnn_combo_forward.3} parent=66 // loop_footer_branch
                  %575 = sbr.rel target = $region69
                $region74: #{gnn_combo_forward.3} parent=66 // loop_exit
                  _
                loop: start=0, step=1, limit=1
                $region75: #{gnn_combo_forward.3} parent=66 // loop_pre_header
                  _
                $region76: #{gnn_combo_forward.3} parent=66 // loop_header
                  %s585 = sphi 0, %s589
                  %p586 = scmp.ge.s32.totalorder %s585, 1
                  %s590 = sphi %s237, %s237
                  %s591 = sphi %s234, %s234
                $region77: #{gnn_combo_forward.3} parent=66 // loop_header_branch
                  %588 = sbr.rel (%p586) target = $region81
                $region78: #{gnn_combo_forward.3} parent=66 // loop_body
                  %v592 = vld [vmem:[%s590] sm:$0xf]
                  %593 = vst [vmem:[%s591] sm:$0xf] %v592
                  %v594 = vld [vmem:[%s590 + $0x4] sm:$0xf]
                  %595 = vst [vmem:[%s591 + $0x4] sm:$0xf] %v594
                  %v596 = vld [vmem:[%s590 + $0x8] sm:$0xf]
                  %597 = vst [vmem:[%s591 + $0x8] sm:$0xf] %v596
                  %v598 = vld [vmem:[%s590 + $0xc] sm:$0xf]
                  %599 = vst [vmem:[%s591 + $0xc] sm:$0xf] %v598
                  %v600 = vld [vmem:[%s590 + $0x10] sm:$0xf]
                  %601 = vst [vmem:[%s591 + $0x10] sm:$0xf] %v600
                  %v602 = vld [vmem:[%s590 + $0x14] sm:$0xf]
                  %603 = vst [vmem:[%s591 + $0x14] sm:$0xf] %v602
                  %v604 = vld [vmem:[%s590 + $0x18] sm:$0xf]
                  %605 = vst [vmem:[%s591 + $0x18] sm:$0xf] %v604
                  %v606 = vld [vmem:[%s590 + $0x1c] sm:$0xf]
                  %607 = vst [vmem:[%s591 + $0x1c] sm:$0xf] %v606
                  %v608 = vld [vmem:[%s590 + $0x20] sm:$0xf]
                  %609 = vst [vmem:[%s591 + $0x20] sm:$0xf] %v608
                  %v610 = vld [vmem:[%s590 + $0x24] sm:$0xf]
                  %611 = vst [vmem:[%s591 + $0x24] sm:$0xf] %v610
                  %v612 = vld [vmem:[%s590 + $0x28] sm:$0xf]
                  %613 = vst [vmem:[%s591 + $0x28] sm:$0xf] %v612
                  %v614 = vld [vmem:[%s590 + $0x2c] sm:$0xf]
                  %615 = vst [vmem:[%s591 + $0x2c] sm:$0xf] %v614
                  %v616 = vld [vmem:[%s590 + $0x30] sm:$0xf]
                  %617 = vst [vmem:[%s591 + $0x30] sm:$0xf] %v616
                  %v618 = vld [vmem:[%s590 + $0x34] sm:$0xf]
                  %619 = vst [vmem:[%s591 + $0x34] sm:$0xf] %v618
                  %v620 = vld [vmem:[%s590 + $0x38] sm:$0xf]
                  %621 = vst [vmem:[%s591 + $0x38] sm:$0xf] %v620
                  %v622 = vld [vmem:[%s590 + $0x3c] sm:$0xf]
                  %623 = vst [vmem:[%s591 + $0x3c] sm:$0xf] %v622
                  %v624 = vld [vmem:[%s590 + $0x80] sm:$0xf]
                  %625 = vst [vmem:[%s591 + $0x40] sm:$0xf] %v624
                  %v626 = vld [vmem:[%s590 + $0x84] sm:$0xf]
                  %627 = vst [vmem:[%s591 + $0x44] sm:$0xf] %v626
                  %v628 = vld [vmem:[%s590 + $0x88] sm:$0xf]
                  %629 = vst [vmem:[%s591 + $0x48] sm:$0xf] %v628
                  %v630 = vld [vmem:[%s590 + $0x8c] sm:$0xf]
                  %631 = vst [vmem:[%s591 + $0x4c] sm:$0xf] %v630
                  %v632 = vld [vmem:[%s590 + $0x90] sm:$0xf]
                  %633 = vst [vmem:[%s591 + $0x50] sm:$0xf] %v632
                  %v634 = vld [vmem:[%s590 + $0x94] sm:$0xf]
                  %635 = vst [vmem:[%s591 + $0x54] sm:$0xf] %v634
                  %v636 = vld [vmem:[%s590 + $0x98] sm:$0xf]
                  %637 = vst [vmem:[%s591 + $0x58] sm:$0xf] %v636
                  %v638 = vld [vmem:[%s590 + $0x9c] sm:$0xf]
                  %639 = vst [vmem:[%s591 + $0x5c] sm:$0xf] %v638
                  %v640 = vld [vmem:[%s590 + $0xa0] sm:$0xf]
                  %641 = vst [vmem:[%s591 + $0x60] sm:$0xf] %v640
                  %v642 = vld [vmem:[%s590 + $0xa4] sm:$0xf]
                  %643 = vst [vmem:[%s591 + $0x64] sm:$0xf] %v642
                  %v644 = vld [vmem:[%s590 + $0xa8] sm:$0xf]
                  %645 = vst [vmem:[%s591 + $0x68] sm:$0xf] %v644
                  %v646 = vld [vmem:[%s590 + $0xac] sm:$0xf]
                  %647 = vst [vmem:[%s591 + $0x6c] sm:$0xf] %v646
                  %v648 = vld [vmem:[%s590 + $0xb0] sm:$0xf]
                  %649 = vst [vmem:[%s591 + $0x70] sm:$0xf] %v648
                  %v650 = vld [vmem:[%s590 + $0xb4] sm:$0xf]
                  %651 = vst [vmem:[%s591 + $0x74] sm:$0xf] %v650
                  %v652 = vld [vmem:[%s590 + $0xb8] sm:$0xf]
                  %653 = vst [vmem:[%s591 + $0x78] sm:$0xf] %v652
                  %v654 = vld [vmem:[%s590 + $0xbc] sm:$0xf]
                  %655 = vst [vmem:[%s591 + $0x7c] sm:$0xf] %v654
                  %v656 = vld [vmem:[%s590 + $0x100] sm:$0xf]
                  %657 = vst [vmem:[%s591 + $0x80] sm:$0xf] %v656
                  %v658 = vld [vmem:[%s590 + $0x104] sm:$0xf]
                  %659 = vst [vmem:[%s591 + $0x84] sm:$0xf] %v658
                  %v660 = vld [vmem:[%s590 + $0x108] sm:$0xf]
                  %661 = vst [vmem:[%s591 + $0x88] sm:$0xf] %v660
                  %v662 = vld [vmem:[%s590 + $0x10c] sm:$0xf]
                  %663 = vst [vmem:[%s591 + $0x8c] sm:$0xf] %v662
                  %v664 = vld [vmem:[%s590 + $0x110] sm:$0xf]
                  %665 = vst [vmem:[%s591 + $0x90] sm:$0xf] %v664
                  %v666 = vld [vmem:[%s590 + $0x114] sm:$0xf]
                  %667 = vst [vmem:[%s591 + $0x94] sm:$0xf] %v666
                  %v668 = vld [vmem:[%s590 + $0x118] sm:$0xf]
                  %669 = vst [vmem:[%s591 + $0x98] sm:$0xf] %v668
                  %v670 = vld [vmem:[%s590 + $0x11c] sm:$0xf]
                  %671 = vst [vmem:[%s591 + $0x9c] sm:$0xf] %v670
                  %v672 = vld [vmem:[%s590 + $0x120] sm:$0xf]
                  %673 = vst [vmem:[%s591 + $0xa0] sm:$0xf] %v672
                  %v674 = vld [vmem:[%s590 + $0x124] sm:$0xf]
                  %675 = vst [vmem:[%s591 + $0xa4] sm:$0xf] %v674
                  %v676 = vld [vmem:[%s590 + $0x128] sm:$0xf]
                  %677 = vst [vmem:[%s591 + $0xa8] sm:$0xf] %v676
                  %v678 = vld [vmem:[%s590 + $0x12c] sm:$0xf]
                  %679 = vst [vmem:[%s591 + $0xac] sm:$0xf] %v678
                  %v680 = vld [vmem:[%s590 + $0x130] sm:$0xf]
                  %681 = vst [vmem:[%s591 + $0xb0] sm:$0xf] %v680
                  %v682 = vld [vmem:[%s590 + $0x134] sm:$0xf]
                  %683 = vst [vmem:[%s591 + $0xb4] sm:$0xf] %v682
                  %v684 = vld [vmem:[%s590 + $0x138] sm:$0xf]
                  %685 = vst [vmem:[%s591 + $0xb8] sm:$0xf] %v684
                  %v686 = vld [vmem:[%s590 + $0x13c] sm:$0xf]
                  %687 = vst [vmem:[%s591 + $0xbc] sm:$0xf] %v686
                  %v688 = vld [vmem:[%s590 + $0x180] sm:$0xf]
                  %689 = vst [vmem:[%s591 + $0xc0] sm:$0xf] %v688
                  %v690 = vld [vmem:[%s590 + $0x184] sm:$0xf]
                  %691 = vst [vmem:[%s591 + $0xc4] sm:$0xf] %v690
                  %v692 = vld [vmem:[%s590 + $0x188] sm:$0xf]
                  %693 = vst [vmem:[%s591 + $0xc8] sm:$0xf] %v692
                  %v694 = vld [vmem:[%s590 + $0x18c] sm:$0xf]
                  %695 = vst [vmem:[%s591 + $0xcc] sm:$0xf] %v694
                  %v696 = vld [vmem:[%s590 + $0x190] sm:$0xf]
                  %697 = vst [vmem:[%s591 + $0xd0] sm:$0xf] %v696
                  %v698 = vld [vmem:[%s590 + $0x194] sm:$0xf]
                  %699 = vst [vmem:[%s591 + $0xd4] sm:$0xf] %v698
                  %v700 = vld [vmem:[%s590 + $0x198] sm:$0xf]
                  %701 = vst [vmem:[%s591 + $0xd8] sm:$0xf] %v700
                  %v702 = vld [vmem:[%s590 + $0x19c] sm:$0xf]
                  %703 = vst [vmem:[%s591 + $0xdc] sm:$0xf] %v702
                  %v704 = vld [vmem:[%s590 + $0x1a0] sm:$0xf]
                  %705 = vst [vmem:[%s591 + $0xe0] sm:$0xf] %v704
                  %v706 = vld [vmem:[%s590 + $0x1a4] sm:$0xf]
                  %707 = vst [vmem:[%s591 + $0xe4] sm:$0xf] %v706
                  %v708 = vld [vmem:[%s590 + $0x1a8] sm:$0xf]
                  %709 = vst [vmem:[%s591 + $0xe8] sm:$0xf] %v708
                  %v710 = vld [vmem:[%s590 + $0x1ac] sm:$0xf]
                  %711 = vst [vmem:[%s591 + $0xec] sm:$0xf] %v710
                  %v712 = vld [vmem:[%s590 + $0x1b0] sm:$0xf]
                  %713 = vst [vmem:[%s591 + $0xf0] sm:$0xf] %v712
                  %v714 = vld [vmem:[%s590 + $0x1b4] sm:$0xf]
                  %715 = vst [vmem:[%s591 + $0xf4] sm:$0xf] %v714
                  %v716 = vld [vmem:[%s590 + $0x1b8] sm:$0xf]
                  %717 = vst [vmem:[%s591 + $0xf8] sm:$0xf] %v716
                  %v718 = vld [vmem:[%s590 + $0x1bc] sm:$0xf]
                  %719 = vst [vmem:[%s591 + $0xfc] sm:$0xf] %v718
                  %v720 = vld [vmem:[%s590 + $0x200] sm:$0xf]
                  %721 = vst [vmem:[%s591 + $0x100] sm:$0xf] %v720
                  %v722 = vld [vmem:[%s590 + $0x204] sm:$0xf]
                  %723 = vst [vmem:[%s591 + $0x104] sm:$0xf] %v722
                  %v724 = vld [vmem:[%s590 + $0x208] sm:$0xf]
                  %725 = vst [vmem:[%s591 + $0x108] sm:$0xf] %v724
                  %v726 = vld [vmem:[%s590 + $0x20c] sm:$0xf]
                  %727 = vst [vmem:[%s591 + $0x10c] sm:$0xf] %v726
                  %v728 = vld [vmem:[%s590 + $0x210] sm:$0xf]
                  %729 = vst [vmem:[%s591 + $0x110] sm:$0xf] %v728
                  %v730 = vld [vmem:[%s590 + $0x214] sm:$0xf]
                  %731 = vst [vmem:[%s591 + $0x114] sm:$0xf] %v730
                  %v732 = vld [vmem:[%s590 + $0x218] sm:$0xf]
                  %733 = vst [vmem:[%s591 + $0x118] sm:$0xf] %v732
                  %v734 = vld [vmem:[%s590 + $0x21c] sm:$0xf]
                  %735 = vst [vmem:[%s591 + $0x11c] sm:$0xf] %v734
                  %v736 = vld [vmem:[%s590 + $0x220] sm:$0xf]
                  %737 = vst [vmem:[%s591 + $0x120] sm:$0xf] %v736
                  %v738 = vld [vmem:[%s590 + $0x224] sm:$0xf]
                  %739 = vst [vmem:[%s591 + $0x124] sm:$0xf] %v738
                  %v740 = vld [vmem:[%s590 + $0x228] sm:$0xf]
                  %741 = vst [vmem:[%s591 + $0x128] sm:$0xf] %v740
                  %v742 = vld [vmem:[%s590 + $0x22c] sm:$0xf]
                  %743 = vst [vmem:[%s591 + $0x12c] sm:$0xf] %v742
                  %v744 = vld [vmem:[%s590 + $0x230] sm:$0xf]
                  %745 = vst [vmem:[%s591 + $0x130] sm:$0xf] %v744
                  %v746 = vld [vmem:[%s590 + $0x234] sm:$0xf]
                  %747 = vst [vmem:[%s591 + $0x134] sm:$0xf] %v746
                  %v748 = vld [vmem:[%s590 + $0x238] sm:$0xf]
                  %749 = vst [vmem:[%s591 + $0x138] sm:$0xf] %v748
                  %v750 = vld [vmem:[%s590 + $0x23c] sm:$0xf]
                  %751 = vst [vmem:[%s591 + $0x13c] sm:$0xf] %v750
                  %v752 = vld [vmem:[%s590 + $0x280] sm:$0xf]
                  %753 = vst [vmem:[%s591 + $0x140] sm:$0xf] %v752
                  %v754 = vld [vmem:[%s590 + $0x284] sm:$0xf]
                  %755 = vst [vmem:[%s591 + $0x144] sm:$0xf] %v754
                  %v756 = vld [vmem:[%s590 + $0x288] sm:$0xf]
                  %757 = vst [vmem:[%s591 + $0x148] sm:$0xf] %v756
                  %v758 = vld [vmem:[%s590 + $0x28c] sm:$0xf]
                  %759 = vst [vmem:[%s591 + $0x14c] sm:$0xf] %v758
                  %v760 = vld [vmem:[%s590 + $0x290] sm:$0xf]
                  %761 = vst [vmem:[%s591 + $0x150] sm:$0xf] %v760
                  %v762 = vld [vmem:[%s590 + $0x294] sm:$0xf]
                  %763 = vst [vmem:[%s591 + $0x154] sm:$0xf] %v762
                  %v764 = vld [vmem:[%s590 + $0x298] sm:$0xf]
                  %765 = vst [vmem:[%s591 + $0x158] sm:$0xf] %v764
                  %v766 = vld [vmem:[%s590 + $0x29c] sm:$0xf]
                  %767 = vst [vmem:[%s591 + $0x15c] sm:$0xf] %v766
                  %v768 = vld [vmem:[%s590 + $0x2a0] sm:$0xf]
                  %769 = vst [vmem:[%s591 + $0x160] sm:$0xf] %v768
                  %v770 = vld [vmem:[%s590 + $0x2a4] sm:$0xf]
                  %771 = vst [vmem:[%s591 + $0x164] sm:$0xf] %v770
                  %v772 = vld [vmem:[%s590 + $0x2a8] sm:$0xf]
                  %773 = vst [vmem:[%s591 + $0x168] sm:$0xf] %v772
                  %v774 = vld [vmem:[%s590 + $0x2ac] sm:$0xf]
                  %775 = vst [vmem:[%s591 + $0x16c] sm:$0xf] %v774
                  %v776 = vld [vmem:[%s590 + $0x2b0] sm:$0xf]
                  %777 = vst [vmem:[%s591 + $0x170] sm:$0xf] %v776
                  %v778 = vld [vmem:[%s590 + $0x2b4] sm:$0xf]
                  %779 = vst [vmem:[%s591 + $0x174] sm:$0xf] %v778
                  %v780 = vld [vmem:[%s590 + $0x2b8] sm:$0xf]
                  %781 = vst [vmem:[%s591 + $0x178] sm:$0xf] %v780
                  %v782 = vld [vmem:[%s590 + $0x2bc] sm:$0xf]
                  %783 = vst [vmem:[%s591 + $0x17c] sm:$0xf] %v782
                  %v784 = vld [vmem:[%s590 + $0x300] sm:$0xf]
                  %785 = vst [vmem:[%s591 + $0x180] sm:$0xf] %v784
                  %v786 = vld [vmem:[%s590 + $0x304] sm:$0xf]
                  %787 = vst [vmem:[%s591 + $0x184] sm:$0xf] %v786
                  %v788 = vld [vmem:[%s590 + $0x308] sm:$0xf]
                  %789 = vst [vmem:[%s591 + $0x188] sm:$0xf] %v788
                  %v790 = vld [vmem:[%s590 + $0x30c] sm:$0xf]
                  %791 = vst [vmem:[%s591 + $0x18c] sm:$0xf] %v790
                  %v792 = vld [vmem:[%s590 + $0x310] sm:$0xf]
                  %793 = vst [vmem:[%s591 + $0x190] sm:$0xf] %v792
                  %v794 = vld [vmem:[%s590 + $0x314] sm:$0xf]
                  %795 = vst [vmem:[%s591 + $0x194] sm:$0xf] %v794
                  %v796 = vld [vmem:[%s590 + $0x318] sm:$0xf]
                  %797 = vst [vmem:[%s591 + $0x198] sm:$0xf] %v796
                  %v798 = vld [vmem:[%s590 + $0x31c] sm:$0xf]
                  %799 = vst [vmem:[%s591 + $0x19c] sm:$0xf] %v798
                  %v800 = vld [vmem:[%s590 + $0x320] sm:$0xf]
                  %801 = vst [vmem:[%s591 + $0x1a0] sm:$0xf] %v800
                  %v802 = vld [vmem:[%s590 + $0x324] sm:$0xf]
                  %803 = vst [vmem:[%s591 + $0x1a4] sm:$0xf] %v802
                  %v804 = vld [vmem:[%s590 + $0x328] sm:$0xf]
                  %805 = vst [vmem:[%s591 + $0x1a8] sm:$0xf] %v804
                  %v806 = vld [vmem:[%s590 + $0x32c] sm:$0xf]
                  %807 = vst [vmem:[%s591 + $0x1ac] sm:$0xf] %v806
                  %v808 = vld [vmem:[%s590 + $0x330] sm:$0xf]
                  %809 = vst [vmem:[%s591 + $0x1b0] sm:$0xf] %v808
                  %v810 = vld [vmem:[%s590 + $0x334] sm:$0xf]
                  %811 = vst [vmem:[%s591 + $0x1b4] sm:$0xf] %v810
                  %v812 = vld [vmem:[%s590 + $0x338] sm:$0xf]
                  %813 = vst [vmem:[%s591 + $0x1b8] sm:$0xf] %v812
                  %v814 = vld [vmem:[%s590 + $0x33c] sm:$0xf]
                  %815 = vst [vmem:[%s591 + $0x1bc] sm:$0xf] %v814
                  %v816 = vld [vmem:[%s590 + $0x380] sm:$0xf]
                  %817 = vst [vmem:[%s591 + $0x1c0] sm:$0xf] %v816
                  %v818 = vld [vmem:[%s590 + $0x384] sm:$0xf]
                  %819 = vst [vmem:[%s591 + $0x1c4] sm:$0xf] %v818
                  %v820 = vld [vmem:[%s590 + $0x388] sm:$0xf]
                  %821 = vst [vmem:[%s591 + $0x1c8] sm:$0xf] %v820
                  %v822 = vld [vmem:[%s590 + $0x38c] sm:$0xf]
                  %823 = vst [vmem:[%s591 + $0x1cc] sm:$0xf] %v822
                  %v824 = vld [vmem:[%s590 + $0x390] sm:$0xf]
                  %825 = vst [vmem:[%s591 + $0x1d0] sm:$0xf] %v824
                  %v826 = vld [vmem:[%s590 + $0x394] sm:$0xf]
                  %827 = vst [vmem:[%s591 + $0x1d4] sm:$0xf] %v826
                  %v828 = vld [vmem:[%s590 + $0x398] sm:$0xf]
                  %829 = vst [vmem:[%s591 + $0x1d8] sm:$0xf] %v828
                  %v830 = vld [vmem:[%s590 + $0x39c] sm:$0xf]
                  %831 = vst [vmem:[%s591 + $0x1dc] sm:$0xf] %v830
                  %v832 = vld [vmem:[%s590 + $0x3a0] sm:$0xf]
                  %833 = vst [vmem:[%s591 + $0x1e0] sm:$0xf] %v832
                  %v834 = vld [vmem:[%s590 + $0x3a4] sm:$0xf]
                  %835 = vst [vmem:[%s591 + $0x1e4] sm:$0xf] %v834
                  %v836 = vld [vmem:[%s590 + $0x3a8] sm:$0xf]
                  %837 = vst [vmem:[%s591 + $0x1e8] sm:$0xf] %v836
                  %v838 = vld [vmem:[%s590 + $0x3ac] sm:$0xf]
                  %839 = vst [vmem:[%s591 + $0x1ec] sm:$0xf] %v838
                  %v840 = vld [vmem:[%s590 + $0x3b0] sm:$0xf]
                  %841 = vst [vmem:[%s591 + $0x1f0] sm:$0xf] %v840
                  %v842 = vld [vmem:[%s590 + $0x3b4] sm:$0xf]
                  %843 = vst [vmem:[%s591 + $0x1f4] sm:$0xf] %v842
                  %v844 = vld [vmem:[%s590 + $0x3b8] sm:$0xf]
                  %845 = vst [vmem:[%s591 + $0x1f8] sm:$0xf] %v844
                  %v846 = vld [vmem:[%s590 + $0x3bc] sm:$0xf]
                  %847 = vst [vmem:[%s591 + $0x1fc] sm:$0xf] %v846
                  %v848 = vld [vmem:[%s590 + $0x400] sm:$0xf]
                  %849 = vst [vmem:[%s591 + $0x200] sm:$0xf] %v848
                  %v850 = vld [vmem:[%s590 + $0x404] sm:$0xf]
                  %851 = vst [vmem:[%s591 + $0x204] sm:$0xf] %v850
                  %v852 = vld [vmem:[%s590 + $0x408] sm:$0xf]
                  %853 = vst [vmem:[%s591 + $0x208] sm:$0xf] %v852
                  %v854 = vld [vmem:[%s590 + $0x40c] sm:$0xf]
                  %855 = vst [vmem:[%s591 + $0x20c] sm:$0xf] %v854
                  %v856 = vld [vmem:[%s590 + $0x410] sm:$0xf]
                  %857 = vst [vmem:[%s591 + $0x210] sm:$0xf] %v856
                  %v858 = vld [vmem:[%s590 + $0x414] sm:$0xf]
                  %859 = vst [vmem:[%s591 + $0x214] sm:$0xf] %v858
                  %v860 = vld [vmem:[%s590 + $0x418] sm:$0xf]
                  %861 = vst [vmem:[%s591 + $0x218] sm:$0xf] %v860
                  %v862 = vld [vmem:[%s590 + $0x41c] sm:$0xf]
                  %863 = vst [vmem:[%s591 + $0x21c] sm:$0xf] %v862
                  %v864 = vld [vmem:[%s590 + $0x420] sm:$0xf]
                  %865 = vst [vmem:[%s591 + $0x220] sm:$0xf] %v864
                  %v866 = vld [vmem:[%s590 + $0x424] sm:$0xf]
                  %867 = vst [vmem:[%s591 + $0x224] sm:$0xf] %v866
                  %v868 = vld [vmem:[%s590 + $0x428] sm:$0xf]
                  %869 = vst [vmem:[%s591 + $0x228] sm:$0xf] %v868
                  %v870 = vld [vmem:[%s590 + $0x42c] sm:$0xf]
                  %871 = vst [vmem:[%s591 + $0x22c] sm:$0xf] %v870
                  %v872 = vld [vmem:[%s590 + $0x430] sm:$0xf]
                  %873 = vst [vmem:[%s591 + $0x230] sm:$0xf] %v872
                  %v874 = vld [vmem:[%s590 + $0x434] sm:$0xf]
                  %875 = vst [vmem:[%s591 + $0x234] sm:$0xf] %v874
                  %v876 = vld [vmem:[%s590 + $0x438] sm:$0xf]
                  %877 = vst [vmem:[%s591 + $0x238] sm:$0xf] %v876
                  %v878 = vld [vmem:[%s590 + $0x43c] sm:$0xf]
                  %879 = vst [vmem:[%s591 + $0x23c] sm:$0xf] %v878
                  %v880 = vld [vmem:[%s590 + $0x480] sm:$0xf]
                  %881 = vst [vmem:[%s591 + $0x240] sm:$0xf] %v880
                  %v882 = vld [vmem:[%s590 + $0x484] sm:$0xf]
                  %883 = vst [vmem:[%s591 + $0x244] sm:$0xf] %v882
                  %v884 = vld [vmem:[%s590 + $0x488] sm:$0xf]
                  %885 = vst [vmem:[%s591 + $0x248] sm:$0xf] %v884
                  %v886 = vld [vmem:[%s590 + $0x48c] sm:$0xf]
                  %887 = vst [vmem:[%s591 + $0x24c] sm:$0xf] %v886
                  %v888 = vld [vmem:[%s590 + $0x490] sm:$0xf]
                  %889 = vst [vmem:[%s591 + $0x250] sm:$0xf] %v888
                  %v890 = vld [vmem:[%s590 + $0x494] sm:$0xf]
                  %891 = vst [vmem:[%s591 + $0x254] sm:$0xf] %v890
                  %v892 = vld [vmem:[%s590 + $0x498] sm:$0xf]
                  %893 = vst [vmem:[%s591 + $0x258] sm:$0xf] %v892
                  %v894 = vld [vmem:[%s590 + $0x49c] sm:$0xf]
                  %895 = vst [vmem:[%s591 + $0x25c] sm:$0xf] %v894
                  %v896 = vld [vmem:[%s590 + $0x4a0] sm:$0xf]
                  %897 = vst [vmem:[%s591 + $0x260] sm:$0xf] %v896
                  %v898 = vld [vmem:[%s590 + $0x4a4] sm:$0xf]
                  %899 = vst [vmem:[%s591 + $0x264] sm:$0xf] %v898
                  %v900 = vld [vmem:[%s590 + $0x4a8] sm:$0xf]
                  %901 = vst [vmem:[%s591 + $0x268] sm:$0xf] %v900
                  %v902 = vld [vmem:[%s590 + $0x4ac] sm:$0xf]
                  %903 = vst [vmem:[%s591 + $0x26c] sm:$0xf] %v902
                  %v904 = vld [vmem:[%s590 + $0x4b0] sm:$0xf]
                  %905 = vst [vmem:[%s591 + $0x270] sm:$0xf] %v904
                  %v906 = vld [vmem:[%s590 + $0x4b4] sm:$0xf]
                  %907 = vst [vmem:[%s591 + $0x274] sm:$0xf] %v906
                  %v908 = vld [vmem:[%s590 + $0x4b8] sm:$0xf]
                  %909 = vst [vmem:[%s591 + $0x278] sm:$0xf] %v908
                  %v910 = vld [vmem:[%s590 + $0x4bc] sm:$0xf]
                  %911 = vst [vmem:[%s591 + $0x27c] sm:$0xf] %v910
                $region79: #{gnn_combo_forward.3} parent=66 // loop_footer
                  %s589 = sadd.s32 1, %s585
                $region80: #{gnn_combo_forward.3} parent=66 // loop_footer_branch
                  %584 = sbr.rel target = $region76
                $region81: #{gnn_combo_forward.3} parent=66 // loop_exit
                  _
              $region67: #{gnn_combo_forward.3} parent=51 // pred_fallthru
                _
            $region52: #{gnn_combo_forward.3} parent=47 // pred_fallthru
              _
            // Predicated region
            $region53: #{gnn_combo_forward.3} parent=47 // pred_check
              _
            $region54: #{gnn_combo_forward.3} parent=47 // pred_check_branch
              %243 = sbr.rel (0) target = $region56
            $region55: #{gnn_combo_forward.3} parent=47 // pred_region
              loop: start=0, step=1, limit=1
              $region57: #{gnn_combo_forward.3} parent=55 // loop_pre_header
                _
              $region58: #{gnn_combo_forward.3} parent=55 // loop_header
                %s246 = sphi 0, %s250
                %p247 = scmp.ge.s32.totalorder %s246, 1
                %s251 = sphi %s237, %s237
                %s252 = sphi %s234, %s234
              $region59: #{gnn_combo_forward.3} parent=55 // loop_header_branch
                %249 = sbr.rel (%p247) target = $region63
              $region60: #{gnn_combo_forward.3} parent=55 // loop_body
                %v253 = vld [vmem:[%s251] sm:$0xf]
                %254 = vst [vmem:[%s252] sm:$0xf] %v253
                %v255 = vld [vmem:[%s251 + $0x4] sm:$0xf]
                %256 = vst [vmem:[%s252 + $0x4] sm:$0xf] %v255
                %v257 = vld [vmem:[%s251 + $0x8] sm:$0xf]
                %258 = vst [vmem:[%s252 + $0x8] sm:$0xf] %v257
                %v259 = vld [vmem:[%s251 + $0xc] sm:$0xf]
                %260 = vst [vmem:[%s252 + $0xc] sm:$0xf] %v259
                %v261 = vld [vmem:[%s251 + $0x10] sm:$0xf]
                %262 = vst [vmem:[%s252 + $0x10] sm:$0xf] %v261
                %v263 = vld [vmem:[%s251 + $0x14] sm:$0xf]
                %264 = vst [vmem:[%s252 + $0x14] sm:$0xf] %v263
                %v265 = vld [vmem:[%s251 + $0x18] sm:$0xf]
                %266 = vst [vmem:[%s252 + $0x18] sm:$0xf] %v265
                %v267 = vld [vmem:[%s251 + $0x1c] sm:$0xf]
                %268 = vst [vmem:[%s252 + $0x1c] sm:$0xf] %v267
                %v269 = vld [vmem:[%s251 + $0x20] sm:$0xf]
                %270 = vst [vmem:[%s252 + $0x20] sm:$0xf] %v269
                %v271 = vld [vmem:[%s251 + $0x24] sm:$0xf]
                %272 = vst [vmem:[%s252 + $0x24] sm:$0xf] %v271
                %v273 = vld [vmem:[%s251 + $0x28] sm:$0xf]
                %274 = vst [vmem:[%s252 + $0x28] sm:$0xf] %v273
                %v275 = vld [vmem:[%s251 + $0x2c] sm:$0xf]
                %276 = vst [vmem:[%s252 + $0x2c] sm:$0xf] %v275
                %v277 = vld [vmem:[%s251 + $0x30] sm:$0xf]
                %278 = vst [vmem:[%s252 + $0x30] sm:$0xf] %v277
                %v279 = vld [vmem:[%s251 + $0x34] sm:$0xf]
                %280 = vst [vmem:[%s252 + $0x34] sm:$0xf] %v279
                %v281 = vld [vmem:[%s251 + $0x38] sm:$0xf]
                %282 = vst [vmem:[%s252 + $0x38] sm:$0xf] %v281
                %v283 = vld [vmem:[%s251 + $0x3c] sm:$0xf]
                %284 = vst [vmem:[%s252 + $0x3c] sm:$0xf] %v283
                %v285 = vld [vmem:[%s251 + $0x80] sm:$0xf]
                %286 = vst [vmem:[%s252 + $0x40] sm:$0xf] %v285
                %v287 = vld [vmem:[%s251 + $0x84] sm:$0xf]
                %288 = vst [vmem:[%s252 + $0x44] sm:$0xf] %v287
                %v289 = vld [vmem:[%s251 + $0x88] sm:$0xf]
                %290 = vst [vmem:[%s252 + $0x48] sm:$0xf] %v289
                %v291 = vld [vmem:[%s251 + $0x8c] sm:$0xf]
                %292 = vst [vmem:[%s252 + $0x4c] sm:$0xf] %v291
                %v293 = vld [vmem:[%s251 + $0x90] sm:$0xf]
                %294 = vst [vmem:[%s252 + $0x50] sm:$0xf] %v293
                %v295 = vld [vmem:[%s251 + $0x94] sm:$0xf]
                %296 = vst [vmem:[%s252 + $0x54] sm:$0xf] %v295
                %v297 = vld [vmem:[%s251 + $0x98] sm:$0xf]
                %298 = vst [vmem:[%s252 + $0x58] sm:$0xf] %v297
                %v299 = vld [vmem:[%s251 + $0x9c] sm:$0xf]
                %300 = vst [vmem:[%s252 + $0x5c] sm:$0xf] %v299
                %v301 = vld [vmem:[%s251 + $0xa0] sm:$0xf]
                %302 = vst [vmem:[%s252 + $0x60] sm:$0xf] %v301
                %v303 = vld [vmem:[%s251 + $0xa4] sm:$0xf]
                %304 = vst [vmem:[%s252 + $0x64] sm:$0xf] %v303
                %v305 = vld [vmem:[%s251 + $0xa8] sm:$0xf]
                %306 = vst [vmem:[%s252 + $0x68] sm:$0xf] %v305
                %v307 = vld [vmem:[%s251 + $0xac] sm:$0xf]
                %308 = vst [vmem:[%s252 + $0x6c] sm:$0xf] %v307
                %v309 = vld [vmem:[%s251 + $0xb0] sm:$0xf]
                %310 = vst [vmem:[%s252 + $0x70] sm:$0xf] %v309
                %v311 = vld [vmem:[%s251 + $0xb4] sm:$0xf]
                %312 = vst [vmem:[%s252 + $0x74] sm:$0xf] %v311
                %v313 = vld [vmem:[%s251 + $0xb8] sm:$0xf]
                %314 = vst [vmem:[%s252 + $0x78] sm:$0xf] %v313
                %v315 = vld [vmem:[%s251 + $0xbc] sm:$0xf]
                %316 = vst [vmem:[%s252 + $0x7c] sm:$0xf] %v315
                %v317 = vld [vmem:[%s251 + $0x100] sm:$0xf]
                %318 = vst [vmem:[%s252 + $0x80] sm:$0xf] %v317
                %v319 = vld [vmem:[%s251 + $0x104] sm:$0xf]
                %320 = vst [vmem:[%s252 + $0x84] sm:$0xf] %v319
                %v321 = vld [vmem:[%s251 + $0x108] sm:$0xf]
                %322 = vst [vmem:[%s252 + $0x88] sm:$0xf] %v321
                %v323 = vld [vmem:[%s251 + $0x10c] sm:$0xf]
                %324 = vst [vmem:[%s252 + $0x8c] sm:$0xf] %v323
                %v325 = vld [vmem:[%s251 + $0x110] sm:$0xf]
                %326 = vst [vmem:[%s252 + $0x90] sm:$0xf] %v325
                %v327 = vld [vmem:[%s251 + $0x114] sm:$0xf]
                %328 = vst [vmem:[%s252 + $0x94] sm:$0xf] %v327
                %v329 = vld [vmem:[%s251 + $0x118] sm:$0xf]
                %330 = vst [vmem:[%s252 + $0x98] sm:$0xf] %v329
                %v331 = vld [vmem:[%s251 + $0x11c] sm:$0xf]
                %332 = vst [vmem:[%s252 + $0x9c] sm:$0xf] %v331
                %v333 = vld [vmem:[%s251 + $0x120] sm:$0xf]
                %334 = vst [vmem:[%s252 + $0xa0] sm:$0xf] %v333
                %v335 = vld [vmem:[%s251 + $0x124] sm:$0xf]
                %336 = vst [vmem:[%s252 + $0xa4] sm:$0xf] %v335
                %v337 = vld [vmem:[%s251 + $0x128] sm:$0xf]
                %338 = vst [vmem:[%s252 + $0xa8] sm:$0xf] %v337
                %v339 = vld [vmem:[%s251 + $0x12c] sm:$0xf]
                %340 = vst [vmem:[%s252 + $0xac] sm:$0xf] %v339
                %v341 = vld [vmem:[%s251 + $0x130] sm:$0xf]
                %342 = vst [vmem:[%s252 + $0xb0] sm:$0xf] %v341
                %v343 = vld [vmem:[%s251 + $0x134] sm:$0xf]
                %344 = vst [vmem:[%s252 + $0xb4] sm:$0xf] %v343
                %v345 = vld [vmem:[%s251 + $0x138] sm:$0xf]
                %346 = vst [vmem:[%s252 + $0xb8] sm:$0xf] %v345
                %v347 = vld [vmem:[%s251 + $0x13c] sm:$0xf]
                %348 = vst [vmem:[%s252 + $0xbc] sm:$0xf] %v347
                %v349 = vld [vmem:[%s251 + $0x180] sm:$0xf]
                %350 = vst [vmem:[%s252 + $0xc0] sm:$0xf] %v349
                %v351 = vld [vmem:[%s251 + $0x184] sm:$0xf]
                %352 = vst [vmem:[%s252 + $0xc4] sm:$0xf] %v351
                %v353 = vld [vmem:[%s251 + $0x188] sm:$0xf]
                %354 = vst [vmem:[%s252 + $0xc8] sm:$0xf] %v353
                %v355 = vld [vmem:[%s251 + $0x18c] sm:$0xf]
                %356 = vst [vmem:[%s252 + $0xcc] sm:$0xf] %v355
                %v357 = vld [vmem:[%s251 + $0x190] sm:$0xf]
                %358 = vst [vmem:[%s252 + $0xd0] sm:$0xf] %v357
                %v359 = vld [vmem:[%s251 + $0x194] sm:$0xf]
                %360 = vst [vmem:[%s252 + $0xd4] sm:$0xf] %v359
                %v361 = vld [vmem:[%s251 + $0x198] sm:$0xf]
                %362 = vst [vmem:[%s252 + $0xd8] sm:$0xf] %v361
                %v363 = vld [vmem:[%s251 + $0x19c] sm:$0xf]
                %364 = vst [vmem:[%s252 + $0xdc] sm:$0xf] %v363
                %v365 = vld [vmem:[%s251 + $0x1a0] sm:$0xf]
                %366 = vst [vmem:[%s252 + $0xe0] sm:$0xf] %v365
                %v367 = vld [vmem:[%s251 + $0x1a4] sm:$0xf]
                %368 = vst [vmem:[%s252 + $0xe4] sm:$0xf] %v367
                %v369 = vld [vmem:[%s251 + $0x1a8] sm:$0xf]
                %370 = vst [vmem:[%s252 + $0xe8] sm:$0xf] %v369
                %v371 = vld [vmem:[%s251 + $0x1ac] sm:$0xf]
                %372 = vst [vmem:[%s252 + $0xec] sm:$0xf] %v371
                %v373 = vld [vmem:[%s251 + $0x1b0] sm:$0xf]
                %374 = vst [vmem:[%s252 + $0xf0] sm:$0xf] %v373
                %v375 = vld [vmem:[%s251 + $0x1b4] sm:$0xf]
                %376 = vst [vmem:[%s252 + $0xf4] sm:$0xf] %v375
                %v377 = vld [vmem:[%s251 + $0x1b8] sm:$0xf]
                %378 = vst [vmem:[%s252 + $0xf8] sm:$0xf] %v377
                %v379 = vld [vmem:[%s251 + $0x1bc] sm:$0xf]
                %380 = vst [vmem:[%s252 + $0xfc] sm:$0xf] %v379
                %v381 = vld [vmem:[%s251 + $0x200] sm:$0xf]
                %382 = vst [vmem:[%s252 + $0x100] sm:$0xf] %v381
                %v383 = vld [vmem:[%s251 + $0x204] sm:$0xf]
                %384 = vst [vmem:[%s252 + $0x104] sm:$0xf] %v383
                %v385 = vld [vmem:[%s251 + $0x208] sm:$0xf]
                %386 = vst [vmem:[%s252 + $0x108] sm:$0xf] %v385
                %v387 = vld [vmem:[%s251 + $0x20c] sm:$0xf]
                %388 = vst [vmem:[%s252 + $0x10c] sm:$0xf] %v387
                %v389 = vld [vmem:[%s251 + $0x210] sm:$0xf]
                %390 = vst [vmem:[%s252 + $0x110] sm:$0xf] %v389
                %v391 = vld [vmem:[%s251 + $0x214] sm:$0xf]
                %392 = vst [vmem:[%s252 + $0x114] sm:$0xf] %v391
                %v393 = vld [vmem:[%s251 + $0x218] sm:$0xf]
                %394 = vst [vmem:[%s252 + $0x118] sm:$0xf] %v393
                %v395 = vld [vmem:[%s251 + $0x21c] sm:$0xf]
                %396 = vst [vmem:[%s252 + $0x11c] sm:$0xf] %v395
                %v397 = vld [vmem:[%s251 + $0x220] sm:$0xf]
                %398 = vst [vmem:[%s252 + $0x120] sm:$0xf] %v397
                %v399 = vld [vmem:[%s251 + $0x224] sm:$0xf]
                %400 = vst [vmem:[%s252 + $0x124] sm:$0xf] %v399
                %v401 = vld [vmem:[%s251 + $0x228] sm:$0xf]
                %402 = vst [vmem:[%s252 + $0x128] sm:$0xf] %v401
                %v403 = vld [vmem:[%s251 + $0x22c] sm:$0xf]
                %404 = vst [vmem:[%s252 + $0x12c] sm:$0xf] %v403
                %v405 = vld [vmem:[%s251 + $0x230] sm:$0xf]
                %406 = vst [vmem:[%s252 + $0x130] sm:$0xf] %v405
                %v407 = vld [vmem:[%s251 + $0x234] sm:$0xf]
                %408 = vst [vmem:[%s252 + $0x134] sm:$0xf] %v407
                %v409 = vld [vmem:[%s251 + $0x238] sm:$0xf]
                %410 = vst [vmem:[%s252 + $0x138] sm:$0xf] %v409
                %v411 = vld [vmem:[%s251 + $0x23c] sm:$0xf]
                %412 = vst [vmem:[%s252 + $0x13c] sm:$0xf] %v411
                %v413 = vld [vmem:[%s251 + $0x280] sm:$0xf]
                %414 = vst [vmem:[%s252 + $0x140] sm:$0xf] %v413
                %v415 = vld [vmem:[%s251 + $0x284] sm:$0xf]
                %416 = vst [vmem:[%s252 + $0x144] sm:$0xf] %v415
                %v417 = vld [vmem:[%s251 + $0x288] sm:$0xf]
                %418 = vst [vmem:[%s252 + $0x148] sm:$0xf] %v417
                %v419 = vld [vmem:[%s251 + $0x28c] sm:$0xf]
                %420 = vst [vmem:[%s252 + $0x14c] sm:$0xf] %v419
                %v421 = vld [vmem:[%s251 + $0x290] sm:$0xf]
                %422 = vst [vmem:[%s252 + $0x150] sm:$0xf] %v421
                %v423 = vld [vmem:[%s251 + $0x294] sm:$0xf]
                %424 = vst [vmem:[%s252 + $0x154] sm:$0xf] %v423
                %v425 = vld [vmem:[%s251 + $0x298] sm:$0xf]
                %426 = vst [vmem:[%s252 + $0x158] sm:$0xf] %v425
                %v427 = vld [vmem:[%s251 + $0x29c] sm:$0xf]
                %428 = vst [vmem:[%s252 + $0x15c] sm:$0xf] %v427
                %v429 = vld [vmem:[%s251 + $0x2a0] sm:$0xf]
                %430 = vst [vmem:[%s252 + $0x160] sm:$0xf] %v429
                %v431 = vld [vmem:[%s251 + $0x2a4] sm:$0xf]
                %432 = vst [vmem:[%s252 + $0x164] sm:$0xf] %v431
                %v433 = vld [vmem:[%s251 + $0x2a8] sm:$0xf]
                %434 = vst [vmem:[%s252 + $0x168] sm:$0xf] %v433
                %v435 = vld [vmem:[%s251 + $0x2ac] sm:$0xf]
                %436 = vst [vmem:[%s252 + $0x16c] sm:$0xf] %v435
                %v437 = vld [vmem:[%s251 + $0x2b0] sm:$0xf]
                %438 = vst [vmem:[%s252 + $0x170] sm:$0xf] %v437
                %v439 = vld [vmem:[%s251 + $0x2b4] sm:$0xf]
                %440 = vst [vmem:[%s252 + $0x174] sm:$0xf] %v439
                %v441 = vld [vmem:[%s251 + $0x2b8] sm:$0xf]
                %442 = vst [vmem:[%s252 + $0x178] sm:$0xf] %v441
                %v443 = vld [vmem:[%s251 + $0x2bc] sm:$0xf]
                %444 = vst [vmem:[%s252 + $0x17c] sm:$0xf] %v443
                %v445 = vld [vmem:[%s251 + $0x300] sm:$0xf]
                %446 = vst [vmem:[%s252 + $0x180] sm:$0xf] %v445
                %v447 = vld [vmem:[%s251 + $0x304] sm:$0xf]
                %448 = vst [vmem:[%s252 + $0x184] sm:$0xf] %v447
                %v449 = vld [vmem:[%s251 + $0x308] sm:$0xf]
                %450 = vst [vmem:[%s252 + $0x188] sm:$0xf] %v449
                %v451 = vld [vmem:[%s251 + $0x30c] sm:$0xf]
                %452 = vst [vmem:[%s252 + $0x18c] sm:$0xf] %v451
                %v453 = vld [vmem:[%s251 + $0x310] sm:$0xf]
                %454 = vst [vmem:[%s252 + $0x190] sm:$0xf] %v453
                %v455 = vld [vmem:[%s251 + $0x314] sm:$0xf]
                %456 = vst [vmem:[%s252 + $0x194] sm:$0xf] %v455
                %v457 = vld [vmem:[%s251 + $0x318] sm:$0xf]
                %458 = vst [vmem:[%s252 + $0x198] sm:$0xf] %v457
                %v459 = vld [vmem:[%s251 + $0x31c] sm:$0xf]
                %460 = vst [vmem:[%s252 + $0x19c] sm:$0xf] %v459
                %v461 = vld [vmem:[%s251 + $0x320] sm:$0xf]
                %462 = vst [vmem:[%s252 + $0x1a0] sm:$0xf] %v461
                %v463 = vld [vmem:[%s251 + $0x324] sm:$0xf]
                %464 = vst [vmem:[%s252 + $0x1a4] sm:$0xf] %v463
                %v465 = vld [vmem:[%s251 + $0x328] sm:$0xf]
                %466 = vst [vmem:[%s252 + $0x1a8] sm:$0xf] %v465
                %v467 = vld [vmem:[%s251 + $0x32c] sm:$0xf]
                %468 = vst [vmem:[%s252 + $0x1ac] sm:$0xf] %v467
                %v469 = vld [vmem:[%s251 + $0x330] sm:$0xf]
                %470 = vst [vmem:[%s252 + $0x1b0] sm:$0xf] %v469
                %v471 = vld [vmem:[%s251 + $0x334] sm:$0xf]
                %472 = vst [vmem:[%s252 + $0x1b4] sm:$0xf] %v471
                %v473 = vld [vmem:[%s251 + $0x338] sm:$0xf]
                %474 = vst [vmem:[%s252 + $0x1b8] sm:$0xf] %v473
                %v475 = vld [vmem:[%s251 + $0x33c] sm:$0xf]
                %476 = vst [vmem:[%s252 + $0x1bc] sm:$0xf] %v475
                %v477 = vld [vmem:[%s251 + $0x380] sm:$0xf]
                %478 = vst [vmem:[%s252 + $0x1c0] sm:$0xf] %v477
                %v479 = vld [vmem:[%s251 + $0x384] sm:$0xf]
                %480 = vst [vmem:[%s252 + $0x1c4] sm:$0xf] %v479
                %v481 = vld [vmem:[%s251 + $0x388] sm:$0xf]
                %482 = vst [vmem:[%s252 + $0x1c8] sm:$0xf] %v481
                %v483 = vld [vmem:[%s251 + $0x38c] sm:$0xf]
                %484 = vst [vmem:[%s252 + $0x1cc] sm:$0xf] %v483
                %v485 = vld [vmem:[%s251 + $0x390] sm:$0xf]
                %486 = vst [vmem:[%s252 + $0x1d0] sm:$0xf] %v485
                %v487 = vld [vmem:[%s251 + $0x394] sm:$0xf]
                %488 = vst [vmem:[%s252 + $0x1d4] sm:$0xf] %v487
                %v489 = vld [vmem:[%s251 + $0x398] sm:$0xf]
                %490 = vst [vmem:[%s252 + $0x1d8] sm:$0xf] %v489
                %v491 = vld [vmem:[%s251 + $0x39c] sm:$0xf]
                %492 = vst [vmem:[%s252 + $0x1dc] sm:$0xf] %v491
                %v493 = vld [vmem:[%s251 + $0x3a0] sm:$0xf]
                %494 = vst [vmem:[%s252 + $0x1e0] sm:$0xf] %v493
                %v495 = vld [vmem:[%s251 + $0x3a4] sm:$0xf]
                %496 = vst [vmem:[%s252 + $0x1e4] sm:$0xf] %v495
                %v497 = vld [vmem:[%s251 + $0x3a8] sm:$0xf]
                %498 = vst [vmem:[%s252 + $0x1e8] sm:$0xf] %v497
                %v499 = vld [vmem:[%s251 + $0x3ac] sm:$0xf]
                %500 = vst [vmem:[%s252 + $0x1ec] sm:$0xf] %v499
                %v501 = vld [vmem:[%s251 + $0x3b0] sm:$0xf]
                %502 = vst [vmem:[%s252 + $0x1f0] sm:$0xf] %v501
                %v503 = vld [vmem:[%s251 + $0x3b4] sm:$0xf]
                %504 = vst [vmem:[%s252 + $0x1f4] sm:$0xf] %v503
                %v505 = vld [vmem:[%s251 + $0x3b8] sm:$0xf]
                %506 = vst [vmem:[%s252 + $0x1f8] sm:$0xf] %v505
                %v507 = vld [vmem:[%s251 + $0x3bc] sm:$0xf]
                %508 = vst [vmem:[%s252 + $0x1fc] sm:$0xf] %v507
                %v509 = vld [vmem:[%s251 + $0x400] sm:$0xf]
                %510 = vst [vmem:[%s252 + $0x200] sm:$0xf] %v509
                %v511 = vld [vmem:[%s251 + $0x404] sm:$0xf]
                %512 = vst [vmem:[%s252 + $0x204] sm:$0xf] %v511
                %v513 = vld [vmem:[%s251 + $0x408] sm:$0xf]
                %514 = vst [vmem:[%s252 + $0x208] sm:$0xf] %v513
                %v515 = vld [vmem:[%s251 + $0x40c] sm:$0xf]
                %516 = vst [vmem:[%s252 + $0x20c] sm:$0xf] %v515
                %v517 = vld [vmem:[%s251 + $0x410] sm:$0xf]
                %518 = vst [vmem:[%s252 + $0x210] sm:$0xf] %v517
                %v519 = vld [vmem:[%s251 + $0x414] sm:$0xf]
                %520 = vst [vmem:[%s252 + $0x214] sm:$0xf] %v519
                %v521 = vld [vmem:[%s251 + $0x418] sm:$0xf]
                %522 = vst [vmem:[%s252 + $0x218] sm:$0xf] %v521
                %v523 = vld [vmem:[%s251 + $0x41c] sm:$0xf]
                %524 = vst [vmem:[%s252 + $0x21c] sm:$0xf] %v523
                %v525 = vld [vmem:[%s251 + $0x420] sm:$0xf]
                %526 = vst [vmem:[%s252 + $0x220] sm:$0xf] %v525
                %v527 = vld [vmem:[%s251 + $0x424] sm:$0xf]
                %528 = vst [vmem:[%s252 + $0x224] sm:$0xf] %v527
                %v529 = vld [vmem:[%s251 + $0x428] sm:$0xf]
                %530 = vst [vmem:[%s252 + $0x228] sm:$0xf] %v529
                %v531 = vld [vmem:[%s251 + $0x42c] sm:$0xf]
                %532 = vst [vmem:[%s252 + $0x22c] sm:$0xf] %v531
                %v533 = vld [vmem:[%s251 + $0x430] sm:$0xf]
                %534 = vst [vmem:[%s252 + $0x230] sm:$0xf] %v533
                %v535 = vld [vmem:[%s251 + $0x434] sm:$0xf]
                %536 = vst [vmem:[%s252 + $0x234] sm:$0xf] %v535
                %v537 = vld [vmem:[%s251 + $0x438] sm:$0xf]
                %538 = vst [vmem:[%s252 + $0x238] sm:$0xf] %v537
                %v539 = vld [vmem:[%s251 + $0x43c] sm:$0xf]
                %540 = vst [vmem:[%s252 + $0x23c] sm:$0xf] %v539
                %v541 = vld [vmem:[%s251 + $0x480] sm:$0xf]
                %542 = vst [vmem:[%s252 + $0x240] sm:$0xf] %v541
                %v543 = vld [vmem:[%s251 + $0x484] sm:$0xf]
                %544 = vst [vmem:[%s252 + $0x244] sm:$0xf] %v543
                %v545 = vld [vmem:[%s251 + $0x488] sm:$0xf]
                %546 = vst [vmem:[%s252 + $0x248] sm:$0xf] %v545
                %v547 = vld [vmem:[%s251 + $0x48c] sm:$0xf]
                %548 = vst [vmem:[%s252 + $0x24c] sm:$0xf] %v547
                %v549 = vld [vmem:[%s251 + $0x490] sm:$0xf]
                %550 = vst [vmem:[%s252 + $0x250] sm:$0xf] %v549
                %v551 = vld [vmem:[%s251 + $0x494] sm:$0xf]
                %552 = vst [vmem:[%s252 + $0x254] sm:$0xf] %v551
                %v553 = vld [vmem:[%s251 + $0x498] sm:$0xf]
                %554 = vst [vmem:[%s252 + $0x258] sm:$0xf] %v553
                %v555 = vld [vmem:[%s251 + $0x49c] sm:$0xf]
                %556 = vst [vmem:[%s252 + $0x25c] sm:$0xf] %v555
                %v557 = vld [vmem:[%s251 + $0x4a0] sm:$0xf]
                %558 = vst [vmem:[%s252 + $0x260] sm:$0xf] %v557
                %v559 = vld [vmem:[%s251 + $0x4a4] sm:$0xf]
                %560 = vst [vmem:[%s252 + $0x264] sm:$0xf] %v559
                %v561 = vld [vmem:[%s251 + $0x4a8] sm:$0xf]
                %562 = vst [vmem:[%s252 + $0x268] sm:$0xf] %v561
                %v563 = vld [vmem:[%s251 + $0x4ac] sm:$0xf]
                %564 = vst [vmem:[%s252 + $0x26c] sm:$0xf] %v563
                %v565 = vld [vmem:[%s251 + $0x4b0] sm:$0xf]
                %566 = vst [vmem:[%s252 + $0x270] sm:$0xf] %v565
                %v567 = vld [vmem:[%s251 + $0x4b4] sm:$0xf]
                %568 = vst [vmem:[%s252 + $0x274] sm:$0xf] %v567
                %v569 = vld [vmem:[%s251 + $0x4b8] sm:$0xf]
                %570 = vst [vmem:[%s252 + $0x278] sm:$0xf] %v569
                %v571 = vld [vmem:[%s251 + $0x4bc] sm:$0xf]
                %572 = vst [vmem:[%s252 + $0x27c] sm:$0xf] %v571
              $region61: #{gnn_combo_forward.3} parent=55 // loop_footer
                %s250 = sadd.s32 1, %s246
              $region62: #{gnn_combo_forward.3} parent=55 // loop_footer_branch
                %245 = sbr.rel target = $region58
              $region63: #{gnn_combo_forward.3} parent=55 // loop_exit
                _
            $region56: #{gnn_combo_forward.3} parent=47 // pred_fallthru
              _
          $region48: #{gnn_combo_forward.3} parent=43 // pred_fallthru
            _
          %912 = vnop
        $region44: #{gnn_combo_forward.3} parent=39 // pred_fallthru
          _
      $region40: #{gnn_combo_forward.3} parent=5 // pred_fallthru
        _
      %p913 = scmp.le.s32.totalorder 1, %s13
      %p914 = scmp.lt.s32.totalorder %s13, 3
      %p915 = pnand %p913, %p914
      %p916 = pneg %p915
      // Predicated region
      $region82: #{gnn_combo_forward.3} parent=5 // pred_check
        _
      $region83: #{gnn_combo_forward.3} parent=5 // pred_check_branch
        %918 = sbr.rel (%p915) target = $region85
      $region84: #{gnn_combo_forward.3} parent=5 // pred_region
        %s919 = ssub.s32 %s13, 1
        %s920 = sand.u32 %s26, 1
        %s921 = sand.u32 %s26, 1
        %s922 = smul.addr %s921, 640
        %s923 = scalar_lea.vmem [#allocation2], %s922
        // Predicated region
        $region86: #{gnn_combo_forward.3} parent=84 // pred_check
          %p924 = pneg %p39
        $region87: #{gnn_combo_forward.3} parent=84 // pred_check_branch
          %926 = sbr.rel (%p924) target = $region89
        $region88: #{gnn_combo_forward.3} parent=84 // pred_region
          _
        $region89: #{gnn_combo_forward.3} parent=84 // pred_fallthru
          _
        %s927 = sand.u32 %s26, 1
        %s928 = sand.u32 %s26, 1
        %s929 = smul.addr %s928, 640
        %s930 = scalar_lea.vmem [#allocation2], %s929
        %p931 = pneg %p39
        %p932 = pneg %p36
        %p933 = pneg %p60
        %p934 = pneg %p57
        %p935 = pneg %p81
        %p936 = pneg %p78
        %p937 = pneg %p102
        %p938 = pneg %p99
        %p939 = pneg %p123
        %p940 = pneg %p120
        %p941 = pneg %p144
        %p942 = pneg %p141
        %p943 = pneg %p165
        %p944 = pneg %p162
        %p945 = pneg %p191
        %p946 = pneg %p188
        %s947 = smul.u32 16, %s18
        %p948 = scmp.lt.s32.totalorder %s947, 31
        %s949 = scalar_select %p948, %s947, 31
        %s950 = smul.addr %s949, 8
        %s951 = scalar_lea.vmem %s7, %s950
        %s952 = smul.u32 16, %s18
        %s953 = smul.u32 16, %s18
        %p954 = scmp.lt.s32.totalorder %s953, 31
        %s955 = scalar_select %p954, %s953, 31
        %s956 = smul.addr %s955, 8
        %s957 = scalar_lea.vmem %s7, %s956
        %s958 = smul.u32 16, %s18
        %v960 = vld [vmem:[%s923] sm:$0xf]
        %v961 = vld [vmem:[%s923 + $0x4] sm:$0xf]
        %v962 = vld [vmem:[%s923 + $0x8] sm:$0xf]
        %v963 = vld [vmem:[%s923 + $0xc] sm:$0xf]
        %v964 = vld [vmem:[%s923 + $0x10] sm:$0xf]
        %v965 = vld [vmem:[%s923 + $0x14] sm:$0xf]
        %v966 = vld [vmem:[%s923 + $0x18] sm:$0xf]
        %v967 = vld [vmem:[%s923 + $0x1c] sm:$0xf]
        %v968 = vld [vmem:[%s923 + $0x20] sm:$0xf]
        %v969 = vld [vmem:[%s923 + $0x24] sm:$0xf]
        %v970 = vld [vmem:[%s923 + $0x28] sm:$0xf]
        %v971 = vld [vmem:[%s923 + $0x2c] sm:$0xf]
        %v972 = vld [vmem:[%s923 + $0x30] sm:$0xf]
        %v973 = vld [vmem:[%s923 + $0x34] sm:$0xf]
        %v974 = vld [vmem:[%s923 + $0x38] sm:$0xf]
        %v975 = vld [vmem:[%s923 + $0x3c] sm:$0xf]
        %v976 = vld [vmem:[%s923 + $0x40] sm:$0xf]
        %v977 = vld [vmem:[%s923 + $0x44] sm:$0xf]
        %v978 = vld [vmem:[%s923 + $0x48] sm:$0xf]
        %v979 = vld [vmem:[%s923 + $0x4c] sm:$0xf]
        %v980 = vld [vmem:[%s923 + $0x50] sm:$0xf]
        %v981 = vld [vmem:[%s923 + $0x54] sm:$0xf]
        %v982 = vld [vmem:[%s923 + $0x58] sm:$0xf]
        %v983 = vld [vmem:[%s923 + $0x5c] sm:$0xf]
        %v984 = vld [vmem:[%s923 + $0x60] sm:$0xf]
        %v985 = vld [vmem:[%s923 + $0x64] sm:$0xf]
        %v986 = vld [vmem:[%s923 + $0x68] sm:$0xf]
        %v987 = vld [vmem:[%s923 + $0x6c] sm:$0xf]
        %v988 = vld [vmem:[%s923 + $0x70] sm:$0xf]
        %v989 = vld [vmem:[%s923 + $0x74] sm:$0xf]
        %v990 = vld [vmem:[%s923 + $0x78] sm:$0xf]
        %v991 = vld [vmem:[%s923 + $0x7c] sm:$0xf]
        %v992 = vld [vmem:[%s923 + $0x80] sm:$0xf]
        %v993 = vld [vmem:[%s923 + $0x84] sm:$0xf]
        %v994 = vld [vmem:[%s923 + $0x88] sm:$0xf]
        %v995 = vld [vmem:[%s923 + $0x8c] sm:$0xf]
        %v996 = vld [vmem:[%s923 + $0x90] sm:$0xf]
        %v997 = vld [vmem:[%s923 + $0x94] sm:$0xf]
        %v998 = vld [vmem:[%s923 + $0x98] sm:$0xf]
        %v999 = vld [vmem:[%s923 + $0x9c] sm:$0xf]
        %v1000 = vld [vmem:[%s923 + $0xa0] sm:$0xf]
        %v1001 = vld [vmem:[%s923 + $0xa4] sm:$0xf]
        %v1002 = vld [vmem:[%s923 + $0xa8] sm:$0xf]
        %v1003 = vld [vmem:[%s923 + $0xac] sm:$0xf]
        %v1004 = vld [vmem:[%s923 + $0xb0] sm:$0xf]
        %v1005 = vld [vmem:[%s923 + $0xb4] sm:$0xf]
        %v1006 = vld [vmem:[%s923 + $0xb8] sm:$0xf]
        %v1007 = vld [vmem:[%s923 + $0xbc] sm:$0xf]
        %v1008 = vld [vmem:[%s923 + $0xc0] sm:$0xf]
        %v1009 = vld [vmem:[%s923 + $0xc4] sm:$0xf]
        %v1010 = vld [vmem:[%s923 + $0xc8] sm:$0xf]
        %v1011 = vld [vmem:[%s923 + $0xcc] sm:$0xf]
        %v1012 = vld [vmem:[%s923 + $0xd0] sm:$0xf]
        %v1013 = vld [vmem:[%s923 + $0xd4] sm:$0xf]
        %v1014 = vld [vmem:[%s923 + $0xd8] sm:$0xf]
        %v1015 = vld [vmem:[%s923 + $0xdc] sm:$0xf]
        %v1016 = vld [vmem:[%s923 + $0xe0] sm:$0xf]
        %v1017 = vld [vmem:[%s923 + $0xe4] sm:$0xf]
        %v1018 = vld [vmem:[%s923 + $0xe8] sm:$0xf]
        %v1019 = vld [vmem:[%s923 + $0xec] sm:$0xf]
        %v1020 = vld [vmem:[%s923 + $0xf0] sm:$0xf]
        %v1021 = vld [vmem:[%s923 + $0xf4] sm:$0xf]
        %v1022 = vld [vmem:[%s923 + $0xf8] sm:$0xf]
        %v1023 = vld [vmem:[%s923 + $0xfc] sm:$0xf]
        %v1024 = vld [vmem:[%s923 + $0x100] sm:$0xf]
        %v1025 = vld [vmem:[%s923 + $0x104] sm:$0xf]
        %v1026 = vld [vmem:[%s923 + $0x108] sm:$0xf]
        %v1027 = vld [vmem:[%s923 + $0x10c] sm:$0xf]
        %v1028 = vld [vmem:[%s923 + $0x110] sm:$0xf]
        %v1029 = vld [vmem:[%s923 + $0x114] sm:$0xf]
        %v1030 = vld [vmem:[%s923 + $0x118] sm:$0xf]
        %v1031 = vld [vmem:[%s923 + $0x11c] sm:$0xf]
        %v1032 = vld [vmem:[%s923 + $0x120] sm:$0xf]
        %v1033 = vld [vmem:[%s923 + $0x124] sm:$0xf]
        %v1034 = vld [vmem:[%s923 + $0x128] sm:$0xf]
        %v1035 = vld [vmem:[%s923 + $0x12c] sm:$0xf]
        %v1036 = vld [vmem:[%s923 + $0x130] sm:$0xf]
        %v1037 = vld [vmem:[%s923 + $0x134] sm:$0xf]
        %v1038 = vld [vmem:[%s923 + $0x138] sm:$0xf]
        %v1039 = vld [vmem:[%s923 + $0x13c] sm:$0xf]
        %v1040 = vld [vmem:[%s923 + $0x140] sm:$0xf]
        %v1041 = vld [vmem:[%s923 + $0x144] sm:$0xf]
        %v1042 = vld [vmem:[%s923 + $0x148] sm:$0xf]
        %v1043 = vld [vmem:[%s923 + $0x14c] sm:$0xf]
        %v1044 = vld [vmem:[%s923 + $0x150] sm:$0xf]
        %v1045 = vld [vmem:[%s923 + $0x154] sm:$0xf]
        %v1046 = vld [vmem:[%s923 + $0x158] sm:$0xf]
        %v1047 = vld [vmem:[%s923 + $0x15c] sm:$0xf]
        %v1048 = vld [vmem:[%s923 + $0x160] sm:$0xf]
        %v1049 = vld [vmem:[%s923 + $0x164] sm:$0xf]
        %v1050 = vld [vmem:[%s923 + $0x168] sm:$0xf]
        %v1051 = vld [vmem:[%s923 + $0x16c] sm:$0xf]
        %v1052 = vld [vmem:[%s923 + $0x170] sm:$0xf]
        %v1053 = vld [vmem:[%s923 + $0x174] sm:$0xf]
        %v1054 = vld [vmem:[%s923 + $0x178] sm:$0xf]
        %v1055 = vld [vmem:[%s923 + $0x17c] sm:$0xf]
        %v1056 = vld [vmem:[%s923 + $0x180] sm:$0xf]
        %v1057 = vld [vmem:[%s923 + $0x184] sm:$0xf]
        %v1058 = vld [vmem:[%s923 + $0x188] sm:$0xf]
        %v1059 = vld [vmem:[%s923 + $0x18c] sm:$0xf]
        %v1060 = vld [vmem:[%s923 + $0x190] sm:$0xf]
        %v1061 = vld [vmem:[%s923 + $0x194] sm:$0xf]
        %v1062 = vld [vmem:[%s923 + $0x198] sm:$0xf]
        %v1063 = vld [vmem:[%s923 + $0x19c] sm:$0xf]
        %v1064 = vld [vmem:[%s923 + $0x1a0] sm:$0xf]
        %v1065 = vld [vmem:[%s923 + $0x1a4] sm:$0xf]
        %v1066 = vld [vmem:[%s923 + $0x1a8] sm:$0xf]
        %v1067 = vld [vmem:[%s923 + $0x1ac] sm:$0xf]
        %v1068 = vld [vmem:[%s923 + $0x1b0] sm:$0xf]
        %v1069 = vld [vmem:[%s923 + $0x1b4] sm:$0xf]
        %v1070 = vld [vmem:[%s923 + $0x1b8] sm:$0xf]
        %v1071 = vld [vmem:[%s923 + $0x1bc] sm:$0xf]
        %v1072 = vld [vmem:[%s923 + $0x1c0] sm:$0xf]
        %v1073 = vld [vmem:[%s923 + $0x1c4] sm:$0xf]
        %v1074 = vld [vmem:[%s923 + $0x1c8] sm:$0xf]
        %v1075 = vld [vmem:[%s923 + $0x1cc] sm:$0xf]
        %v1076 = vld [vmem:[%s923 + $0x1d0] sm:$0xf]
        %v1077 = vld [vmem:[%s923 + $0x1d4] sm:$0xf]
        %v1078 = vld [vmem:[%s923 + $0x1d8] sm:$0xf]
        %v1079 = vld [vmem:[%s923 + $0x1dc] sm:$0xf]
        %v1080 = vld [vmem:[%s923 + $0x1e0] sm:$0xf]
        %v1081 = vld [vmem:[%s923 + $0x1e4] sm:$0xf]
        %v1082 = vld [vmem:[%s923 + $0x1e8] sm:$0xf]
        %v1083 = vld [vmem:[%s923 + $0x1ec] sm:$0xf]
        %v1084 = vld [vmem:[%s923 + $0x1f0] sm:$0xf]
        %v1085 = vld [vmem:[%s923 + $0x1f4] sm:$0xf]
        %v1086 = vld [vmem:[%s923 + $0x1f8] sm:$0xf]
        %v1087 = vld [vmem:[%s923 + $0x1fc] sm:$0xf]
        %v1088 = vld [vmem:[%s923 + $0x200] sm:$0xf]
        %v1089 = vld [vmem:[%s923 + $0x204] sm:$0xf]
        %v1090 = vld [vmem:[%s923 + $0x208] sm:$0xf]
        %v1091 = vld [vmem:[%s923 + $0x20c] sm:$0xf]
        %v1092 = vld [vmem:[%s923 + $0x210] sm:$0xf]
        %v1093 = vld [vmem:[%s923 + $0x214] sm:$0xf]
        %v1094 = vld [vmem:[%s923 + $0x218] sm:$0xf]
        %v1095 = vld [vmem:[%s923 + $0x21c] sm:$0xf]
        %v1096 = vld [vmem:[%s923 + $0x220] sm:$0xf]
        %v1097 = vld [vmem:[%s923 + $0x224] sm:$0xf]
        %v1098 = vld [vmem:[%s923 + $0x228] sm:$0xf]
        %v1099 = vld [vmem:[%s923 + $0x22c] sm:$0xf]
        %v1100 = vld [vmem:[%s923 + $0x230] sm:$0xf]
        %v1101 = vld [vmem:[%s923 + $0x234] sm:$0xf]
        %v1102 = vld [vmem:[%s923 + $0x238] sm:$0xf]
        %v1103 = vld [vmem:[%s923 + $0x23c] sm:$0xf]
        %v1104 = vld [vmem:[%s923 + $0x240] sm:$0xf]
        %v1105 = vld [vmem:[%s923 + $0x244] sm:$0xf]
        %v1106 = vld [vmem:[%s923 + $0x248] sm:$0xf]
        %v1107 = vld [vmem:[%s923 + $0x24c] sm:$0xf]
        %v1108 = vld [vmem:[%s923 + $0x250] sm:$0xf]
        %v1109 = vld [vmem:[%s923 + $0x254] sm:$0xf]
        %v1110 = vld [vmem:[%s923 + $0x258] sm:$0xf]
        %v1111 = vld [vmem:[%s923 + $0x25c] sm:$0xf]
        %v1112 = vld [vmem:[%s923 + $0x260] sm:$0xf]
        %v1113 = vld [vmem:[%s923 + $0x264] sm:$0xf]
        %v1114 = vld [vmem:[%s923 + $0x268] sm:$0xf]
        %v1115 = vld [vmem:[%s923 + $0x26c] sm:$0xf]
        %v1116 = vld [vmem:[%s923 + $0x270] sm:$0xf]
        %v1117 = vld [vmem:[%s923 + $0x274] sm:$0xf]
        %v1118 = vld [vmem:[%s923 + $0x278] sm:$0xf]
        %v1119 = vld [vmem:[%s923 + $0x27c] sm:$0xf]
        %v1120 = vunpack.c.l.bf16 %v960
        %v1121 = vunpack.c.l.bf16 %v961
        %v1122 = vunpack.c.l.bf16 %v962
        %v1123 = vunpack.c.l.bf16 %v963
        %v1124 = vunpack.c.l.bf16 %v964
        %v1125 = vunpack.c.l.bf16 %v965
        %v1126 = vunpack.c.l.bf16 %v966
        %v1127 = vunpack.c.l.bf16 %v967
        %v1128 = vunpack.c.l.bf16 %v968
        %v1129 = vunpack.c.l.bf16 %v969
        %v1130 = vunpack.c.l.bf16 %v970
        %v1131 = vunpack.c.l.bf16 %v971
        %v1132 = vunpack.c.l.bf16 %v972
        %v1133 = vunpack.c.l.bf16 %v973
        %v1134 = vunpack.c.l.bf16 %v974
        %v1135 = vunpack.c.l.bf16 %v975
        %v1136 = vunpack.c.l.bf16 %v976
        %v1137 = vunpack.c.l.bf16 %v977
        %v1138 = vunpack.c.l.bf16 %v978
        %v1139 = vunpack.c.l.bf16 %v979
        %v1140 = vunpack.c.l.bf16 %v980
        %v1141 = vunpack.c.l.bf16 %v981
        %v1142 = vunpack.c.l.bf16 %v982
        %v1143 = vunpack.c.l.bf16 %v983
        %v1144 = vunpack.c.l.bf16 %v984
        %v1145 = vunpack.c.l.bf16 %v985
        %v1146 = vunpack.c.l.bf16 %v986
        %v1147 = vunpack.c.l.bf16 %v987
        %v1148 = vunpack.c.l.bf16 %v988
        %v1149 = vunpack.c.l.bf16 %v989
        %v1150 = vunpack.c.l.bf16 %v990
        %v1151 = vunpack.c.l.bf16 %v991
        %v1152 = vunpack.c.l.bf16 %v992
        %v1153 = vunpack.c.l.bf16 %v993
        %v1154 = vunpack.c.l.bf16 %v994
        %v1155 = vunpack.c.l.bf16 %v995
        %v1156 = vunpack.c.l.bf16 %v996
        %v1157 = vunpack.c.l.bf16 %v997
        %v1158 = vunpack.c.l.bf16 %v998
        %v1159 = vunpack.c.l.bf16 %v999
        %v1160 = vunpack.c.l.bf16 %v1000
        %v1161 = vunpack.c.l.bf16 %v1001
        %v1162 = vunpack.c.l.bf16 %v1002
        %v1163 = vunpack.c.l.bf16 %v1003
        %v1164 = vunpack.c.l.bf16 %v1004
        %v1165 = vunpack.c.l.bf16 %v1005
        %v1166 = vunpack.c.l.bf16 %v1006
        %v1167 = vunpack.c.l.bf16 %v1007
        %v1168 = vunpack.c.l.bf16 %v1008
        %v1169 = vunpack.c.l.bf16 %v1009
        %v1170 = vunpack.c.l.bf16 %v1010
        %v1171 = vunpack.c.l.bf16 %v1011
        %v1172 = vunpack.c.l.bf16 %v1012
        %v1173 = vunpack.c.l.bf16 %v1013
        %v1174 = vunpack.c.l.bf16 %v1014
        %v1175 = vunpack.c.l.bf16 %v1015
        %v1176 = vunpack.c.l.bf16 %v1016
        %v1177 = vunpack.c.l.bf16 %v1017
        %v1178 = vunpack.c.l.bf16 %v1018
        %v1179 = vunpack.c.l.bf16 %v1019
        %v1180 = vunpack.c.l.bf16 %v1020
        %v1181 = vunpack.c.l.bf16 %v1021
        %v1182 = vunpack.c.l.bf16 %v1022
        %v1183 = vunpack.c.l.bf16 %v1023
        %v1184 = vunpack.c.l.bf16 %v1024
        %v1185 = vunpack.c.l.bf16 %v1025
        %v1186 = vunpack.c.l.bf16 %v1026
        %v1187 = vunpack.c.l.bf16 %v1027
        %v1188 = vunpack.c.l.bf16 %v1028
        %v1189 = vunpack.c.l.bf16 %v1029
        %v1190 = vunpack.c.l.bf16 %v1030
        %v1191 = vunpack.c.l.bf16 %v1031
        %v1192 = vunpack.c.l.bf16 %v1032
        %v1193 = vunpack.c.l.bf16 %v1033
        %v1194 = vunpack.c.l.bf16 %v1034
        %v1195 = vunpack.c.l.bf16 %v1035
        %v1196 = vunpack.c.l.bf16 %v1036
        %v1197 = vunpack.c.l.bf16 %v1037
        %v1198 = vunpack.c.l.bf16 %v1038
        %v1199 = vunpack.c.l.bf16 %v1039
        %v1200 = vunpack.c.l.bf16 %v1040
        %v1201 = vunpack.c.l.bf16 %v1041
        %v1202 = vunpack.c.l.bf16 %v1042
        %v1203 = vunpack.c.l.bf16 %v1043
        %v1204 = vunpack.c.l.bf16 %v1044
        %v1205 = vunpack.c.l.bf16 %v1045
        %v1206 = vunpack.c.l.bf16 %v1046
        %v1207 = vunpack.c.l.bf16 %v1047
        %v1208 = vunpack.c.l.bf16 %v1048
        %v1209 = vunpack.c.l.bf16 %v1049
        %v1210 = vunpack.c.l.bf16 %v1050
        %v1211 = vunpack.c.l.bf16 %v1051
        %v1212 = vunpack.c.l.bf16 %v1052
        %v1213 = vunpack.c.l.bf16 %v1053
        %v1214 = vunpack.c.l.bf16 %v1054
        %v1215 = vunpack.c.l.bf16 %v1055
        %v1216 = vunpack.c.l.bf16 %v1056
        %v1217 = vunpack.c.l.bf16 %v1057
        %v1218 = vunpack.c.l.bf16 %v1058
        %v1219 = vunpack.c.l.bf16 %v1059
        %v1220 = vunpack.c.l.bf16 %v1060
        %v1221 = vunpack.c.l.bf16 %v1061
        %v1222 = vunpack.c.l.bf16 %v1062
        %v1223 = vunpack.c.l.bf16 %v1063
        %v1224 = vunpack.c.l.bf16 %v1064
        %v1225 = vunpack.c.l.bf16 %v1065
        %v1226 = vunpack.c.l.bf16 %v1066
        %v1227 = vunpack.c.l.bf16 %v1067
        %v1228 = vunpack.c.l.bf16 %v1068
        %v1229 = vunpack.c.l.bf16 %v1069
        %v1230 = vunpack.c.l.bf16 %v1070
        %v1231 = vunpack.c.l.bf16 %v1071
        %v1232 = vunpack.c.l.bf16 %v1072
        %v1233 = vunpack.c.l.bf16 %v1073
        %v1234 = vunpack.c.l.bf16 %v1074
        %v1235 = vunpack.c.l.bf16 %v1075
        %v1236 = vunpack.c.l.bf16 %v1076
        %v1237 = vunpack.c.l.bf16 %v1077
        %v1238 = vunpack.c.l.bf16 %v1078
        %v1239 = vunpack.c.l.bf16 %v1079
        %v1240 = vunpack.c.l.bf16 %v1080
        %v1241 = vunpack.c.l.bf16 %v1081
        %v1242 = vunpack.c.l.bf16 %v1082
        %v1243 = vunpack.c.l.bf16 %v1083
        %v1244 = vunpack.c.l.bf16 %v1084
        %v1245 = vunpack.c.l.bf16 %v1085
        %v1246 = vunpack.c.l.bf16 %v1086
        %v1247 = vunpack.c.l.bf16 %v1087
        %v1248 = vunpack.c.l.bf16 %v1088
        %v1249 = vunpack.c.l.bf16 %v1089
        %v1250 = vunpack.c.l.bf16 %v1090
        %v1251 = vunpack.c.l.bf16 %v1091
        %v1252 = vunpack.c.l.bf16 %v1092
        %v1253 = vunpack.c.l.bf16 %v1093
        %v1254 = vunpack.c.l.bf16 %v1094
        %v1255 = vunpack.c.l.bf16 %v1095
        %v1256 = vunpack.c.l.bf16 %v1096
        %v1257 = vunpack.c.l.bf16 %v1097
        %v1258 = vunpack.c.l.bf16 %v1098
        %v1259 = vunpack.c.l.bf16 %v1099
        %v1260 = vunpack.c.l.bf16 %v1100
        %v1261 = vunpack.c.l.bf16 %v1101
        %v1262 = vunpack.c.l.bf16 %v1102
        %v1263 = vunpack.c.l.bf16 %v1103
        %v1264 = vunpack.c.l.bf16 %v1104
        %v1265 = vunpack.c.l.bf16 %v1105
        %v1266 = vunpack.c.l.bf16 %v1106
        %v1267 = vunpack.c.l.bf16 %v1107
        %v1268 = vunpack.c.l.bf16 %v1108
        %v1269 = vunpack.c.l.bf16 %v1109
        %v1270 = vunpack.c.l.bf16 %v1110
        %v1271 = vunpack.c.l.bf16 %v1111
        %v1272 = vunpack.c.l.bf16 %v1112
        %v1273 = vunpack.c.l.bf16 %v1113
        %v1274 = vunpack.c.l.bf16 %v1114
        %v1275 = vunpack.c.l.bf16 %v1115
        %v1276 = vunpack.c.l.bf16 %v1116
        %v1277 = vunpack.c.l.bf16 %v1117
        %v1278 = vunpack.c.l.bf16 %v1118
        %v1279 = vunpack.c.l.bf16 %v1119
        %v1280 = vadd.f32 %v1120, %v1136
        %v1281 = vadd.f32 %v1280, %v1152
        %v1282 = vadd.f32 %v1281, %v1168
        %v1283 = vadd.f32 %v1282, %v1184
        %v1284 = vadd.f32 %v1283, %v1200
        %v1285 = vadd.f32 %v1284, %v1216
        %v1286 = vadd.f32 %v1285, %v1232
        %v1287 = vadd.f32 %v1286, %v1248
        %v1288 = vadd.f32 %v1287, %v1264
        %v1289 = vadd.f32 %v1121, %v1137
        %v1290 = vadd.f32 %v1289, %v1153
        %v1291 = vadd.f32 %v1290, %v1169
        %v1292 = vadd.f32 %v1291, %v1185
        %v1293 = vadd.f32 %v1292, %v1201
        %v1294 = vadd.f32 %v1293, %v1217
        %v1295 = vadd.f32 %v1294, %v1233
        %v1296 = vadd.f32 %v1295, %v1249
        %v1297 = vadd.f32 %v1296, %v1265
        %v1298 = vadd.f32 %v1122, %v1138
        %v1299 = vadd.f32 %v1298, %v1154
        %v1300 = vadd.f32 %v1299, %v1170
        %v1301 = vadd.f32 %v1300, %v1186
        %v1302 = vadd.f32 %v1301, %v1202
        %v1303 = vadd.f32 %v1302, %v1218
        %v1304 = vadd.f32 %v1303, %v1234
        %v1305 = vadd.f32 %v1304, %v1250
        %v1306 = vadd.f32 %v1305, %v1266
        %v1307 = vadd.f32 %v1123, %v1139
        %v1308 = vadd.f32 %v1307, %v1155
        %v1309 = vadd.f32 %v1308, %v1171
        %v1310 = vadd.f32 %v1309, %v1187
        %v1311 = vadd.f32 %v1310, %v1203
        %v1312 = vadd.f32 %v1311, %v1219
        %v1313 = vadd.f32 %v1312, %v1235
        %v1314 = vadd.f32 %v1313, %v1251
        %v1315 = vadd.f32 %v1314, %v1267
        %v1316 = vadd.f32 %v1124, %v1140
        %v1317 = vadd.f32 %v1316, %v1156
        %v1318 = vadd.f32 %v1317, %v1172
        %v1319 = vadd.f32 %v1318, %v1188
        %v1320 = vadd.f32 %v1319, %v1204
        %v1321 = vadd.f32 %v1320, %v1220
        %v1322 = vadd.f32 %v1321, %v1236
        %v1323 = vadd.f32 %v1322, %v1252
        %v1324 = vadd.f32 %v1323, %v1268
        %v1325 = vadd.f32 %v1125, %v1141
        %v1326 = vadd.f32 %v1325, %v1157
        %v1327 = vadd.f32 %v1326, %v1173
        %v1328 = vadd.f32 %v1327, %v1189
        %v1329 = vadd.f32 %v1328, %v1205
        %v1330 = vadd.f32 %v1329, %v1221
        %v1331 = vadd.f32 %v1330, %v1237
        %v1332 = vadd.f32 %v1331, %v1253
        %v1333 = vadd.f32 %v1332, %v1269
        %v1334 = vadd.f32 %v1126, %v1142
        %v1335 = vadd.f32 %v1334, %v1158
        %v1336 = vadd.f32 %v1335, %v1174
        %v1337 = vadd.f32 %v1336, %v1190
        %v1338 = vadd.f32 %v1337, %v1206
        %v1339 = vadd.f32 %v1338, %v1222
        %v1340 = vadd.f32 %v1339, %v1238
        %v1341 = vadd.f32 %v1340, %v1254
        %v1342 = vadd.f32 %v1341, %v1270
        %v1343 = vadd.f32 %v1127, %v1143
        %v1344 = vadd.f32 %v1343, %v1159
        %v1345 = vadd.f32 %v1344, %v1175
        %v1346 = vadd.f32 %v1345, %v1191
        %v1347 = vadd.f32 %v1346, %v1207
        %v1348 = vadd.f32 %v1347, %v1223
        %v1349 = vadd.f32 %v1348, %v1239
        %v1350 = vadd.f32 %v1349, %v1255
        %v1351 = vadd.f32 %v1350, %v1271
        %v1352 = vadd.f32 %v1128, %v1144
        %v1353 = vadd.f32 %v1352, %v1160
        %v1354 = vadd.f32 %v1353, %v1176
        %v1355 = vadd.f32 %v1354, %v1192
        %v1356 = vadd.f32 %v1355, %v1208
        %v1357 = vadd.f32 %v1356, %v1224
        %v1358 = vadd.f32 %v1357, %v1240
        %v1359 = vadd.f32 %v1358, %v1256
        %v1360 = vadd.f32 %v1359, %v1272
        %v1361 = vadd.f32 %v1129, %v1145
        %v1362 = vadd.f32 %v1361, %v1161
        %v1363 = vadd.f32 %v1362, %v1177
        %v1364 = vadd.f32 %v1363, %v1193
        %v1365 = vadd.f32 %v1364, %v1209
        %v1366 = vadd.f32 %v1365, %v1225
        %v1367 = vadd.f32 %v1366, %v1241
        %v1368 = vadd.f32 %v1367, %v1257
        %v1369 = vadd.f32 %v1368, %v1273
        %v1370 = vadd.f32 %v1130, %v1146
        %v1371 = vadd.f32 %v1370, %v1162
        %v1372 = vadd.f32 %v1371, %v1178
        %v1373 = vadd.f32 %v1372, %v1194
        %v1374 = vadd.f32 %v1373, %v1210
        %v1375 = vadd.f32 %v1374, %v1226
        %v1376 = vadd.f32 %v1375, %v1242
        %v1377 = vadd.f32 %v1376, %v1258
        %v1378 = vadd.f32 %v1377, %v1274
        %v1379 = vadd.f32 %v1131, %v1147
        %v1380 = vadd.f32 %v1379, %v1163
        %v1381 = vadd.f32 %v1380, %v1179
        %v1382 = vadd.f32 %v1381, %v1195
        %v1383 = vadd.f32 %v1382, %v1211
        %v1384 = vadd.f32 %v1383, %v1227
        %v1385 = vadd.f32 %v1384, %v1243
        %v1386 = vadd.f32 %v1385, %v1259
        %v1387 = vadd.f32 %v1386, %v1275
        %v1388 = vadd.f32 %v1132, %v1148
        %v1389 = vadd.f32 %v1388, %v1164
        %v1390 = vadd.f32 %v1389, %v1180
        %v1391 = vadd.f32 %v1390, %v1196
        %v1392 = vadd.f32 %v1391, %v1212
        %v1393 = vadd.f32 %v1392, %v1228
        %v1394 = vadd.f32 %v1393, %v1244
        %v1395 = vadd.f32 %v1394, %v1260
        %v1396 = vadd.f32 %v1395, %v1276
        %v1397 = vadd.f32 %v1133, %v1149
        %v1398 = vadd.f32 %v1397, %v1165
        %v1399 = vadd.f32 %v1398, %v1181
        %v1400 = vadd.f32 %v1399, %v1197
        %v1401 = vadd.f32 %v1400, %v1213
        %v1402 = vadd.f32 %v1401, %v1229
        %v1403 = vadd.f32 %v1402, %v1245
        %v1404 = vadd.f32 %v1403, %v1261
        %v1405 = vadd.f32 %v1404, %v1277
        %v1406 = vadd.f32 %v1134, %v1150
        %v1407 = vadd.f32 %v1406, %v1166
        %v1408 = vadd.f32 %v1407, %v1182
        %v1409 = vadd.f32 %v1408, %v1198
        %v1410 = vadd.f32 %v1409, %v1214
        %v1411 = vadd.f32 %v1410, %v1230
        %v1412 = vadd.f32 %v1411, %v1246
        %v1413 = vadd.f32 %v1412, %v1262
        %v1414 = vadd.f32 %v1413, %v1278
        %v1415 = vadd.f32 %v1135, %v1151
        %v1416 = vadd.f32 %v1415, %v1167
        %v1417 = vadd.f32 %v1416, %v1183
        %v1418 = vadd.f32 %v1417, %v1199
        %v1419 = vadd.f32 %v1418, %v1215
        %v1420 = vadd.f32 %v1419, %v1231
        %v1421 = vadd.f32 %v1420, %v1247
        %v1422 = vadd.f32 %v1421, %v1263
        %v1423 = vadd.f32 %v1422, %v1279
        %v1424 = vmul.f32 %v1288, 0.1
        %v1425 = vmul.f32 %v1297, 0.1
        %v1426 = vmul.f32 %v1306, 0.1
        %v1427 = vmul.f32 %v1315, 0.1
        %v1428 = vmul.f32 %v1324, 0.1
        %v1429 = vmul.f32 %v1333, 0.1
        %v1430 = vmul.f32 %v1342, 0.1
        %v1431 = vmul.f32 %v1351, 0.1
        %v1432 = vmul.f32 %v1360, 0.1
        %v1433 = vmul.f32 %v1369, 0.1
        %v1434 = vmul.f32 %v1378, 0.1
        %v1435 = vmul.f32 %v1387, 0.1
        %v1436 = vmul.f32 %v1396, 0.1
        %v1437 = vmul.f32 %v1405, 0.1
        %v1438 = vmul.f32 %v1414, 0.1
        %v1439 = vmul.f32 %v1423, 0.1
        %v1440 = vpack.c.bf16 %v1425, %v1424
        %v1441 = vpack.c.bf16 %v1427, %v1426
        %v1442 = vpack.c.bf16 %v1429, %v1428
        %v1443 = vpack.c.bf16 %v1431, %v1430
        %v1444 = vpack.c.bf16 %v1433, %v1432
        %v1445 = vpack.c.bf16 %v1435, %v1434
        %v1446 = vpack.c.bf16 %v1437, %v1436
        %v1447 = vpack.c.bf16 %v1439, %v1438
        %v1448 = vld [vmem:[%s1] sm:$0xf]
        %v1449 = vld [vmem:[%s1 + $0x4] sm:$0xf]
        %v1450 = vld [vmem:[%s1 + $0x8] sm:$0xf]
        %v1451 = vld [vmem:[%s1 + $0xc] sm:$0xf]
        %v1452 = vld [vmem:[%s1 + $0x10] sm:$0xf]
        %v1453 = vld [vmem:[%s1 + $0x14] sm:$0xf]
        %v1454 = vld [vmem:[%s1 + $0x18] sm:$0xf]
        %v1455 = vld [vmem:[%s1 + $0x1c] sm:$0xf]
        %v1456 = vld [vmem:[%s1 + $0x20] sm:$0xf]
        %v1457 = vld [vmem:[%s1 + $0x24] sm:$0xf]
        %v1458 = vld [vmem:[%s1 + $0x28] sm:$0xf]
        %v1459 = vld [vmem:[%s1 + $0x2c] sm:$0xf]
        %v1460 = vld [vmem:[%s1 + $0x30] sm:$0xf]
        %v1461 = vld [vmem:[%s1 + $0x34] sm:$0xf]
        %v1462 = vld [vmem:[%s1 + $0x38] sm:$0xf]
        %v1463 = vld [vmem:[%s1 + $0x3c] sm:$0xf]
        %v1464 = vld [vmem:[%s2] sm:$0x1]
        %v1466 = vlaneseq
        %v1467 = vshrl.u32 %v1466, 7
        %v1468 = vsub.s32 0, %v1467
        %v1469 = vrot.slane %v1464, %v1468
        %v1487 = vunpack.c.l.b16 %v1448
        %v1488 = vunpack.c.l.b16 %v1449
        %v1489 = vunpack.c.l.b16 %v1450
        %v1490 = vunpack.c.l.b16 %v1451
        %v1491 = vunpack.c.l.b16 %v1452
        %v1492 = vunpack.c.l.b16 %v1453
        %v1493 = vunpack.c.l.b16 %v1454
        %v1494 = vunpack.c.l.b16 %v1455
        %v1495 = vunpack.c.l.b16 %v1456
        %v1496 = vunpack.c.l.b16 %v1457
        %v1497 = vunpack.c.l.b16 %v1458
        %v1498 = vunpack.c.l.b16 %v1459
        %v1499 = vunpack.c.l.b16 %v1460
        %v1500 = vunpack.c.l.b16 %v1461
        %v1501 = vunpack.c.l.b16 %v1462
        %v1502 = vunpack.c.l.b16 %v1463
        %v1503 = vpack.c.b16 %v1488, %v1487
        %v1504 = vpack.c.b16 %v1490, %v1489
        %v1505 = vpack.c.b16 %v1492, %v1491
        %v1506 = vpack.c.b16 %v1494, %v1493
        %v1507 = vpack.c.b16 %v1496, %v1495
        %v1508 = vpack.c.b16 %v1498, %v1497
        %v1509 = vpack.c.b16 %v1500, %v1499
        %v1510 = vpack.c.b16 %v1502, %v1501
        %1519 = vmatprep.subr.bf16.mxu0 0
        %1520 = vmatpush1.bf16.msra.mxu0 %v1503
        %1521 = vmatprep.subr.bf16.mxu0 0
        %1522 = vmatpush1.bf16.msra.mxu0 %v1504
        %1523 = vmatprep.subr.bf16.mxu0 0
        %1524 = vmatpush1.bf16.msra.mxu0 %v1505
        %1525 = vmatprep.subr.bf16.mxu0 0
        %1526 = vmatpush1.bf16.msra.mxu0 %v1506
        %1527 = vmatprep.subr.bf16.mxu0 0
        %1528 = vmatpush1.bf16.msra.mxu0 %v1507
        %1529 = vmatprep.subr.bf16.mxu0 0
        %1530 = vmatpush1.bf16.msra.mxu0 %v1508
        %1531 = vmatprep.subr.bf16.mxu0 0
        %1532 = vmatpush1.bf16.msra.mxu0 %v1509
        %1533 = vmatprep.subr.bf16.mxu0 0
        %1534 = vmatpush1.bf16.msra.mxu0 %v1510
        %1535 = vmatprep.subr.bf16.mxu0 0
        %1536 = vmatpush1.bf16.msra.mxu0 0
        %1537 = vmatprep.subr.bf16.mxu0 0
        %1538 = vmatpush1.bf16.msra.mxu0 0
        %1539 = vmatprep.subr.bf16.mxu0 0
        %1540 = vmatpush1.bf16.msra.mxu0 0
        %1541 = vmatprep.subr.bf16.mxu0 0
        %1542 = vmatpush1.bf16.msra.mxu0 0
        %1543 = vmatprep.subr.bf16.mxu0 0
        %1544 = vmatpush1.bf16.msra.mxu0 0
        %1545 = vmatprep.subr.bf16.mxu0 0
        %1546 = vmatpush1.bf16.msra.mxu0 0
        %1547 = vmatprep.subr.bf16.mxu0 0
        %1548 = vmatpush1.bf16.msra.mxu0 0
        %1549 = vmatprep.subr.bf16.mxu0 0
        %1550 = vmatpush1.bf16.msra.mxu0 0
        %1551 = vmatprep.mubr.bf16.mxu0 0
        %1552 = vmatmul.mubr.bf16.gmra.mrb[0].mxu0 %v1440
        %v1553 = vpop.f32.mrb[0].mxu0
        %v1554 = vadd.f32 %v1469, %v1553
        %v1555 = vpop.f32.mrb[0].mxu0
        %v1556 = vpop.f32.mrb[0].mxu0
        %v1557 = vadd.f32 %v1469, %v1556
        %v1558 = vpop.f32.mrb[0].mxu0
        %1559 = vmatprep.mubr.bf16.mxu0 0
        %1560 = vmatmul.mubr.bf16.gmra.mrb[0].mxu0 %v1441
        %v1561 = vpop.f32.mrb[0].mxu0
        %v1562 = vadd.f32 %v1469, %v1561
        %v1563 = vpop.f32.mrb[0].mxu0
        %v1564 = vpop.f32.mrb[0].mxu0
        %v1565 = vadd.f32 %v1469, %v1564
        %v1566 = vpop.f32.mrb[0].mxu0
        %1567 = vmatprep.mubr.bf16.mxu0 0
        %1568 = vmatmul.mubr.bf16.gmra.mrb[0].mxu0 %v1442
        %v1569 = vpop.f32.mrb[0].mxu0
        %v1570 = vadd.f32 %v1469, %v1569
        %v1571 = vpop.f32.mrb[0].mxu0
        %v1572 = vpop.f32.mrb[0].mxu0
        %v1573 = vadd.f32 %v1469, %v1572
        %v1574 = vpop.f32.mrb[0].mxu0
        %1575 = vmatprep.mubr.bf16.mxu0 0
        %1576 = vmatmul.mubr.bf16.gmra.mrb[0].mxu0 %v1443
        %v1577 = vpop.f32.mrb[0].mxu0
        %v1578 = vadd.f32 %v1469, %v1577
        %v1579 = vpop.f32.mrb[0].mxu0
        %v1580 = vpop.f32.mrb[0].mxu0
        %v1581 = vadd.f32 %v1469, %v1580
        %v1582 = vpop.f32.mrb[0].mxu0
        %1583 = vmatprep.mubr.bf16.mxu0 0
        %1584 = vmatmul.mubr.bf16.gmra.mrb[0].mxu0 %v1444
        %v1585 = vpop.f32.mrb[0].mxu0
        %v1586 = vadd.f32 %v1469, %v1585
        %v1587 = vpop.f32.mrb[0].mxu0
        %v1588 = vpop.f32.mrb[0].mxu0
        %v1589 = vadd.f32 %v1469, %v1588
        %v1590 = vpop.f32.mrb[0].mxu0
        %1591 = vmatprep.mubr.bf16.mxu0 0
        %1592 = vmatmul.mubr.bf16.gmra.mrb[0].mxu0 %v1445
        %v1593 = vpop.f32.mrb[0].mxu0
        %v1594 = vadd.f32 %v1469, %v1593
        %v1595 = vpop.f32.mrb[0].mxu0
        %v1596 = vpop.f32.mrb[0].mxu0
        %v1597 = vadd.f32 %v1469, %v1596
        %v1598 = vpop.f32.mrb[0].mxu0
        %1599 = vmatprep.mubr.bf16.mxu0 0
        %1600 = vmatmul.mubr.bf16.gmra.mrb[0].mxu0 %v1446
        %v1601 = vpop.f32.mrb[0].mxu0
        %v1602 = vadd.f32 %v1469, %v1601
        %v1603 = vpop.f32.mrb[0].mxu0
        %v1604 = vpop.f32.mrb[0].mxu0
        %v1605 = vadd.f32 %v1469, %v1604
        %v1606 = vpop.f32.mrb[0].mxu0
        %1607 = vmatprep.mubr.bf16.mxu0 0
        %1608 = vmatmul.mubr.bf16.gmra.mrb[0].mxu0 %v1447
        %v1609 = vpop.f32.mrb[0].mxu0
        %v1610 = vadd.f32 %v1469, %v1609
        %v1611 = vpop.f32.mrb[0].mxu0
        %v1612 = vpop.f32.mrb[0].mxu0
        %v1613 = vadd.f32 %v1469, %v1612
        %v1614 = vpop.f32.mrb[0].mxu0
        %1615 = vdwg.mxu0
        %v1616 = vpack.c.bf16 %v1557, %v1554
        %v1617 = vpack.c.bf16 %v1565, %v1562
        %v1618 = vpack.c.bf16 %v1573, %v1570
        %v1619 = vpack.c.bf16 %v1581, %v1578
        %v1620 = vpack.c.bf16 %v1589, %v1586
        %v1621 = vpack.c.bf16 %v1597, %v1594
        %v1622 = vpack.c.bf16 %v1605, %v1602
        %v1623 = vpack.c.bf16 %v1613, %v1610
        %v1624 = vld [vmem:[%s3] sm:$0xf]
        %v1625 = vld [vmem:[%s3 + $0x4] sm:$0xf]
        %v1626 = vld [vmem:[%s3 + $0x8] sm:$0xf]
        %v1627 = vld [vmem:[%s3 + $0xc] sm:$0xf]
        %v1628 = vld [vmem:[%s3 + $0x10] sm:$0xf]
        %v1629 = vld [vmem:[%s3 + $0x14] sm:$0xf]
        %v1630 = vld [vmem:[%s3 + $0x18] sm:$0xf]
        %v1631 = vld [vmem:[%s3 + $0x1c] sm:$0xf]
        %v1632 = vld [vmem:[%s3 + $0x20] sm:$0xf]
        %v1633 = vld [vmem:[%s3 + $0x24] sm:$0xf]
        %v1634 = vld [vmem:[%s3 + $0x28] sm:$0xf]
        %v1635 = vld [vmem:[%s3 + $0x2c] sm:$0xf]
        %v1636 = vld [vmem:[%s3 + $0x30] sm:$0xf]
        %v1637 = vld [vmem:[%s3 + $0x34] sm:$0xf]
        %v1638 = vld [vmem:[%s3 + $0x38] sm:$0xf]
        %v1639 = vld [vmem:[%s3 + $0x3c] sm:$0xf]
        %v1640 = vld [vmem:[%s4] sm:$0x1]
        %v1642 = vlaneseq
        %v1643 = vshrl.u32 %v1642, 7
        %v1644 = vsub.s32 0, %v1643
        %v1645 = vrot.slane %v1640, %v1644
        %v1663 = vunpack.c.l.b16 %v1624
        %v1664 = vunpack.c.l.b16 %v1625
        %v1665 = vunpack.c.l.b16 %v1626
        %v1666 = vunpack.c.l.b16 %v1627
        %v1667 = vunpack.c.l.b16 %v1628
        %v1668 = vunpack.c.l.b16 %v1629
        %v1669 = vunpack.c.l.b16 %v1630
        %v1670 = vunpack.c.l.b16 %v1631
        %v1671 = vunpack.c.l.b16 %v1632
        %v1672 = vunpack.c.l.b16 %v1633
        %v1673 = vunpack.c.l.b16 %v1634
        %v1674 = vunpack.c.l.b16 %v1635
        %v1675 = vunpack.c.l.b16 %v1636
        %v1676 = vunpack.c.l.b16 %v1637
        %v1677 = vunpack.c.l.b16 %v1638
        %v1678 = vunpack.c.l.b16 %v1639
        %v1679 = vpack.c.b16 %v1664, %v1663
        %v1680 = vpack.c.b16 %v1666, %v1665
        %v1681 = vpack.c.b16 %v1668, %v1667
        %v1682 = vpack.c.b16 %v1670, %v1669
        %v1683 = vpack.c.b16 %v1672, %v1671
        %v1684 = vpack.c.b16 %v1674, %v1673
        %v1685 = vpack.c.b16 %v1676, %v1675
        %v1686 = vpack.c.b16 %v1678, %v1677
        %1695 = vmatprep.subr.bf16.mxu0 0
        %1696 = vmatpush1.bf16.msra.mxu0 %v1679
        %1697 = vmatprep.subr.bf16.mxu0 0
        %1698 = vmatpush1.bf16.msra.mxu0 %v1680
        %1699 = vmatprep.subr.bf16.mxu0 0
        %1700 = vmatpush1.bf16.msra.mxu0 %v1681
        %1701 = vmatprep.subr.bf16.mxu0 0
        %1702 = vmatpush1.bf16.msra.mxu0 %v1682
        %1703 = vmatprep.subr.bf16.mxu0 0
        %1704 = vmatpush1.bf16.msra.mxu0 %v1683
        %1705 = vmatprep.subr.bf16.mxu0 0
        %1706 = vmatpush1.bf16.msra.mxu0 %v1684
        %1707 = vmatprep.subr.bf16.mxu0 0
        %1708 = vmatpush1.bf16.msra.mxu0 %v1685
        %1709 = vmatprep.subr.bf16.mxu0 0
        %1710 = vmatpush1.bf16.msra.mxu0 %v1686
        %1711 = vmatprep.subr.bf16.mxu0 0
        %1712 = vmatpush1.bf16.msra.mxu0 0
        %1713 = vmatprep.subr.bf16.mxu0 0
        %1714 = vmatpush1.bf16.msra.mxu0 0
        %1715 = vmatprep.subr.bf16.mxu0 0
        %1716 = vmatpush1.bf16.msra.mxu0 0
        %1717 = vmatprep.subr.bf16.mxu0 0
        %1718 = vmatpush1.bf16.msra.mxu0 0
        %1719 = vmatprep.subr.bf16.mxu0 0
        %1720 = vmatpush1.bf16.msra.mxu0 0
        %1721 = vmatprep.subr.bf16.mxu0 0
        %1722 = vmatpush1.bf16.msra.mxu0 0
        %1723 = vmatprep.subr.bf16.mxu0 0
        %1724 = vmatpush1.bf16.msra.mxu0 0
        %1725 = vmatprep.subr.bf16.mxu0 0
        %1726 = vmatpush1.bf16.msra.mxu0 0
        %1727 = vmatprep.mubr.bf16.mxu0 0
        %1728 = vmatmul.mubr.bf16.gmra.mrb[0].mxu0 %v1616
        %v1729 = vpop.f32.mrb[0].mxu0
        %v1730 = vadd.f32 %v1645, %v1729
        %v1731 = vpop.f32.mrb[0].mxu0
        %v1732 = vpop.f32.mrb[0].mxu0
        %v1733 = vadd.f32 %v1645, %v1732
        %v1734 = vpop.f32.mrb[0].mxu0
        %1735 = vmatprep.mubr.bf16.mxu0 0
        %1736 = vmatmul.mubr.bf16.gmra.mrb[0].mxu0 %v1617
        %v1737 = vpop.f32.mrb[0].mxu0
        %v1738 = vadd.f32 %v1645, %v1737
        %v1739 = vpop.f32.mrb[0].mxu0
        %v1740 = vpop.f32.mrb[0].mxu0
        %v1741 = vadd.f32 %v1645, %v1740
        %v1742 = vpop.f32.mrb[0].mxu0
        %1743 = vmatprep.mubr.bf16.mxu0 0
        %1744 = vmatmul.mubr.bf16.gmra.mrb[0].mxu0 %v1618
        %v1745 = vpop.f32.mrb[0].mxu0
        %v1746 = vadd.f32 %v1645, %v1745
        %v1747 = vpop.f32.mrb[0].mxu0
        %v1748 = vpop.f32.mrb[0].mxu0
        %v1749 = vadd.f32 %v1645, %v1748
        %v1750 = vpop.f32.mrb[0].mxu0
        %1751 = vmatprep.mubr.bf16.mxu0 0
        %1752 = vmatmul.mubr.bf16.gmra.mrb[0].mxu0 %v1619
        %v1753 = vpop.f32.mrb[0].mxu0
        %v1754 = vadd.f32 %v1645, %v1753
        %v1755 = vpop.f32.mrb[0].mxu0
        %v1756 = vpop.f32.mrb[0].mxu0
        %v1757 = vadd.f32 %v1645, %v1756
        %v1758 = vpop.f32.mrb[0].mxu0
        %1759 = vmatprep.mubr.bf16.mxu0 0
        %1760 = vmatmul.mubr.bf16.gmra.mrb[0].mxu0 %v1620
        %v1761 = vpop.f32.mrb[0].mxu0
        %v1762 = vadd.f32 %v1645, %v1761
        %v1763 = vpop.f32.mrb[0].mxu0
        %v1764 = vpop.f32.mrb[0].mxu0
        %v1765 = vadd.f32 %v1645, %v1764
        %v1766 = vpop.f32.mrb[0].mxu0
        %1767 = vmatprep.mubr.bf16.mxu0 0
        %1768 = vmatmul.mubr.bf16.gmra.mrb[0].mxu0 %v1621
        %v1769 = vpop.f32.mrb[0].mxu0
        %v1770 = vadd.f32 %v1645, %v1769
        %v1771 = vpop.f32.mrb[0].mxu0
        %v1772 = vpop.f32.mrb[0].mxu0
        %v1773 = vadd.f32 %v1645, %v1772
        %v1774 = vpop.f32.mrb[0].mxu0
        %1775 = vmatprep.mubr.bf16.mxu0 0
        %1776 = vmatmul.mubr.bf16.gmra.mrb[0].mxu0 %v1622
        %v1777 = vpop.f32.mrb[0].mxu0
        %v1778 = vadd.f32 %v1645, %v1777
        %v1779 = vpop.f32.mrb[0].mxu0
        %v1780 = vpop.f32.mrb[0].mxu0
        %v1781 = vadd.f32 %v1645, %v1780
        %v1782 = vpop.f32.mrb[0].mxu0
        %1783 = vmatprep.mubr.bf16.mxu0 0
        %1784 = vmatmul.mubr.bf16.gmra.mrb[0].mxu0 %v1623
        %v1785 = vpop.f32.mrb[0].mxu0
        %v1786 = vadd.f32 %v1645, %v1785
        %v1787 = vpop.f32.mrb[0].mxu0
        %v1788 = vpop.f32.mrb[0].mxu0
        %v1789 = vadd.f32 %v1645, %v1788
        %v1790 = vpop.f32.mrb[0].mxu0
        %1791 = vdwg.mxu0
        %1792 = vmax.xlane.f32.xlu0 %v1730
        %v1793 = vpop.xlane.xlu0 %1792
        %1794 = vmax.xlane.f32.xlu0 %v1733
        %v1795 = vpop.xlane.xlu0 %1794
        %1796 = vmax.xlane.f32.xlu0 %v1738
        %v1797 = vpop.xlane.xlu0 %1796
        %1798 = vmax.xlane.f32.xlu0 %v1741
        %v1799 = vpop.xlane.xlu0 %1798
        %1800 = vmax.xlane.f32.xlu0 %v1746
        %v1801 = vpop.xlane.xlu0 %1800
        %1802 = vmax.xlane.f32.xlu0 %v1749
        %v1803 = vpop.xlane.xlu0 %1802
        %1804 = vmax.xlane.f32.xlu0 %v1754
        %v1805 = vpop.xlane.xlu0 %1804
        %1806 = vmax.xlane.f32.xlu0 %v1757
        %v1807 = vpop.xlane.xlu0 %1806
        %1808 = vmax.xlane.f32.xlu0 %v1762
        %v1809 = vpop.xlane.xlu0 %1808
        %1810 = vmax.xlane.f32.xlu0 %v1765
        %v1811 = vpop.xlane.xlu0 %1810
        %1812 = vmax.xlane.f32.xlu0 %v1770
        %v1813 = vpop.xlane.xlu0 %1812
        %1814 = vmax.xlane.f32.xlu0 %v1773
        %v1815 = vpop.xlane.xlu0 %1814
        %1816 = vmax.xlane.f32.xlu0 %v1778
        %v1817 = vpop.xlane.xlu0 %1816
        %1818 = vmax.xlane.f32.xlu0 %v1781
        %v1819 = vpop.xlane.xlu0 %1818
        %1820 = vmax.xlane.f32.xlu0 %v1786
        %v1821 = vpop.xlane.xlu0 %1820
        %1822 = vmax.xlane.f32.xlu0 %v1789
        %v1823 = vpop.xlane.xlu0 %1822
        %v1824 = vsub.f32 %v1730, %v1793
        %v1825 = vsub.f32 %v1733, %v1795
        %v1826 = vsub.f32 %v1738, %v1797
        %v1827 = vsub.f32 %v1741, %v1799
        %v1828 = vsub.f32 %v1746, %v1801
        %v1829 = vsub.f32 %v1749, %v1803
        %v1830 = vsub.f32 %v1754, %v1805
        %v1831 = vsub.f32 %v1757, %v1807
        %v1832 = vsub.f32 %v1762, %v1809
        %v1833 = vsub.f32 %v1765, %v1811
        %v1834 = vsub.f32 %v1770, %v1813
        %v1835 = vsub.f32 %v1773, %v1815
        %v1836 = vsub.f32 %v1778, %v1817
        %v1837 = vsub.f32 %v1781, %v1819
        %v1838 = vsub.f32 %v1786, %v1821
        %v1839 = vsub.f32 %v1789, %v1823
        %v1840 = vmul.f32 %v1824, 1.442695
        %v1841 = vpow.pop %v1840
        %v1842 = vmul.f32 %v1825, 1.442695
        %v1843 = vpow.pop %v1842
        %v1844 = vmul.f32 %v1826, 1.442695
        %v1845 = vpow.pop %v1844
        %v1846 = vmul.f32 %v1827, 1.442695
        %v1847 = vpow.pop %v1846
        %v1848 = vmul.f32 %v1828, 1.442695
        %v1849 = vpow.pop %v1848
        %v1850 = vmul.f32 %v1829, 1.442695
        %v1851 = vpow.pop %v1850
        %v1852 = vmul.f32 %v1830, 1.442695
        %v1853 = vpow.pop %v1852
        %v1854 = vmul.f32 %v1831, 1.442695
        %v1855 = vpow.pop %v1854
        %v1856 = vmul.f32 %v1832, 1.442695
        %v1857 = vpow.pop %v1856
        %v1858 = vmul.f32 %v1833, 1.442695
        %v1859 = vpow.pop %v1858
        %v1860 = vmul.f32 %v1834, 1.442695
        %v1861 = vpow.pop %v1860
        %v1862 = vmul.f32 %v1835, 1.442695
        %v1863 = vpow.pop %v1862
        %v1864 = vmul.f32 %v1836, 1.442695
        %v1865 = vpow.pop %v1864
        %v1866 = vmul.f32 %v1837, 1.442695
        %v1867 = vpow.pop %v1866
        %v1868 = vmul.f32 %v1838, 1.442695
        %v1869 = vpow.pop %v1868
        %v1870 = vmul.f32 %v1839, 1.442695
        %v1871 = vpow.pop %v1870
        %1872 = vadd.xlane.f32.xlu0 %v1841
        %v1873 = vpop.xlane.xlu0 %1872
        %1874 = vadd.xlane.f32.xlu0 %v1843
        %v1875 = vpop.xlane.xlu0 %1874
        %1876 = vadd.xlane.f32.xlu0 %v1845
        %v1877 = vpop.xlane.xlu0 %1876
        %1878 = vadd.xlane.f32.xlu0 %v1847
        %v1879 = vpop.xlane.xlu0 %1878
        %1880 = vadd.xlane.f32.xlu0 %v1849
        %v1881 = vpop.xlane.xlu0 %1880
        %1882 = vadd.xlane.f32.xlu0 %v1851
        %v1883 = vpop.xlane.xlu0 %1882
        %1884 = vadd.xlane.f32.xlu0 %v1853
        %v1885 = vpop.xlane.xlu0 %1884
        %1886 = vadd.xlane.f32.xlu0 %v1855
        %v1887 = vpop.xlane.xlu0 %1886
        %1888 = vadd.xlane.f32.xlu0 %v1857
        %v1889 = vpop.xlane.xlu0 %1888
        %1890 = vadd.xlane.f32.xlu0 %v1859
        %v1891 = vpop.xlane.xlu0 %1890
        %1892 = vadd.xlane.f32.xlu0 %v1861
        %v1893 = vpop.xlane.xlu0 %1892
        %1894 = vadd.xlane.f32.xlu0 %v1863
        %v1895 = vpop.xlane.xlu0 %1894
        %1896 = vadd.xlane.f32.xlu0 %v1865
        %v1897 = vpop.xlane.xlu0 %1896
        %1898 = vadd.xlane.f32.xlu0 %v1867
        %v1899 = vpop.xlane.xlu0 %1898
        %1900 = vadd.xlane.f32.xlu0 %v1869
        %v1901 = vpop.xlane.xlu0 %1900
        %1902 = vadd.xlane.f32.xlu0 %v1871
        %v1903 = vpop.xlane.xlu0 %1902
        %v1904 = vrcp.pop %v1873
        %v1905 = vrcp.pop %v1875
        %v1906 = vrcp.pop %v1877
        %v1907 = vrcp.pop %v1879
        %v1908 = vrcp.pop %v1881
        %v1909 = vrcp.pop %v1883
        %v1910 = vrcp.pop %v1885
        %v1911 = vrcp.pop %v1887
        %v1912 = vrcp.pop %v1889
        %v1913 = vrcp.pop %v1891
        %v1914 = vrcp.pop %v1893
        %v1915 = vrcp.pop %v1895
        %v1916 = vrcp.pop %v1897
        %v1917 = vrcp.pop %v1899
        %v1918 = vrcp.pop %v1901
        %v1919 = vrcp.pop %v1903
        %v1920 = vmul.f32 %v1841, %v1904
        %v1921 = vmul.f32 %v1843, %v1905
        %v1922 = vmul.f32 %v1845, %v1906
        %v1923 = vmul.f32 %v1847, %v1907
        %v1924 = vmul.f32 %v1849, %v1908
        %v1925 = vmul.f32 %v1851, %v1909
        %v1926 = vmul.f32 %v1853, %v1910
        %v1927 = vmul.f32 %v1855, %v1911
        %v1928 = vmul.f32 %v1857, %v1912
        %v1929 = vmul.f32 %v1859, %v1913
        %v1930 = vmul.f32 %v1861, %v1914
        %v1931 = vmul.f32 %v1863, %v1915
        %v1932 = vmul.f32 %v1865, %v1916
        %v1933 = vmul.f32 %v1867, %v1917
        %v1934 = vmul.f32 %v1869, %v1918
        %v1935 = vmul.f32 %v1871, %v1919
        %v1936 = vpack.c.bf16 %v1921, %v1920
        %v1937 = vpack.c.bf16 %v1923, %v1922
        %v1938 = vpack.c.bf16 %v1925, %v1924
        %v1939 = vpack.c.bf16 %v1927, %v1926
        %v1940 = vpack.c.bf16 %v1929, %v1928
        %v1941 = vpack.c.bf16 %v1931, %v1930
        %v1942 = vpack.c.bf16 %v1933, %v1932
        %v1943 = vpack.c.bf16 %v1935, %v1934
        %v1944 = vld [vmem:[%s5] sm:$0xf]
        %v1945 = vld [vmem:[%s5 + $0x4] sm:$0xf]
        %v1946 = vld [vmem:[%s5 + $0x8] sm:$0xf]
        %v1947 = vld [vmem:[%s5 + $0xc] sm:$0xf]
        %v1948 = vld [vmem:[%s5 + $0x10] sm:$0xf]
        %v1949 = vld [vmem:[%s5 + $0x14] sm:$0xf]
        %v1950 = vld [vmem:[%s5 + $0x18] sm:$0xf]
        %v1951 = vld [vmem:[%s5 + $0x1c] sm:$0xf]
        %v1952 = vld [vmem:[%s5 + $0x20] sm:$0xf]
        %v1953 = vld [vmem:[%s5 + $0x24] sm:$0xf]
        %v1954 = vld [vmem:[%s5 + $0x28] sm:$0xf]
        %v1955 = vld [vmem:[%s5 + $0x2c] sm:$0xf]
        %v1956 = vld [vmem:[%s5 + $0x30] sm:$0xf]
        %v1957 = vld [vmem:[%s5 + $0x34] sm:$0xf]
        %v1958 = vld [vmem:[%s5 + $0x38] sm:$0xf]
        %v1959 = vld [vmem:[%s5 + $0x3c] sm:$0xf]
        %v1960 = vld [vmem:[%s6] sm:$0x1]
        %v1962 = vlaneseq
        %v1963 = vshrl.u32 %v1962, 7
        %v1964 = vsub.s32 0, %v1963
        %v1965 = vrot.slane %v1960, %v1964
        %v1983 = vunpack.c.l.b16 %v1944
        %v1984 = vunpack.c.l.b16 %v1945
        %v1985 = vunpack.c.l.b16 %v1946
        %v1986 = vunpack.c.l.b16 %v1947
        %v1987 = vunpack.c.l.b16 %v1948
        %v1988 = vunpack.c.l.b16 %v1949
        %v1989 = vunpack.c.l.b16 %v1950
        %v1990 = vunpack.c.l.b16 %v1951
        %v1991 = vunpack.c.l.b16 %v1952
        %v1992 = vunpack.c.l.b16 %v1953
        %v1993 = vunpack.c.l.b16 %v1954
        %v1994 = vunpack.c.l.b16 %v1955
        %v1995 = vunpack.c.l.b16 %v1956
        %v1996 = vunpack.c.l.b16 %v1957
        %v1997 = vunpack.c.l.b16 %v1958
        %v1998 = vunpack.c.l.b16 %v1959
        %v1999 = vpack.c.b16 %v1984, %v1983
        %v2000 = vpack.c.b16 %v1986, %v1985
        %v2001 = vpack.c.b16 %v1988, %v1987
        %v2002 = vpack.c.b16 %v1990, %v1989
        %v2003 = vpack.c.b16 %v1992, %v1991
        %v2004 = vpack.c.b16 %v1994, %v1993
        %v2005 = vpack.c.b16 %v1996, %v1995
        %v2006 = vpack.c.b16 %v1998, %v1997
        %2015 = vmatprep.subr.bf16.mxu0 0
        %2016 = vmatpush1.bf16.msra.mxu0 %v1999
        %2017 = vmatprep.subr.bf16.mxu0 0
        %2018 = vmatpush1.bf16.msra.mxu0 %v2000
        %2019 = vmatprep.subr.bf16.mxu0 0
        %2020 = vmatpush1.bf16.msra.mxu0 %v2001
        %2021 = vmatprep.subr.bf16.mxu0 0
        %2022 = vmatpush1.bf16.msra.mxu0 %v2002
        %2023 = vmatprep.subr.bf16.mxu0 0
        %2024 = vmatpush1.bf16.msra.mxu0 %v2003
        %2025 = vmatprep.subr.bf16.mxu0 0
        %2026 = vmatpush1.bf16.msra.mxu0 %v2004
        %2027 = vmatprep.subr.bf16.mxu0 0
        %2028 = vmatpush1.bf16.msra.mxu0 %v2005
        %2029 = vmatprep.subr.bf16.mxu0 0
        %2030 = vmatpush1.bf16.msra.mxu0 %v2006
        %2031 = vmatprep.subr.bf16.mxu0 0
        %2032 = vmatpush1.bf16.msra.mxu0 0
        %2033 = vmatprep.subr.bf16.mxu0 0
        %2034 = vmatpush1.bf16.msra.mxu0 0
        %2035 = vmatprep.subr.bf16.mxu0 0
        %2036 = vmatpush1.bf16.msra.mxu0 0
        %2037 = vmatprep.subr.bf16.mxu0 0
        %2038 = vmatpush1.bf16.msra.mxu0 0
        %2039 = vmatprep.subr.bf16.mxu0 0
        %2040 = vmatpush1.bf16.msra.mxu0 0
        %2041 = vmatprep.subr.bf16.mxu0 0
        %2042 = vmatpush1.bf16.msra.mxu0 0
        %2043 = vmatprep.subr.bf16.mxu0 0
        %2044 = vmatpush1.bf16.msra.mxu0 0
        %2045 = vmatprep.subr.bf16.mxu0 0
        %2046 = vmatpush1.bf16.msra.mxu0 0
        %2047 = vmatprep.mubr.bf16.mxu0 0
        %2048 = vmatmul.mubr.bf16.gmra.mrb[0].mxu0 %v1936
        %v2049 = vpop.f32.mrb[0].mxu0
        %v2050 = vadd.f32 %v1965, %v2049
        %v2051 = vpop.f32.mrb[0].mxu0
        %v2052 = vpop.f32.mrb[0].mxu0
        %v2053 = vadd.f32 %v1965, %v2052
        %v2054 = vpop.f32.mrb[0].mxu0
        %2055 = vmatprep.mubr.bf16.mxu0 0
        %2056 = vmatmul.mubr.bf16.gmra.mrb[0].mxu0 %v1937
        %v2057 = vpop.f32.mrb[0].mxu0
        %v2058 = vadd.f32 %v1965, %v2057
        %v2059 = vpop.f32.mrb[0].mxu0
        %v2060 = vpop.f32.mrb[0].mxu0
        %v2061 = vadd.f32 %v1965, %v2060
        %v2062 = vpop.f32.mrb[0].mxu0
        %2063 = vmatprep.mubr.bf16.mxu0 0
        %2064 = vmatmul.mubr.bf16.gmra.mrb[0].mxu0 %v1938
        %v2065 = vpop.f32.mrb[0].mxu0
        %v2066 = vadd.f32 %v1965, %v2065
        %v2067 = vpop.f32.mrb[0].mxu0
        %v2068 = vpop.f32.mrb[0].mxu0
        %v2069 = vadd.f32 %v1965, %v2068
        %v2070 = vpop.f32.mrb[0].mxu0
        %2071 = vmatprep.mubr.bf16.mxu0 0
        %2072 = vmatmul.mubr.bf16.gmra.mrb[0].mxu0 %v1939
        %v2073 = vpop.f32.mrb[0].mxu0
        %v2074 = vadd.f32 %v1965, %v2073
        %v2075 = vpop.f32.mrb[0].mxu0
        %v2076 = vpop.f32.mrb[0].mxu0
        %v2077 = vadd.f32 %v1965, %v2076
        %v2078 = vpop.f32.mrb[0].mxu0
        %2079 = vmatprep.mubr.bf16.mxu0 0
        %2080 = vmatmul.mubr.bf16.gmra.mrb[0].mxu0 %v1940
        %v2081 = vpop.f32.mrb[0].mxu0
        %v2082 = vadd.f32 %v1965, %v2081
        %v2083 = vpop.f32.mrb[0].mxu0
        %v2084 = vpop.f32.mrb[0].mxu0
        %v2085 = vadd.f32 %v1965, %v2084
        %v2086 = vpop.f32.mrb[0].mxu0
        %2087 = vmatprep.mubr.bf16.mxu0 0
        %2088 = vmatmul.mubr.bf16.gmra.mrb[0].mxu0 %v1941
        %v2089 = vpop.f32.mrb[0].mxu0
        %v2090 = vadd.f32 %v1965, %v2089
        %v2091 = vpop.f32.mrb[0].mxu0
        %v2092 = vpop.f32.mrb[0].mxu0
        %v2093 = vadd.f32 %v1965, %v2092
        %v2094 = vpop.f32.mrb[0].mxu0
        %2095 = vmatprep.mubr.bf16.mxu0 0
        %2096 = vmatmul.mubr.bf16.gmra.mrb[0].mxu0 %v1942
        %v2097 = vpop.f32.mrb[0].mxu0
        %v2098 = vadd.f32 %v1965, %v2097
        %v2099 = vpop.f32.mrb[0].mxu0
        %v2100 = vpop.f32.mrb[0].mxu0
        %v2101 = vadd.f32 %v1965, %v2100
        %v2102 = vpop.f32.mrb[0].mxu0
        %2103 = vmatprep.mubr.bf16.mxu0 0
        %2104 = vmatmul.mubr.bf16.gmra.mrb[0].mxu0 %v1943
        %v2105 = vpop.f32.mrb[0].mxu0
        %v2106 = vadd.f32 %v1965, %v2105
        %v2107 = vpop.f32.mrb[0].mxu0
        %v2108 = vpop.f32.mrb[0].mxu0
        %v2109 = vadd.f32 %v1965, %v2108
        %v2110 = vpop.f32.mrb[0].mxu0
        %2111 = vdwg.mxu0
        %2112 = vmax.xlane.f32.xlu0 %v2050
        %v2113 = vpop.xlane.xlu0 %2112
        %2114 = vmax.xlane.f32.xlu0 %v2053
        %v2115 = vpop.xlane.xlu0 %2114
        %2116 = vmax.xlane.f32.xlu0 %v2058
        %v2117 = vpop.xlane.xlu0 %2116
        %2118 = vmax.xlane.f32.xlu0 %v2061
        %v2119 = vpop.xlane.xlu0 %2118
        %2120 = vmax.xlane.f32.xlu0 %v2066
        %v2121 = vpop.xlane.xlu0 %2120
        %2122 = vmax.xlane.f32.xlu0 %v2069
        %v2123 = vpop.xlane.xlu0 %2122
        %2124 = vmax.xlane.f32.xlu0 %v2074
        %v2125 = vpop.xlane.xlu0 %2124
        %2126 = vmax.xlane.f32.xlu0 %v2077
        %v2127 = vpop.xlane.xlu0 %2126
        %2128 = vmax.xlane.f32.xlu0 %v2082
        %v2129 = vpop.xlane.xlu0 %2128
        %2130 = vmax.xlane.f32.xlu0 %v2085
        %v2131 = vpop.xlane.xlu0 %2130
        %2132 = vmax.xlane.f32.xlu0 %v2090
        %v2133 = vpop.xlane.xlu0 %2132
        %2134 = vmax.xlane.f32.xlu0 %v2093
        %v2135 = vpop.xlane.xlu0 %2134
        %2136 = vmax.xlane.f32.xlu0 %v2098
        %v2137 = vpop.xlane.xlu0 %2136
        %2138 = vmax.xlane.f32.xlu0 %v2101
        %v2139 = vpop.xlane.xlu0 %2138
        %2140 = vmax.xlane.f32.xlu0 %v2106
        %v2141 = vpop.xlane.xlu0 %2140
        %2142 = vmax.xlane.f32.xlu0 %v2109
        %v2143 = vpop.xlane.xlu0 %2142
        %v2144 = vsub.f32 %v2050, %v2113
        %v2145 = vsub.f32 %v2053, %v2115
        %v2146 = vsub.f32 %v2058, %v2117
        %v2147 = vsub.f32 %v2061, %v2119
        %v2148 = vsub.f32 %v2066, %v2121
        %v2149 = vsub.f32 %v2069, %v2123
        %v2150 = vsub.f32 %v2074, %v2125
        %v2151 = vsub.f32 %v2077, %v2127
        %v2152 = vsub.f32 %v2082, %v2129
        %v2153 = vsub.f32 %v2085, %v2131
        %v2154 = vsub.f32 %v2090, %v2133
        %v2155 = vsub.f32 %v2093, %v2135
        %v2156 = vsub.f32 %v2098, %v2137
        %v2157 = vsub.f32 %v2101, %v2139
        %v2158 = vsub.f32 %v2106, %v2141
        %v2159 = vsub.f32 %v2109, %v2143
        %v2160 = vmul.f32 %v2144, 1.442695
        %v2161 = vpow.pop %v2160
        %v2162 = vmul.f32 %v2145, 1.442695
        %v2163 = vpow.pop %v2162
        %v2164 = vmul.f32 %v2146, 1.442695
        %v2165 = vpow.pop %v2164
        %v2166 = vmul.f32 %v2147, 1.442695
        %v2167 = vpow.pop %v2166
        %v2168 = vmul.f32 %v2148, 1.442695
        %v2169 = vpow.pop %v2168
        %v2170 = vmul.f32 %v2149, 1.442695
        %v2171 = vpow.pop %v2170
        %v2172 = vmul.f32 %v2150, 1.442695
        %v2173 = vpow.pop %v2172
        %v2174 = vmul.f32 %v2151, 1.442695
        %v2175 = vpow.pop %v2174
        %v2176 = vmul.f32 %v2152, 1.442695
        %v2177 = vpow.pop %v2176
        %v2178 = vmul.f32 %v2153, 1.442695
        %v2179 = vpow.pop %v2178
        %v2180 = vmul.f32 %v2154, 1.442695
        %v2181 = vpow.pop %v2180
        %v2182 = vmul.f32 %v2155, 1.442695
        %v2183 = vpow.pop %v2182
        %v2184 = vmul.f32 %v2156, 1.442695
        %v2185 = vpow.pop %v2184
        %v2186 = vmul.f32 %v2157, 1.442695
        %v2187 = vpow.pop %v2186
        %v2188 = vmul.f32 %v2158, 1.442695
        %v2189 = vpow.pop %v2188
        %v2190 = vmul.f32 %v2159, 1.442695
        %v2191 = vpow.pop %v2190
        %2192 = vadd.xlane.f32.xlu0 %v2161
        %v2193 = vpop.xlane.xlu0 %2192
        %2194 = vadd.xlane.f32.xlu0 %v2163
        %v2195 = vpop.xlane.xlu0 %2194
        %2196 = vadd.xlane.f32.xlu0 %v2165
        %v2197 = vpop.xlane.xlu0 %2196
        %2198 = vadd.xlane.f32.xlu0 %v2167
        %v2199 = vpop.xlane.xlu0 %2198
        %2200 = vadd.xlane.f32.xlu0 %v2169
        %v2201 = vpop.xlane.xlu0 %2200
        %2202 = vadd.xlane.f32.xlu0 %v2171
        %v2203 = vpop.xlane.xlu0 %2202
        %2204 = vadd.xlane.f32.xlu0 %v2173
        %v2205 = vpop.xlane.xlu0 %2204
        %2206 = vadd.xlane.f32.xlu0 %v2175
        %v2207 = vpop.xlane.xlu0 %2206
        %2208 = vadd.xlane.f32.xlu0 %v2177
        %v2209 = vpop.xlane.xlu0 %2208
        %2210 = vadd.xlane.f32.xlu0 %v2179
        %v2211 = vpop.xlane.xlu0 %2210
        %2212 = vadd.xlane.f32.xlu0 %v2181
        %v2213 = vpop.xlane.xlu0 %2212
        %2214 = vadd.xlane.f32.xlu0 %v2183
        %v2215 = vpop.xlane.xlu0 %2214
        %2216 = vadd.xlane.f32.xlu0 %v2185
        %v2217 = vpop.xlane.xlu0 %2216
        %2218 = vadd.xlane.f32.xlu0 %v2187
        %v2219 = vpop.xlane.xlu0 %2218
        %2220 = vadd.xlane.f32.xlu0 %v2189
        %v2221 = vpop.xlane.xlu0 %2220
        %2222 = vadd.xlane.f32.xlu0 %v2191
        %v2223 = vpop.xlane.xlu0 %2222
        %v2224 = vrcp.pop %v2193
        %v2225 = vmul.f32 %v2161, %v2224
        %v2226 = vrcp.pop %v2195
        %v2227 = vmul.f32 %v2163, %v2226
        %v2228 = vrcp.pop %v2197
        %v2229 = vmul.f32 %v2165, %v2228
        %v2230 = vrcp.pop %v2199
        %v2231 = vmul.f32 %v2167, %v2230
        %v2232 = vrcp.pop %v2201
        %v2233 = vmul.f32 %v2169, %v2232
        %v2234 = vrcp.pop %v2203
        %v2235 = vmul.f32 %v2171, %v2234
        %v2236 = vrcp.pop %v2205
        %v2237 = vmul.f32 %v2173, %v2236
        %v2238 = vrcp.pop %v2207
        %v2239 = vmul.f32 %v2175, %v2238
        %v2240 = vrcp.pop %v2209
        %v2241 = vmul.f32 %v2177, %v2240
        %v2242 = vrcp.pop %v2211
        %v2243 = vmul.f32 %v2179, %v2242
        %v2244 = vrcp.pop %v2213
        %v2245 = vmul.f32 %v2181, %v2244
        %v2246 = vrcp.pop %v2215
        %v2247 = vmul.f32 %v2183, %v2246
        %v2248 = vrcp.pop %v2217
        %v2249 = vmul.f32 %v2185, %v2248
        %v2250 = vrcp.pop %v2219
        %v2251 = vmul.f32 %v2187, %v2250
        %v2252 = vrcp.pop %v2221
        %v2253 = vmul.f32 %v2189, %v2252
        %v2254 = vrcp.pop %v2223
        %v2255 = vmul.f32 %v2191, %v2254
        %2256 = vst [vmem:[%s957] sm:$0xff] %v2225
        %2257 = vst [vmem:[%s957 + $0x8] sm:$0xff] %v2227
        %2258 = vst [vmem:[%s957 + $0x10] sm:$0xff] %v2229
        %2259 = vst [vmem:[%s957 + $0x18] sm:$0xff] %v2231
        %2260 = vst [vmem:[%s957 + $0x20] sm:$0xff] %v2233
        %2261 = vst [vmem:[%s957 + $0x28] sm:$0xff] %v2235
        %2262 = vst [vmem:[%s957 + $0x30] sm:$0xff] %v2237
        %2263 = vst [vmem:[%s957 + $0x38] sm:$0xff] %v2239
        %2264 = vst [vmem:[%s957 + $0x40] sm:$0xff] %v2241
        %2265 = vst [vmem:[%s957 + $0x48] sm:$0xff] %v2243
        %2266 = vst [vmem:[%s957 + $0x50] sm:$0xff] %v2245
        %2267 = vst [vmem:[%s957 + $0x58] sm:$0xff] %v2247
        %2268 = vst [vmem:[%s957 + $0x60] sm:$0xff] %v2249
        %2269 = vst [vmem:[%s957 + $0x68] sm:$0xff] %v2251
        %2270 = vst [vmem:[%s957 + $0x70] sm:$0xff] %v2253
        %2271 = vst [vmem:[%s957 + $0x78] sm:$0xff] %v2255
        %s2272 = smul.u32 16, %s18
        %p2273 = scmp.lt.s32.totalorder %s2272, 31
        %s2274 = scalar_select %p2273, %s2272, 31
        %s2275 = smul.addr %s2274, 8
        %s2276 = scalar_lea.vmem %s7, %s2275
        // Predicated region
        $region90: #{gnn_combo_forward.3} parent=84 // pred_check
          %p2277 = pneg %p188
        $region91: #{gnn_combo_forward.3} parent=84 // pred_check_branch
          %2279 = sbr.rel (%p2277) target = $region93
        $region92: #{gnn_combo_forward.3} parent=84 // pred_region
          %s2280 = smul.u32 16, %s18
        $region93: #{gnn_combo_forward.3} parent=84 // pred_fallthru
          _
      $region85: #{gnn_combo_forward.3} parent=5 // pred_fallthru
        _
      %p2281 = scmp.le.s32.totalorder 2, %s13
      // Predicated region
      $region94: #{gnn_combo_forward.3} parent=5 // pred_check
        %p2282 = pneg %p2281
      $region95: #{gnn_combo_forward.3} parent=5 // pred_check_branch
        %2284 = sbr.rel (%p2282) target = $region97
      $region96: #{gnn_combo_forward.3} parent=5 // pred_region
        %s2285 = ssub.s32 %s13, 2
        // Predicated region
        $region98: #{gnn_combo_forward.3} parent=96 // pred_check
          %p2286 = pneg %p194
        $region99: #{gnn_combo_forward.3} parent=96 // pred_check_branch
          %2288 = sbr.rel (%p2286) target = $region101
        $region100: #{gnn_combo_forward.3} parent=96 // pred_region
          %s2289 = smul.u32 16, %s19
          %p2290 = scmp.lt.s32.totalorder %s2289, 31
          %s2291 = scalar_select %p2290, %s2289, 31
          %s2292 = smul.addr %s2291, 8
          %s2293 = scalar_lea.vmem %s7, %s2292
        $region101: #{gnn_combo_forward.3} parent=96 // pred_fallthru
          _
      $region97: #{gnn_combo_forward.3} parent=5 // pred_fallthru
        _
    $region6: #{gnn_combo_forward.3} parent=1 // loop_footer
      %s17 = sadd.s32 1, %s13
    $region7: #{gnn_combo_forward.3} parent=1 // loop_footer_branch
      %12 = sbr.rel target = $region3
    $region8: #{gnn_combo_forward.3} parent=1 // loop_exit
      _

// kernel: gnn_combo_forward.2
$region0: #{gnn_combo_forward.2}
  #allocation0 [shape = 'u32[]', space=smem, size = 0x4, offset = 0x4, fixed_abs, tag = 'smem constant byte address 0x4 - core index']
  #allocation1 [shape = 'u32[144,128]{1,0:T(1,128)}', space=vmem, size = 0x12000, scoped, tag = 'internal scratch']
  %s0 = inlined_call_operand.vmem [shape: f32[256,128], index: 0, kind: input, shape index: {}]
  %s1 = inlined_call_operand.vmem [shape: bf16[10,256,128], index: 1, kind: input, shape index: {}]
  %s2 = inlined_call_operand.vmem [shape: bf16[128,128], index: 2, kind: input, shape index: {}]
  %s3 = inlined_call_operand.vmem [shape: f32[1,128], index: 3, kind: input, shape index: {}]
  %s4 = inlined_call_operand.vmem [shape: bf16[256,128], index: 4, kind: output, shape index: {}]
  %s5 = sld [smem:[#allocation0]]
  $region90: #{gnn_combo_forward.2} parent=0
    _
  %s7 = ssub.s32 1, %s5
  %s8 = scalar_select 0, %s7, %s5
  $region1: #{gnn_combo_forward.2} parent=0
    #allocation2 [shape = 'u8[655360]{0}', space=vmem, size = 0xa0000, scoped, tag = 'input window, operand 1']
    loop: start=0, step=1, limit=4
    $region2: #{gnn_combo_forward.2} parent=1 // loop_pre_header
      _
    $region3: #{gnn_combo_forward.2} parent=1 // loop_header
      %s10 = sphi 0, %s14
      %p11 = scmp.ge.s32.totalorder %s10, 4
      %s20 = sphi 0, %s22
      %s23 = sphi 0, %s20
      %s24 = sphi 0, %s23
      %s40 = sphi 0, %s24
      %s46 = sphi 0, %s48
      %s49 = sphi 0, %s46
      %s50 = sphi 0, %s49
      %s66 = sphi 0, %s50
      %s70 = sphi 0, %s70
      %s72 = sphi 0, %s70
      %s73 = sphi 0, %s72
      %s87 = sphi 0, %s73
      %s91 = sphi 0, %s91
      %s93 = sphi 0, %s91
      %s94 = sphi 0, %s93
      %s108 = sphi 0, %s94
      %s114 = sphi 0, %s116
      %s117 = sphi 0, %s114
      %s118 = sphi 0, %s117
      %s134 = sphi 0, %s118
    $region4: #{gnn_combo_forward.2} parent=1 // loop_header_branch
      %13 = sbr.rel (%p11) target = $region8
    $region5: #{gnn_combo_forward.2} parent=1 // loop_body
      %s15 = ssub.s32 %s10, 1
      %s16 = ssub.s32 %s10, 2
      %s17 = sadd.s32 %s10, 1
      %s18 = ssub.s32 %s10, %s17
      %p19 = scmp.eq.s32.totalorder %s18, 0
      %s21 = sadd.s32 %s20, 1
      %s22 = scalar_select %p19, %s20, %s21
      %p25 = pneg %p19
      %p26 = scmp.eq.s32.totalorder %s10, 1
      %p27 = por %p25, %p26
      %p28 = scmp.ne.s32.totalorder %s20, %s23
      %p29 = scmp.eq.s32.totalorder %s10, 0
      %p30 = por %p28, %p29
      %p31 = scmp.ne.s32.totalorder %s20, %s23
      %p32 = scmp.eq.s32.totalorder %s15, 1
      %p33 = por %p31, %p32
      %p34 = scmp.ne.s32.totalorder %s23, %s24
      %p35 = scmp.eq.s32.totalorder %s15, 0
      %p36 = por %p34, %p35
      %p37 = scmp.ne.s32.totalorder %s23, %s24
      %p38 = scmp.eq.s32.totalorder %s16, 1
      %p39 = por %p37, %p38
      %p41 = scmp.ne.s32.totalorder %s24, %s40
      %p42 = scmp.eq.s32.totalorder %s16, 0
      %p43 = por %p41, %p42
      %s44 = ssub.s32 %s10, %s17
      %p45 = scmp.eq.s32.totalorder %s44, 0
      %s47 = sadd.s32 %s46, 1
      %s48 = scalar_select %p45, %s46, %s47
      %p51 = pneg %p45
      %p52 = scmp.eq.s32.totalorder %s10, 1
      %p53 = por %p51, %p52
      %p54 = scmp.ne.s32.totalorder %s46, %s49
      %p55 = scmp.eq.s32.totalorder %s10, 0
      %p56 = por %p54, %p55
      %p57 = scmp.ne.s32.totalorder %s46, %s49
      %p58 = scmp.eq.s32.totalorder %s15, 1
      %p59 = por %p57, %p58
      %p60 = scmp.ne.s32.totalorder %s49, %s50
      %p61 = scmp.eq.s32.totalorder %s15, 0
      %p62 = por %p60, %p61
      %p63 = scmp.ne.s32.totalorder %s49, %s50
      %p64 = scmp.eq.s32.totalorder %s16, 1
      %p65 = por %p63, %p64
      %p67 = scmp.ne.s32.totalorder %s50, %s66
      %p68 = scmp.eq.s32.totalorder %s16, 0
      %p69 = por %p67, %p68
      %s71 = sadd.s32 %s70, 1
      %p74 = scmp.eq.s32.totalorder %s10, 1
      %p75 = scmp.ne.s32.totalorder %s70, %s72
      %p76 = scmp.eq.s32.totalorder %s10, 0
      %p77 = por %p75, %p76
      %p78 = scmp.ne.s32.totalorder %s70, %s72
      %p79 = scmp.eq.s32.totalorder %s15, 1
      %p80 = por %p78, %p79
      %p81 = scmp.ne.s32.totalorder %s72, %s73
      %p82 = scmp.eq.s32.totalorder %s15, 0
      %p83 = por %p81, %p82
      %p84 = scmp.ne.s32.totalorder %s72, %s73
      %p85 = scmp.eq.s32.totalorder %s16, 1
      %p86 = por %p84, %p85
      %p88 = scmp.ne.s32.totalorder %s73, %s87
      %p89 = scmp.eq.s32.totalorder %s16, 0
      %p90 = por %p88, %p89
      %s92 = sadd.s32 %s91, 1
      %p95 = scmp.eq.s32.totalorder %s10, 1
      %p96 = scmp.ne.s32.totalorder %s91, %s93
      %p97 = scmp.eq.s32.totalorder %s10, 0
      %p98 = por %p96, %p97
      %p99 = scmp.ne.s32.totalorder %s91, %s93
      %p100 = scmp.eq.s32.totalorder %s15, 1
      %p101 = por %p99, %p100
      %p102 = scmp.ne.s32.totalorder %s93, %s94
      %p103 = scmp.eq.s32.totalorder %s15, 0
      %p104 = por %p102, %p103
      %p105 = scmp.ne.s32.totalorder %s93, %s94
      %p106 = scmp.eq.s32.totalorder %s16, 1
      %p107 = por %p105, %p106
      %p109 = scmp.ne.s32.totalorder %s94, %s108
      %p110 = scmp.eq.s32.totalorder %s16, 0
      %p111 = por %p109, %p110
      %s112 = ssub.s32 %s10, %s17
      %p113 = scmp.eq.s32.totalorder %s112, 0
      %s115 = sadd.s32 %s114, 1
      %s116 = scalar_select %p113, %s114, %s115
      %p119 = pneg %p113
      %p120 = scmp.eq.s32.totalorder %s10, 1
      %p121 = por %p119, %p120
      %p122 = scmp.ne.s32.totalorder %s114, %s117
      %p123 = scmp.eq.s32.totalorder %s10, 0
      %p124 = por %p122, %p123
      %p125 = scmp.ne.s32.totalorder %s114, %s117
      %p126 = scmp.eq.s32.totalorder %s15, 1
      %p127 = por %p125, %p126
      %p128 = scmp.ne.s32.totalorder %s117, %s118
      %p129 = scmp.eq.s32.totalorder %s15, 0
      %p130 = por %p128, %p129
      %p131 = scmp.ne.s32.totalorder %s117, %s118
      %p132 = scmp.eq.s32.totalorder %s16, 1
      %p133 = por %p131, %p132
      %p135 = scmp.ne.s32.totalorder %s118, %s134
      %p136 = scmp.eq.s32.totalorder %s16, 0
      %p137 = por %p135, %p136
      %p138 = scmp.le.s32.totalorder 1, %s10
      %p139 = scmp.lt.s32.totalorder %s10, 3
      %p140 = pnand %p138, %p139
      %p141 = pneg %p140
      // Predicated region
      $region9: #{gnn_combo_forward.2} parent=5 // pred_check
        _
      $region10: #{gnn_combo_forward.2} parent=5 // pred_check_branch
        %143 = sbr.rel (%p140) target = $region12
      $region11: #{gnn_combo_forward.2} parent=5 // pred_region
        %s144 = ssub.s32 %s10, 1
        // Predicated region
        $region13: #{gnn_combo_forward.2} parent=11 // pred_check
          %p145 = pneg %p83
        $region14: #{gnn_combo_forward.2} parent=11 // pred_check_branch
          %147 = sbr.rel (%p145) target = $region16
        $region15: #{gnn_combo_forward.2} parent=11 // pred_region
          _
        $region16: #{gnn_combo_forward.2} parent=11 // pred_fallthru
          _
        // Predicated region
        $region17: #{gnn_combo_forward.2} parent=11 // pred_check
          %p148 = pneg %p104
        $region18: #{gnn_combo_forward.2} parent=11 // pred_check_branch
          %150 = sbr.rel (%p148) target = $region20
        $region19: #{gnn_combo_forward.2} parent=11 // pred_region
          _
        $region20: #{gnn_combo_forward.2} parent=11 // pred_fallthru
          _
      $region12: #{gnn_combo_forward.2} parent=5 // pred_fallthru
        _
      %p151 = scmp.lt.s32.totalorder %s10, 2
      // Predicated region
      $region21: #{gnn_combo_forward.2} parent=5 // pred_check
        %p152 = pneg %p151
      $region22: #{gnn_combo_forward.2} parent=5 // pred_check_branch
        %154 = sbr.rel (%p152) target = $region24
      $region23: #{gnn_combo_forward.2} parent=5 // pred_region
        // Predicated region
        $region25: #{gnn_combo_forward.2} parent=23 // pred_check
          %p155 = pneg %p30
        $region26: #{gnn_combo_forward.2} parent=23 // pred_check_branch
          %157 = sbr.rel (%p155) target = $region28
        $region27: #{gnn_combo_forward.2} parent=23 // pred_region
          %s158 = smul.u32 16, %s10
          %p159 = scmp.lt.s32.totalorder %s158, 31
          %s160 = scalar_select %p159, %s158, 31
          %s161 = smul.addr %s160, 8
          %s162 = scalar_lea.vmem %s0, %s161
          %s163 = smul.u32 16, %s10
        $region28: #{gnn_combo_forward.2} parent=23 // pred_fallthru
          _
        // Predicated region
        $region29: #{gnn_combo_forward.2} parent=23 // pred_check
          %p164 = pneg %p56
        $region30: #{gnn_combo_forward.2} parent=23 // pred_check_branch
          %166 = sbr.rel (%p164) target = $region32
        $region31: #{gnn_combo_forward.2} parent=23 // pred_region
          %s167 = sand.u32 %s46, 1
          %s168 = sand.u32 %s46, 1
          %s169 = smul.addr %s168, 640
          %s170 = scalar_lea.vmem [#allocation2], %s169
          %s171 = smul.u32 16, %s10
          %s172 = smul.addr %s171, 4
          %s173 = scalar_lea.vmem %s1, %s172
          // Predicated region
          $region33: #{gnn_combo_forward.2} parent=31 // pred_check
            _
          $region34: #{gnn_combo_forward.2} parent=31 // pred_check_branch
            %175 = sbr.rel (0) target = $region36
          $region35: #{gnn_combo_forward.2} parent=31 // pred_region
            // Predicated region
            $region37: #{gnn_combo_forward.2} parent=35 // pred_check
              _
            $region38: #{gnn_combo_forward.2} parent=35 // pred_check_branch
              %177 = sbr.rel target = $region40
            $region39: #{gnn_combo_forward.2} parent=35 // pred_region
              // Predicated region
              $region52: #{gnn_combo_forward.2} parent=39 // pred_check
                _
              $region53: #{gnn_combo_forward.2} parent=39 // pred_check_branch
                %510 = sbr.rel (0) target = $region55
              $region54: #{gnn_combo_forward.2} parent=39 // pred_region
                loop: start=0, step=1, limit=1
                $region56: #{gnn_combo_forward.2} parent=54 // loop_pre_header
                  _
                $region57: #{gnn_combo_forward.2} parent=54 // loop_header
                  %s512 = sphi 0, %s516
                  %p513 = scmp.ge.s32.totalorder %s512, 1
                  %s517 = sphi %s173, %s173
                  %s518 = sphi %s170, %s170
                $region58: #{gnn_combo_forward.2} parent=54 // loop_header_branch
                  %515 = sbr.rel (%p513) target = $region62
                $region59: #{gnn_combo_forward.2} parent=54 // loop_body
                  _
                $region60: #{gnn_combo_forward.2} parent=54 // loop_footer
                  %s516 = sadd.s32 1, %s512
                $region61: #{gnn_combo_forward.2} parent=54 // loop_footer_branch
                  %511 = sbr.rel target = $region57
                $region62: #{gnn_combo_forward.2} parent=54 // loop_exit
                  _
                loop: start=0, step=1, limit=1
                $region63: #{gnn_combo_forward.2} parent=54 // loop_pre_header
                  _
                $region64: #{gnn_combo_forward.2} parent=54 // loop_header
                  %s521 = sphi 0, %s525
                  %p522 = scmp.ge.s32.totalorder %s521, 1
                  %s526 = sphi %s173, %s173
                  %s527 = sphi %s170, %s170
                $region65: #{gnn_combo_forward.2} parent=54 // loop_header_branch
                  %524 = sbr.rel (%p522) target = $region69
                $region66: #{gnn_combo_forward.2} parent=54 // loop_body
                  %v528 = vld [vmem:[%s526] sm:$0xf]
                  %529 = vst [vmem:[%s527] sm:$0xf] %v528
                  %v530 = vld [vmem:[%s526 + $0x4] sm:$0xf]
                  %531 = vst [vmem:[%s527 + $0x4] sm:$0xf] %v530
                  %v532 = vld [vmem:[%s526 + $0x8] sm:$0xf]
                  %533 = vst [vmem:[%s527 + $0x8] sm:$0xf] %v532
                  %v534 = vld [vmem:[%s526 + $0xc] sm:$0xf]
                  %535 = vst [vmem:[%s527 + $0xc] sm:$0xf] %v534
                  %v536 = vld [vmem:[%s526 + $0x10] sm:$0xf]
                  %537 = vst [vmem:[%s527 + $0x10] sm:$0xf] %v536
                  %v538 = vld [vmem:[%s526 + $0x14] sm:$0xf]
                  %539 = vst [vmem:[%s527 + $0x14] sm:$0xf] %v538
                  %v540 = vld [vmem:[%s526 + $0x18] sm:$0xf]
                  %541 = vst [vmem:[%s527 + $0x18] sm:$0xf] %v540
                  %v542 = vld [vmem:[%s526 + $0x1c] sm:$0xf]
                  %543 = vst [vmem:[%s527 + $0x1c] sm:$0xf] %v542
                  %v544 = vld [vmem:[%s526 + $0x20] sm:$0xf]
                  %545 = vst [vmem:[%s527 + $0x20] sm:$0xf] %v544
                  %v546 = vld [vmem:[%s526 + $0x24] sm:$0xf]
                  %547 = vst [vmem:[%s527 + $0x24] sm:$0xf] %v546
                  %v548 = vld [vmem:[%s526 + $0x28] sm:$0xf]
                  %549 = vst [vmem:[%s527 + $0x28] sm:$0xf] %v548
                  %v550 = vld [vmem:[%s526 + $0x2c] sm:$0xf]
                  %551 = vst [vmem:[%s527 + $0x2c] sm:$0xf] %v550
                  %v552 = vld [vmem:[%s526 + $0x30] sm:$0xf]
                  %553 = vst [vmem:[%s527 + $0x30] sm:$0xf] %v552
                  %v554 = vld [vmem:[%s526 + $0x34] sm:$0xf]
                  %555 = vst [vmem:[%s527 + $0x34] sm:$0xf] %v554
                  %v556 = vld [vmem:[%s526 + $0x38] sm:$0xf]
                  %557 = vst [vmem:[%s527 + $0x38] sm:$0xf] %v556
                  %v558 = vld [vmem:[%s526 + $0x3c] sm:$0xf]
                  %559 = vst [vmem:[%s527 + $0x3c] sm:$0xf] %v558
                  %v560 = vld [vmem:[%s526 + $0x80] sm:$0xf]
                  %561 = vst [vmem:[%s527 + $0x40] sm:$0xf] %v560
                  %v562 = vld [vmem:[%s526 + $0x84] sm:$0xf]
                  %563 = vst [vmem:[%s527 + $0x44] sm:$0xf] %v562
                  %v564 = vld [vmem:[%s526 + $0x88] sm:$0xf]
                  %565 = vst [vmem:[%s527 + $0x48] sm:$0xf] %v564
                  %v566 = vld [vmem:[%s526 + $0x8c] sm:$0xf]
                  %567 = vst [vmem:[%s527 + $0x4c] sm:$0xf] %v566
                  %v568 = vld [vmem:[%s526 + $0x90] sm:$0xf]
                  %569 = vst [vmem:[%s527 + $0x50] sm:$0xf] %v568
                  %v570 = vld [vmem:[%s526 + $0x94] sm:$0xf]
                  %571 = vst [vmem:[%s527 + $0x54] sm:$0xf] %v570
                  %v572 = vld [vmem:[%s526 + $0x98] sm:$0xf]
                  %573 = vst [vmem:[%s527 + $0x58] sm:$0xf] %v572
                  %v574 = vld [vmem:[%s526 + $0x9c] sm:$0xf]
                  %575 = vst [vmem:[%s527 + $0x5c] sm:$0xf] %v574
                  %v576 = vld [vmem:[%s526 + $0xa0] sm:$0xf]
                  %577 = vst [vmem:[%s527 + $0x60] sm:$0xf] %v576
                  %v578 = vld [vmem:[%s526 + $0xa4] sm:$0xf]
                  %579 = vst [vmem:[%s527 + $0x64] sm:$0xf] %v578
                  %v580 = vld [vmem:[%s526 + $0xa8] sm:$0xf]
                  %581 = vst [vmem:[%s527 + $0x68] sm:$0xf] %v580
                  %v582 = vld [vmem:[%s526 + $0xac] sm:$0xf]
                  %583 = vst [vmem:[%s527 + $0x6c] sm:$0xf] %v582
                  %v584 = vld [vmem:[%s526 + $0xb0] sm:$0xf]
                  %585 = vst [vmem:[%s527 + $0x70] sm:$0xf] %v584
                  %v586 = vld [vmem:[%s526 + $0xb4] sm:$0xf]
                  %587 = vst [vmem:[%s527 + $0x74] sm:$0xf] %v586
                  %v588 = vld [vmem:[%s526 + $0xb8] sm:$0xf]
                  %589 = vst [vmem:[%s527 + $0x78] sm:$0xf] %v588
                  %v590 = vld [vmem:[%s526 + $0xbc] sm:$0xf]
                  %591 = vst [vmem:[%s527 + $0x7c] sm:$0xf] %v590
                  %v592 = vld [vmem:[%s526 + $0x100] sm:$0xf]
                  %593 = vst [vmem:[%s527 + $0x80] sm:$0xf] %v592
                  %v594 = vld [vmem:[%s526 + $0x104] sm:$0xf]
                  %595 = vst [vmem:[%s527 + $0x84] sm:$0xf] %v594
                  %v596 = vld [vmem:[%s526 + $0x108] sm:$0xf]
                  %597 = vst [vmem:[%s527 + $0x88] sm:$0xf] %v596
                  %v598 = vld [vmem:[%s526 + $0x10c] sm:$0xf]
                  %599 = vst [vmem:[%s527 + $0x8c] sm:$0xf] %v598
                  %v600 = vld [vmem:[%s526 + $0x110] sm:$0xf]
                  %601 = vst [vmem:[%s527 + $0x90] sm:$0xf] %v600
                  %v602 = vld [vmem:[%s526 + $0x114] sm:$0xf]
                  %603 = vst [vmem:[%s527 + $0x94] sm:$0xf] %v602
                  %v604 = vld [vmem:[%s526 + $0x118] sm:$0xf]
                  %605 = vst [vmem:[%s527 + $0x98] sm:$0xf] %v604
                  %v606 = vld [vmem:[%s526 + $0x11c] sm:$0xf]
                  %607 = vst [vmem:[%s527 + $0x9c] sm:$0xf] %v606
                  %v608 = vld [vmem:[%s526 + $0x120] sm:$0xf]
                  %609 = vst [vmem:[%s527 + $0xa0] sm:$0xf] %v608
                  %v610 = vld [vmem:[%s526 + $0x124] sm:$0xf]
                  %611 = vst [vmem:[%s527 + $0xa4] sm:$0xf] %v610
                  %v612 = vld [vmem:[%s526 + $0x128] sm:$0xf]
                  %613 = vst [vmem:[%s527 + $0xa8] sm:$0xf] %v612
                  %v614 = vld [vmem:[%s526 + $0x12c] sm:$0xf]
                  %615 = vst [vmem:[%s527 + $0xac] sm:$0xf] %v614
                  %v616 = vld [vmem:[%s526 + $0x130] sm:$0xf]
                  %617 = vst [vmem:[%s527 + $0xb0] sm:$0xf] %v616
                  %v618 = vld [vmem:[%s526 + $0x134] sm:$0xf]
                  %619 = vst [vmem:[%s527 + $0xb4] sm:$0xf] %v618
                  %v620 = vld [vmem:[%s526 + $0x138] sm:$0xf]
                  %621 = vst [vmem:[%s527 + $0xb8] sm:$0xf] %v620
                  %v622 = vld [vmem:[%s526 + $0x13c] sm:$0xf]
                  %623 = vst [vmem:[%s527 + $0xbc] sm:$0xf] %v622
                  %v624 = vld [vmem:[%s526 + $0x180] sm:$0xf]
                  %625 = vst [vmem:[%s527 + $0xc0] sm:$0xf] %v624
                  %v626 = vld [vmem:[%s526 + $0x184] sm:$0xf]
                  %627 = vst [vmem:[%s527 + $0xc4] sm:$0xf] %v626
                  %v628 = vld [vmem:[%s526 + $0x188] sm:$0xf]
                  %629 = vst [vmem:[%s527 + $0xc8] sm:$0xf] %v628
                  %v630 = vld [vmem:[%s526 + $0x18c] sm:$0xf]
                  %631 = vst [vmem:[%s527 + $0xcc] sm:$0xf] %v630
                  %v632 = vld [vmem:[%s526 + $0x190] sm:$0xf]
                  %633 = vst [vmem:[%s527 + $0xd0] sm:$0xf] %v632
                  %v634 = vld [vmem:[%s526 + $0x194] sm:$0xf]
                  %635 = vst [vmem:[%s527 + $0xd4] sm:$0xf] %v634
                  %v636 = vld [vmem:[%s526 + $0x198] sm:$0xf]
                  %637 = vst [vmem:[%s527 + $0xd8] sm:$0xf] %v636
                  %v638 = vld [vmem:[%s526 + $0x19c] sm:$0xf]
                  %639 = vst [vmem:[%s527 + $0xdc] sm:$0xf] %v638
                  %v640 = vld [vmem:[%s526 + $0x1a0] sm:$0xf]
                  %641 = vst [vmem:[%s527 + $0xe0] sm:$0xf] %v640
                  %v642 = vld [vmem:[%s526 + $0x1a4] sm:$0xf]
                  %643 = vst [vmem:[%s527 + $0xe4] sm:$0xf] %v642
                  %v644 = vld [vmem:[%s526 + $0x1a8] sm:$0xf]
                  %645 = vst [vmem:[%s527 + $0xe8] sm:$0xf] %v644
                  %v646 = vld [vmem:[%s526 + $0x1ac] sm:$0xf]
                  %647 = vst [vmem:[%s527 + $0xec] sm:$0xf] %v646
                  %v648 = vld [vmem:[%s526 + $0x1b0] sm:$0xf]
                  %649 = vst [vmem:[%s527 + $0xf0] sm:$0xf] %v648
                  %v650 = vld [vmem:[%s526 + $0x1b4] sm:$0xf]
                  %651 = vst [vmem:[%s527 + $0xf4] sm:$0xf] %v650
                  %v652 = vld [vmem:[%s526 + $0x1b8] sm:$0xf]
                  %653 = vst [vmem:[%s527 + $0xf8] sm:$0xf] %v652
                  %v654 = vld [vmem:[%s526 + $0x1bc] sm:$0xf]
                  %655 = vst [vmem:[%s527 + $0xfc] sm:$0xf] %v654
                  %v656 = vld [vmem:[%s526 + $0x200] sm:$0xf]
                  %657 = vst [vmem:[%s527 + $0x100] sm:$0xf] %v656
                  %v658 = vld [vmem:[%s526 + $0x204] sm:$0xf]
                  %659 = vst [vmem:[%s527 + $0x104] sm:$0xf] %v658
                  %v660 = vld [vmem:[%s526 + $0x208] sm:$0xf]
                  %661 = vst [vmem:[%s527 + $0x108] sm:$0xf] %v660
                  %v662 = vld [vmem:[%s526 + $0x20c] sm:$0xf]
                  %663 = vst [vmem:[%s527 + $0x10c] sm:$0xf] %v662
                  %v664 = vld [vmem:[%s526 + $0x210] sm:$0xf]
                  %665 = vst [vmem:[%s527 + $0x110] sm:$0xf] %v664
                  %v666 = vld [vmem:[%s526 + $0x214] sm:$0xf]
                  %667 = vst [vmem:[%s527 + $0x114] sm:$0xf] %v666
                  %v668 = vld [vmem:[%s526 + $0x218] sm:$0xf]
                  %669 = vst [vmem:[%s527 + $0x118] sm:$0xf] %v668
                  %v670 = vld [vmem:[%s526 + $0x21c] sm:$0xf]
                  %671 = vst [vmem:[%s527 + $0x11c] sm:$0xf] %v670
                  %v672 = vld [vmem:[%s526 + $0x220] sm:$0xf]
                  %673 = vst [vmem:[%s527 + $0x120] sm:$0xf] %v672
                  %v674 = vld [vmem:[%s526 + $0x224] sm:$0xf]
                  %675 = vst [vmem:[%s527 + $0x124] sm:$0xf] %v674
                  %v676 = vld [vmem:[%s526 + $0x228] sm:$0xf]
                  %677 = vst [vmem:[%s527 + $0x128] sm:$0xf] %v676
                  %v678 = vld [vmem:[%s526 + $0x22c] sm:$0xf]
                  %679 = vst [vmem:[%s527 + $0x12c] sm:$0xf] %v678
                  %v680 = vld [vmem:[%s526 + $0x230] sm:$0xf]
                  %681 = vst [vmem:[%s527 + $0x130] sm:$0xf] %v680
                  %v682 = vld [vmem:[%s526 + $0x234] sm:$0xf]
                  %683 = vst [vmem:[%s527 + $0x134] sm:$0xf] %v682
                  %v684 = vld [vmem:[%s526 + $0x238] sm:$0xf]
                  %685 = vst [vmem:[%s527 + $0x138] sm:$0xf] %v684
                  %v686 = vld [vmem:[%s526 + $0x23c] sm:$0xf]
                  %687 = vst [vmem:[%s527 + $0x13c] sm:$0xf] %v686
                  %v688 = vld [vmem:[%s526 + $0x280] sm:$0xf]
                  %689 = vst [vmem:[%s527 + $0x140] sm:$0xf] %v688
                  %v690 = vld [vmem:[%s526 + $0x284] sm:$0xf]
                  %691 = vst [vmem:[%s527 + $0x144] sm:$0xf] %v690
                  %v692 = vld [vmem:[%s526 + $0x288] sm:$0xf]
                  %693 = vst [vmem:[%s527 + $0x148] sm:$0xf] %v692
                  %v694 = vld [vmem:[%s526 + $0x28c] sm:$0xf]
                  %695 = vst [vmem:[%s527 + $0x14c] sm:$0xf] %v694
                  %v696 = vld [vmem:[%s526 + $0x290] sm:$0xf]
                  %697 = vst [vmem:[%s527 + $0x150] sm:$0xf] %v696
                  %v698 = vld [vmem:[%s526 + $0x294] sm:$0xf]
                  %699 = vst [vmem:[%s527 + $0x154] sm:$0xf] %v698
                  %v700 = vld [vmem:[%s526 + $0x298] sm:$0xf]
                  %701 = vst [vmem:[%s527 + $0x158] sm:$0xf] %v700
                  %v702 = vld [vmem:[%s526 + $0x29c] sm:$0xf]
                  %703 = vst [vmem:[%s527 + $0x15c] sm:$0xf] %v702
                  %v704 = vld [vmem:[%s526 + $0x2a0] sm:$0xf]
                  %705 = vst [vmem:[%s527 + $0x160] sm:$0xf] %v704
                  %v706 = vld [vmem:[%s526 + $0x2a4] sm:$0xf]
                  %707 = vst [vmem:[%s527 + $0x164] sm:$0xf] %v706
                  %v708 = vld [vmem:[%s526 + $0x2a8] sm:$0xf]
                  %709 = vst [vmem:[%s527 + $0x168] sm:$0xf] %v708
                  %v710 = vld [vmem:[%s526 + $0x2ac] sm:$0xf]
                  %711 = vst [vmem:[%s527 + $0x16c] sm:$0xf] %v710
                  %v712 = vld [vmem:[%s526 + $0x2b0] sm:$0xf]
                  %713 = vst [vmem:[%s527 + $0x170] sm:$0xf] %v712
                  %v714 = vld [vmem:[%s526 + $0x2b4] sm:$0xf]
                  %715 = vst [vmem:[%s527 + $0x174] sm:$0xf] %v714
                  %v716 = vld [vmem:[%s526 + $0x2b8] sm:$0xf]
                  %717 = vst [vmem:[%s527 + $0x178] sm:$0xf] %v716
                  %v718 = vld [vmem:[%s526 + $0x2bc] sm:$0xf]
                  %719 = vst [vmem:[%s527 + $0x17c] sm:$0xf] %v718
                  %v720 = vld [vmem:[%s526 + $0x300] sm:$0xf]
                  %721 = vst [vmem:[%s527 + $0x180] sm:$0xf] %v720
                  %v722 = vld [vmem:[%s526 + $0x304] sm:$0xf]
                  %723 = vst [vmem:[%s527 + $0x184] sm:$0xf] %v722
                  %v724 = vld [vmem:[%s526 + $0x308] sm:$0xf]
                  %725 = vst [vmem:[%s527 + $0x188] sm:$0xf] %v724
                  %v726 = vld [vmem:[%s526 + $0x30c] sm:$0xf]
                  %727 = vst [vmem:[%s527 + $0x18c] sm:$0xf] %v726
                  %v728 = vld [vmem:[%s526 + $0x310] sm:$0xf]
                  %729 = vst [vmem:[%s527 + $0x190] sm:$0xf] %v728
                  %v730 = vld [vmem:[%s526 + $0x314] sm:$0xf]
                  %731 = vst [vmem:[%s527 + $0x194] sm:$0xf] %v730
                  %v732 = vld [vmem:[%s526 + $0x318] sm:$0xf]
                  %733 = vst [vmem:[%s527 + $0x198] sm:$0xf] %v732
                  %v734 = vld [vmem:[%s526 + $0x31c] sm:$0xf]
                  %735 = vst [vmem:[%s527 + $0x19c] sm:$0xf] %v734
                  %v736 = vld [vmem:[%s526 + $0x320] sm:$0xf]
                  %737 = vst [vmem:[%s527 + $0x1a0] sm:$0xf] %v736
                  %v738 = vld [vmem:[%s526 + $0x324] sm:$0xf]
                  %739 = vst [vmem:[%s527 + $0x1a4] sm:$0xf] %v738
                  %v740 = vld [vmem:[%s526 + $0x328] sm:$0xf]
                  %741 = vst [vmem:[%s527 + $0x1a8] sm:$0xf] %v740
                  %v742 = vld [vmem:[%s526 + $0x32c] sm:$0xf]
                  %743 = vst [vmem:[%s527 + $0x1ac] sm:$0xf] %v742
                  %v744 = vld [vmem:[%s526 + $0x330] sm:$0xf]
                  %745 = vst [vmem:[%s527 + $0x1b0] sm:$0xf] %v744
                  %v746 = vld [vmem:[%s526 + $0x334] sm:$0xf]
                  %747 = vst [vmem:[%s527 + $0x1b4] sm:$0xf] %v746
                  %v748 = vld [vmem:[%s526 + $0x338] sm:$0xf]
                  %749 = vst [vmem:[%s527 + $0x1b8] sm:$0xf] %v748
                  %v750 = vld [vmem:[%s526 + $0x33c] sm:$0xf]
                  %751 = vst [vmem:[%s527 + $0x1bc] sm:$0xf] %v750
                  %v752 = vld [vmem:[%s526 + $0x380] sm:$0xf]
                  %753 = vst [vmem:[%s527 + $0x1c0] sm:$0xf] %v752
                  %v754 = vld [vmem:[%s526 + $0x384] sm:$0xf]
                  %755 = vst [vmem:[%s527 + $0x1c4] sm:$0xf] %v754
                  %v756 = vld [vmem:[%s526 + $0x388] sm:$0xf]
                  %757 = vst [vmem:[%s527 + $0x1c8] sm:$0xf] %v756
                  %v758 = vld [vmem:[%s526 + $0x38c] sm:$0xf]
                  %759 = vst [vmem:[%s527 + $0x1cc] sm:$0xf] %v758
                  %v760 = vld [vmem:[%s526 + $0x390] sm:$0xf]
                  %761 = vst [vmem:[%s527 + $0x1d0] sm:$0xf] %v760
                  %v762 = vld [vmem:[%s526 + $0x394] sm:$0xf]
                  %763 = vst [vmem:[%s527 + $0x1d4] sm:$0xf] %v762
                  %v764 = vld [vmem:[%s526 + $0x398] sm:$0xf]
                  %765 = vst [vmem:[%s527 + $0x1d8] sm:$0xf] %v764
                  %v766 = vld [vmem:[%s526 + $0x39c] sm:$0xf]
                  %767 = vst [vmem:[%s527 + $0x1dc] sm:$0xf] %v766
                  %v768 = vld [vmem:[%s526 + $0x3a0] sm:$0xf]
                  %769 = vst [vmem:[%s527 + $0x1e0] sm:$0xf] %v768
                  %v770 = vld [vmem:[%s526 + $0x3a4] sm:$0xf]
                  %771 = vst [vmem:[%s527 + $0x1e4] sm:$0xf] %v770
                  %v772 = vld [vmem:[%s526 + $0x3a8] sm:$0xf]
                  %773 = vst [vmem:[%s527 + $0x1e8] sm:$0xf] %v772
                  %v774 = vld [vmem:[%s526 + $0x3ac] sm:$0xf]
                  %775 = vst [vmem:[%s527 + $0x1ec] sm:$0xf] %v774
                  %v776 = vld [vmem:[%s526 + $0x3b0] sm:$0xf]
                  %777 = vst [vmem:[%s527 + $0x1f0] sm:$0xf] %v776
                  %v778 = vld [vmem:[%s526 + $0x3b4] sm:$0xf]
                  %779 = vst [vmem:[%s527 + $0x1f4] sm:$0xf] %v778
                  %v780 = vld [vmem:[%s526 + $0x3b8] sm:$0xf]
                  %781 = vst [vmem:[%s527 + $0x1f8] sm:$0xf] %v780
                  %v782 = vld [vmem:[%s526 + $0x3bc] sm:$0xf]
                  %783 = vst [vmem:[%s527 + $0x1fc] sm:$0xf] %v782
                  %v784 = vld [vmem:[%s526 + $0x400] sm:$0xf]
                  %785 = vst [vmem:[%s527 + $0x200] sm:$0xf] %v784
                  %v786 = vld [vmem:[%s526 + $0x404] sm:$0xf]
                  %787 = vst [vmem:[%s527 + $0x204] sm:$0xf] %v786
                  %v788 = vld [vmem:[%s526 + $0x408] sm:$0xf]
                  %789 = vst [vmem:[%s527 + $0x208] sm:$0xf] %v788
                  %v790 = vld [vmem:[%s526 + $0x40c] sm:$0xf]
                  %791 = vst [vmem:[%s527 + $0x20c] sm:$0xf] %v790
                  %v792 = vld [vmem:[%s526 + $0x410] sm:$0xf]
                  %793 = vst [vmem:[%s527 + $0x210] sm:$0xf] %v792
                  %v794 = vld [vmem:[%s526 + $0x414] sm:$0xf]
                  %795 = vst [vmem:[%s527 + $0x214] sm:$0xf] %v794
                  %v796 = vld [vmem:[%s526 + $0x418] sm:$0xf]
                  %797 = vst [vmem:[%s527 + $0x218] sm:$0xf] %v796
                  %v798 = vld [vmem:[%s526 + $0x41c] sm:$0xf]
                  %799 = vst [vmem:[%s527 + $0x21c] sm:$0xf] %v798
                  %v800 = vld [vmem:[%s526 + $0x420] sm:$0xf]
                  %801 = vst [vmem:[%s527 + $0x220] sm:$0xf] %v800
                  %v802 = vld [vmem:[%s526 + $0x424] sm:$0xf]
                  %803 = vst [vmem:[%s527 + $0x224] sm:$0xf] %v802
                  %v804 = vld [vmem:[%s526 + $0x428] sm:$0xf]
                  %805 = vst [vmem:[%s527 + $0x228] sm:$0xf] %v804
                  %v806 = vld [vmem:[%s526 + $0x42c] sm:$0xf]
                  %807 = vst [vmem:[%s527 + $0x22c] sm:$0xf] %v806
                  %v808 = vld [vmem:[%s526 + $0x430] sm:$0xf]
                  %809 = vst [vmem:[%s527 + $0x230] sm:$0xf] %v808
                  %v810 = vld [vmem:[%s526 + $0x434] sm:$0xf]
                  %811 = vst [vmem:[%s527 + $0x234] sm:$0xf] %v810
                  %v812 = vld [vmem:[%s526 + $0x438] sm:$0xf]
                  %813 = vst [vmem:[%s527 + $0x238] sm:$0xf] %v812
                  %v814 = vld [vmem:[%s526 + $0x43c] sm:$0xf]
                  %815 = vst [vmem:[%s527 + $0x23c] sm:$0xf] %v814
                  %v816 = vld [vmem:[%s526 + $0x480] sm:$0xf]
                  %817 = vst [vmem:[%s527 + $0x240] sm:$0xf] %v816
                  %v818 = vld [vmem:[%s526 + $0x484] sm:$0xf]
                  %819 = vst [vmem:[%s527 + $0x244] sm:$0xf] %v818
                  %v820 = vld [vmem:[%s526 + $0x488] sm:$0xf]
                  %821 = vst [vmem:[%s527 + $0x248] sm:$0xf] %v820
                  %v822 = vld [vmem:[%s526 + $0x48c] sm:$0xf]
                  %823 = vst [vmem:[%s527 + $0x24c] sm:$0xf] %v822
                  %v824 = vld [vmem:[%s526 + $0x490] sm:$0xf]
                  %825 = vst [vmem:[%s527 + $0x250] sm:$0xf] %v824
                  %v826 = vld [vmem:[%s526 + $0x494] sm:$0xf]
                  %827 = vst [vmem:[%s527 + $0x254] sm:$0xf] %v826
                  %v828 = vld [vmem:[%s526 + $0x498] sm:$0xf]
                  %829 = vst [vmem:[%s527 + $0x258] sm:$0xf] %v828
                  %v830 = vld [vmem:[%s526 + $0x49c] sm:$0xf]
                  %831 = vst [vmem:[%s527 + $0x25c] sm:$0xf] %v830
                  %v832 = vld [vmem:[%s526 + $0x4a0] sm:$0xf]
                  %833 = vst [vmem:[%s527 + $0x260] sm:$0xf] %v832
                  %v834 = vld [vmem:[%s526 + $0x4a4] sm:$0xf]
                  %835 = vst [vmem:[%s527 + $0x264] sm:$0xf] %v834
                  %v836 = vld [vmem:[%s526 + $0x4a8] sm:$0xf]
                  %837 = vst [vmem:[%s527 + $0x268] sm:$0xf] %v836
                  %v838 = vld [vmem:[%s526 + $0x4ac] sm:$0xf]
                  %839 = vst [vmem:[%s527 + $0x26c] sm:$0xf] %v838
                  %v840 = vld [vmem:[%s526 + $0x4b0] sm:$0xf]
                  %841 = vst [vmem:[%s527 + $0x270] sm:$0xf] %v840
                  %v842 = vld [vmem:[%s526 + $0x4b4] sm:$0xf]
                  %843 = vst [vmem:[%s527 + $0x274] sm:$0xf] %v842
                  %v844 = vld [vmem:[%s526 + $0x4b8] sm:$0xf]
                  %845 = vst [vmem:[%s527 + $0x278] sm:$0xf] %v844
                  %v846 = vld [vmem:[%s526 + $0x4bc] sm:$0xf]
                  %847 = vst [vmem:[%s527 + $0x27c] sm:$0xf] %v846
                $region67: #{gnn_combo_forward.2} parent=54 // loop_footer
                  %s525 = sadd.s32 1, %s521
                $region68: #{gnn_combo_forward.2} parent=54 // loop_footer_branch
                  %520 = sbr.rel target = $region64
                $region69: #{gnn_combo_forward.2} parent=54 // loop_exit
                  _
              $region55: #{gnn_combo_forward.2} parent=39 // pred_fallthru
                _
            $region40: #{gnn_combo_forward.2} parent=35 // pred_fallthru
              _
            // Predicated region
            $region41: #{gnn_combo_forward.2} parent=35 // pred_check
              _
            $region42: #{gnn_combo_forward.2} parent=35 // pred_check_branch
              %179 = sbr.rel (0) target = $region44
            $region43: #{gnn_combo_forward.2} parent=35 // pred_region
              loop: start=0, step=1, limit=1
              $region45: #{gnn_combo_forward.2} parent=43 // loop_pre_header
                _
              $region46: #{gnn_combo_forward.2} parent=43 // loop_header
                %s182 = sphi 0, %s186
                %p183 = scmp.ge.s32.totalorder %s182, 1
                %s187 = sphi %s173, %s173
                %s188 = sphi %s170, %s170
              $region47: #{gnn_combo_forward.2} parent=43 // loop_header_branch
                %185 = sbr.rel (%p183) target = $region51
              $region48: #{gnn_combo_forward.2} parent=43 // loop_body
                %v189 = vld [vmem:[%s187] sm:$0xf]
                %190 = vst [vmem:[%s188] sm:$0xf] %v189
                %v191 = vld [vmem:[%s187 + $0x4] sm:$0xf]
                %192 = vst [vmem:[%s188 + $0x4] sm:$0xf] %v191
                %v193 = vld [vmem:[%s187 + $0x8] sm:$0xf]
                %194 = vst [vmem:[%s188 + $0x8] sm:$0xf] %v193
                %v195 = vld [vmem:[%s187 + $0xc] sm:$0xf]
                %196 = vst [vmem:[%s188 + $0xc] sm:$0xf] %v195
                %v197 = vld [vmem:[%s187 + $0x10] sm:$0xf]
                %198 = vst [vmem:[%s188 + $0x10] sm:$0xf] %v197
                %v199 = vld [vmem:[%s187 + $0x14] sm:$0xf]
                %200 = vst [vmem:[%s188 + $0x14] sm:$0xf] %v199
                %v201 = vld [vmem:[%s187 + $0x18] sm:$0xf]
                %202 = vst [vmem:[%s188 + $0x18] sm:$0xf] %v201
                %v203 = vld [vmem:[%s187 + $0x1c] sm:$0xf]
                %204 = vst [vmem:[%s188 + $0x1c] sm:$0xf] %v203
                %v205 = vld [vmem:[%s187 + $0x20] sm:$0xf]
                %206 = vst [vmem:[%s188 + $0x20] sm:$0xf] %v205
                %v207 = vld [vmem:[%s187 + $0x24] sm:$0xf]
                %208 = vst [vmem:[%s188 + $0x24] sm:$0xf] %v207
                %v209 = vld [vmem:[%s187 + $0x28] sm:$0xf]
                %210 = vst [vmem:[%s188 + $0x28] sm:$0xf] %v209
                %v211 = vld [vmem:[%s187 + $0x2c] sm:$0xf]
                %212 = vst [vmem:[%s188 + $0x2c] sm:$0xf] %v211
                %v213 = vld [vmem:[%s187 + $0x30] sm:$0xf]
                %214 = vst [vmem:[%s188 + $0x30] sm:$0xf] %v213
                %v215 = vld [vmem:[%s187 + $0x34] sm:$0xf]
                %216 = vst [vmem:[%s188 + $0x34] sm:$0xf] %v215
                %v217 = vld [vmem:[%s187 + $0x38] sm:$0xf]
                %218 = vst [vmem:[%s188 + $0x38] sm:$0xf] %v217
                %v219 = vld [vmem:[%s187 + $0x3c] sm:$0xf]
                %220 = vst [vmem:[%s188 + $0x3c] sm:$0xf] %v219
                %v221 = vld [vmem:[%s187 + $0x80] sm:$0xf]
                %222 = vst [vmem:[%s188 + $0x40] sm:$0xf] %v221
                %v223 = vld [vmem:[%s187 + $0x84] sm:$0xf]
                %224 = vst [vmem:[%s188 + $0x44] sm:$0xf] %v223
                %v225 = vld [vmem:[%s187 + $0x88] sm:$0xf]
                %226 = vst [vmem:[%s188 + $0x48] sm:$0xf] %v225
                %v227 = vld [vmem:[%s187 + $0x8c] sm:$0xf]
                %228 = vst [vmem:[%s188 + $0x4c] sm:$0xf] %v227
                %v229 = vld [vmem:[%s187 + $0x90] sm:$0xf]
                %230 = vst [vmem:[%s188 + $0x50] sm:$0xf] %v229
                %v231 = vld [vmem:[%s187 + $0x94] sm:$0xf]
                %232 = vst [vmem:[%s188 + $0x54] sm:$0xf] %v231
                %v233 = vld [vmem:[%s187 + $0x98] sm:$0xf]
                %234 = vst [vmem:[%s188 + $0x58] sm:$0xf] %v233
                %v235 = vld [vmem:[%s187 + $0x9c] sm:$0xf]
                %236 = vst [vmem:[%s188 + $0x5c] sm:$0xf] %v235
                %v237 = vld [vmem:[%s187 + $0xa0] sm:$0xf]
                %238 = vst [vmem:[%s188 + $0x60] sm:$0xf] %v237
                %v239 = vld [vmem:[%s187 + $0xa4] sm:$0xf]
                %240 = vst [vmem:[%s188 + $0x64] sm:$0xf] %v239
                %v241 = vld [vmem:[%s187 + $0xa8] sm:$0xf]
                %242 = vst [vmem:[%s188 + $0x68] sm:$0xf] %v241
                %v243 = vld [vmem:[%s187 + $0xac] sm:$0xf]
                %244 = vst [vmem:[%s188 + $0x6c] sm:$0xf] %v243
                %v245 = vld [vmem:[%s187 + $0xb0] sm:$0xf]
                %246 = vst [vmem:[%s188 + $0x70] sm:$0xf] %v245
                %v247 = vld [vmem:[%s187 + $0xb4] sm:$0xf]
                %248 = vst [vmem:[%s188 + $0x74] sm:$0xf] %v247
                %v249 = vld [vmem:[%s187 + $0xb8] sm:$0xf]
                %250 = vst [vmem:[%s188 + $0x78] sm:$0xf] %v249
                %v251 = vld [vmem:[%s187 + $0xbc] sm:$0xf]
                %252 = vst [vmem:[%s188 + $0x7c] sm:$0xf] %v251
                %v253 = vld [vmem:[%s187 + $0x100] sm:$0xf]
                %254 = vst [vmem:[%s188 + $0x80] sm:$0xf] %v253
                %v255 = vld [vmem:[%s187 + $0x104] sm:$0xf]
                %256 = vst [vmem:[%s188 + $0x84] sm:$0xf] %v255
                %v257 = vld [vmem:[%s187 + $0x108] sm:$0xf]
                %258 = vst [vmem:[%s188 + $0x88] sm:$0xf] %v257
                %v259 = vld [vmem:[%s187 + $0x10c] sm:$0xf]
                %260 = vst [vmem:[%s188 + $0x8c] sm:$0xf] %v259
                %v261 = vld [vmem:[%s187 + $0x110] sm:$0xf]
                %262 = vst [vmem:[%s188 + $0x90] sm:$0xf] %v261
                %v263 = vld [vmem:[%s187 + $0x114] sm:$0xf]
                %264 = vst [vmem:[%s188 + $0x94] sm:$0xf] %v263
                %v265 = vld [vmem:[%s187 + $0x118] sm:$0xf]
                %266 = vst [vmem:[%s188 + $0x98] sm:$0xf] %v265
                %v267 = vld [vmem:[%s187 + $0x11c] sm:$0xf]
                %268 = vst [vmem:[%s188 + $0x9c] sm:$0xf] %v267
                %v269 = vld [vmem:[%s187 + $0x120] sm:$0xf]
                %270 = vst [vmem:[%s188 + $0xa0] sm:$0xf] %v269
                %v271 = vld [vmem:[%s187 + $0x124] sm:$0xf]
                %272 = vst [vmem:[%s188 + $0xa4] sm:$0xf] %v271
                %v273 = vld [vmem:[%s187 + $0x128] sm:$0xf]
                %274 = vst [vmem:[%s188 + $0xa8] sm:$0xf] %v273
                %v275 = vld [vmem:[%s187 + $0x12c] sm:$0xf]
                %276 = vst [vmem:[%s188 + $0xac] sm:$0xf] %v275
                %v277 = vld [vmem:[%s187 + $0x130] sm:$0xf]
                %278 = vst [vmem:[%s188 + $0xb0] sm:$0xf] %v277
                %v279 = vld [vmem:[%s187 + $0x134] sm:$0xf]
                %280 = vst [vmem:[%s188 + $0xb4] sm:$0xf] %v279
                %v281 = vld [vmem:[%s187 + $0x138] sm:$0xf]
                %282 = vst [vmem:[%s188 + $0xb8] sm:$0xf] %v281
                %v283 = vld [vmem:[%s187 + $0x13c] sm:$0xf]
                %284 = vst [vmem:[%s188 + $0xbc] sm:$0xf] %v283
                %v285 = vld [vmem:[%s187 + $0x180] sm:$0xf]
                %286 = vst [vmem:[%s188 + $0xc0] sm:$0xf] %v285
                %v287 = vld [vmem:[%s187 + $0x184] sm:$0xf]
                %288 = vst [vmem:[%s188 + $0xc4] sm:$0xf] %v287
                %v289 = vld [vmem:[%s187 + $0x188] sm:$0xf]
                %290 = vst [vmem:[%s188 + $0xc8] sm:$0xf] %v289
                %v291 = vld [vmem:[%s187 + $0x18c] sm:$0xf]
                %292 = vst [vmem:[%s188 + $0xcc] sm:$0xf] %v291
                %v293 = vld [vmem:[%s187 + $0x190] sm:$0xf]
                %294 = vst [vmem:[%s188 + $0xd0] sm:$0xf] %v293
                %v295 = vld [vmem:[%s187 + $0x194] sm:$0xf]
                %296 = vst [vmem:[%s188 + $0xd4] sm:$0xf] %v295
                %v297 = vld [vmem:[%s187 + $0x198] sm:$0xf]
                %298 = vst [vmem:[%s188 + $0xd8] sm:$0xf] %v297
                %v299 = vld [vmem:[%s187 + $0x19c] sm:$0xf]
                %300 = vst [vmem:[%s188 + $0xdc] sm:$0xf] %v299
                %v301 = vld [vmem:[%s187 + $0x1a0] sm:$0xf]
                %302 = vst [vmem:[%s188 + $0xe0] sm:$0xf] %v301
                %v303 = vld [vmem:[%s187 + $0x1a4] sm:$0xf]
                %304 = vst [vmem:[%s188 + $0xe4] sm:$0xf] %v303
                %v305 = vld [vmem:[%s187 + $0x1a8] sm:$0xf]
                %306 = vst [vmem:[%s188 + $0xe8] sm:$0xf] %v305
                %v307 = vld [vmem:[%s187 + $0x1ac] sm:$0xf]
                %308 = vst [vmem:[%s188 + $0xec] sm:$0xf] %v307
                %v309 = vld [vmem:[%s187 + $0x1b0] sm:$0xf]
                %310 = vst [vmem:[%s188 + $0xf0] sm:$0xf] %v309
                %v311 = vld [vmem:[%s187 + $0x1b4] sm:$0xf]
                %312 = vst [vmem:[%s188 + $0xf4] sm:$0xf] %v311
                %v313 = vld [vmem:[%s187 + $0x1b8] sm:$0xf]
                %314 = vst [vmem:[%s188 + $0xf8] sm:$0xf] %v313
                %v315 = vld [vmem:[%s187 + $0x1bc] sm:$0xf]
                %316 = vst [vmem:[%s188 + $0xfc] sm:$0xf] %v315
                %v317 = vld [vmem:[%s187 + $0x200] sm:$0xf]
                %318 = vst [vmem:[%s188 + $0x100] sm:$0xf] %v317
                %v319 = vld [vmem:[%s187 + $0x204] sm:$0xf]
                %320 = vst [vmem:[%s188 + $0x104] sm:$0xf] %v319
                %v321 = vld [vmem:[%s187 + $0x208] sm:$0xf]
                %322 = vst [vmem:[%s188 + $0x108] sm:$0xf] %v321
                %v323 = vld [vmem:[%s187 + $0x20c] sm:$0xf]
                %324 = vst [vmem:[%s188 + $0x10c] sm:$0xf] %v323
                %v325 = vld [vmem:[%s187 + $0x210] sm:$0xf]
                %326 = vst [vmem:[%s188 + $0x110] sm:$0xf] %v325
                %v327 = vld [vmem:[%s187 + $0x214] sm:$0xf]
                %328 = vst [vmem:[%s188 + $0x114] sm:$0xf] %v327
                %v329 = vld [vmem:[%s187 + $0x218] sm:$0xf]
                %330 = vst [vmem:[%s188 + $0x118] sm:$0xf] %v329
                %v331 = vld [vmem:[%s187 + $0x21c] sm:$0xf]
                %332 = vst [vmem:[%s188 + $0x11c] sm:$0xf] %v331
                %v333 = vld [vmem:[%s187 + $0x220] sm:$0xf]
                %334 = vst [vmem:[%s188 + $0x120] sm:$0xf] %v333
                %v335 = vld [vmem:[%s187 + $0x224] sm:$0xf]
                %336 = vst [vmem:[%s188 + $0x124] sm:$0xf] %v335
                %v337 = vld [vmem:[%s187 + $0x228] sm:$0xf]
                %338 = vst [vmem:[%s188 + $0x128] sm:$0xf] %v337
                %v339 = vld [vmem:[%s187 + $0x22c] sm:$0xf]
                %340 = vst [vmem:[%s188 + $0x12c] sm:$0xf] %v339
                %v341 = vld [vmem:[%s187 + $0x230] sm:$0xf]
                %342 = vst [vmem:[%s188 + $0x130] sm:$0xf] %v341
                %v343 = vld [vmem:[%s187 + $0x234] sm:$0xf]
                %344 = vst [vmem:[%s188 + $0x134] sm:$0xf] %v343
                %v345 = vld [vmem:[%s187 + $0x238] sm:$0xf]
                %346 = vst [vmem:[%s188 + $0x138] sm:$0xf] %v345
                %v347 = vld [vmem:[%s187 + $0x23c] sm:$0xf]
                %348 = vst [vmem:[%s188 + $0x13c] sm:$0xf] %v347
                %v349 = vld [vmem:[%s187 + $0x280] sm:$0xf]
                %350 = vst [vmem:[%s188 + $0x140] sm:$0xf] %v349
                %v351 = vld [vmem:[%s187 + $0x284] sm:$0xf]
                %352 = vst [vmem:[%s188 + $0x144] sm:$0xf] %v351
                %v353 = vld [vmem:[%s187 + $0x288] sm:$0xf]
                %354 = vst [vmem:[%s188 + $0x148] sm:$0xf] %v353
                %v355 = vld [vmem:[%s187 + $0x28c] sm:$0xf]
                %356 = vst [vmem:[%s188 + $0x14c] sm:$0xf] %v355
                %v357 = vld [vmem:[%s187 + $0x290] sm:$0xf]
                %358 = vst [vmem:[%s188 + $0x150] sm:$0xf] %v357
                %v359 = vld [vmem:[%s187 + $0x294] sm:$0xf]
                %360 = vst [vmem:[%s188 + $0x154] sm:$0xf] %v359
                %v361 = vld [vmem:[%s187 + $0x298] sm:$0xf]
                %362 = vst [vmem:[%s188 + $0x158] sm:$0xf] %v361
                %v363 = vld [vmem:[%s187 + $0x29c] sm:$0xf]
                %364 = vst [vmem:[%s188 + $0x15c] sm:$0xf] %v363
                %v365 = vld [vmem:[%s187 + $0x2a0] sm:$0xf]
                %366 = vst [vmem:[%s188 + $0x160] sm:$0xf] %v365
                %v367 = vld [vmem:[%s187 + $0x2a4] sm:$0xf]
                %368 = vst [vmem:[%s188 + $0x164] sm:$0xf] %v367
                %v369 = vld [vmem:[%s187 + $0x2a8] sm:$0xf]
                %370 = vst [vmem:[%s188 + $0x168] sm:$0xf] %v369
                %v371 = vld [vmem:[%s187 + $0x2ac] sm:$0xf]
                %372 = vst [vmem:[%s188 + $0x16c] sm:$0xf] %v371
                %v373 = vld [vmem:[%s187 + $0x2b0] sm:$0xf]
                %374 = vst [vmem:[%s188 + $0x170] sm:$0xf] %v373
                %v375 = vld [vmem:[%s187 + $0x2b4] sm:$0xf]
                %376 = vst [vmem:[%s188 + $0x174] sm:$0xf] %v375
                %v377 = vld [vmem:[%s187 + $0x2b8] sm:$0xf]
                %378 = vst [vmem:[%s188 + $0x178] sm:$0xf] %v377
                %v379 = vld [vmem:[%s187 + $0x2bc] sm:$0xf]
                %380 = vst [vmem:[%s188 + $0x17c] sm:$0xf] %v379
                %v381 = vld [vmem:[%s187 + $0x300] sm:$0xf]
                %382 = vst [vmem:[%s188 + $0x180] sm:$0xf] %v381
                %v383 = vld [vmem:[%s187 + $0x304] sm:$0xf]
                %384 = vst [vmem:[%s188 + $0x184] sm:$0xf] %v383
                %v385 = vld [vmem:[%s187 + $0x308] sm:$0xf]
                %386 = vst [vmem:[%s188 + $0x188] sm:$0xf] %v385
                %v387 = vld [vmem:[%s187 + $0x30c] sm:$0xf]
                %388 = vst [vmem:[%s188 + $0x18c] sm:$0xf] %v387
                %v389 = vld [vmem:[%s187 + $0x310] sm:$0xf]
                %390 = vst [vmem:[%s188 + $0x190] sm:$0xf] %v389
                %v391 = vld [vmem:[%s187 + $0x314] sm:$0xf]
                %392 = vst [vmem:[%s188 + $0x194] sm:$0xf] %v391
                %v393 = vld [vmem:[%s187 + $0x318] sm:$0xf]
                %394 = vst [vmem:[%s188 + $0x198] sm:$0xf] %v393
                %v395 = vld [vmem:[%s187 + $0x31c] sm:$0xf]
                %396 = vst [vmem:[%s188 + $0x19c] sm:$0xf] %v395
                %v397 = vld [vmem:[%s187 + $0x320] sm:$0xf]
                %398 = vst [vmem:[%s188 + $0x1a0] sm:$0xf] %v397
                %v399 = vld [vmem:[%s187 + $0x324] sm:$0xf]
                %400 = vst [vmem:[%s188 + $0x1a4] sm:$0xf] %v399
                %v401 = vld [vmem:[%s187 + $0x328] sm:$0xf]
                %402 = vst [vmem:[%s188 + $0x1a8] sm:$0xf] %v401
                %v403 = vld [vmem:[%s187 + $0x32c] sm:$0xf]
                %404 = vst [vmem:[%s188 + $0x1ac] sm:$0xf] %v403
                %v405 = vld [vmem:[%s187 + $0x330] sm:$0xf]
                %406 = vst [vmem:[%s188 + $0x1b0] sm:$0xf] %v405
                %v407 = vld [vmem:[%s187 + $0x334] sm:$0xf]
                %408 = vst [vmem:[%s188 + $0x1b4] sm:$0xf] %v407
                %v409 = vld [vmem:[%s187 + $0x338] sm:$0xf]
                %410 = vst [vmem:[%s188 + $0x1b8] sm:$0xf] %v409
                %v411 = vld [vmem:[%s187 + $0x33c] sm:$0xf]
                %412 = vst [vmem:[%s188 + $0x1bc] sm:$0xf] %v411
                %v413 = vld [vmem:[%s187 + $0x380] sm:$0xf]
                %414 = vst [vmem:[%s188 + $0x1c0] sm:$0xf] %v413
                %v415 = vld [vmem:[%s187 + $0x384] sm:$0xf]
                %416 = vst [vmem:[%s188 + $0x1c4] sm:$0xf] %v415
                %v417 = vld [vmem:[%s187 + $0x388] sm:$0xf]
                %418 = vst [vmem:[%s188 + $0x1c8] sm:$0xf] %v417
                %v419 = vld [vmem:[%s187 + $0x38c] sm:$0xf]
                %420 = vst [vmem:[%s188 + $0x1cc] sm:$0xf] %v419
                %v421 = vld [vmem:[%s187 + $0x390] sm:$0xf]
                %422 = vst [vmem:[%s188 + $0x1d0] sm:$0xf] %v421
                %v423 = vld [vmem:[%s187 + $0x394] sm:$0xf]
                %424 = vst [vmem:[%s188 + $0x1d4] sm:$0xf] %v423
                %v425 = vld [vmem:[%s187 + $0x398] sm:$0xf]
                %426 = vst [vmem:[%s188 + $0x1d8] sm:$0xf] %v425
                %v427 = vld [vmem:[%s187 + $0x39c] sm:$0xf]
                %428 = vst [vmem:[%s188 + $0x1dc] sm:$0xf] %v427
                %v429 = vld [vmem:[%s187 + $0x3a0] sm:$0xf]
                %430 = vst [vmem:[%s188 + $0x1e0] sm:$0xf] %v429
                %v431 = vld [vmem:[%s187 + $0x3a4] sm:$0xf]
                %432 = vst [vmem:[%s188 + $0x1e4] sm:$0xf] %v431
                %v433 = vld [vmem:[%s187 + $0x3a8] sm:$0xf]
                %434 = vst [vmem:[%s188 + $0x1e8] sm:$0xf] %v433
                %v435 = vld [vmem:[%s187 + $0x3ac] sm:$0xf]
                %436 = vst [vmem:[%s188 + $0x1ec] sm:$0xf] %v435
                %v437 = vld [vmem:[%s187 + $0x3b0] sm:$0xf]
                %438 = vst [vmem:[%s188 + $0x1f0] sm:$0xf] %v437
                %v439 = vld [vmem:[%s187 + $0x3b4] sm:$0xf]
                %440 = vst [vmem:[%s188 + $0x1f4] sm:$0xf] %v439
                %v441 = vld [vmem:[%s187 + $0x3b8] sm:$0xf]
                %442 = vst [vmem:[%s188 + $0x1f8] sm:$0xf] %v441
                %v443 = vld [vmem:[%s187 + $0x3bc] sm:$0xf]
                %444 = vst [vmem:[%s188 + $0x1fc] sm:$0xf] %v443
                %v445 = vld [vmem:[%s187 + $0x400] sm:$0xf]
                %446 = vst [vmem:[%s188 + $0x200] sm:$0xf] %v445
                %v447 = vld [vmem:[%s187 + $0x404] sm:$0xf]
                %448 = vst [vmem:[%s188 + $0x204] sm:$0xf] %v447
                %v449 = vld [vmem:[%s187 + $0x408] sm:$0xf]
                %450 = vst [vmem:[%s188 + $0x208] sm:$0xf] %v449
                %v451 = vld [vmem:[%s187 + $0x40c] sm:$0xf]
                %452 = vst [vmem:[%s188 + $0x20c] sm:$0xf] %v451
                %v453 = vld [vmem:[%s187 + $0x410] sm:$0xf]
                %454 = vst [vmem:[%s188 + $0x210] sm:$0xf] %v453
                %v455 = vld [vmem:[%s187 + $0x414] sm:$0xf]
                %456 = vst [vmem:[%s188 + $0x214] sm:$0xf] %v455
                %v457 = vld [vmem:[%s187 + $0x418] sm:$0xf]
                %458 = vst [vmem:[%s188 + $0x218] sm:$0xf] %v457
                %v459 = vld [vmem:[%s187 + $0x41c] sm:$0xf]
                %460 = vst [vmem:[%s188 + $0x21c] sm:$0xf] %v459
                %v461 = vld [vmem:[%s187 + $0x420] sm:$0xf]
                %462 = vst [vmem:[%s188 + $0x220] sm:$0xf] %v461
                %v463 = vld [vmem:[%s187 + $0x424] sm:$0xf]
                %464 = vst [vmem:[%s188 + $0x224] sm:$0xf] %v463
                %v465 = vld [vmem:[%s187 + $0x428] sm:$0xf]
                %466 = vst [vmem:[%s188 + $0x228] sm:$0xf] %v465
                %v467 = vld [vmem:[%s187 + $0x42c] sm:$0xf]
                %468 = vst [vmem:[%s188 + $0x22c] sm:$0xf] %v467
                %v469 = vld [vmem:[%s187 + $0x430] sm:$0xf]
                %470 = vst [vmem:[%s188 + $0x230] sm:$0xf] %v469
                %v471 = vld [vmem:[%s187 + $0x434] sm:$0xf]
                %472 = vst [vmem:[%s188 + $0x234] sm:$0xf] %v471
                %v473 = vld [vmem:[%s187 + $0x438] sm:$0xf]
                %474 = vst [vmem:[%s188 + $0x238] sm:$0xf] %v473
                %v475 = vld [vmem:[%s187 + $0x43c] sm:$0xf]
                %476 = vst [vmem:[%s188 + $0x23c] sm:$0xf] %v475
                %v477 = vld [vmem:[%s187 + $0x480] sm:$0xf]
                %478 = vst [vmem:[%s188 + $0x240] sm:$0xf] %v477
                %v479 = vld [vmem:[%s187 + $0x484] sm:$0xf]
                %480 = vst [vmem:[%s188 + $0x244] sm:$0xf] %v479
                %v481 = vld [vmem:[%s187 + $0x488] sm:$0xf]
                %482 = vst [vmem:[%s188 + $0x248] sm:$0xf] %v481
                %v483 = vld [vmem:[%s187 + $0x48c] sm:$0xf]
                %484 = vst [vmem:[%s188 + $0x24c] sm:$0xf] %v483
                %v485 = vld [vmem:[%s187 + $0x490] sm:$0xf]
                %486 = vst [vmem:[%s188 + $0x250] sm:$0xf] %v485
                %v487 = vld [vmem:[%s187 + $0x494] sm:$0xf]
                %488 = vst [vmem:[%s188 + $0x254] sm:$0xf] %v487
                %v489 = vld [vmem:[%s187 + $0x498] sm:$0xf]
                %490 = vst [vmem:[%s188 + $0x258] sm:$0xf] %v489
                %v491 = vld [vmem:[%s187 + $0x49c] sm:$0xf]
                %492 = vst [vmem:[%s188 + $0x25c] sm:$0xf] %v491
                %v493 = vld [vmem:[%s187 + $0x4a0] sm:$0xf]
                %494 = vst [vmem:[%s188 + $0x260] sm:$0xf] %v493
                %v495 = vld [vmem:[%s187 + $0x4a4] sm:$0xf]
                %496 = vst [vmem:[%s188 + $0x264] sm:$0xf] %v495
                %v497 = vld [vmem:[%s187 + $0x4a8] sm:$0xf]
                %498 = vst [vmem:[%s188 + $0x268] sm:$0xf] %v497
                %v499 = vld [vmem:[%s187 + $0x4ac] sm:$0xf]
                %500 = vst [vmem:[%s188 + $0x26c] sm:$0xf] %v499
                %v501 = vld [vmem:[%s187 + $0x4b0] sm:$0xf]
                %502 = vst [vmem:[%s188 + $0x270] sm:$0xf] %v501
                %v503 = vld [vmem:[%s187 + $0x4b4] sm:$0xf]
                %504 = vst [vmem:[%s188 + $0x274] sm:$0xf] %v503
                %v505 = vld [vmem:[%s187 + $0x4b8] sm:$0xf]
                %506 = vst [vmem:[%s188 + $0x278] sm:$0xf] %v505
                %v507 = vld [vmem:[%s187 + $0x4bc] sm:$0xf]
                %508 = vst [vmem:[%s188 + $0x27c] sm:$0xf] %v507
              $region49: #{gnn_combo_forward.2} parent=43 // loop_footer
                %s186 = sadd.s32 1, %s182
              $region50: #{gnn_combo_forward.2} parent=43 // loop_footer_branch
                %181 = sbr.rel target = $region46
              $region51: #{gnn_combo_forward.2} parent=43 // loop_exit
                _
            $region44: #{gnn_combo_forward.2} parent=35 // pred_fallthru
              _
          $region36: #{gnn_combo_forward.2} parent=31 // pred_fallthru
            _
          %848 = vnop
        $region32: #{gnn_combo_forward.2} parent=23 // pred_fallthru
          _
      $region24: #{gnn_combo_forward.2} parent=5 // pred_fallthru
        _
      %p849 = scmp.le.s32.totalorder 1, %s10
      %p850 = scmp.lt.s32.totalorder %s10, 3
      %p851 = pnand %p849, %p850
      %p852 = pneg %p851
      // Predicated region
      $region70: #{gnn_combo_forward.2} parent=5 // pred_check
        _
      $region71: #{gnn_combo_forward.2} parent=5 // pred_check_branch
        %854 = sbr.rel (%p851) target = $region73
      $region72: #{gnn_combo_forward.2} parent=5 // pred_region
        %s855 = ssub.s32 %s10, 1
        %s856 = sand.u32 %s49, 1
        %s857 = sand.u32 %s49, 1
        %s858 = smul.addr %s857, 640
        %s859 = scalar_lea.vmem [#allocation2], %s858
        // Predicated region
        $region74: #{gnn_combo_forward.2} parent=72 // pred_check
          %p860 = pneg %p62
        $region75: #{gnn_combo_forward.2} parent=72 // pred_check_branch
          %862 = sbr.rel (%p860) target = $region77
        $region76: #{gnn_combo_forward.2} parent=72 // pred_region
          _
        $region77: #{gnn_combo_forward.2} parent=72 // pred_fallthru
          _
        %s863 = smul.u32 16, %s15
        %p864 = scmp.lt.s32.totalorder %s863, 31
        %s865 = scalar_select %p864, %s863, 31
        %s866 = smul.addr %s865, 8
        %s867 = scalar_lea.vmem %s0, %s866
        %p868 = pneg %p36
        %p869 = pneg %p33
        %s870 = sand.u32 %s49, 1
        %s871 = sand.u32 %s49, 1
        %s872 = smul.addr %s871, 640
        %s873 = scalar_lea.vmem [#allocation2], %s872
        %p874 = pneg %p62
        %p875 = pneg %p59
        %p876 = pneg %p83
        %p877 = pneg %p80
        %p878 = pneg %p104
        %p879 = pneg %p101
        %p880 = pneg %p130
        %p881 = pneg %p127
        %s882 = smul.u32 16, %s15
        %p883 = scmp.lt.s32.totalorder %s882, 31
        %s884 = scalar_select %p883, %s882, 31
        %s885 = smul.addr %s884, 4
        %s886 = scalar_lea.vmem %s4, %s885
        %s887 = smul.u32 16, %s15
        %p888 = scmp.lt.s32.totalorder %s887, 31
        %s889 = scalar_select %p888, %s887, 31
        %s890 = smul.addr %s889, 8
        %s891 = scalar_lea.vmem %s0, %s890
        %s892 = smul.u32 16, %s15
        %s893 = smul.u32 16, %s15
        %s894 = smul.u32 16, %s15
        %p895 = scmp.lt.s32.totalorder %s894, 31
        %s896 = scalar_select %p895, %s894, 31
        %s897 = smul.addr %s896, 4
        %s898 = scalar_lea.vmem %s4, %s897
        %s899 = smul.u32 16, %s15
        %v901 = vld [vmem:[%s891] sm:$0xff]
        %v902 = vld [vmem:[%s891 + $0x8] sm:$0xff]
        %v903 = vld [vmem:[%s891 + $0x10] sm:$0xff]
        %v904 = vld [vmem:[%s891 + $0x18] sm:$0xff]
        %v905 = vld [vmem:[%s891 + $0x20] sm:$0xff]
        %v906 = vld [vmem:[%s891 + $0x28] sm:$0xff]
        %v907 = vld [vmem:[%s891 + $0x30] sm:$0xff]
        %v908 = vld [vmem:[%s891 + $0x38] sm:$0xff]
        %v909 = vld [vmem:[%s891 + $0x40] sm:$0xff]
        %v910 = vld [vmem:[%s891 + $0x48] sm:$0xff]
        %v911 = vld [vmem:[%s891 + $0x50] sm:$0xff]
        %v912 = vld [vmem:[%s891 + $0x58] sm:$0xff]
        %v913 = vld [vmem:[%s891 + $0x60] sm:$0xff]
        %v914 = vld [vmem:[%s891 + $0x68] sm:$0xff]
        %v915 = vld [vmem:[%s891 + $0x70] sm:$0xff]
        %v916 = vld [vmem:[%s891 + $0x78] sm:$0xff]
        %v917 = vld [vmem:[%s859] sm:$0xf]
        %v918 = vld [vmem:[%s859 + $0x4] sm:$0xf]
        %v919 = vld [vmem:[%s859 + $0x8] sm:$0xf]
        %v920 = vld [vmem:[%s859 + $0xc] sm:$0xf]
        %v921 = vld [vmem:[%s859 + $0x10] sm:$0xf]
        %v922 = vld [vmem:[%s859 + $0x14] sm:$0xf]
        %v923 = vld [vmem:[%s859 + $0x18] sm:$0xf]
        %v924 = vld [vmem:[%s859 + $0x1c] sm:$0xf]
        %v925 = vld [vmem:[%s859 + $0x20] sm:$0xf]
        %v926 = vld [vmem:[%s859 + $0x24] sm:$0xf]
        %v927 = vld [vmem:[%s859 + $0x28] sm:$0xf]
        %v928 = vld [vmem:[%s859 + $0x2c] sm:$0xf]
        %v929 = vld [vmem:[%s859 + $0x30] sm:$0xf]
        %v930 = vld [vmem:[%s859 + $0x34] sm:$0xf]
        %v931 = vld [vmem:[%s859 + $0x38] sm:$0xf]
        %v932 = vld [vmem:[%s859 + $0x3c] sm:$0xf]
        %v933 = vld [vmem:[%s859 + $0x40] sm:$0xf]
        %v934 = vld [vmem:[%s859 + $0x44] sm:$0xf]
        %v935 = vld [vmem:[%s859 + $0x48] sm:$0xf]
        %v936 = vld [vmem:[%s859 + $0x4c] sm:$0xf]
        %v937 = vld [vmem:[%s859 + $0x50] sm:$0xf]
        %v938 = vld [vmem:[%s859 + $0x54] sm:$0xf]
        %v939 = vld [vmem:[%s859 + $0x58] sm:$0xf]
        %v940 = vld [vmem:[%s859 + $0x5c] sm:$0xf]
        %v941 = vld [vmem:[%s859 + $0x60] sm:$0xf]
        %v942 = vld [vmem:[%s859 + $0x64] sm:$0xf]
        %v943 = vld [vmem:[%s859 + $0x68] sm:$0xf]
        %v944 = vld [vmem:[%s859 + $0x6c] sm:$0xf]
        %v945 = vld [vmem:[%s859 + $0x70] sm:$0xf]
        %v946 = vld [vmem:[%s859 + $0x74] sm:$0xf]
        %v947 = vld [vmem:[%s859 + $0x78] sm:$0xf]
        %v948 = vld [vmem:[%s859 + $0x7c] sm:$0xf]
        %v949 = vld [vmem:[%s859 + $0x80] sm:$0xf]
        %v950 = vld [vmem:[%s859 + $0x84] sm:$0xf]
        %v951 = vld [vmem:[%s859 + $0x88] sm:$0xf]
        %v952 = vld [vmem:[%s859 + $0x8c] sm:$0xf]
        %v953 = vld [vmem:[%s859 + $0x90] sm:$0xf]
        %v954 = vld [vmem:[%s859 + $0x94] sm:$0xf]
        %v955 = vld [vmem:[%s859 + $0x98] sm:$0xf]
        %v956 = vld [vmem:[%s859 + $0x9c] sm:$0xf]
        %v957 = vld [vmem:[%s859 + $0xa0] sm:$0xf]
        %v958 = vld [vmem:[%s859 + $0xa4] sm:$0xf]
        %v959 = vld [vmem:[%s859 + $0xa8] sm:$0xf]
        %v960 = vld [vmem:[%s859 + $0xac] sm:$0xf]
        %v961 = vld [vmem:[%s859 + $0xb0] sm:$0xf]
        %v962 = vld [vmem:[%s859 + $0xb4] sm:$0xf]
        %v963 = vld [vmem:[%s859 + $0xb8] sm:$0xf]
        %v964 = vld [vmem:[%s859 + $0xbc] sm:$0xf]
        %v965 = vld [vmem:[%s859 + $0xc0] sm:$0xf]
        %v966 = vld [vmem:[%s859 + $0xc4] sm:$0xf]
        %v967 = vld [vmem:[%s859 + $0xc8] sm:$0xf]
        %v968 = vld [vmem:[%s859 + $0xcc] sm:$0xf]
        %v969 = vld [vmem:[%s859 + $0xd0] sm:$0xf]
        %v970 = vld [vmem:[%s859 + $0xd4] sm:$0xf]
        %v971 = vld [vmem:[%s859 + $0xd8] sm:$0xf]
        %v972 = vld [vmem:[%s859 + $0xdc] sm:$0xf]
        %v973 = vld [vmem:[%s859 + $0xe0] sm:$0xf]
        %v974 = vld [vmem:[%s859 + $0xe4] sm:$0xf]
        %v975 = vld [vmem:[%s859 + $0xe8] sm:$0xf]
        %v976 = vld [vmem:[%s859 + $0xec] sm:$0xf]
        %v977 = vld [vmem:[%s859 + $0xf0] sm:$0xf]
        %v978 = vld [vmem:[%s859 + $0xf4] sm:$0xf]
        %v979 = vld [vmem:[%s859 + $0xf8] sm:$0xf]
        %v980 = vld [vmem:[%s859 + $0xfc] sm:$0xf]
        %v981 = vld [vmem:[%s859 + $0x100] sm:$0xf]
        %v982 = vld [vmem:[%s859 + $0x104] sm:$0xf]
        %v983 = vld [vmem:[%s859 + $0x108] sm:$0xf]
        %v984 = vld [vmem:[%s859 + $0x10c] sm:$0xf]
        %v985 = vld [vmem:[%s859 + $0x110] sm:$0xf]
        %v986 = vld [vmem:[%s859 + $0x114] sm:$0xf]
        %v987 = vld [vmem:[%s859 + $0x118] sm:$0xf]
        %v988 = vld [vmem:[%s859 + $0x11c] sm:$0xf]
        %v989 = vld [vmem:[%s859 + $0x120] sm:$0xf]
        %v990 = vld [vmem:[%s859 + $0x124] sm:$0xf]
        %v991 = vld [vmem:[%s859 + $0x128] sm:$0xf]
        %v992 = vld [vmem:[%s859 + $0x12c] sm:$0xf]
        %v993 = vld [vmem:[%s859 + $0x130] sm:$0xf]
        %v994 = vld [vmem:[%s859 + $0x134] sm:$0xf]
        %v995 = vld [vmem:[%s859 + $0x138] sm:$0xf]
        %v996 = vld [vmem:[%s859 + $0x13c] sm:$0xf]
        %v997 = vld [vmem:[%s859 + $0x140] sm:$0xf]
        %v998 = vld [vmem:[%s859 + $0x144] sm:$0xf]
        %v999 = vld [vmem:[%s859 + $0x148] sm:$0xf]
        %v1000 = vld [vmem:[%s859 + $0x14c] sm:$0xf]
        %v1001 = vld [vmem:[%s859 + $0x150] sm:$0xf]
        %v1002 = vld [vmem:[%s859 + $0x154] sm:$0xf]
        %v1003 = vld [vmem:[%s859 + $0x158] sm:$0xf]
        %v1004 = vld [vmem:[%s859 + $0x15c] sm:$0xf]
        %v1005 = vld [vmem:[%s859 + $0x160] sm:$0xf]
        %v1006 = vld [vmem:[%s859 + $0x164] sm:$0xf]
        %v1007 = vld [vmem:[%s859 + $0x168] sm:$0xf]
        %v1008 = vld [vmem:[%s859 + $0x16c] sm:$0xf]
        %v1009 = vld [vmem:[%s859 + $0x170] sm:$0xf]
        %v1010 = vld [vmem:[%s859 + $0x174] sm:$0xf]
        %v1011 = vld [vmem:[%s859 + $0x178] sm:$0xf]
        %v1012 = vld [vmem:[%s859 + $0x17c] sm:$0xf]
        %v1013 = vld [vmem:[%s859 + $0x180] sm:$0xf]
        %v1014 = vld [vmem:[%s859 + $0x184] sm:$0xf]
        %v1015 = vld [vmem:[%s859 + $0x188] sm:$0xf]
        %v1016 = vld [vmem:[%s859 + $0x18c] sm:$0xf]
        %v1017 = vld [vmem:[%s859 + $0x190] sm:$0xf]
        %v1018 = vld [vmem:[%s859 + $0x194] sm:$0xf]
        %v1019 = vld [vmem:[%s859 + $0x198] sm:$0xf]
        %v1020 = vld [vmem:[%s859 + $0x19c] sm:$0xf]
        %v1021 = vld [vmem:[%s859 + $0x1a0] sm:$0xf]
        %v1022 = vld [vmem:[%s859 + $0x1a4] sm:$0xf]
        %v1023 = vld [vmem:[%s859 + $0x1a8] sm:$0xf]
        %v1024 = vld [vmem:[%s859 + $0x1ac] sm:$0xf]
        %v1025 = vld [vmem:[%s859 + $0x1b0] sm:$0xf]
        %v1026 = vld [vmem:[%s859 + $0x1b4] sm:$0xf]
        %v1027 = vld [vmem:[%s859 + $0x1b8] sm:$0xf]
        %v1028 = vld [vmem:[%s859 + $0x1bc] sm:$0xf]
        %v1029 = vld [vmem:[%s859 + $0x1c0] sm:$0xf]
        %v1030 = vld [vmem:[%s859 + $0x1c4] sm:$0xf]
        %v1031 = vld [vmem:[%s859 + $0x1c8] sm:$0xf]
        %v1032 = vld [vmem:[%s859 + $0x1cc] sm:$0xf]
        %v1033 = vld [vmem:[%s859 + $0x1d0] sm:$0xf]
        %v1034 = vld [vmem:[%s859 + $0x1d4] sm:$0xf]
        %v1035 = vld [vmem:[%s859 + $0x1d8] sm:$0xf]
        %v1036 = vld [vmem:[%s859 + $0x1dc] sm:$0xf]
        %v1037 = vld [vmem:[%s859 + $0x1e0] sm:$0xf]
        %v1038 = vld [vmem:[%s859 + $0x1e4] sm:$0xf]
        %v1039 = vld [vmem:[%s859 + $0x1e8] sm:$0xf]
        %v1040 = vld [vmem:[%s859 + $0x1ec] sm:$0xf]
        %v1041 = vld [vmem:[%s859 + $0x1f0] sm:$0xf]
        %v1042 = vld [vmem:[%s859 + $0x1f4] sm:$0xf]
        %v1043 = vld [vmem:[%s859 + $0x1f8] sm:$0xf]
        %v1044 = vld [vmem:[%s859 + $0x1fc] sm:$0xf]
        %v1045 = vld [vmem:[%s859 + $0x200] sm:$0xf]
        %v1046 = vld [vmem:[%s859 + $0x204] sm:$0xf]
        %v1047 = vld [vmem:[%s859 + $0x208] sm:$0xf]
        %v1048 = vld [vmem:[%s859 + $0x20c] sm:$0xf]
        %v1049 = vld [vmem:[%s859 + $0x210] sm:$0xf]
        %v1050 = vld [vmem:[%s859 + $0x214] sm:$0xf]
        %v1051 = vld [vmem:[%s859 + $0x218] sm:$0xf]
        %v1052 = vld [vmem:[%s859 + $0x21c] sm:$0xf]
        %v1053 = vld [vmem:[%s859 + $0x220] sm:$0xf]
        %v1054 = vld [vmem:[%s859 + $0x224] sm:$0xf]
        %v1055 = vld [vmem:[%s859 + $0x228] sm:$0xf]
        %v1056 = vld [vmem:[%s859 + $0x22c] sm:$0xf]
        %v1057 = vld [vmem:[%s859 + $0x230] sm:$0xf]
        %v1058 = vld [vmem:[%s859 + $0x234] sm:$0xf]
        %v1059 = vld [vmem:[%s859 + $0x238] sm:$0xf]
        %v1060 = vld [vmem:[%s859 + $0x23c] sm:$0xf]
        %v1061 = vld [vmem:[%s859 + $0x240] sm:$0xf]
        %v1062 = vld [vmem:[%s859 + $0x244] sm:$0xf]
        %v1063 = vld [vmem:[%s859 + $0x248] sm:$0xf]
        %v1064 = vld [vmem:[%s859 + $0x24c] sm:$0xf]
        %v1065 = vld [vmem:[%s859 + $0x250] sm:$0xf]
        %v1066 = vld [vmem:[%s859 + $0x254] sm:$0xf]
        %v1067 = vld [vmem:[%s859 + $0x258] sm:$0xf]
        %v1068 = vld [vmem:[%s859 + $0x25c] sm:$0xf]
        %v1069 = vld [vmem:[%s859 + $0x260] sm:$0xf]
        %v1070 = vld [vmem:[%s859 + $0x264] sm:$0xf]
        %v1071 = vld [vmem:[%s859 + $0x268] sm:$0xf]
        %v1072 = vld [vmem:[%s859 + $0x26c] sm:$0xf]
        %v1073 = vld [vmem:[%s859 + $0x270] sm:$0xf]
        %v1074 = vld [vmem:[%s859 + $0x274] sm:$0xf]
        %v1075 = vld [vmem:[%s859 + $0x278] sm:$0xf]
        %v1076 = vld [vmem:[%s859 + $0x27c] sm:$0xf]
        %v1077 = vunpack.c.l.bf16 %v917
        %v1078 = vunpack.c.l.bf16 %v918
        %v1079 = vunpack.c.l.bf16 %v919
        %v1080 = vunpack.c.l.bf16 %v920
        %v1081 = vunpack.c.l.bf16 %v921
        %v1082 = vunpack.c.l.bf16 %v922
        %v1083 = vunpack.c.l.bf16 %v923
        %v1084 = vunpack.c.l.bf16 %v924
        %v1085 = vunpack.c.l.bf16 %v925
        %v1086 = vunpack.c.l.bf16 %v926
        %v1087 = vunpack.c.l.bf16 %v927
        %v1088 = vunpack.c.l.bf16 %v928
        %v1089 = vunpack.c.l.bf16 %v929
        %v1090 = vunpack.c.l.bf16 %v930
        %v1091 = vunpack.c.l.bf16 %v931
        %v1092 = vunpack.c.l.bf16 %v932
        %v1093 = vunpack.c.l.bf16 %v933
        %v1094 = vunpack.c.l.bf16 %v934
        %v1095 = vunpack.c.l.bf16 %v935
        %v1096 = vunpack.c.l.bf16 %v936
        %v1097 = vunpack.c.l.bf16 %v937
        %v1098 = vunpack.c.l.bf16 %v938
        %v1099 = vunpack.c.l.bf16 %v939
        %v1100 = vunpack.c.l.bf16 %v940
        %v1101 = vunpack.c.l.bf16 %v941
        %v1102 = vunpack.c.l.bf16 %v942
        %v1103 = vunpack.c.l.bf16 %v943
        %v1104 = vunpack.c.l.bf16 %v944
        %v1105 = vunpack.c.l.bf16 %v945
        %v1106 = vunpack.c.l.bf16 %v946
        %v1107 = vunpack.c.l.bf16 %v947
        %v1108 = vunpack.c.l.bf16 %v948
        %v1109 = vunpack.c.l.bf16 %v949
        %v1110 = vunpack.c.l.bf16 %v950
        %v1111 = vunpack.c.l.bf16 %v951
        %v1112 = vunpack.c.l.bf16 %v952
        %v1113 = vunpack.c.l.bf16 %v953
        %v1114 = vunpack.c.l.bf16 %v954
        %v1115 = vunpack.c.l.bf16 %v955
        %v1116 = vunpack.c.l.bf16 %v956
        %v1117 = vunpack.c.l.bf16 %v957
        %v1118 = vunpack.c.l.bf16 %v958
        %v1119 = vunpack.c.l.bf16 %v959
        %v1120 = vunpack.c.l.bf16 %v960
        %v1121 = vunpack.c.l.bf16 %v961
        %v1122 = vunpack.c.l.bf16 %v962
        %v1123 = vunpack.c.l.bf16 %v963
        %v1124 = vunpack.c.l.bf16 %v964
        %v1125 = vunpack.c.l.bf16 %v965
        %v1126 = vunpack.c.l.bf16 %v966
        %v1127 = vunpack.c.l.bf16 %v967
        %v1128 = vunpack.c.l.bf16 %v968
        %v1129 = vunpack.c.l.bf16 %v969
        %v1130 = vunpack.c.l.bf16 %v970
        %v1131 = vunpack.c.l.bf16 %v971
        %v1132 = vunpack.c.l.bf16 %v972
        %v1133 = vunpack.c.l.bf16 %v973
        %v1134 = vunpack.c.l.bf16 %v974
        %v1135 = vunpack.c.l.bf16 %v975
        %v1136 = vunpack.c.l.bf16 %v976
        %v1137 = vunpack.c.l.bf16 %v977
        %v1138 = vunpack.c.l.bf16 %v978
        %v1139 = vunpack.c.l.bf16 %v979
        %v1140 = vunpack.c.l.bf16 %v980
        %v1141 = vunpack.c.l.bf16 %v981
        %v1142 = vunpack.c.l.bf16 %v982
        %v1143 = vunpack.c.l.bf16 %v983
        %v1144 = vunpack.c.l.bf16 %v984
        %v1145 = vunpack.c.l.bf16 %v985
        %v1146 = vunpack.c.l.bf16 %v986
        %v1147 = vunpack.c.l.bf16 %v987
        %v1148 = vunpack.c.l.bf16 %v988
        %v1149 = vunpack.c.l.bf16 %v989
        %v1150 = vunpack.c.l.bf16 %v990
        %v1151 = vunpack.c.l.bf16 %v991
        %v1152 = vunpack.c.l.bf16 %v992
        %v1153 = vunpack.c.l.bf16 %v993
        %v1154 = vunpack.c.l.bf16 %v994
        %v1155 = vunpack.c.l.bf16 %v995
        %v1156 = vunpack.c.l.bf16 %v996
        %v1157 = vunpack.c.l.bf16 %v997
        %v1158 = vunpack.c.l.bf16 %v998
        %v1159 = vunpack.c.l.bf16 %v999
        %v1160 = vunpack.c.l.bf16 %v1000
        %v1161 = vunpack.c.l.bf16 %v1001
        %v1162 = vunpack.c.l.bf16 %v1002
        %v1163 = vunpack.c.l.bf16 %v1003
        %v1164 = vunpack.c.l.bf16 %v1004
        %v1165 = vunpack.c.l.bf16 %v1005
        %v1166 = vunpack.c.l.bf16 %v1006
        %v1167 = vunpack.c.l.bf16 %v1007
        %v1168 = vunpack.c.l.bf16 %v1008
        %v1169 = vunpack.c.l.bf16 %v1009
        %v1170 = vunpack.c.l.bf16 %v1010
        %v1171 = vunpack.c.l.bf16 %v1011
        %v1172 = vunpack.c.l.bf16 %v1012
        %v1173 = vunpack.c.l.bf16 %v1013
        %v1174 = vunpack.c.l.bf16 %v1014
        %v1175 = vunpack.c.l.bf16 %v1015
        %v1176 = vunpack.c.l.bf16 %v1016
        %v1177 = vunpack.c.l.bf16 %v1017
        %v1178 = vunpack.c.l.bf16 %v1018
        %v1179 = vunpack.c.l.bf16 %v1019
        %v1180 = vunpack.c.l.bf16 %v1020
        %v1181 = vunpack.c.l.bf16 %v1021
        %v1182 = vunpack.c.l.bf16 %v1022
        %v1183 = vunpack.c.l.bf16 %v1023
        %v1184 = vunpack.c.l.bf16 %v1024
        %v1185 = vunpack.c.l.bf16 %v1025
        %v1186 = vunpack.c.l.bf16 %v1026
        %v1187 = vunpack.c.l.bf16 %v1027
        %v1188 = vunpack.c.l.bf16 %v1028
        %v1189 = vunpack.c.l.bf16 %v1029
        %v1190 = vunpack.c.l.bf16 %v1030
        %v1191 = vunpack.c.l.bf16 %v1031
        %v1192 = vunpack.c.l.bf16 %v1032
        %v1193 = vunpack.c.l.bf16 %v1033
        %v1194 = vunpack.c.l.bf16 %v1034
        %v1195 = vunpack.c.l.bf16 %v1035
        %v1196 = vunpack.c.l.bf16 %v1036
        %v1197 = vunpack.c.l.bf16 %v1037
        %v1198 = vunpack.c.l.bf16 %v1038
        %v1199 = vunpack.c.l.bf16 %v1039
        %v1200 = vunpack.c.l.bf16 %v1040
        %v1201 = vunpack.c.l.bf16 %v1041
        %v1202 = vunpack.c.l.bf16 %v1042
        %v1203 = vunpack.c.l.bf16 %v1043
        %v1204 = vunpack.c.l.bf16 %v1044
        %v1205 = vunpack.c.l.bf16 %v1045
        %v1206 = vunpack.c.l.bf16 %v1046
        %v1207 = vunpack.c.l.bf16 %v1047
        %v1208 = vunpack.c.l.bf16 %v1048
        %v1209 = vunpack.c.l.bf16 %v1049
        %v1210 = vunpack.c.l.bf16 %v1050
        %v1211 = vunpack.c.l.bf16 %v1051
        %v1212 = vunpack.c.l.bf16 %v1052
        %v1213 = vunpack.c.l.bf16 %v1053
        %v1214 = vunpack.c.l.bf16 %v1054
        %v1215 = vunpack.c.l.bf16 %v1055
        %v1216 = vunpack.c.l.bf16 %v1056
        %v1217 = vunpack.c.l.bf16 %v1057
        %v1218 = vunpack.c.l.bf16 %v1058
        %v1219 = vunpack.c.l.bf16 %v1059
        %v1220 = vunpack.c.l.bf16 %v1060
        %v1221 = vunpack.c.l.bf16 %v1061
        %v1222 = vunpack.c.l.bf16 %v1062
        %v1223 = vunpack.c.l.bf16 %v1063
        %v1224 = vunpack.c.l.bf16 %v1064
        %v1225 = vunpack.c.l.bf16 %v1065
        %v1226 = vunpack.c.l.bf16 %v1066
        %v1227 = vunpack.c.l.bf16 %v1067
        %v1228 = vunpack.c.l.bf16 %v1068
        %v1229 = vunpack.c.l.bf16 %v1069
        %v1230 = vunpack.c.l.bf16 %v1070
        %v1231 = vunpack.c.l.bf16 %v1071
        %v1232 = vunpack.c.l.bf16 %v1072
        %v1233 = vunpack.c.l.bf16 %v1073
        %v1234 = vunpack.c.l.bf16 %v1074
        %v1235 = vunpack.c.l.bf16 %v1075
        %v1236 = vunpack.c.l.bf16 %v1076
        %v1237 = vadd.f32 %v1077, %v901
        %v1238 = vadd.f32 %v1078, %v902
        %v1239 = vadd.f32 %v1079, %v903
        %v1240 = vadd.f32 %v1080, %v904
        %v1241 = vadd.f32 %v1081, %v905
        %v1242 = vadd.f32 %v1082, %v906
        %v1243 = vadd.f32 %v1083, %v907
        %v1244 = vadd.f32 %v1084, %v908
        %v1245 = vadd.f32 %v1085, %v909
        %v1246 = vadd.f32 %v1086, %v910
        %v1247 = vadd.f32 %v1087, %v911
        %v1248 = vadd.f32 %v1088, %v912
        %v1249 = vadd.f32 %v1089, %v913
        %v1250 = vadd.f32 %v1090, %v914
        %v1251 = vadd.f32 %v1091, %v915
        %v1252 = vadd.f32 %v1092, %v916
        %v1253 = vadd.f32 %v1093, %v901
        %v1254 = vadd.f32 %v1094, %v902
        %v1255 = vadd.f32 %v1095, %v903
        %v1256 = vadd.f32 %v1096, %v904
        %v1257 = vadd.f32 %v1097, %v905
        %v1258 = vadd.f32 %v1098, %v906
        %v1259 = vadd.f32 %v1099, %v907
        %v1260 = vadd.f32 %v1100, %v908
        %v1261 = vadd.f32 %v1101, %v909
        %v1262 = vadd.f32 %v1102, %v910
        %v1263 = vadd.f32 %v1103, %v911
        %v1264 = vadd.f32 %v1104, %v912
        %v1265 = vadd.f32 %v1105, %v913
        %v1266 = vadd.f32 %v1106, %v914
        %v1267 = vadd.f32 %v1107, %v915
        %v1268 = vadd.f32 %v1108, %v916
        %v1269 = vadd.f32 %v1109, %v901
        %v1270 = vadd.f32 %v1110, %v902
        %v1271 = vadd.f32 %v1111, %v903
        %v1272 = vadd.f32 %v1112, %v904
        %v1273 = vadd.f32 %v1113, %v905
        %v1274 = vadd.f32 %v1114, %v906
        %v1275 = vadd.f32 %v1115, %v907
        %v1276 = vadd.f32 %v1116, %v908
        %v1277 = vadd.f32 %v1117, %v909
        %v1278 = vadd.f32 %v1118, %v910
        %v1279 = vadd.f32 %v1119, %v911
        %v1280 = vadd.f32 %v1120, %v912
        %v1281 = vadd.f32 %v1121, %v913
        %v1282 = vadd.f32 %v1122, %v914
        %v1283 = vadd.f32 %v1123, %v915
        %v1284 = vadd.f32 %v1124, %v916
        %v1285 = vadd.f32 %v1125, %v901
        %v1286 = vadd.f32 %v1126, %v902
        %v1287 = vadd.f32 %v1127, %v903
        %v1288 = vadd.f32 %v1128, %v904
        %v1289 = vadd.f32 %v1129, %v905
        %v1290 = vadd.f32 %v1130, %v906
        %v1291 = vadd.f32 %v1131, %v907
        %v1292 = vadd.f32 %v1132, %v908
        %v1293 = vadd.f32 %v1133, %v909
        %v1294 = vadd.f32 %v1134, %v910
        %v1295 = vadd.f32 %v1135, %v911
        %v1296 = vadd.f32 %v1136, %v912
        %v1297 = vadd.f32 %v1137, %v913
        %v1298 = vadd.f32 %v1138, %v914
        %v1299 = vadd.f32 %v1139, %v915
        %v1300 = vadd.f32 %v1140, %v916
        %v1301 = vadd.f32 %v1141, %v901
        %v1302 = vadd.f32 %v1142, %v902
        %v1303 = vadd.f32 %v1143, %v903
        %v1304 = vadd.f32 %v1144, %v904
        %v1305 = vadd.f32 %v1145, %v905
        %v1306 = vadd.f32 %v1146, %v906
        %v1307 = vadd.f32 %v1147, %v907
        %v1308 = vadd.f32 %v1148, %v908
        %v1309 = vadd.f32 %v1149, %v909
        %v1310 = vadd.f32 %v1150, %v910
        %v1311 = vadd.f32 %v1151, %v911
        %v1312 = vadd.f32 %v1152, %v912
        %v1313 = vadd.f32 %v1153, %v913
        %v1314 = vadd.f32 %v1154, %v914
        %v1315 = vadd.f32 %v1155, %v915
        %v1316 = vadd.f32 %v1156, %v916
        %v1317 = vadd.f32 %v1157, %v901
        %v1318 = vadd.f32 %v1158, %v902
        %v1319 = vadd.f32 %v1159, %v903
        %v1320 = vadd.f32 %v1160, %v904
        %v1321 = vadd.f32 %v1161, %v905
        %v1322 = vadd.f32 %v1162, %v906
        %v1323 = vadd.f32 %v1163, %v907
        %v1324 = vadd.f32 %v1164, %v908
        %v1325 = vadd.f32 %v1165, %v909
        %v1326 = vadd.f32 %v1166, %v910
        %v1327 = vadd.f32 %v1167, %v911
        %v1328 = vadd.f32 %v1168, %v912
        %v1329 = vadd.f32 %v1169, %v913
        %v1330 = vadd.f32 %v1170, %v914
        %v1331 = vadd.f32 %v1171, %v915
        %v1332 = vadd.f32 %v1172, %v916
        %v1333 = vadd.f32 %v1173, %v901
        %v1334 = vadd.f32 %v1174, %v902
        %v1335 = vadd.f32 %v1175, %v903
        %v1336 = vadd.f32 %v1176, %v904
        %v1337 = vadd.f32 %v1177, %v905
        %v1338 = vadd.f32 %v1178, %v906
        %v1339 = vadd.f32 %v1179, %v907
        %v1340 = vadd.f32 %v1180, %v908
        %v1341 = vadd.f32 %v1181, %v909
        %v1342 = vadd.f32 %v1182, %v910
        %v1343 = vadd.f32 %v1183, %v911
        %v1344 = vadd.f32 %v1184, %v912
        %v1345 = vadd.f32 %v1185, %v913
        %v1346 = vadd.f32 %v1186, %v914
        %v1347 = vadd.f32 %v1187, %v915
        %v1348 = vadd.f32 %v1188, %v916
        %v1349 = vadd.f32 %v1189, %v901
        %v1350 = vadd.f32 %v1190, %v902
        %v1351 = vadd.f32 %v1191, %v903
        %v1352 = vadd.f32 %v1192, %v904
        %v1353 = vadd.f32 %v1193, %v905
        %v1354 = vadd.f32 %v1194, %v906
        %v1355 = vadd.f32 %v1195, %v907
        %v1356 = vadd.f32 %v1196, %v908
        %v1357 = vadd.f32 %v1197, %v909
        %v1358 = vadd.f32 %v1198, %v910
        %v1359 = vadd.f32 %v1199, %v911
        %v1360 = vadd.f32 %v1200, %v912
        %v1361 = vadd.f32 %v1201, %v913
        %v1362 = vadd.f32 %v1202, %v914
        %v1363 = vadd.f32 %v1203, %v915
        %v1364 = vadd.f32 %v1204, %v916
        %v1365 = vadd.f32 %v1205, %v901
        %v1366 = vadd.f32 %v1206, %v902
        %v1367 = vadd.f32 %v1207, %v903
        %v1368 = vadd.f32 %v1208, %v904
        %v1369 = vadd.f32 %v1209, %v905
        %v1370 = vadd.f32 %v1210, %v906
        %v1371 = vadd.f32 %v1211, %v907
        %v1372 = vadd.f32 %v1212, %v908
        %v1373 = vadd.f32 %v1213, %v909
        %v1374 = vadd.f32 %v1214, %v910
        %v1375 = vadd.f32 %v1215, %v911
        %v1376 = vadd.f32 %v1216, %v912
        %v1377 = vadd.f32 %v1217, %v913
        %v1378 = vadd.f32 %v1218, %v914
        %v1379 = vadd.f32 %v1219, %v915
        %v1380 = vadd.f32 %v1220, %v916
        %v1381 = vadd.f32 %v1221, %v901
        %v1382 = vadd.f32 %v1222, %v902
        %v1383 = vadd.f32 %v1223, %v903
        %v1384 = vadd.f32 %v1224, %v904
        %v1385 = vadd.f32 %v1225, %v905
        %v1386 = vadd.f32 %v1226, %v906
        %v1387 = vadd.f32 %v1227, %v907
        %v1388 = vadd.f32 %v1228, %v908
        %v1389 = vadd.f32 %v1229, %v909
        %v1390 = vadd.f32 %v1230, %v910
        %v1391 = vadd.f32 %v1231, %v911
        %v1392 = vadd.f32 %v1232, %v912
        %v1393 = vadd.f32 %v1233, %v913
        %v1394 = vadd.f32 %v1234, %v914
        %v1395 = vadd.f32 %v1235, %v915
        %v1396 = vadd.f32 %v1236, %v916
        %v1397 = vmax.f32 %v1237, 0.0
        %v1398 = vmax.f32 %v1238, 0.0
        %v1399 = vmax.f32 %v1239, 0.0
        %v1400 = vmax.f32 %v1240, 0.0
        %v1401 = vmax.f32 %v1241, 0.0
        %v1402 = vmax.f32 %v1242, 0.0
        %v1403 = vmax.f32 %v1243, 0.0
        %v1404 = vmax.f32 %v1244, 0.0
        %v1405 = vmax.f32 %v1245, 0.0
        %v1406 = vmax.f32 %v1246, 0.0
        %v1407 = vmax.f32 %v1247, 0.0
        %v1408 = vmax.f32 %v1248, 0.0
        %v1409 = vmax.f32 %v1249, 0.0
        %v1410 = vmax.f32 %v1250, 0.0
        %v1411 = vmax.f32 %v1251, 0.0
        %v1412 = vmax.f32 %v1252, 0.0
        %v1413 = vmax.f32 %v1253, 0.0
        %v1414 = vmax.f32 %v1254, 0.0
        %v1415 = vmax.f32 %v1255, 0.0
        %v1416 = vmax.f32 %v1256, 0.0
        %v1417 = vmax.f32 %v1257, 0.0
        %v1418 = vmax.f32 %v1258, 0.0
        %v1419 = vmax.f32 %v1259, 0.0
        %v1420 = vmax.f32 %v1260, 0.0
        %v1421 = vmax.f32 %v1261, 0.0
        %v1422 = vmax.f32 %v1262, 0.0
        %v1423 = vmax.f32 %v1263, 0.0
        %v1424 = vmax.f32 %v1264, 0.0
        %v1425 = vmax.f32 %v1265, 0.0
        %v1426 = vmax.f32 %v1266, 0.0
        %v1427 = vmax.f32 %v1267, 0.0
        %v1428 = vmax.f32 %v1268, 0.0
        %v1429 = vmax.f32 %v1269, 0.0
        %v1430 = vmax.f32 %v1270, 0.0
        %v1431 = vmax.f32 %v1271, 0.0
        %v1432 = vmax.f32 %v1272, 0.0
        %v1433 = vmax.f32 %v1273, 0.0
        %v1434 = vmax.f32 %v1274, 0.0
        %v1435 = vmax.f32 %v1275, 0.0
        %v1436 = vmax.f32 %v1276, 0.0
        %v1437 = vmax.f32 %v1277, 0.0
        %v1438 = vmax.f32 %v1278, 0.0
        %v1439 = vmax.f32 %v1279, 0.0
        %v1440 = vmax.f32 %v1280, 0.0
        %v1441 = vmax.f32 %v1281, 0.0
        %v1442 = vmax.f32 %v1282, 0.0
        %v1443 = vmax.f32 %v1283, 0.0
        %v1444 = vmax.f32 %v1284, 0.0
        %v1445 = vmax.f32 %v1285, 0.0
        %v1446 = vmax.f32 %v1286, 0.0
        %v1447 = vmax.f32 %v1287, 0.0
        %v1448 = vmax.f32 %v1288, 0.0
        %v1449 = vmax.f32 %v1289, 0.0
        %v1450 = vmax.f32 %v1290, 0.0
        %v1451 = vmax.f32 %v1291, 0.0
        %v1452 = vmax.f32 %v1292, 0.0
        %v1453 = vmax.f32 %v1293, 0.0
        %v1454 = vmax.f32 %v1294, 0.0
        %v1455 = vmax.f32 %v1295, 0.0
        %v1456 = vmax.f32 %v1296, 0.0
        %v1457 = vmax.f32 %v1297, 0.0
        %v1458 = vmax.f32 %v1298, 0.0
        %v1459 = vmax.f32 %v1299, 0.0
        %v1460 = vmax.f32 %v1300, 0.0
        %v1461 = vmax.f32 %v1301, 0.0
        %v1462 = vmax.f32 %v1302, 0.0
        %v1463 = vmax.f32 %v1303, 0.0
        %v1464 = vmax.f32 %v1304, 0.0
        %v1465 = vmax.f32 %v1305, 0.0
        %v1466 = vmax.f32 %v1306, 0.0
        %v1467 = vmax.f32 %v1307, 0.0
        %v1468 = vmax.f32 %v1308, 0.0
        %v1469 = vmax.f32 %v1309, 0.0
        %v1470 = vmax.f32 %v1310, 0.0
        %v1471 = vmax.f32 %v1311, 0.0
        %v1472 = vmax.f32 %v1312, 0.0
        %v1473 = vmax.f32 %v1313, 0.0
        %v1474 = vmax.f32 %v1314, 0.0
        %v1475 = vmax.f32 %v1315, 0.0
        %v1476 = vmax.f32 %v1316, 0.0
        %v1477 = vmax.f32 %v1317, 0.0
        %v1478 = vmax.f32 %v1318, 0.0
        %v1479 = vmax.f32 %v1319, 0.0
        %v1480 = vmax.f32 %v1320, 0.0
        %v1481 = vmax.f32 %v1321, 0.0
        %v1482 = vmax.f32 %v1322, 0.0
        %v1483 = vmax.f32 %v1323, 0.0
        %v1484 = vmax.f32 %v1324, 0.0
        %v1485 = vmax.f32 %v1325, 0.0
        %v1486 = vmax.f32 %v1326, 0.0
        %v1487 = vmax.f32 %v1327, 0.0
        %v1488 = vmax.f32 %v1328, 0.0
        %v1489 = vmax.f32 %v1329, 0.0
        %v1490 = vmax.f32 %v1330, 0.0
        %v1491 = vmax.f32 %v1331, 0.0
        %v1492 = vmax.f32 %v1332, 0.0
        %v1493 = vmax.f32 %v1333, 0.0
        %v1494 = vmax.f32 %v1334, 0.0
        %v1495 = vmax.f32 %v1335, 0.0
        %v1496 = vmax.f32 %v1336, 0.0
        %v1497 = vmax.f32 %v1337, 0.0
        %v1498 = vmax.f32 %v1338, 0.0
        %v1499 = vmax.f32 %v1339, 0.0
        %v1500 = vmax.f32 %v1340, 0.0
        %v1501 = vmax.f32 %v1341, 0.0
        %v1502 = vmax.f32 %v1342, 0.0
        %v1503 = vmax.f32 %v1343, 0.0
        %v1504 = vmax.f32 %v1344, 0.0
        %v1505 = vmax.f32 %v1345, 0.0
        %v1506 = vmax.f32 %v1346, 0.0
        %v1507 = vmax.f32 %v1347, 0.0
        %v1508 = vmax.f32 %v1348, 0.0
        %v1509 = vmax.f32 %v1349, 0.0
        %v1510 = vmax.f32 %v1350, 0.0
        %v1511 = vmax.f32 %v1351, 0.0
        %v1512 = vmax.f32 %v1352, 0.0
        %v1513 = vmax.f32 %v1353, 0.0
        %v1514 = vmax.f32 %v1354, 0.0
        %v1515 = vmax.f32 %v1355, 0.0
        %v1516 = vmax.f32 %v1356, 0.0
        %v1517 = vmax.f32 %v1357, 0.0
        %v1518 = vmax.f32 %v1358, 0.0
        %v1519 = vmax.f32 %v1359, 0.0
        %v1520 = vmax.f32 %v1360, 0.0
        %v1521 = vmax.f32 %v1361, 0.0
        %v1522 = vmax.f32 %v1362, 0.0
        %v1523 = vmax.f32 %v1363, 0.0
        %v1524 = vmax.f32 %v1364, 0.0
        %v1525 = vmax.f32 %v1365, 0.0
        %v1526 = vmax.f32 %v1366, 0.0
        %v1527 = vmax.f32 %v1367, 0.0
        %v1528 = vmax.f32 %v1368, 0.0
        %v1529 = vmax.f32 %v1369, 0.0
        %v1530 = vmax.f32 %v1370, 0.0
        %v1531 = vmax.f32 %v1371, 0.0
        %v1532 = vmax.f32 %v1372, 0.0
        %v1533 = vmax.f32 %v1373, 0.0
        %v1534 = vmax.f32 %v1374, 0.0
        %v1535 = vmax.f32 %v1375, 0.0
        %v1536 = vmax.f32 %v1376, 0.0
        %v1537 = vmax.f32 %v1377, 0.0
        %v1538 = vmax.f32 %v1378, 0.0
        %v1539 = vmax.f32 %v1379, 0.0
        %v1540 = vmax.f32 %v1380, 0.0
        %v1541 = vmax.f32 %v1381, 0.0
        %v1542 = vmax.f32 %v1382, 0.0
        %v1543 = vmax.f32 %v1383, 0.0
        %v1544 = vmax.f32 %v1384, 0.0
        %v1545 = vmax.f32 %v1385, 0.0
        %v1546 = vmax.f32 %v1386, 0.0
        %v1547 = vmax.f32 %v1387, 0.0
        %v1548 = vmax.f32 %v1388, 0.0
        %v1549 = vmax.f32 %v1389, 0.0
        %v1550 = vmax.f32 %v1390, 0.0
        %v1551 = vmax.f32 %v1391, 0.0
        %v1552 = vmax.f32 %v1392, 0.0
        %v1553 = vmax.f32 %v1393, 0.0
        %v1554 = vmax.f32 %v1394, 0.0
        %v1555 = vmax.f32 %v1395, 0.0
        %v1556 = vmax.f32 %v1396, 0.0
        %v1557 = vpack.c.bf16 %v1398, %v1397
        %v1558 = vpack.c.bf16 %v1400, %v1399
        %v1559 = vpack.c.bf16 %v1402, %v1401
        %v1560 = vpack.c.bf16 %v1404, %v1403
        %v1561 = vpack.c.bf16 %v1406, %v1405
        %v1562 = vpack.c.bf16 %v1408, %v1407
        %v1563 = vpack.c.bf16 %v1410, %v1409
        %v1564 = vpack.c.bf16 %v1412, %v1411
        %v1565 = vpack.c.bf16 %v1414, %v1413
        %v1566 = vpack.c.bf16 %v1416, %v1415
        %v1567 = vpack.c.bf16 %v1418, %v1417
        %v1568 = vpack.c.bf16 %v1420, %v1419
        %v1569 = vpack.c.bf16 %v1422, %v1421
        %v1570 = vpack.c.bf16 %v1424, %v1423
        %v1571 = vpack.c.bf16 %v1426, %v1425
        %v1572 = vpack.c.bf16 %v1428, %v1427
        %v1573 = vpack.c.bf16 %v1430, %v1429
        %v1574 = vpack.c.bf16 %v1432, %v1431
        %v1575 = vpack.c.bf16 %v1434, %v1433
        %v1576 = vpack.c.bf16 %v1436, %v1435
        %v1577 = vpack.c.bf16 %v1438, %v1437
        %v1578 = vpack.c.bf16 %v1440, %v1439
        %v1579 = vpack.c.bf16 %v1442, %v1441
        %v1580 = vpack.c.bf16 %v1444, %v1443
        %v1581 = vpack.c.bf16 %v1446, %v1445
        %v1582 = vpack.c.bf16 %v1448, %v1447
        %v1583 = vpack.c.bf16 %v1450, %v1449
        %v1584 = vpack.c.bf16 %v1452, %v1451
        %v1585 = vpack.c.bf16 %v1454, %v1453
        %v1586 = vpack.c.bf16 %v1456, %v1455
        %v1587 = vpack.c.bf16 %v1458, %v1457
        %v1588 = vpack.c.bf16 %v1460, %v1459
        %v1589 = vpack.c.bf16 %v1462, %v1461
        %v1590 = vpack.c.bf16 %v1464, %v1463
        %v1591 = vpack.c.bf16 %v1466, %v1465
        %v1592 = vpack.c.bf16 %v1468, %v1467
        %v1593 = vpack.c.bf16 %v1470, %v1469
        %v1594 = vpack.c.bf16 %v1472, %v1471
        %v1595 = vpack.c.bf16 %v1474, %v1473
        %v1596 = vpack.c.bf16 %v1476, %v1475
        %v1597 = vpack.c.bf16 %v1478, %v1477
        %v1598 = vpack.c.bf16 %v1480, %v1479
        %v1599 = vpack.c.bf16 %v1482, %v1481
        %v1600 = vpack.c.bf16 %v1484, %v1483
        %v1601 = vpack.c.bf16 %v1486, %v1485
        %v1602 = vpack.c.bf16 %v1488, %v1487
        %v1603 = vpack.c.bf16 %v1490, %v1489
        %v1604 = vpack.c.bf16 %v1492, %v1491
        %v1605 = vpack.c.bf16 %v1494, %v1493
        %v1606 = vpack.c.bf16 %v1496, %v1495
        %v1607 = vpack.c.bf16 %v1498, %v1497
        %v1608 = vpack.c.bf16 %v1500, %v1499
        %v1609 = vpack.c.bf16 %v1502, %v1501
        %v1610 = vpack.c.bf16 %v1504, %v1503
        %v1611 = vpack.c.bf16 %v1506, %v1505
        %v1612 = vpack.c.bf16 %v1508, %v1507
        %v1613 = vpack.c.bf16 %v1510, %v1509
        %v1614 = vpack.c.bf16 %v1512, %v1511
        %v1615 = vpack.c.bf16 %v1514, %v1513
        %v1616 = vpack.c.bf16 %v1516, %v1515
        %v1617 = vpack.c.bf16 %v1518, %v1517
        %v1618 = vpack.c.bf16 %v1520, %v1519
        %v1619 = vpack.c.bf16 %v1522, %v1521
        %v1620 = vpack.c.bf16 %v1524, %v1523
        %v1621 = vpack.c.bf16 %v1526, %v1525
        %v1622 = vpack.c.bf16 %v1528, %v1527
        %v1623 = vpack.c.bf16 %v1530, %v1529
        %v1624 = vpack.c.bf16 %v1532, %v1531
        %v1625 = vpack.c.bf16 %v1534, %v1533
        %v1626 = vpack.c.bf16 %v1536, %v1535
        %v1627 = vpack.c.bf16 %v1538, %v1537
        %v1628 = vpack.c.bf16 %v1540, %v1539
        %v1629 = vpack.c.bf16 %v1542, %v1541
        %v1630 = vpack.c.bf16 %v1544, %v1543
        %v1631 = vpack.c.bf16 %v1546, %v1545
        %v1632 = vpack.c.bf16 %v1548, %v1547
        %v1633 = vpack.c.bf16 %v1550, %v1549
        %v1634 = vpack.c.bf16 %v1552, %v1551
        %v1635 = vpack.c.bf16 %v1554, %v1553
        %v1636 = vpack.c.bf16 %v1556, %v1555
        %v1637 = vld [vmem:[%s2] sm:$0xf]
        %v1638 = vld [vmem:[%s2 + $0x4] sm:$0xf]
        %v1639 = vld [vmem:[%s2 + $0x8] sm:$0xf]
        %v1640 = vld [vmem:[%s2 + $0xc] sm:$0xf]
        %v1641 = vld [vmem:[%s2 + $0x10] sm:$0xf]
        %v1642 = vld [vmem:[%s2 + $0x14] sm:$0xf]
        %v1643 = vld [vmem:[%s2 + $0x18] sm:$0xf]
        %v1644 = vld [vmem:[%s2 + $0x1c] sm:$0xf]
        %v1645 = vld [vmem:[%s2 + $0x20] sm:$0xf]
        %v1646 = vld [vmem:[%s2 + $0x24] sm:$0xf]
        %v1647 = vld [vmem:[%s2 + $0x28] sm:$0xf]
        %v1648 = vld [vmem:[%s2 + $0x2c] sm:$0xf]
        %v1649 = vld [vmem:[%s2 + $0x30] sm:$0xf]
        %v1650 = vld [vmem:[%s2 + $0x34] sm:$0xf]
        %v1651 = vld [vmem:[%s2 + $0x38] sm:$0xf]
        %v1652 = vld [vmem:[%s2 + $0x3c] sm:$0xf]
        %v1653 = vld [vmem:[%s3] sm:$0x1]
        %v1655 = vlaneseq
        %v1656 = vshrl.u32 %v1655, 7
        %v1657 = vsub.s32 0, %v1656
        %v1658 = vrot.slane %v1653, %v1657
        %v1676 = vunpack.c.l.b16 %v1637
        %v1677 = vunpack.c.l.b16 %v1638
        %v1678 = vunpack.c.l.b16 %v1639
        %v1679 = vunpack.c.l.b16 %v1640
        %v1680 = vunpack.c.l.b16 %v1641
        %v1681 = vunpack.c.l.b16 %v1642
        %v1682 = vunpack.c.l.b16 %v1643
        %v1683 = vunpack.c.l.b16 %v1644
        %v1684 = vunpack.c.l.b16 %v1645
        %v1685 = vunpack.c.l.b16 %v1646
        %v1686 = vunpack.c.l.b16 %v1647
        %v1687 = vunpack.c.l.b16 %v1648
        %v1688 = vunpack.c.l.b16 %v1649
        %v1689 = vunpack.c.l.b16 %v1650
        %v1690 = vunpack.c.l.b16 %v1651
        %v1691 = vunpack.c.l.b16 %v1652
        %v1692 = vpack.c.b16 %v1677, %v1676
        %v1693 = vpack.c.b16 %v1679, %v1678
        %v1694 = vpack.c.b16 %v1681, %v1680
        %v1695 = vpack.c.b16 %v1683, %v1682
        %v1696 = vpack.c.b16 %v1685, %v1684
        %v1697 = vpack.c.b16 %v1687, %v1686
        %v1698 = vpack.c.b16 %v1689, %v1688
        %v1699 = vpack.c.b16 %v1691, %v1690
        %1708 = vmatprep.subr.bf16.mxu0 0
        %1709 = vmatpush1.bf16.msra.mxu0 %v1692
        %1710 = vmatprep.subr.bf16.mxu0 0
        %1711 = vmatpush1.bf16.msra.mxu0 %v1693
        %1712 = vmatprep.subr.bf16.mxu0 0
        %1713 = vmatpush1.bf16.msra.mxu0 %v1694
        %1714 = vmatprep.subr.bf16.mxu0 0
        %1715 = vmatpush1.bf16.msra.mxu0 %v1695
        %1716 = vmatprep.subr.bf16.mxu0 0
        %1717 = vmatpush1.bf16.msra.mxu0 %v1696
        %1718 = vmatprep.subr.bf16.mxu0 0
        %1719 = vmatpush1.bf16.msra.mxu0 %v1697
        %1720 = vmatprep.subr.bf16.mxu0 0
        %1721 = vmatpush1.bf16.msra.mxu0 %v1698
        %1722 = vmatprep.subr.bf16.mxu0 0
        %1723 = vmatpush1.bf16.msra.mxu0 %v1699
        %1724 = vmatprep.subr.bf16.mxu0 0
        %1725 = vmatpush1.bf16.msra.mxu0 0
        %1726 = vmatprep.subr.bf16.mxu0 0
        %1727 = vmatpush1.bf16.msra.mxu0 0
        %1728 = vmatprep.subr.bf16.mxu0 0
        %1729 = vmatpush1.bf16.msra.mxu0 0
        %1730 = vmatprep.subr.bf16.mxu0 0
        %1731 = vmatpush1.bf16.msra.mxu0 0
        %1732 = vmatprep.subr.bf16.mxu0 0
        %1733 = vmatpush1.bf16.msra.mxu0 0
        %1734 = vmatprep.subr.bf16.mxu0 0
        %1735 = vmatpush1.bf16.msra.mxu0 0
        %1736 = vmatprep.subr.bf16.mxu0 0
        %1737 = vmatpush1.bf16.msra.mxu0 0
        %1738 = vmatprep.subr.bf16.mxu0 0
        %1739 = vmatpush1.bf16.msra.mxu0 0
        %1740 = vmatprep.mubr.bf16.mxu0 0
        %1741 = vmatmul.mubr.bf16.gmra.mrb[0].mxu0 %v1557
        %v1742 = vpop.f32.mrb[0].mxu0
        %v1743 = vadd.f32 %v1658, %v1742
        %v1744 = vpop.f32.mrb[0].mxu0
        %v1745 = vpop.f32.mrb[0].mxu0
        %v1746 = vadd.f32 %v1658, %v1745
        %v1747 = vpop.f32.mrb[0].mxu0
        %1748 = vmatprep.mubr.bf16.mxu0 0
        %1749 = vmatmul.mubr.bf16.gmra.mrb[0].mxu0 %v1558
        %v1750 = vpop.f32.mrb[0].mxu0
        %v1751 = vadd.f32 %v1658, %v1750
        %v1752 = vpop.f32.mrb[0].mxu0
        %v1753 = vpop.f32.mrb[0].mxu0
        %v1754 = vadd.f32 %v1658, %v1753
        %v1755 = vpop.f32.mrb[0].mxu0
        %1756 = vmatprep.mubr.bf16.mxu0 0
        %1757 = vmatmul.mubr.bf16.gmra.mrb[0].mxu0 %v1559
        %v1758 = vpop.f32.mrb[0].mxu0
        %v1759 = vadd.f32 %v1658, %v1758
        %v1760 = vpop.f32.mrb[0].mxu0
        %v1761 = vpop.f32.mrb[0].mxu0
        %v1762 = vadd.f32 %v1658, %v1761
        %v1763 = vpop.f32.mrb[0].mxu0
        %1764 = vmatprep.mubr.bf16.mxu0 0
        %1765 = vmatmul.mubr.bf16.gmra.mrb[0].mxu0 %v1560
        %v1766 = vpop.f32.mrb[0].mxu0
        %v1767 = vadd.f32 %v1658, %v1766
        %v1768 = vpop.f32.mrb[0].mxu0
        %v1769 = vpop.f32.mrb[0].mxu0
        %v1770 = vadd.f32 %v1658, %v1769
        %v1771 = vpop.f32.mrb[0].mxu0
        %1772 = vmatprep.mubr.bf16.mxu0 0
        %1773 = vmatmul.mubr.bf16.gmra.mrb[0].mxu0 %v1561
        %v1774 = vpop.f32.mrb[0].mxu0
        %v1775 = vadd.f32 %v1658, %v1774
        %v1776 = vpop.f32.mrb[0].mxu0
        %v1777 = vpop.f32.mrb[0].mxu0
        %v1778 = vadd.f32 %v1658, %v1777
        %v1779 = vpop.f32.mrb[0].mxu0
        %1780 = vmatprep.mubr.bf16.mxu0 0
        %1781 = vmatmul.mubr.bf16.gmra.mrb[0].mxu0 %v1562
        %v1782 = vpop.f32.mrb[0].mxu0
        %v1783 = vadd.f32 %v1658, %v1782
        %v1784 = vpop.f32.mrb[0].mxu0
        %v1785 = vpop.f32.mrb[0].mxu0
        %v1786 = vadd.f32 %v1658, %v1785
        %v1787 = vpop.f32.mrb[0].mxu0
        %1788 = vmatprep.mubr.bf16.mxu0 0
        %1789 = vmatmul.mubr.bf16.gmra.mrb[0].mxu0 %v1563
        %v1790 = vpop.f32.mrb[0].mxu0
        %v1791 = vadd.f32 %v1658, %v1790
        %v1792 = vpop.f32.mrb[0].mxu0
        %v1793 = vpop.f32.mrb[0].mxu0
        %v1794 = vadd.f32 %v1658, %v1793
        %v1795 = vpop.f32.mrb[0].mxu0
        %1796 = vmatprep.mubr.bf16.mxu0 0
        %1797 = vmatmul.mubr.bf16.gmra.mrb[0].mxu0 %v1564
        %v1798 = vpop.f32.mrb[0].mxu0
        %v1799 = vadd.f32 %v1658, %v1798
        %v1800 = vpop.f32.mrb[0].mxu0
        %v1801 = vpop.f32.mrb[0].mxu0
        %v1802 = vadd.f32 %v1658, %v1801
        %v1803 = vpop.f32.mrb[0].mxu0
        %1804 = vmatprep.mubr.bf16.mxu0 0
        %1805 = vmatmul.mubr.bf16.gmra.mrb[0].mxu0 %v1565
        %v1806 = vpop.f32.mrb[0].mxu0
        %v1807 = vadd.f32 %v1658, %v1806
        %v1808 = vpop.f32.mrb[0].mxu0
        %v1809 = vpop.f32.mrb[0].mxu0
        %v1810 = vadd.f32 %v1658, %v1809
        %v1811 = vpop.f32.mrb[0].mxu0
        %1812 = vmatprep.mubr.bf16.mxu0 0
        %1813 = vmatmul.mubr.bf16.gmra.mrb[0].mxu0 %v1566
        %v1814 = vpop.f32.mrb[0].mxu0
        %v1815 = vadd.f32 %v1658, %v1814
        %v1816 = vpop.f32.mrb[0].mxu0
        %v1817 = vpop.f32.mrb[0].mxu0
        %v1818 = vadd.f32 %v1658, %v1817
        %v1819 = vpop.f32.mrb[0].mxu0
        %1820 = vmatprep.mubr.bf16.mxu0 0
        %1821 = vmatmul.mubr.bf16.gmra.mrb[0].mxu0 %v1567
        %v1822 = vpop.f32.mrb[0].mxu0
        %v1823 = vadd.f32 %v1658, %v1822
        %v1824 = vpop.f32.mrb[0].mxu0
        %v1825 = vpop.f32.mrb[0].mxu0
        %v1826 = vadd.f32 %v1658, %v1825
        %v1827 = vpop.f32.mrb[0].mxu0
        %1828 = vmatprep.mubr.bf16.mxu0 0
        %1829 = vmatmul.mubr.bf16.gmra.mrb[0].mxu0 %v1568
        %v1830 = vpop.f32.mrb[0].mxu0
        %v1831 = vadd.f32 %v1658, %v1830
        %v1832 = vpop.f32.mrb[0].mxu0
        %v1833 = vpop.f32.mrb[0].mxu0
        %v1834 = vadd.f32 %v1658, %v1833
        %v1835 = vpop.f32.mrb[0].mxu0
        %1836 = vmatprep.mubr.bf16.mxu0 0
        %1837 = vmatmul.mubr.bf16.gmra.mrb[0].mxu0 %v1569
        %v1838 = vpop.f32.mrb[0].mxu0
        %v1839 = vadd.f32 %v1658, %v1838
        %v1840 = vpop.f32.mrb[0].mxu0
        %v1841 = vpop.f32.mrb[0].mxu0
        %v1842 = vadd.f32 %v1658, %v1841
        %v1843 = vpop.f32.mrb[0].mxu0
        %1844 = vmatprep.mubr.bf16.mxu0 0
        %1845 = vmatmul.mubr.bf16.gmra.mrb[0].mxu0 %v1570
        %v1846 = vpop.f32.mrb[0].mxu0
        %v1847 = vadd.f32 %v1658, %v1846
        %v1848 = vpop.f32.mrb[0].mxu0
        %v1849 = vpop.f32.mrb[0].mxu0
        %v1850 = vadd.f32 %v1658, %v1849
        %v1851 = vpop.f32.mrb[0].mxu0
        %1852 = vmatprep.mubr.bf16.mxu0 0
        %1853 = vmatmul.mubr.bf16.gmra.mrb[0].mxu0 %v1571
        %v1854 = vpop.f32.mrb[0].mxu0
        %v1855 = vadd.f32 %v1658, %v1854
        %v1856 = vpop.f32.mrb[0].mxu0
        %v1857 = vpop.f32.mrb[0].mxu0
        %v1858 = vadd.f32 %v1658, %v1857
        %v1859 = vpop.f32.mrb[0].mxu0
        %1860 = vmatprep.mubr.bf16.mxu0 0
        %1861 = vmatmul.mubr.bf16.gmra.mrb[0].mxu0 %v1572
        %v1862 = vpop.f32.mrb[0].mxu0
        %v1863 = vadd.f32 %v1658, %v1862
        %v1864 = vpop.f32.mrb[0].mxu0
        %v1865 = vpop.f32.mrb[0].mxu0
        %v1866 = vadd.f32 %v1658, %v1865
        %v1867 = vpop.f32.mrb[0].mxu0
        %1868 = vmatprep.mubr.bf16.mxu0 0
        %1869 = vmatmul.mubr.bf16.gmra.mrb[0].mxu0 %v1573
        %v1870 = vpop.f32.mrb[0].mxu0
        %v1871 = vadd.f32 %v1658, %v1870
        %v1872 = vpop.f32.mrb[0].mxu0
        %v1873 = vpop.f32.mrb[0].mxu0
        %v1874 = vadd.f32 %v1658, %v1873
        %v1875 = vpop.f32.mrb[0].mxu0
        %1876 = vmatprep.mubr.bf16.mxu0 0
        %1877 = vmatmul.mubr.bf16.gmra.mrb[0].mxu0 %v1574
        %v1878 = vpop.f32.mrb[0].mxu0
        %v1879 = vadd.f32 %v1658, %v1878
        %v1880 = vpop.f32.mrb[0].mxu0
        %v1881 = vpop.f32.mrb[0].mxu0
        %v1882 = vadd.f32 %v1658, %v1881
        %v1883 = vpop.f32.mrb[0].mxu0
        %1884 = vmatprep.mubr.bf16.mxu0 0
        %1885 = vmatmul.mubr.bf16.gmra.mrb[0].mxu0 %v1575
        %v1886 = vpop.f32.mrb[0].mxu0
        %v1887 = vadd.f32 %v1658, %v1886
        %v1888 = vpop.f32.mrb[0].mxu0
        %v1889 = vpop.f32.mrb[0].mxu0
        %v1890 = vadd.f32 %v1658, %v1889
        %v1891 = vpop.f32.mrb[0].mxu0
        %1892 = vmatprep.mubr.bf16.mxu0 0
        %1893 = vmatmul.mubr.bf16.gmra.mrb[0].mxu0 %v1576
        %v1894 = vpop.f32.mrb[0].mxu0
        %v1895 = vadd.f32 %v1658, %v1894
        %v1896 = vpop.f32.mrb[0].mxu0
        %v1897 = vpop.f32.mrb[0].mxu0
        %v1898 = vadd.f32 %v1658, %v1897
        %v1899 = vpop.f32.mrb[0].mxu0
        %1900 = vmatprep.mubr.bf16.mxu0 0
        %1901 = vmatmul.mubr.bf16.gmra.mrb[0].mxu0 %v1577
        %v1902 = vpop.f32.mrb[0].mxu0
        %v1903 = vadd.f32 %v1658, %v1902
        %v1904 = vpop.f32.mrb[0].mxu0
        %v1905 = vpop.f32.mrb[0].mxu0
        %v1906 = vadd.f32 %v1658, %v1905
        %v1907 = vpop.f32.mrb[0].mxu0
        %1908 = vmatprep.mubr.bf16.mxu0 0
        %1909 = vmatmul.mubr.bf16.gmra.mrb[0].mxu0 %v1578
        %v1910 = vpop.f32.mrb[0].mxu0
        %v1911 = vadd.f32 %v1658, %v1910
        %v1912 = vpop.f32.mrb[0].mxu0
        %v1913 = vpop.f32.mrb[0].mxu0
        %v1914 = vadd.f32 %v1658, %v1913
        %v1915 = vpop.f32.mrb[0].mxu0
        %1916 = vmatprep.mubr.bf16.mxu0 0
        %1917 = vmatmul.mubr.bf16.gmra.mrb[0].mxu0 %v1579
        %v1918 = vpop.f32.mrb[0].mxu0
        %v1919 = vadd.f32 %v1658, %v1918
        %v1920 = vpop.f32.mrb[0].mxu0
        %v1921 = vpop.f32.mrb[0].mxu0
        %v1922 = vadd.f32 %v1658, %v1921
        %v1923 = vpop.f32.mrb[0].mxu0
        %1924 = vmatprep.mubr.bf16.mxu0 0
        %1925 = vmatmul.mubr.bf16.gmra.mrb[0].mxu0 %v1580
        %v1926 = vpop.f32.mrb[0].mxu0
        %v1927 = vadd.f32 %v1658, %v1926
        %v1928 = vpop.f32.mrb[0].mxu0
        %v1929 = vpop.f32.mrb[0].mxu0
        %v1930 = vadd.f32 %v1658, %v1929
        %v1931 = vpop.f32.mrb[0].mxu0
        %1932 = vmatprep.mubr.bf16.mxu0 0
        %1933 = vmatmul.mubr.bf16.gmra.mrb[0].mxu0 %v1581
        %v1934 = vpop.f32.mrb[0].mxu0
        %v1935 = vadd.f32 %v1658, %v1934
        %v1936 = vpop.f32.mrb[0].mxu0
        %v1937 = vpop.f32.mrb[0].mxu0
        %v1938 = vadd.f32 %v1658, %v1937
        %v1939 = vpop.f32.mrb[0].mxu0
        %1940 = vmatprep.mubr.bf16.mxu0 0
        %1941 = vmatmul.mubr.bf16.gmra.mrb[0].mxu0 %v1582
        %v1942 = vpop.f32.mrb[0].mxu0
        %v1943 = vadd.f32 %v1658, %v1942
        %v1944 = vpop.f32.mrb[0].mxu0
        %v1945 = vpop.f32.mrb[0].mxu0
        %v1946 = vadd.f32 %v1658, %v1945
        %v1947 = vpop.f32.mrb[0].mxu0
        %1948 = vmatprep.mubr.bf16.mxu0 0
        %1949 = vmatmul.mubr.bf16.gmra.mrb[0].mxu0 %v1583
        %v1950 = vpop.f32.mrb[0].mxu0
        %v1951 = vadd.f32 %v1658, %v1950
        %v1952 = vpop.f32.mrb[0].mxu0
        %v1953 = vpop.f32.mrb[0].mxu0
        %v1954 = vadd.f32 %v1658, %v1953
        %v1955 = vpop.f32.mrb[0].mxu0
        %1956 = vmatprep.mubr.bf16.mxu0 0
        %1957 = vmatmul.mubr.bf16.gmra.mrb[0].mxu0 %v1584
        %v1958 = vpop.f32.mrb[0].mxu0
        %v1959 = vadd.f32 %v1658, %v1958
        %v1960 = vpop.f32.mrb[0].mxu0
        %v1961 = vpop.f32.mrb[0].mxu0
        %v1962 = vadd.f32 %v1658, %v1961
        %v1963 = vpop.f32.mrb[0].mxu0
        %1964 = vmatprep.mubr.bf16.mxu0 0
        %1965 = vmatmul.mubr.bf16.gmra.mrb[0].mxu0 %v1585
        %v1966 = vpop.f32.mrb[0].mxu0
        %v1967 = vadd.f32 %v1658, %v1966
        %v1968 = vpop.f32.mrb[0].mxu0
        %v1969 = vpop.f32.mrb[0].mxu0
        %v1970 = vadd.f32 %v1658, %v1969
        %v1971 = vpop.f32.mrb[0].mxu0
        %1972 = vmatprep.mubr.bf16.mxu0 0
        %1973 = vmatmul.mubr.bf16.gmra.mrb[0].mxu0 %v1586
        %v1974 = vpop.f32.mrb[0].mxu0
        %v1975 = vadd.f32 %v1658, %v1974
        %v1976 = vpop.f32.mrb[0].mxu0
        %v1977 = vpop.f32.mrb[0].mxu0
        %v1978 = vadd.f32 %v1658, %v1977
        %v1979 = vpop.f32.mrb[0].mxu0
        %1980 = vmatprep.mubr.bf16.mxu0 0
        %1981 = vmatmul.mubr.bf16.gmra.mrb[0].mxu0 %v1587
        %v1982 = vpop.f32.mrb[0].mxu0
        %v1983 = vadd.f32 %v1658, %v1982
        %v1984 = vpop.f32.mrb[0].mxu0
        %v1985 = vpop.f32.mrb[0].mxu0
        %v1986 = vadd.f32 %v1658, %v1985
        %v1987 = vpop.f32.mrb[0].mxu0
        %1988 = vmatprep.mubr.bf16.mxu0 0
        %1989 = vmatmul.mubr.bf16.gmra.mrb[0].mxu0 %v1588
        %v1990 = vpop.f32.mrb[0].mxu0
        %v1991 = vadd.f32 %v1658, %v1990
        %v1992 = vpop.f32.mrb[0].mxu0
        %v1993 = vpop.f32.mrb[0].mxu0
        %v1994 = vadd.f32 %v1658, %v1993
        %v1995 = vpop.f32.mrb[0].mxu0
        %1996 = vmatprep.mubr.bf16.mxu0 0
        %1997 = vmatmul.mubr.bf16.gmra.mrb[0].mxu0 %v1589
        %v1998 = vpop.f32.mrb[0].mxu0
        %v1999 = vadd.f32 %v1658, %v1998
        %v2000 = vpop.f32.mrb[0].mxu0
        %v2001 = vpop.f32.mrb[0].mxu0
        %v2002 = vadd.f32 %v1658, %v2001
        %v2003 = vpop.f32.mrb[0].mxu0
        %2004 = vmatprep.mubr.bf16.mxu0 0
        %2005 = vmatmul.mubr.bf16.gmra.mrb[0].mxu0 %v1590
        %v2006 = vpop.f32.mrb[0].mxu0
        %v2007 = vadd.f32 %v1658, %v2006
        %v2008 = vpop.f32.mrb[0].mxu0
        %v2009 = vpop.f32.mrb[0].mxu0
        %v2010 = vadd.f32 %v1658, %v2009
        %v2011 = vpop.f32.mrb[0].mxu0
        %2012 = vmatprep.mubr.bf16.mxu0 0
        %2013 = vmatmul.mubr.bf16.gmra.mrb[0].mxu0 %v1591
        %v2014 = vpop.f32.mrb[0].mxu0
        %v2015 = vadd.f32 %v1658, %v2014
        %v2016 = vpop.f32.mrb[0].mxu0
        %v2017 = vpop.f32.mrb[0].mxu0
        %v2018 = vadd.f32 %v1658, %v2017
        %v2019 = vpop.f32.mrb[0].mxu0
        %2020 = vmatprep.mubr.bf16.mxu0 0
        %2021 = vmatmul.mubr.bf16.gmra.mrb[0].mxu0 %v1592
        %v2022 = vpop.f32.mrb[0].mxu0
        %v2023 = vadd.f32 %v1658, %v2022
        %v2024 = vpop.f32.mrb[0].mxu0
        %v2025 = vpop.f32.mrb[0].mxu0
        %v2026 = vadd.f32 %v1658, %v2025
        %v2027 = vpop.f32.mrb[0].mxu0
        %2028 = vmatprep.mubr.bf16.mxu0 0
        %2029 = vmatmul.mubr.bf16.gmra.mrb[0].mxu0 %v1593
        %v2030 = vpop.f32.mrb[0].mxu0
        %v2031 = vadd.f32 %v1658, %v2030
        %v2032 = vpop.f32.mrb[0].mxu0
        %v2033 = vpop.f32.mrb[0].mxu0
        %v2034 = vadd.f32 %v1658, %v2033
        %v2035 = vpop.f32.mrb[0].mxu0
        %2036 = vmatprep.mubr.bf16.mxu0 0
        %2037 = vmatmul.mubr.bf16.gmra.mrb[0].mxu0 %v1594
        %v2038 = vpop.f32.mrb[0].mxu0
        %v2039 = vadd.f32 %v1658, %v2038
        %v2040 = vpop.f32.mrb[0].mxu0
        %v2041 = vpop.f32.mrb[0].mxu0
        %v2042 = vadd.f32 %v1658, %v2041
        %v2043 = vpop.f32.mrb[0].mxu0
        %2044 = vmatprep.mubr.bf16.mxu0 0
        %2045 = vmatmul.mubr.bf16.gmra.mrb[0].mxu0 %v1595
        %v2046 = vpop.f32.mrb[0].mxu0
        %v2047 = vadd.f32 %v1658, %v2046
        %v2048 = vpop.f32.mrb[0].mxu0
        %v2049 = vpop.f32.mrb[0].mxu0
        %v2050 = vadd.f32 %v1658, %v2049
        %v2051 = vpop.f32.mrb[0].mxu0
        %2052 = vmatprep.mubr.bf16.mxu0 0
        %2053 = vmatmul.mubr.bf16.gmra.mrb[0].mxu0 %v1596
        %v2054 = vpop.f32.mrb[0].mxu0
        %v2055 = vadd.f32 %v1658, %v2054
        %v2056 = vpop.f32.mrb[0].mxu0
        %v2057 = vpop.f32.mrb[0].mxu0
        %v2058 = vadd.f32 %v1658, %v2057
        %v2059 = vpop.f32.mrb[0].mxu0
        %2060 = vmatprep.mubr.bf16.mxu0 0
        %2061 = vmatmul.mubr.bf16.gmra.mrb[0].mxu0 %v1597
        %v2062 = vpop.f32.mrb[0].mxu0
        %v2063 = vadd.f32 %v1658, %v2062
        %v2064 = vpop.f32.mrb[0].mxu0
        %v2065 = vpop.f32.mrb[0].mxu0
        %v2066 = vadd.f32 %v1658, %v2065
        %v2067 = vpop.f32.mrb[0].mxu0
        %2068 = vmatprep.mubr.bf16.mxu0 0
        %2069 = vmatmul.mubr.bf16.gmra.mrb[0].mxu0 %v1598
        %v2070 = vpop.f32.mrb[0].mxu0
        %v2071 = vadd.f32 %v1658, %v2070
        %v2072 = vpop.f32.mrb[0].mxu0
        %v2073 = vpop.f32.mrb[0].mxu0
        %v2074 = vadd.f32 %v1658, %v2073
        %v2075 = vpop.f32.mrb[0].mxu0
        %2076 = vmatprep.mubr.bf16.mxu0 0
        %2077 = vmatmul.mubr.bf16.gmra.mrb[0].mxu0 %v1599
        %v2078 = vpop.f32.mrb[0].mxu0
        %v2079 = vadd.f32 %v1658, %v2078
        %v2080 = vpop.f32.mrb[0].mxu0
        %v2081 = vpop.f32.mrb[0].mxu0
        %v2082 = vadd.f32 %v1658, %v2081
        %v2083 = vpop.f32.mrb[0].mxu0
        %2084 = vmatprep.mubr.bf16.mxu0 0
        %2085 = vmatmul.mubr.bf16.gmra.mrb[0].mxu0 %v1600
        %v2086 = vpop.f32.mrb[0].mxu0
        %v2087 = vadd.f32 %v1658, %v2086
        %v2088 = vpop.f32.mrb[0].mxu0
        %v2089 = vpop.f32.mrb[0].mxu0
        %v2090 = vadd.f32 %v1658, %v2089
        %v2091 = vpop.f32.mrb[0].mxu0
        %2092 = vmatprep.mubr.bf16.mxu0 0
        %2093 = vmatmul.mubr.bf16.gmra.mrb[0].mxu0 %v1601
        %v2094 = vpop.f32.mrb[0].mxu0
        %v2095 = vadd.f32 %v1658, %v2094
        %v2096 = vpop.f32.mrb[0].mxu0
        %v2097 = vpop.f32.mrb[0].mxu0
        %v2098 = vadd.f32 %v1658, %v2097
        %v2099 = vpop.f32.mrb[0].mxu0
        %2100 = vmatprep.mubr.bf16.mxu0 0
        %2101 = vmatmul.mubr.bf16.gmra.mrb[0].mxu0 %v1602
        %v2102 = vpop.f32.mrb[0].mxu0
        %v2103 = vadd.f32 %v1658, %v2102
        %v2104 = vpop.f32.mrb[0].mxu0
        %v2105 = vpop.f32.mrb[0].mxu0
        %v2106 = vadd.f32 %v1658, %v2105
        %v2107 = vpop.f32.mrb[0].mxu0
        %2108 = vmatprep.mubr.bf16.mxu0 0
        %2109 = vmatmul.mubr.bf16.gmra.mrb[0].mxu0 %v1603
        %v2110 = vpop.f32.mrb[0].mxu0
        %v2111 = vadd.f32 %v1658, %v2110
        %v2112 = vpop.f32.mrb[0].mxu0
        %v2113 = vpop.f32.mrb[0].mxu0
        %v2114 = vadd.f32 %v1658, %v2113
        %v2115 = vpop.f32.mrb[0].mxu0
        %2116 = vmatprep.mubr.bf16.mxu0 0
        %2117 = vmatmul.mubr.bf16.gmra.mrb[0].mxu0 %v1604
        %v2118 = vpop.f32.mrb[0].mxu0
        %v2119 = vadd.f32 %v1658, %v2118
        %v2120 = vpop.f32.mrb[0].mxu0
        %v2121 = vpop.f32.mrb[0].mxu0
        %v2122 = vadd.f32 %v1658, %v2121
        %v2123 = vpop.f32.mrb[0].mxu0
        %2124 = vmatprep.mubr.bf16.mxu0 0
        %2125 = vmatmul.mubr.bf16.gmra.mrb[0].mxu0 %v1605
        %v2126 = vpop.f32.mrb[0].mxu0
        %v2127 = vadd.f32 %v1658, %v2126
        %v2128 = vpop.f32.mrb[0].mxu0
        %v2129 = vpop.f32.mrb[0].mxu0
        %v2130 = vadd.f32 %v1658, %v2129
        %v2131 = vpop.f32.mrb[0].mxu0
        %2132 = vmatprep.mubr.bf16.mxu0 0
        %2133 = vmatmul.mubr.bf16.gmra.mrb[0].mxu0 %v1606
        %v2134 = vpop.f32.mrb[0].mxu0
        %v2135 = vadd.f32 %v1658, %v2134
        %v2136 = vpop.f32.mrb[0].mxu0
        %v2137 = vpop.f32.mrb[0].mxu0
        %v2138 = vadd.f32 %v1658, %v2137
        %v2139 = vpop.f32.mrb[0].mxu0
        %2140 = vmatprep.mubr.bf16.mxu0 0
        %2141 = vmatmul.mubr.bf16.gmra.mrb[0].mxu0 %v1607
        %v2142 = vpop.f32.mrb[0].mxu0
        %v2143 = vadd.f32 %v1658, %v2142
        %v2144 = vpop.f32.mrb[0].mxu0
        %v2145 = vpop.f32.mrb[0].mxu0
        %v2146 = vadd.f32 %v1658, %v2145
        %v2147 = vpop.f32.mrb[0].mxu0
        %2148 = vmatprep.mubr.bf16.mxu0 0
        %2149 = vmatmul.mubr.bf16.gmra.mrb[0].mxu0 %v1608
        %v2150 = vpop.f32.mrb[0].mxu0
        %v2151 = vadd.f32 %v1658, %v2150
        %v2152 = vpop.f32.mrb[0].mxu0
        %v2153 = vpop.f32.mrb[0].mxu0
        %v2154 = vadd.f32 %v1658, %v2153
        %v2155 = vpop.f32.mrb[0].mxu0
        %2156 = vmatprep.mubr.bf16.mxu0 0
        %2157 = vmatmul.mubr.bf16.gmra.mrb[0].mxu0 %v1609
        %v2158 = vpop.f32.mrb[0].mxu0
        %v2159 = vadd.f32 %v1658, %v2158
        %v2160 = vpop.f32.mrb[0].mxu0
        %v2161 = vpop.f32.mrb[0].mxu0
        %v2162 = vadd.f32 %v1658, %v2161
        %v2163 = vpop.f32.mrb[0].mxu0
        %2164 = vmatprep.mubr.bf16.mxu0 0
        %2165 = vmatmul.mubr.bf16.gmra.mrb[0].mxu0 %v1610
        %v2166 = vpop.f32.mrb[0].mxu0
        %v2167 = vadd.f32 %v1658, %v2166
        %v2168 = vpop.f32.mrb[0].mxu0
        %v2169 = vpop.f32.mrb[0].mxu0
        %v2170 = vadd.f32 %v1658, %v2169
        %v2171 = vpop.f32.mrb[0].mxu0
        %2172 = vmatprep.mubr.bf16.mxu0 0
        %2173 = vmatmul.mubr.bf16.gmra.mrb[0].mxu0 %v1611
        %v2174 = vpop.f32.mrb[0].mxu0
        %v2175 = vadd.f32 %v1658, %v2174
        %v2176 = vpop.f32.mrb[0].mxu0
        %v2177 = vpop.f32.mrb[0].mxu0
        %v2178 = vadd.f32 %v1658, %v2177
        %v2179 = vpop.f32.mrb[0].mxu0
        %2180 = vmatprep.mubr.bf16.mxu0 0
        %2181 = vmatmul.mubr.bf16.gmra.mrb[0].mxu0 %v1612
        %v2182 = vpop.f32.mrb[0].mxu0
        %v2183 = vadd.f32 %v1658, %v2182
        %v2184 = vpop.f32.mrb[0].mxu0
        %v2185 = vpop.f32.mrb[0].mxu0
        %v2186 = vadd.f32 %v1658, %v2185
        %v2187 = vpop.f32.mrb[0].mxu0
        %2188 = vmatprep.mubr.bf16.mxu0 0
        %2189 = vmatmul.mubr.bf16.gmra.mrb[0].mxu0 %v1613
        %v2190 = vpop.f32.mrb[0].mxu0
        %v2191 = vadd.f32 %v1658, %v2190
        %v2192 = vpop.f32.mrb[0].mxu0
        %v2193 = vpop.f32.mrb[0].mxu0
        %v2194 = vadd.f32 %v1658, %v2193
        %v2195 = vpop.f32.mrb[0].mxu0
        %2196 = vmatprep.mubr.bf16.mxu0 0
        %2197 = vmatmul.mubr.bf16.gmra.mrb[0].mxu0 %v1614
        %v2198 = vpop.f32.mrb[0].mxu0
        %v2199 = vadd.f32 %v1658, %v2198
        %v2200 = vpop.f32.mrb[0].mxu0
        %v2201 = vpop.f32.mrb[0].mxu0
        %v2202 = vadd.f32 %v1658, %v2201
        %v2203 = vpop.f32.mrb[0].mxu0
        %2204 = vmatprep.mubr.bf16.mxu0 0
        %2205 = vmatmul.mubr.bf16.gmra.mrb[0].mxu0 %v1615
        %v2206 = vpop.f32.mrb[0].mxu0
        %v2207 = vadd.f32 %v1658, %v2206
        %v2208 = vpop.f32.mrb[0].mxu0
        %v2209 = vpop.f32.mrb[0].mxu0
        %v2210 = vadd.f32 %v1658, %v2209
        %v2211 = vpop.f32.mrb[0].mxu0
        %2212 = vmatprep.mubr.bf16.mxu0 0
        %2213 = vmatmul.mubr.bf16.gmra.mrb[0].mxu0 %v1616
        %v2214 = vpop.f32.mrb[0].mxu0
        %v2215 = vadd.f32 %v1658, %v2214
        %v2216 = vpop.f32.mrb[0].mxu0
        %v2217 = vpop.f32.mrb[0].mxu0
        %v2218 = vadd.f32 %v1658, %v2217
        %v2219 = vpop.f32.mrb[0].mxu0
        %2220 = vmatprep.mubr.bf16.mxu0 0
        %2221 = vmatmul.mubr.bf16.gmra.mrb[0].mxu0 %v1617
        %v2222 = vpop.f32.mrb[0].mxu0
        %v2223 = vadd.f32 %v1658, %v2222
        %v2224 = vpop.f32.mrb[0].mxu0
        %v2225 = vpop.f32.mrb[0].mxu0
        %v2226 = vadd.f32 %v1658, %v2225
        %v2227 = vpop.f32.mrb[0].mxu0
        %2228 = vmatprep.mubr.bf16.mxu0 0
        %2229 = vmatmul.mubr.bf16.gmra.mrb[0].mxu0 %v1618
        %v2230 = vpop.f32.mrb[0].mxu0
        %v2231 = vadd.f32 %v1658, %v2230
        %v2232 = vpop.f32.mrb[0].mxu0
        %v2233 = vpop.f32.mrb[0].mxu0
        %v2234 = vadd.f32 %v1658, %v2233
        %v2235 = vpop.f32.mrb[0].mxu0
        %2236 = vmatprep.mubr.bf16.mxu0 0
        %2237 = vmatmul.mubr.bf16.gmra.mrb[0].mxu0 %v1619
        %v2238 = vpop.f32.mrb[0].mxu0
        %v2239 = vadd.f32 %v1658, %v2238
        %v2240 = vpop.f32.mrb[0].mxu0
        %v2241 = vpop.f32.mrb[0].mxu0
        %v2242 = vadd.f32 %v1658, %v2241
        %v2243 = vpop.f32.mrb[0].mxu0
        %2244 = vmatprep.mubr.bf16.mxu0 0
        %2245 = vmatmul.mubr.bf16.gmra.mrb[0].mxu0 %v1620
        %v2246 = vpop.f32.mrb[0].mxu0
        %v2247 = vadd.f32 %v1658, %v2246
        %v2248 = vpop.f32.mrb[0].mxu0
        %v2249 = vpop.f32.mrb[0].mxu0
        %v2250 = vadd.f32 %v1658, %v2249
        %v2251 = vpop.f32.mrb[0].mxu0
        %2252 = vmatprep.mubr.bf16.mxu0 0
        %2253 = vmatmul.mubr.bf16.gmra.mrb[0].mxu0 %v1621
        %v2254 = vpop.f32.mrb[0].mxu0
        %v2255 = vadd.f32 %v1658, %v2254
        %v2256 = vpop.f32.mrb[0].mxu0
        %v2257 = vpop.f32.mrb[0].mxu0
        %v2258 = vadd.f32 %v1658, %v2257
        %v2259 = vpop.f32.mrb[0].mxu0
        %2260 = vmatprep.mubr.bf16.mxu0 0
        %2261 = vmatmul.mubr.bf16.gmra.mrb[0].mxu0 %v1622
        %v2262 = vpop.f32.mrb[0].mxu0
        %v2263 = vadd.f32 %v1658, %v2262
        %v2264 = vpop.f32.mrb[0].mxu0
        %v2265 = vpop.f32.mrb[0].mxu0
        %v2266 = vadd.f32 %v1658, %v2265
        %v2267 = vpop.f32.mrb[0].mxu0
        %2268 = vmatprep.mubr.bf16.mxu0 0
        %2269 = vmatmul.mubr.bf16.gmra.mrb[0].mxu0 %v1623
        %v2270 = vpop.f32.mrb[0].mxu0
        %v2271 = vadd.f32 %v1658, %v2270
        %v2272 = vpop.f32.mrb[0].mxu0
        %v2273 = vpop.f32.mrb[0].mxu0
        %v2274 = vadd.f32 %v1658, %v2273
        %v2275 = vpop.f32.mrb[0].mxu0
        %2276 = vmatprep.mubr.bf16.mxu0 0
        %2277 = vmatmul.mubr.bf16.gmra.mrb[0].mxu0 %v1624
        %v2278 = vpop.f32.mrb[0].mxu0
        %v2279 = vadd.f32 %v1658, %v2278
        %v2280 = vpop.f32.mrb[0].mxu0
        %v2281 = vpop.f32.mrb[0].mxu0
        %v2282 = vadd.f32 %v1658, %v2281
        %v2283 = vpop.f32.mrb[0].mxu0
        %2284 = vmatprep.mubr.bf16.mxu0 0
        %2285 = vmatmul.mubr.bf16.gmra.mrb[0].mxu0 %v1625
        %v2286 = vpop.f32.mrb[0].mxu0
        %v2287 = vadd.f32 %v1658, %v2286
        %v2288 = vpop.f32.mrb[0].mxu0
        %v2289 = vpop.f32.mrb[0].mxu0
        %v2290 = vadd.f32 %v1658, %v2289
        %v2291 = vpop.f32.mrb[0].mxu0
        %2292 = vmatprep.mubr.bf16.mxu0 0
        %2293 = vmatmul.mubr.bf16.gmra.mrb[0].mxu0 %v1626
        %v2294 = vpop.f32.mrb[0].mxu0
        %v2295 = vadd.f32 %v1658, %v2294
        %v2296 = vpop.f32.mrb[0].mxu0
        %v2297 = vpop.f32.mrb[0].mxu0
        %v2298 = vadd.f32 %v1658, %v2297
        %v2299 = vpop.f32.mrb[0].mxu0
        %2300 = vmatprep.mubr.bf16.mxu0 0
        %2301 = vmatmul.mubr.bf16.gmra.mrb[0].mxu0 %v1627
        %v2302 = vpop.f32.mrb[0].mxu0
        %v2303 = vadd.f32 %v1658, %v2302
        %v2304 = vpop.f32.mrb[0].mxu0
        %v2305 = vpop.f32.mrb[0].mxu0
        %v2306 = vadd.f32 %v1658, %v2305
        %v2307 = vpop.f32.mrb[0].mxu0
        %2308 = vmatprep.mubr.bf16.mxu0 0
        %2309 = vmatmul.mubr.bf16.gmra.mrb[0].mxu0 %v1628
        %v2310 = vpop.f32.mrb[0].mxu0
        %v2311 = vadd.f32 %v1658, %v2310
        %v2312 = vpop.f32.mrb[0].mxu0
        %v2313 = vpop.f32.mrb[0].mxu0
        %v2314 = vadd.f32 %v1658, %v2313
        %v2315 = vpop.f32.mrb[0].mxu0
        %2316 = vmatprep.mubr.bf16.mxu0 0
        %2317 = vmatmul.mubr.bf16.gmra.mrb[0].mxu0 %v1629
        %v2318 = vpop.f32.mrb[0].mxu0
        %v2319 = vadd.f32 %v1658, %v2318
        %v2320 = vpop.f32.mrb[0].mxu0
        %v2321 = vpop.f32.mrb[0].mxu0
        %v2322 = vadd.f32 %v1658, %v2321
        %v2323 = vpop.f32.mrb[0].mxu0
        %2324 = vmatprep.mubr.bf16.mxu0 0
        %2325 = vmatmul.mubr.bf16.gmra.mrb[0].mxu0 %v1630
        %v2326 = vpop.f32.mrb[0].mxu0
        %v2327 = vadd.f32 %v1658, %v2326
        %v2328 = vpop.f32.mrb[0].mxu0
        %v2329 = vpop.f32.mrb[0].mxu0
        %v2330 = vadd.f32 %v1658, %v2329
        %v2331 = vpop.f32.mrb[0].mxu0
        %2332 = vmatprep.mubr.bf16.mxu0 0
        %2333 = vmatmul.mubr.bf16.gmra.mrb[0].mxu0 %v1631
        %v2334 = vpop.f32.mrb[0].mxu0
        %v2335 = vadd.f32 %v1658, %v2334
        %v2336 = vpop.f32.mrb[0].mxu0
        %v2337 = vpop.f32.mrb[0].mxu0
        %v2338 = vadd.f32 %v1658, %v2337
        %v2339 = vpop.f32.mrb[0].mxu0
        %2340 = vmatprep.mubr.bf16.mxu0 0
        %2341 = vmatmul.mubr.bf16.gmra.mrb[0].mxu0 %v1632
        %v2342 = vpop.f32.mrb[0].mxu0
        %v2343 = vadd.f32 %v1658, %v2342
        %v2344 = vpop.f32.mrb[0].mxu0
        %v2345 = vpop.f32.mrb[0].mxu0
        %v2346 = vadd.f32 %v1658, %v2345
        %v2347 = vpop.f32.mrb[0].mxu0
        %2348 = vmatprep.mubr.bf16.mxu0 0
        %2349 = vmatmul.mubr.bf16.gmra.mrb[0].mxu0 %v1633
        %v2350 = vpop.f32.mrb[0].mxu0
        %v2351 = vadd.f32 %v1658, %v2350
        %v2352 = vpop.f32.mrb[0].mxu0
        %v2353 = vpop.f32.mrb[0].mxu0
        %v2354 = vadd.f32 %v1658, %v2353
        %v2355 = vpop.f32.mrb[0].mxu0
        %2356 = vmatprep.mubr.bf16.mxu0 0
        %2357 = vmatmul.mubr.bf16.gmra.mrb[0].mxu0 %v1634
        %v2358 = vpop.f32.mrb[0].mxu0
        %v2359 = vadd.f32 %v1658, %v2358
        %v2360 = vpop.f32.mrb[0].mxu0
        %v2361 = vpop.f32.mrb[0].mxu0
        %v2362 = vadd.f32 %v1658, %v2361
        %v2363 = vpop.f32.mrb[0].mxu0
        %2364 = vmatprep.mubr.bf16.mxu0 0
        %2365 = vmatmul.mubr.bf16.gmra.mrb[0].mxu0 %v1635
        %v2366 = vpop.f32.mrb[0].mxu0
        %v2367 = vadd.f32 %v1658, %v2366
        %v2368 = vpop.f32.mrb[0].mxu0
        %v2369 = vpop.f32.mrb[0].mxu0
        %v2370 = vadd.f32 %v1658, %v2369
        %v2371 = vpop.f32.mrb[0].mxu0
        %2372 = vmatprep.mubr.bf16.mxu0 0
        %2373 = vmatmul.mubr.bf16.gmra.mrb[0].mxu0 %v1636
        %v2374 = vpop.f32.mrb[0].mxu0
        %v2375 = vadd.f32 %v1658, %v2374
        %v2376 = vpop.f32.mrb[0].mxu0
        %v2377 = vpop.f32.mrb[0].mxu0
        %v2378 = vadd.f32 %v1658, %v2377
        %v2379 = vpop.f32.mrb[0].mxu0
        %2380 = vdwg.mxu0
        %2381 = vmax.xlane.f32.xlu0 %v1743
        %v2382 = vpop.xlane.xlu0 %2381
        %2383 = vmax.xlane.f32.xlu0 %v1746
        %v2384 = vpop.xlane.xlu0 %2383
        %2385 = vmax.xlane.f32.xlu0 %v1751
        %v2386 = vpop.xlane.xlu0 %2385
        %2387 = vmax.xlane.f32.xlu0 %v1754
        %v2388 = vpop.xlane.xlu0 %2387
        %2389 = vmax.xlane.f32.xlu0 %v1759
        %v2390 = vpop.xlane.xlu0 %2389
        %2391 = vmax.xlane.f32.xlu0 %v1762
        %v2392 = vpop.xlane.xlu0 %2391
        %2393 = vmax.xlane.f32.xlu0 %v1767
        %v2394 = vpop.xlane.xlu0 %2393
        %2395 = vmax.xlane.f32.xlu0 %v1770
        %v2396 = vpop.xlane.xlu0 %2395
        %2397 = vmax.xlane.f32.xlu0 %v1775
        %v2398 = vpop.xlane.xlu0 %2397
        %2399 = vmax.xlane.f32.xlu0 %v1778
        %v2400 = vpop.xlane.xlu0 %2399
        %2401 = vmax.xlane.f32.xlu0 %v1783
        %v2402 = vpop.xlane.xlu0 %2401
        %2403 = vmax.xlane.f32.xlu0 %v1786
        %v2404 = vpop.xlane.xlu0 %2403
        %2405 = vmax.xlane.f32.xlu0 %v1791
        %v2406 = vpop.xlane.xlu0 %2405
        %2407 = vmax.xlane.f32.xlu0 %v1794
        %v2408 = vpop.xlane.xlu0 %2407
        %2409 = vmax.xlane.f32.xlu0 %v1799
        %v2410 = vpop.xlane.xlu0 %2409
        %2411 = vmax.xlane.f32.xlu0 %v1802
        %v2412 = vpop.xlane.xlu0 %2411
        %2413 = vmax.xlane.f32.xlu0 %v1807
        %v2414 = vpop.xlane.xlu0 %2413
        %2415 = vmax.xlane.f32.xlu0 %v1810
        %v2416 = vpop.xlane.xlu0 %2415
        %2417 = vmax.xlane.f32.xlu0 %v1815
        %v2418 = vpop.xlane.xlu0 %2417
        %2419 = vmax.xlane.f32.xlu0 %v1818
        %v2420 = vpop.xlane.xlu0 %2419
        %2421 = vmax.xlane.f32.xlu0 %v1823
        %v2422 = vpop.xlane.xlu0 %2421
        %2423 = vmax.xlane.f32.xlu0 %v1826
        %v2424 = vpop.xlane.xlu0 %2423
        %2425 = vmax.xlane.f32.xlu0 %v1831
        %v2426 = vpop.xlane.xlu0 %2425
        %2427 = vmax.xlane.f32.xlu0 %v1834
        %v2428 = vpop.xlane.xlu0 %2427
        %2429 = vmax.xlane.f32.xlu0 %v1839
        %v2430 = vpop.xlane.xlu0 %2429
        %2431 = vmax.xlane.f32.xlu0 %v1842
        %v2432 = vpop.xlane.xlu0 %2431
        %2433 = vmax.xlane.f32.xlu0 %v1847
        %v2434 = vpop.xlane.xlu0 %2433
        %2435 = vmax.xlane.f32.xlu0 %v1850
        %v2436 = vpop.xlane.xlu0 %2435
        %2437 = vmax.xlane.f32.xlu0 %v1855
        %v2438 = vpop.xlane.xlu0 %2437
        %2439 = vmax.xlane.f32.xlu0 %v1858
        %v2440 = vpop.xlane.xlu0 %2439
        %2441 = vmax.xlane.f32.xlu0 %v1863
        %v2442 = vpop.xlane.xlu0 %2441
        %2443 = vmax.xlane.f32.xlu0 %v1866
        %v2444 = vpop.xlane.xlu0 %2443
        %2445 = vmax.xlane.f32.xlu0 %v1871
        %v2446 = vpop.xlane.xlu0 %2445
        %2447 = vmax.xlane.f32.xlu0 %v1874
        %v2448 = vpop.xlane.xlu0 %2447
        %2449 = vmax.xlane.f32.xlu0 %v1879
        %v2450 = vpop.xlane.xlu0 %2449
        %2451 = vmax.xlane.f32.xlu0 %v1882
        %v2452 = vpop.xlane.xlu0 %2451
        %2453 = vmax.xlane.f32.xlu0 %v1887
        %v2454 = vpop.xlane.xlu0 %2453
        %2455 = vmax.xlane.f32.xlu0 %v1890
        %v2456 = vpop.xlane.xlu0 %2455
        %2457 = vmax.xlane.f32.xlu0 %v1895
        %v2458 = vpop.xlane.xlu0 %2457
        %2459 = vmax.xlane.f32.xlu0 %v1898
        %v2460 = vpop.xlane.xlu0 %2459
        %2461 = vmax.xlane.f32.xlu0 %v1903
        %v2462 = vpop.xlane.xlu0 %2461
        %2463 = vmax.xlane.f32.xlu0 %v1906
        %v2464 = vpop.xlane.xlu0 %2463
        %2465 = vmax.xlane.f32.xlu0 %v1911
        %v2466 = vpop.xlane.xlu0 %2465
        %2467 = vmax.xlane.f32.xlu0 %v1914
        %v2468 = vpop.xlane.xlu0 %2467
        %2469 = vmax.xlane.f32.xlu0 %v1919
        %v2470 = vpop.xlane.xlu0 %2469
        %2471 = vmax.xlane.f32.xlu0 %v1922
        %v2472 = vpop.xlane.xlu0 %2471
        %2473 = vmax.xlane.f32.xlu0 %v1927
        %v2474 = vpop.xlane.xlu0 %2473
        %2475 = vmax.xlane.f32.xlu0 %v1930
        %v2476 = vpop.xlane.xlu0 %2475
        %2477 = vmax.xlane.f32.xlu0 %v1935
        %v2478 = vpop.xlane.xlu0 %2477
        %2479 = vmax.xlane.f32.xlu0 %v1938
        %v2480 = vpop.xlane.xlu0 %2479
        %2481 = vmax.xlane.f32.xlu0 %v1943
        %v2482 = vpop.xlane.xlu0 %2481
        %2483 = vmax.xlane.f32.xlu0 %v1946
        %v2484 = vpop.xlane.xlu0 %2483
        %2485 = vmax.xlane.f32.xlu0 %v1951
        %v2486 = vpop.xlane.xlu0 %2485
        %2487 = vmax.xlane.f32.xlu0 %v1954
        %v2488 = vpop.xlane.xlu0 %2487
        %2489 = vmax.xlane.f32.xlu0 %v1959
        %v2490 = vpop.xlane.xlu0 %2489
        %2491 = vmax.xlane.f32.xlu0 %v1962
        %v2492 = vpop.xlane.xlu0 %2491
        %2493 = vmax.xlane.f32.xlu0 %v1967
        %v2494 = vpop.xlane.xlu0 %2493
        %2495 = vmax.xlane.f32.xlu0 %v1970
        %v2496 = vpop.xlane.xlu0 %2495
        %2497 = vmax.xlane.f32.xlu0 %v1975
        %v2498 = vpop.xlane.xlu0 %2497
        %2499 = vmax.xlane.f32.xlu0 %v1978
        %v2500 = vpop.xlane.xlu0 %2499
        %2501 = vmax.xlane.f32.xlu0 %v1983
        %v2502 = vpop.xlane.xlu0 %2501
        %2503 = vmax.xlane.f32.xlu0 %v1986
        %v2504 = vpop.xlane.xlu0 %2503
        %2505 = vmax.xlane.f32.xlu0 %v1991
        %v2506 = vpop.xlane.xlu0 %2505
        %2507 = vmax.xlane.f32.xlu0 %v1994
        %v2508 = vpop.xlane.xlu0 %2507
        %2509 = vmax.xlane.f32.xlu0 %v1999
        %v2510 = vpop.xlane.xlu0 %2509
        %2511 = vmax.xlane.f32.xlu0 %v2002
        %v2512 = vpop.xlane.xlu0 %2511
        %2513 = vmax.xlane.f32.xlu0 %v2007
        %v2514 = vpop.xlane.xlu0 %2513
        %2515 = vmax.xlane.f32.xlu0 %v2010
        %v2516 = vpop.xlane.xlu0 %2515
        %2517 = vmax.xlane.f32.xlu0 %v2015
        %v2518 = vpop.xlane.xlu0 %2517
        %2519 = vmax.xlane.f32.xlu0 %v2018
        %v2520 = vpop.xlane.xlu0 %2519
        %2521 = vmax.xlane.f32.xlu0 %v2023
        %v2522 = vpop.xlane.xlu0 %2521
        %2523 = vmax.xlane.f32.xlu0 %v2026
        %v2524 = vpop.xlane.xlu0 %2523
        %2525 = vmax.xlane.f32.xlu0 %v2031
        %v2526 = vpop.xlane.xlu0 %2525
        %2527 = vmax.xlane.f32.xlu0 %v2034
        %v2528 = vpop.xlane.xlu0 %2527
        %2529 = vmax.xlane.f32.xlu0 %v2039
        %v2530 = vpop.xlane.xlu0 %2529
        %2531 = vmax.xlane.f32.xlu0 %v2042
        %v2532 = vpop.xlane.xlu0 %2531
        %2533 = vmax.xlane.f32.xlu0 %v2047
        %v2534 = vpop.xlane.xlu0 %2533
        %2535 = vmax.xlane.f32.xlu0 %v2050
        %v2536 = vpop.xlane.xlu0 %2535
        %2537 = vmax.xlane.f32.xlu0 %v2055
        %v2538 = vpop.xlane.xlu0 %2537
        %2539 = vmax.xlane.f32.xlu0 %v2058
        %v2540 = vpop.xlane.xlu0 %2539
        %2541 = vmax.xlane.f32.xlu0 %v2063
        %v2542 = vpop.xlane.xlu0 %2541
        %2543 = vmax.xlane.f32.xlu0 %v2066
        %v2544 = vpop.xlane.xlu0 %2543
        %2545 = vmax.xlane.f32.xlu0 %v2071
        %v2546 = vpop.xlane.xlu0 %2545
        %2547 = vmax.xlane.f32.xlu0 %v2074
        %v2548 = vpop.xlane.xlu0 %2547
        %2549 = vmax.xlane.f32.xlu0 %v2079
        %v2550 = vpop.xlane.xlu0 %2549
        %2551 = vmax.xlane.f32.xlu0 %v2082
        %v2552 = vpop.xlane.xlu0 %2551
        %2553 = vmax.xlane.f32.xlu0 %v2087
        %v2554 = vpop.xlane.xlu0 %2553
        %2555 = vmax.xlane.f32.xlu0 %v2090
        %v2556 = vpop.xlane.xlu0 %2555
        %2557 = vmax.xlane.f32.xlu0 %v2095
        %v2558 = vpop.xlane.xlu0 %2557
        %2559 = vmax.xlane.f32.xlu0 %v2098
        %v2560 = vpop.xlane.xlu0 %2559
        %2561 = vmax.xlane.f32.xlu0 %v2103
        %v2562 = vpop.xlane.xlu0 %2561
        %2563 = vmax.xlane.f32.xlu0 %v2106
        %v2564 = vpop.xlane.xlu0 %2563
        %2565 = vmax.xlane.f32.xlu0 %v2111
        %v2566 = vpop.xlane.xlu0 %2565
        %2567 = vmax.xlane.f32.xlu0 %v2114
        %v2568 = vpop.xlane.xlu0 %2567
        %2569 = vmax.xlane.f32.xlu0 %v2119
        %v2570 = vpop.xlane.xlu0 %2569
        %2571 = vmax.xlane.f32.xlu0 %v2122
        %v2572 = vpop.xlane.xlu0 %2571
        %2573 = vmax.xlane.f32.xlu0 %v2127
        %v2574 = vpop.xlane.xlu0 %2573
        %2575 = vmax.xlane.f32.xlu0 %v2130
        %v2576 = vpop.xlane.xlu0 %2575
        %2577 = vmax.xlane.f32.xlu0 %v2135
        %v2578 = vpop.xlane.xlu0 %2577
        %2579 = vmax.xlane.f32.xlu0 %v2138
        %v2580 = vpop.xlane.xlu0 %2579
        %2581 = vmax.xlane.f32.xlu0 %v2143
        %v2582 = vpop.xlane.xlu0 %2581
        %2583 = vmax.xlane.f32.xlu0 %v2146
        %v2584 = vpop.xlane.xlu0 %2583
        %2585 = vmax.xlane.f32.xlu0 %v2151
        %v2586 = vpop.xlane.xlu0 %2585
        %2587 = vmax.xlane.f32.xlu0 %v2154
        %v2588 = vpop.xlane.xlu0 %2587
        %2589 = vmax.xlane.f32.xlu0 %v2159
        %v2590 = vpop.xlane.xlu0 %2589
        %2591 = vmax.xlane.f32.xlu0 %v2162
        %v2592 = vpop.xlane.xlu0 %2591
        %2593 = vmax.xlane.f32.xlu0 %v2167
        %v2594 = vpop.xlane.xlu0 %2593
        %2595 = vmax.xlane.f32.xlu0 %v2170
        %v2596 = vpop.xlane.xlu0 %2595
        %2597 = vmax.xlane.f32.xlu0 %v2175
        %v2598 = vpop.xlane.xlu0 %2597
        %2599 = vmax.xlane.f32.xlu0 %v2178
        %v2600 = vpop.xlane.xlu0 %2599
        %2601 = vmax.xlane.f32.xlu0 %v2183
        %v2602 = vpop.xlane.xlu0 %2601
        %2603 = vmax.xlane.f32.xlu0 %v2186
        %v2604 = vpop.xlane.xlu0 %2603
        %2605 = vmax.xlane.f32.xlu0 %v2191
        %v2606 = vpop.xlane.xlu0 %2605
        %2607 = vmax.xlane.f32.xlu0 %v2194
        %v2608 = vpop.xlane.xlu0 %2607
        %2609 = vmax.xlane.f32.xlu0 %v2199
        %v2610 = vpop.xlane.xlu0 %2609
        %2611 = vmax.xlane.f32.xlu0 %v2202
        %v2612 = vpop.xlane.xlu0 %2611
        %2613 = vmax.xlane.f32.xlu0 %v2207
        %v2614 = vpop.xlane.xlu0 %2613
        %2615 = vmax.xlane.f32.xlu0 %v2210
        %v2616 = vpop.xlane.xlu0 %2615
        %2617 = vmax.xlane.f32.xlu0 %v2215
        %v2618 = vpop.xlane.xlu0 %2617
        %2619 = vmax.xlane.f32.xlu0 %v2218
        %v2620 = vpop.xlane.xlu0 %2619
        %2621 = vmax.xlane.f32.xlu0 %v2223
        %v2622 = vpop.xlane.xlu0 %2621
        %2623 = vmax.xlane.f32.xlu0 %v2226
        %v2624 = vpop.xlane.xlu0 %2623
        %2625 = vmax.xlane.f32.xlu0 %v2231
        %v2626 = vpop.xlane.xlu0 %2625
        %2627 = vmax.xlane.f32.xlu0 %v2234
        %v2628 = vpop.xlane.xlu0 %2627
        %2629 = vmax.xlane.f32.xlu0 %v2239
        %v2630 = vpop.xlane.xlu0 %2629
        %2631 = vmax.xlane.f32.xlu0 %v2242
        %v2632 = vpop.xlane.xlu0 %2631
        %2633 = vmax.xlane.f32.xlu0 %v2247
        %v2634 = vpop.xlane.xlu0 %2633
        %2635 = vmax.xlane.f32.xlu0 %v2250
        %v2636 = vpop.xlane.xlu0 %2635
        %2637 = vmax.xlane.f32.xlu0 %v2255
        %v2638 = vpop.xlane.xlu0 %2637
        %2639 = vmax.xlane.f32.xlu0 %v2258
        %v2640 = vpop.xlane.xlu0 %2639
        %2641 = vmax.xlane.f32.xlu0 %v2263
        %v2642 = vpop.xlane.xlu0 %2641
        %2643 = vmax.xlane.f32.xlu0 %v2266
        %v2644 = vpop.xlane.xlu0 %2643
        %2645 = vmax.xlane.f32.xlu0 %v2271
        %v2646 = vpop.xlane.xlu0 %2645
        %2647 = vmax.xlane.f32.xlu0 %v2274
        %v2648 = vpop.xlane.xlu0 %2647
        %2649 = vmax.xlane.f32.xlu0 %v2279
        %v2650 = vpop.xlane.xlu0 %2649
        %2651 = vmax.xlane.f32.xlu0 %v2282
        %v2652 = vpop.xlane.xlu0 %2651
        %2653 = vmax.xlane.f32.xlu0 %v2287
        %v2654 = vpop.xlane.xlu0 %2653
        %2655 = vmax.xlane.f32.xlu0 %v2290
        %v2656 = vpop.xlane.xlu0 %2655
        %2657 = vmax.xlane.f32.xlu0 %v2295
        %v2658 = vpop.xlane.xlu0 %2657
        %2659 = vmax.xlane.f32.xlu0 %v2298
        %v2660 = vpop.xlane.xlu0 %2659
        %2661 = vmax.xlane.f32.xlu0 %v2303
        %v2662 = vpop.xlane.xlu0 %2661
        %2663 = vmax.xlane.f32.xlu0 %v2306
        %v2664 = vpop.xlane.xlu0 %2663
        %2665 = vmax.xlane.f32.xlu0 %v2311
        %v2666 = vpop.xlane.xlu0 %2665
        %2667 = vmax.xlane.f32.xlu0 %v2314
        %v2668 = vpop.xlane.xlu0 %2667
        %2669 = vmax.xlane.f32.xlu0 %v2319
        %v2670 = vpop.xlane.xlu0 %2669
        %2671 = vmax.xlane.f32.xlu0 %v2322
        %v2672 = vpop.xlane.xlu0 %2671
        %2673 = vmax.xlane.f32.xlu0 %v2327
        %v2674 = vpop.xlane.xlu0 %2673
        %2675 = vmax.xlane.f32.xlu0 %v2330
        %v2676 = vpop.xlane.xlu0 %2675
        %2677 = vmax.xlane.f32.xlu0 %v2335
        %v2678 = vpop.xlane.xlu0 %2677
        %2679 = vmax.xlane.f32.xlu0 %v2338
        %v2680 = vpop.xlane.xlu0 %2679
        %2681 = vmax.xlane.f32.xlu0 %v2343
        %v2682 = vpop.xlane.xlu0 %2681
        %2683 = vmax.xlane.f32.xlu0 %v2346
        %v2684 = vpop.xlane.xlu0 %2683
        %2685 = vmax.xlane.f32.xlu0 %v2351
        %v2686 = vpop.xlane.xlu0 %2685
        %2687 = vmax.xlane.f32.xlu0 %v2354
        %v2688 = vpop.xlane.xlu0 %2687
        %2689 = vmax.xlane.f32.xlu0 %v2359
        %v2690 = vpop.xlane.xlu0 %2689
        %2691 = vmax.xlane.f32.xlu0 %v2362
        %v2692 = vpop.xlane.xlu0 %2691
        %2693 = vmax.xlane.f32.xlu0 %v2367
        %v2694 = vpop.xlane.xlu0 %2693
        %2695 = vmax.xlane.f32.xlu0 %v2370
        %v2696 = vpop.xlane.xlu0 %2695
        %2697 = vmax.xlane.f32.xlu0 %v2375
        %v2698 = vpop.xlane.xlu0 %2697
        %2699 = vmax.xlane.f32.xlu0 %v2378
        %v2700 = vpop.xlane.xlu0 %2699
        %v2701 = vsub.f32 %v1743, %v2382
        %v2702 = vsub.f32 %v1746, %v2384
        %v2703 = vsub.f32 %v1751, %v2386
        %v2704 = vsub.f32 %v1754, %v2388
        %v2705 = vsub.f32 %v1759, %v2390
        %v2706 = vsub.f32 %v1762, %v2392
        %v2707 = vsub.f32 %v1767, %v2394
        %v2708 = vsub.f32 %v1770, %v2396
        %v2709 = vsub.f32 %v1775, %v2398
        %v2710 = vsub.f32 %v1778, %v2400
        %v2711 = vsub.f32 %v1783, %v2402
        %v2712 = vsub.f32 %v1786, %v2404
        %v2713 = vsub.f32 %v1791, %v2406
        %v2714 = vsub.f32 %v1794, %v2408
        %v2715 = vsub.f32 %v1799, %v2410
        %v2716 = vsub.f32 %v1802, %v2412
        %v2717 = vsub.f32 %v1807, %v2414
        %v2718 = vsub.f32 %v1810, %v2416
        %v2719 = vsub.f32 %v1815, %v2418
        %v2720 = vsub.f32 %v1818, %v2420
        %v2721 = vsub.f32 %v1823, %v2422
        %v2722 = vsub.f32 %v1826, %v2424
        %v2723 = vsub.f32 %v1831, %v2426
        %v2724 = vsub.f32 %v1834, %v2428
        %v2725 = vsub.f32 %v1839, %v2430
        %v2726 = vsub.f32 %v1842, %v2432
        %v2727 = vsub.f32 %v1847, %v2434
        %v2728 = vsub.f32 %v1850, %v2436
        %v2729 = vsub.f32 %v1855, %v2438
        %v2730 = vsub.f32 %v1858, %v2440
        %v2731 = vsub.f32 %v1863, %v2442
        %v2732 = vsub.f32 %v1866, %v2444
        %v2733 = vsub.f32 %v1871, %v2446
        %v2734 = vsub.f32 %v1874, %v2448
        %v2735 = vsub.f32 %v1879, %v2450
        %v2736 = vsub.f32 %v1882, %v2452
        %v2737 = vsub.f32 %v1887, %v2454
        %v2738 = vsub.f32 %v1890, %v2456
        %v2739 = vsub.f32 %v1895, %v2458
        %v2740 = vsub.f32 %v1898, %v2460
        %v2741 = vsub.f32 %v1903, %v2462
        %v2742 = vsub.f32 %v1906, %v2464
        %v2743 = vsub.f32 %v1911, %v2466
        %v2744 = vsub.f32 %v1914, %v2468
        %v2745 = vsub.f32 %v1919, %v2470
        %v2746 = vsub.f32 %v1922, %v2472
        %v2747 = vsub.f32 %v1927, %v2474
        %v2748 = vsub.f32 %v1930, %v2476
        %v2749 = vsub.f32 %v1935, %v2478
        %v2750 = vsub.f32 %v1938, %v2480
        %v2751 = vsub.f32 %v1943, %v2482
        %v2752 = vsub.f32 %v1946, %v2484
        %v2753 = vsub.f32 %v1951, %v2486
        %v2754 = vsub.f32 %v1954, %v2488
        %v2755 = vsub.f32 %v1959, %v2490
        %v2756 = vsub.f32 %v1962, %v2492
        %v2757 = vsub.f32 %v1967, %v2494
        %v2758 = vsub.f32 %v1970, %v2496
        %v2759 = vsub.f32 %v1975, %v2498
        %v2760 = vsub.f32 %v1978, %v2500
        %v2761 = vsub.f32 %v1983, %v2502
        %v2762 = vsub.f32 %v1986, %v2504
        %v2763 = vsub.f32 %v1991, %v2506
        %v2764 = vsub.f32 %v1994, %v2508
        %v2765 = vsub.f32 %v1999, %v2510
        %v2766 = vsub.f32 %v2002, %v2512
        %v2767 = vsub.f32 %v2007, %v2514
        %v2768 = vsub.f32 %v2010, %v2516
        %v2769 = vsub.f32 %v2015, %v2518
        %v2770 = vsub.f32 %v2018, %v2520
        %v2771 = vsub.f32 %v2023, %v2522
        %v2772 = vsub.f32 %v2026, %v2524
        %v2773 = vsub.f32 %v2031, %v2526
        %v2774 = vsub.f32 %v2034, %v2528
        %v2775 = vsub.f32 %v2039, %v2530
        %v2776 = vsub.f32 %v2042, %v2532
        %v2777 = vsub.f32 %v2047, %v2534
        %v2778 = vsub.f32 %v2050, %v2536
        %v2779 = vsub.f32 %v2055, %v2538
        %v2780 = vsub.f32 %v2058, %v2540
        %v2781 = vsub.f32 %v2063, %v2542
        %v2782 = vsub.f32 %v2066, %v2544
        %v2783 = vsub.f32 %v2071, %v2546
        %v2784 = vsub.f32 %v2074, %v2548
        %v2785 = vsub.f32 %v2079, %v2550
        %v2786 = vsub.f32 %v2082, %v2552
        %v2787 = vsub.f32 %v2087, %v2554
        %v2788 = vsub.f32 %v2090, %v2556
        %v2789 = vsub.f32 %v2095, %v2558
        %v2790 = vsub.f32 %v2098, %v2560
        %v2791 = vsub.f32 %v2103, %v2562
        %v2792 = vsub.f32 %v2106, %v2564
        %v2793 = vsub.f32 %v2111, %v2566
        %v2794 = vsub.f32 %v2114, %v2568
        %v2795 = vsub.f32 %v2119, %v2570
        %v2796 = vsub.f32 %v2122, %v2572
        %v2797 = vsub.f32 %v2127, %v2574
        %v2798 = vsub.f32 %v2130, %v2576
        %v2799 = vsub.f32 %v2135, %v2578
        %v2800 = vsub.f32 %v2138, %v2580
        %v2801 = vsub.f32 %v2143, %v2582
        %v2802 = vsub.f32 %v2146, %v2584
        %v2803 = vsub.f32 %v2151, %v2586
        %v2804 = vsub.f32 %v2154, %v2588
        %v2805 = vsub.f32 %v2159, %v2590
        %v2806 = vsub.f32 %v2162, %v2592
        %v2807 = vsub.f32 %v2167, %v2594
        %v2808 = vsub.f32 %v2170, %v2596
        %v2809 = vsub.f32 %v2175, %v2598
        %v2810 = vsub.f32 %v2178, %v2600
        %v2811 = vsub.f32 %v2183, %v2602
        %v2812 = vsub.f32 %v2186, %v2604
        %v2813 = vsub.f32 %v2191, %v2606
        %v2814 = vsub.f32 %v2194, %v2608
        %v2815 = vsub.f32 %v2199, %v2610
        %v2816 = vsub.f32 %v2202, %v2612
        %v2817 = vsub.f32 %v2207, %v2614
        %v2818 = vsub.f32 %v2210, %v2616
        %v2819 = vsub.f32 %v2215, %v2618
        %v2820 = vsub.f32 %v2218, %v2620
        %v2821 = vsub.f32 %v2223, %v2622
        %v2822 = vsub.f32 %v2226, %v2624
        %v2823 = vsub.f32 %v2231, %v2626
        %v2824 = vsub.f32 %v2234, %v2628
        %v2825 = vsub.f32 %v2239, %v2630
        %v2826 = vsub.f32 %v2242, %v2632
        %v2827 = vsub.f32 %v2247, %v2634
        %v2828 = vsub.f32 %v2250, %v2636
        %v2829 = vsub.f32 %v2255, %v2638
        %v2830 = vsub.f32 %v2258, %v2640
        %v2831 = vsub.f32 %v2263, %v2642
        %v2832 = vsub.f32 %v2266, %v2644
        %v2833 = vsub.f32 %v2271, %v2646
        %v2834 = vsub.f32 %v2274, %v2648
        %v2835 = vsub.f32 %v2279, %v2650
        %v2836 = vsub.f32 %v2282, %v2652
        %v2837 = vsub.f32 %v2287, %v2654
        %v2838 = vsub.f32 %v2290, %v2656
        %v2839 = vsub.f32 %v2295, %v2658
        %v2840 = vsub.f32 %v2298, %v2660
        %v2841 = vsub.f32 %v2303, %v2662
        %v2842 = vsub.f32 %v2306, %v2664
        %v2843 = vsub.f32 %v2311, %v2666
        %v2844 = vsub.f32 %v2314, %v2668
        %v2845 = vsub.f32 %v2319, %v2670
        %v2846 = vsub.f32 %v2322, %v2672
        %v2847 = vsub.f32 %v2327, %v2674
        %v2848 = vsub.f32 %v2330, %v2676
        %v2849 = vsub.f32 %v2335, %v2678
        %v2850 = vsub.f32 %v2338, %v2680
        %v2851 = vsub.f32 %v2343, %v2682
        %v2852 = vsub.f32 %v2346, %v2684
        %v2853 = vsub.f32 %v2351, %v2686
        %v2854 = vsub.f32 %v2354, %v2688
        %v2855 = vsub.f32 %v2359, %v2690
        %v2856 = vsub.f32 %v2362, %v2692
        %v2857 = vsub.f32 %v2367, %v2694
        %v2858 = vsub.f32 %v2370, %v2696
        %v2859 = vsub.f32 %v2375, %v2698
        %v2860 = vsub.f32 %v2378, %v2700
        %v2861 = vmul.f32 %v2701, 1.442695
        %v2862 = vpow.pop %v2861
        %v2863 = vmul.f32 %v2702, 1.442695
        %v2864 = vpow.pop %v2863
        %v2865 = vmul.f32 %v2703, 1.442695
        %v2866 = vpow.pop %v2865
        %v2867 = vmul.f32 %v2704, 1.442695
        %v2868 = vpow.pop %v2867
        %v2869 = vmul.f32 %v2705, 1.442695
        %v2870 = vpow.pop %v2869
        %v2871 = vmul.f32 %v2706, 1.442695
        %v2872 = vpow.pop %v2871
        %v2873 = vmul.f32 %v2707, 1.442695
        %v2874 = vpow.pop %v2873
        %v2875 = vmul.f32 %v2708, 1.442695
        %v2876 = vpow.pop %v2875
        %v2877 = vmul.f32 %v2709, 1.442695
        %v2878 = vpow.pop %v2877
        %v2879 = vmul.f32 %v2710, 1.442695
        %v2880 = vpow.pop %v2879
        %v2881 = vmul.f32 %v2711, 1.442695
        %v2882 = vpow.pop %v2881
        %v2883 = vmul.f32 %v2712, 1.442695
        %v2884 = vpow.pop %v2883
        %v2885 = vmul.f32 %v2713, 1.442695
        %v2886 = vpow.pop %v2885
        %v2887 = vmul.f32 %v2714, 1.442695
        %v2888 = vpow.pop %v2887
        %v2889 = vmul.f32 %v2715, 1.442695
        %v2890 = vpow.pop %v2889
        %v2891 = vmul.f32 %v2716, 1.442695
        %v2892 = vpow.pop %v2891
        %v2893 = vmul.f32 %v2717, 1.442695
        %v2894 = vpow.pop %v2893
        %v2895 = vmul.f32 %v2718, 1.442695
        %v2896 = vpow.pop %v2895
        %v2897 = vmul.f32 %v2719, 1.442695
        %v2898 = vpow.pop %v2897
        %v2899 = vmul.f32 %v2720, 1.442695
        %v2900 = vpow.pop %v2899
        %v2901 = vmul.f32 %v2721, 1.442695
        %v2902 = vpow.pop %v2901
        %v2903 = vmul.f32 %v2722, 1.442695
        %v2904 = vpow.pop %v2903
        %v2905 = vmul.f32 %v2723, 1.442695
        %v2906 = vpow.pop %v2905
        %v2907 = vmul.f32 %v2724, 1.442695
        %v2908 = vpow.pop %v2907
        %v2909 = vmul.f32 %v2725, 1.442695
        %v2910 = vpow.pop %v2909
        %v2911 = vmul.f32 %v2726, 1.442695
        %v2912 = vpow.pop %v2911
        %v2913 = vmul.f32 %v2727, 1.442695
        %v2914 = vpow.pop %v2913
        %v2915 = vmul.f32 %v2728, 1.442695
        %v2916 = vpow.pop %v2915
        %v2917 = vmul.f32 %v2729, 1.442695
        %v2918 = vpow.pop %v2917
        %v2919 = vmul.f32 %v2730, 1.442695
        %v2920 = vpow.pop %v2919
        %v2921 = vmul.f32 %v2731, 1.442695
        %v2922 = vpow.pop %v2921
        %v2923 = vmul.f32 %v2732, 1.442695
        %v2924 = vpow.pop %v2923
        %v2925 = vmul.f32 %v2733, 1.442695
        %v2926 = vpow.pop %v2925
        %v2927 = vmul.f32 %v2734, 1.442695
        %v2928 = vpow.pop %v2927
        %v2929 = vmul.f32 %v2735, 1.442695
        %v2930 = vpow.pop %v2929
        %v2931 = vmul.f32 %v2736, 1.442695
        %v2932 = vpow.pop %v2931
        %v2933 = vmul.f32 %v2737, 1.442695
        %v2934 = vpow.pop %v2933
        %v2935 = vmul.f32 %v2738, 1.442695
        %v2936 = vpow.pop %v2935
        %v2937 = vmul.f32 %v2739, 1.442695
        %v2938 = vpow.pop %v2937
        %v2939 = vmul.f32 %v2740, 1.442695
        %v2940 = vpow.pop %v2939
        %v2941 = vmul.f32 %v2741, 1.442695
        %v2942 = vpow.pop %v2941
        %v2943 = vmul.f32 %v2742, 1.442695
        %v2944 = vpow.pop %v2943
        %v2945 = vmul.f32 %v2743, 1.442695
        %v2946 = vpow.pop %v2945
        %v2947 = vmul.f32 %v2744, 1.442695
        %v2948 = vpow.pop %v2947
        %v2949 = vmul.f32 %v2745, 1.442695
        %v2950 = vpow.pop %v2949
        %v2951 = vmul.f32 %v2746, 1.442695
        %v2952 = vpow.pop %v2951
        %v2953 = vmul.f32 %v2747, 1.442695
        %v2954 = vpow.pop %v2953
        %v2955 = vmul.f32 %v2748, 1.442695
        %v2956 = vpow.pop %v2955
        %v2957 = vmul.f32 %v2749, 1.442695
        %v2958 = vpow.pop %v2957
        %v2959 = vmul.f32 %v2750, 1.442695
        %v2960 = vpow.pop %v2959
        %v2961 = vmul.f32 %v2751, 1.442695
        %v2962 = vpow.pop %v2961
        %v2963 = vmul.f32 %v2752, 1.442695
        %v2964 = vpow.pop %v2963
        %v2965 = vmul.f32 %v2753, 1.442695
        %v2966 = vpow.pop %v2965
        %v2967 = vmul.f32 %v2754, 1.442695
        %v2968 = vpow.pop %v2967
        %v2969 = vmul.f32 %v2755, 1.442695
        %v2970 = vpow.pop %v2969
        %v2971 = vmul.f32 %v2756, 1.442695
        %v2972 = vpow.pop %v2971
        %v2973 = vmul.f32 %v2757, 1.442695
        %v2974 = vpow.pop %v2973
        %v2975 = vmul.f32 %v2758, 1.442695
        %v2976 = vpow.pop %v2975
        %v2977 = vmul.f32 %v2759, 1.442695
        %v2978 = vpow.pop %v2977
        %v2979 = vmul.f32 %v2760, 1.442695
        %v2980 = vpow.pop %v2979
        %v2981 = vmul.f32 %v2761, 1.442695
        %v2982 = vpow.pop %v2981
        %v2983 = vmul.f32 %v2762, 1.442695
        %v2984 = vpow.pop %v2983
        %v2985 = vmul.f32 %v2763, 1.442695
        %v2986 = vpow.pop %v2985
        %v2987 = vmul.f32 %v2764, 1.442695
        %v2988 = vpow.pop %v2987
        %v2989 = vmul.f32 %v2765, 1.442695
        %v2990 = vpow.pop %v2989
        %v2991 = vmul.f32 %v2766, 1.442695
        %v2992 = vpow.pop %v2991
        %v2993 = vmul.f32 %v2767, 1.442695
        %v2994 = vpow.pop %v2993
        %v2995 = vmul.f32 %v2768, 1.442695
        %v2996 = vpow.pop %v2995
        %v2997 = vmul.f32 %v2769, 1.442695
        %v2998 = vpow.pop %v2997
        %v2999 = vmul.f32 %v2770, 1.442695
        %v3000 = vpow.pop %v2999
        %v3001 = vmul.f32 %v2771, 1.442695
        %v3002 = vpow.pop %v3001
        %v3003 = vmul.f32 %v2772, 1.442695
        %v3004 = vpow.pop %v3003
        %v3005 = vmul.f32 %v2773, 1.442695
        %v3006 = vpow.pop %v3005
        %v3007 = vmul.f32 %v2774, 1.442695
        %v3008 = vpow.pop %v3007
        %v3009 = vmul.f32 %v2775, 1.442695
        %v3010 = vpow.pop %v3009
        %v3011 = vmul.f32 %v2776, 1.442695
        %v3012 = vpow.pop %v3011
        %v3013 = vmul.f32 %v2777, 1.442695
        %v3014 = vpow.pop %v3013
        %v3015 = vmul.f32 %v2778, 1.442695
        %v3016 = vpow.pop %v3015
        %v3017 = vmul.f32 %v2779, 1.442695
        %v3018 = vpow.pop %v3017
        %v3019 = vmul.f32 %v2780, 1.442695
        %v3020 = vpow.pop %v3019
        %v3021 = vmul.f32 %v2781, 1.442695
        %v3022 = vpow.pop %v3021
        %v3023 = vmul.f32 %v2782, 1.442695
        %v3024 = vpow.pop %v3023
        %v3025 = vmul.f32 %v2783, 1.442695
        %v3026 = vpow.pop %v3025
        %v3027 = vmul.f32 %v2784, 1.442695
        %v3028 = vpow.pop %v3027
        %v3029 = vmul.f32 %v2785, 1.442695
        %v3030 = vpow.pop %v3029
        %v3031 = vmul.f32 %v2786, 1.442695
        %v3032 = vpow.pop %v3031
        %v3033 = vmul.f32 %v2787, 1.442695
        %v3034 = vpow.pop %v3033
        %v3035 = vmul.f32 %v2788, 1.442695
        %v3036 = vpow.pop %v3035
        %v3037 = vmul.f32 %v2789, 1.442695
        %v3038 = vpow.pop %v3037
        %v3039 = vmul.f32 %v2790, 1.442695
        %v3040 = vpow.pop %v3039
        %v3041 = vmul.f32 %v2791, 1.442695
        %v3042 = vpow.pop %v3041
        %v3043 = vmul.f32 %v2792, 1.442695
        %v3044 = vpow.pop %v3043
        %v3045 = vmul.f32 %v2793, 1.442695
        %v3046 = vpow.pop %v3045
        %v3047 = vmul.f32 %v2794, 1.442695
        %v3048 = vpow.pop %v3047
        %v3049 = vmul.f32 %v2795, 1.442695
        %v3050 = vpow.pop %v3049
        %v3051 = vmul.f32 %v2796, 1.442695
        %v3052 = vpow.pop %v3051
        %v3053 = vmul.f32 %v2797, 1.442695
        %v3054 = vpow.pop %v3053
        %v3055 = vmul.f32 %v2798, 1.442695
        %v3056 = vpow.pop %v3055
        %v3057 = vmul.f32 %v2799, 1.442695
        %v3058 = vpow.pop %v3057
        %v3059 = vmul.f32 %v2800, 1.442695
        %v3060 = vpow.pop %v3059
        %v3061 = vmul.f32 %v2801, 1.442695
        %v3062 = vpow.pop %v3061
        %v3063 = vmul.f32 %v2802, 1.442695
        %v3064 = vpow.pop %v3063
        %v3065 = vmul.f32 %v2803, 1.442695
        %v3066 = vpow.pop %v3065
        %v3067 = vmul.f32 %v2804, 1.442695
        %v3068 = vpow.pop %v3067
        %v3069 = vmul.f32 %v2805, 1.442695
        %v3070 = vpow.pop %v3069
        %v3071 = vmul.f32 %v2806, 1.442695
        %v3072 = vpow.pop %v3071
        %v3073 = vmul.f32 %v2807, 1.442695
        %v3074 = vpow.pop %v3073
        %v3075 = vmul.f32 %v2808, 1.442695
        %v3076 = vpow.pop %v3075
        %v3077 = vmul.f32 %v2809, 1.442695
        %v3078 = vpow.pop %v3077
        %v3079 = vmul.f32 %v2810, 1.442695
        %v3080 = vpow.pop %v3079
        %v3081 = vmul.f32 %v2811, 1.442695
        %v3082 = vpow.pop %v3081
        %v3083 = vmul.f32 %v2812, 1.442695
        %v3084 = vpow.pop %v3083
        %v3085 = vmul.f32 %v2813, 1.442695
        %v3086 = vpow.pop %v3085
        %v3087 = vmul.f32 %v2814, 1.442695
        %v3088 = vpow.pop %v3087
        %v3089 = vmul.f32 %v2815, 1.442695
        %v3090 = vpow.pop %v3089
        %v3091 = vmul.f32 %v2816, 1.442695
        %v3092 = vpow.pop %v3091
        %v3093 = vmul.f32 %v2817, 1.442695
        %v3094 = vpow.pop %v3093
        %v3095 = vmul.f32 %v2818, 1.442695
        %v3096 = vpow.pop %v3095
        %v3097 = vmul.f32 %v2819, 1.442695
        %v3098 = vpow.pop %v3097
        %v3099 = vmul.f32 %v2820, 1.442695
        %v3100 = vpow.pop %v3099
        %v3101 = vmul.f32 %v2821, 1.442695
        %v3102 = vpow.pop %v3101
        %v3103 = vmul.f32 %v2822, 1.442695
        %v3104 = vpow.pop %v3103
        %v3105 = vmul.f32 %v2823, 1.442695
        %v3106 = vpow.pop %v3105
        %v3107 = vmul.f32 %v2824, 1.442695
        %v3108 = vpow.pop %v3107
        %v3109 = vmul.f32 %v2825, 1.442695
        %v3110 = vpow.pop %v3109
        %v3111 = vmul.f32 %v2826, 1.442695
        %v3112 = vpow.pop %v3111
        %v3113 = vmul.f32 %v2827, 1.442695
        %v3114 = vpow.pop %v3113
        %v3115 = vmul.f32 %v2828, 1.442695
        %v3116 = vpow.pop %v3115
        %v3117 = vmul.f32 %v2829, 1.442695
        %v3118 = vpow.pop %v3117
        %v3119 = vmul.f32 %v2830, 1.442695
        %v3120 = vpow.pop %v3119
        %v3121 = vmul.f32 %v2831, 1.442695
        %v3122 = vpow.pop %v3121
        %v3123 = vmul.f32 %v2832, 1.442695
        %v3124 = vpow.pop %v3123
        %v3125 = vmul.f32 %v2833, 1.442695
        %v3126 = vpow.pop %v3125
        %v3127 = vmul.f32 %v2834, 1.442695
        %v3128 = vpow.pop %v3127
        %v3129 = vmul.f32 %v2835, 1.442695
        %v3130 = vpow.pop %v3129
        %v3131 = vmul.f32 %v2836, 1.442695
        %v3132 = vpow.pop %v3131
        %v3133 = vmul.f32 %v2837, 1.442695
        %v3134 = vpow.pop %v3133
        %v3135 = vmul.f32 %v2838, 1.442695
        %v3136 = vpow.pop %v3135
        %v3137 = vmul.f32 %v2839, 1.442695
        %v3138 = vpow.pop %v3137
        %v3139 = vmul.f32 %v2840, 1.442695
        %v3140 = vpow.pop %v3139
        %v3141 = vmul.f32 %v2841, 1.442695
        %v3142 = vpow.pop %v3141
        %v3143 = vmul.f32 %v2842, 1.442695
        %v3144 = vpow.pop %v3143
        %v3145 = vmul.f32 %v2843, 1.442695
        %v3146 = vpow.pop %v3145
        %v3147 = vmul.f32 %v2844, 1.442695
        %v3148 = vpow.pop %v3147
        %v3149 = vmul.f32 %v2845, 1.442695
        %v3150 = vpow.pop %v3149
        %v3151 = vmul.f32 %v2846, 1.442695
        %v3152 = vpow.pop %v3151
        %v3153 = vmul.f32 %v2847, 1.442695
        %v3154 = vpow.pop %v3153
        %v3155 = vmul.f32 %v2848, 1.442695
        %v3156 = vpow.pop %v3155
        %v3157 = vmul.f32 %v2849, 1.442695
        %v3158 = vpow.pop %v3157
        %v3159 = vmul.f32 %v2850, 1.442695
        %v3160 = vpow.pop %v3159
        %v3161 = vmul.f32 %v2851, 1.442695
        %v3162 = vpow.pop %v3161
        %v3163 = vmul.f32 %v2852, 1.442695
        %v3164 = vpow.pop %v3163
        %v3165 = vmul.f32 %v2853, 1.442695
        %v3166 = vpow.pop %v3165
        %v3167 = vmul.f32 %v2854, 1.442695
        %v3168 = vpow.pop %v3167
        %v3169 = vmul.f32 %v2855, 1.442695
        %v3170 = vpow.pop %v3169
        %v3171 = vmul.f32 %v2856, 1.442695
        %v3172 = vpow.pop %v3171
        %v3173 = vmul.f32 %v2857, 1.442695
        %v3174 = vpow.pop %v3173
        %v3175 = vmul.f32 %v2858, 1.442695
        %v3176 = vpow.pop %v3175
        %v3177 = vmul.f32 %v2859, 1.442695
        %v3178 = vpow.pop %v3177
        %v3179 = vmul.f32 %v2860, 1.442695
        %v3180 = vpow.pop %v3179
        %3181 = vadd.xlane.f32.xlu0 %v2862
        %v3182 = vpop.xlane.xlu0 %3181
        %3183 = vadd.xlane.f32.xlu0 %v2864
        %v3184 = vpop.xlane.xlu0 %3183
        %3185 = vadd.xlane.f32.xlu0 %v2866
        %v3186 = vpop.xlane.xlu0 %3185
        %3187 = vadd.xlane.f32.xlu0 %v2868
        %v3188 = vpop.xlane.xlu0 %3187
        %3189 = vadd.xlane.f32.xlu0 %v2870
        %v3190 = vpop.xlane.xlu0 %3189
        %3191 = vadd.xlane.f32.xlu0 %v2872
        %v3192 = vpop.xlane.xlu0 %3191
        %3193 = vadd.xlane.f32.xlu0 %v2874
        %v3194 = vpop.xlane.xlu0 %3193
        %3195 = vadd.xlane.f32.xlu0 %v2876
        %v3196 = vpop.xlane.xlu0 %3195
        %3197 = vadd.xlane.f32.xlu0 %v2878
        %v3198 = vpop.xlane.xlu0 %3197
        %3199 = vadd.xlane.f32.xlu0 %v2880
        %v3200 = vpop.xlane.xlu0 %3199
        %3201 = vadd.xlane.f32.xlu0 %v2882
        %v3202 = vpop.xlane.xlu0 %3201
        %3203 = vadd.xlane.f32.xlu0 %v2884
        %v3204 = vpop.xlane.xlu0 %3203
        %3205 = vadd.xlane.f32.xlu0 %v2886
        %v3206 = vpop.xlane.xlu0 %3205
        %3207 = vadd.xlane.f32.xlu0 %v2888
        %v3208 = vpop.xlane.xlu0 %3207
        %3209 = vadd.xlane.f32.xlu0 %v2890
        %v3210 = vpop.xlane.xlu0 %3209
        %3211 = vadd.xlane.f32.xlu0 %v2892
        %v3212 = vpop.xlane.xlu0 %3211
        %3213 = vadd.xlane.f32.xlu0 %v2894
        %v3214 = vpop.xlane.xlu0 %3213
        %3215 = vadd.xlane.f32.xlu0 %v2896
        %v3216 = vpop.xlane.xlu0 %3215
        %3217 = vadd.xlane.f32.xlu0 %v2898
        %v3218 = vpop.xlane.xlu0 %3217
        %3219 = vadd.xlane.f32.xlu0 %v2900
        %v3220 = vpop.xlane.xlu0 %3219
        %3221 = vadd.xlane.f32.xlu0 %v2902
        %v3222 = vpop.xlane.xlu0 %3221
        %3223 = vadd.xlane.f32.xlu0 %v2904
        %v3224 = vpop.xlane.xlu0 %3223
        %3225 = vadd.xlane.f32.xlu0 %v2906
        %v3226 = vpop.xlane.xlu0 %3225
        %3227 = vadd.xlane.f32.xlu0 %v2908
        %v3228 = vpop.xlane.xlu0 %3227
        %3229 = vadd.xlane.f32.xlu0 %v2910
        %v3230 = vpop.xlane.xlu0 %3229
        %3231 = vadd.xlane.f32.xlu0 %v2912
        %v3232 = vpop.xlane.xlu0 %3231
        %3233 = vadd.xlane.f32.xlu0 %v2914
        %v3234 = vpop.xlane.xlu0 %3233
        %3235 = vadd.xlane.f32.xlu0 %v2916
        %v3236 = vpop.xlane.xlu0 %3235
        %3237 = vadd.xlane.f32.xlu0 %v2918
        %v3238 = vpop.xlane.xlu0 %3237
        %3239 = vadd.xlane.f32.xlu0 %v2920
        %v3240 = vpop.xlane.xlu0 %3239
        %3241 = vadd.xlane.f32.xlu0 %v2922
        %v3242 = vpop.xlane.xlu0 %3241
        %3243 = vadd.xlane.f32.xlu0 %v2924
        %v3244 = vpop.xlane.xlu0 %3243
        %3245 = vadd.xlane.f32.xlu0 %v2926
        %v3246 = vpop.xlane.xlu0 %3245
        %3247 = vadd.xlane.f32.xlu0 %v2928
        %v3248 = vpop.xlane.xlu0 %3247
        %3249 = vadd.xlane.f32.xlu0 %v2930
        %v3250 = vpop.xlane.xlu0 %3249
        %3251 = vadd.xlane.f32.xlu0 %v2932
        %v3252 = vpop.xlane.xlu0 %3251
        %3253 = vadd.xlane.f32.xlu0 %v2934
        %v3254 = vpop.xlane.xlu0 %3253
        %3255 = vadd.xlane.f32.xlu0 %v2936
        %v3256 = vpop.xlane.xlu0 %3255
        %3257 = vadd.xlane.f32.xlu0 %v2938
        %v3258 = vpop.xlane.xlu0 %3257
        %3259 = vadd.xlane.f32.xlu0 %v2940
        %v3260 = vpop.xlane.xlu0 %3259
        %3261 = vadd.xlane.f32.xlu0 %v2942
        %v3262 = vpop.xlane.xlu0 %3261
        %3263 = vadd.xlane.f32.xlu0 %v2944
        %v3264 = vpop.xlane.xlu0 %3263
        %3265 = vadd.xlane.f32.xlu0 %v2946
        %v3266 = vpop.xlane.xlu0 %3265
        %3267 = vadd.xlane.f32.xlu0 %v2948
        %v3268 = vpop.xlane.xlu0 %3267
        %3269 = vadd.xlane.f32.xlu0 %v2950
        %v3270 = vpop.xlane.xlu0 %3269
        %3271 = vadd.xlane.f32.xlu0 %v2952
        %v3272 = vpop.xlane.xlu0 %3271
        %3273 = vadd.xlane.f32.xlu0 %v2954
        %v3274 = vpop.xlane.xlu0 %3273
        %3275 = vadd.xlane.f32.xlu0 %v2956
        %v3276 = vpop.xlane.xlu0 %3275
        %3277 = vadd.xlane.f32.xlu0 %v2958
        %v3278 = vpop.xlane.xlu0 %3277
        %3279 = vadd.xlane.f32.xlu0 %v2960
        %v3280 = vpop.xlane.xlu0 %3279
        %3281 = vadd.xlane.f32.xlu0 %v2962
        %v3282 = vpop.xlane.xlu0 %3281
        %3283 = vadd.xlane.f32.xlu0 %v2964
        %v3284 = vpop.xlane.xlu0 %3283
        %3285 = vadd.xlane.f32.xlu0 %v2966
        %v3286 = vpop.xlane.xlu0 %3285
        %3287 = vadd.xlane.f32.xlu0 %v2968
        %v3288 = vpop.xlane.xlu0 %3287
        %3289 = vadd.xlane.f32.xlu0 %v2970
        %v3290 = vpop.xlane.xlu0 %3289
        %3291 = vadd.xlane.f32.xlu0 %v2972
        %v3292 = vpop.xlane.xlu0 %3291
        %3293 = vadd.xlane.f32.xlu0 %v2974
        %v3294 = vpop.xlane.xlu0 %3293
        %3295 = vadd.xlane.f32.xlu0 %v2976
        %v3296 = vpop.xlane.xlu0 %3295
        %3297 = vadd.xlane.f32.xlu0 %v2978
        %v3298 = vpop.xlane.xlu0 %3297
        %3299 = vadd.xlane.f32.xlu0 %v2980
        %v3300 = vpop.xlane.xlu0 %3299
        %3301 = vadd.xlane.f32.xlu0 %v2982
        %v3302 = vpop.xlane.xlu0 %3301
        %3303 = vadd.xlane.f32.xlu0 %v2984
        %v3304 = vpop.xlane.xlu0 %3303
        %3305 = vadd.xlane.f32.xlu0 %v2986
        %v3306 = vpop.xlane.xlu0 %3305
        %3307 = vadd.xlane.f32.xlu0 %v2988
        %v3308 = vpop.xlane.xlu0 %3307
        %3309 = vadd.xlane.f32.xlu0 %v2990
        %v3310 = vpop.xlane.xlu0 %3309
        %3311 = vadd.xlane.f32.xlu0 %v2992
        %v3312 = vpop.xlane.xlu0 %3311
        %3313 = vadd.xlane.f32.xlu0 %v2994
        %v3314 = vpop.xlane.xlu0 %3313
        %3315 = vadd.xlane.f32.xlu0 %v2996
        %v3316 = vpop.xlane.xlu0 %3315
        %3317 = vadd.xlane.f32.xlu0 %v2998
        %v3318 = vpop.xlane.xlu0 %3317
        %3319 = vadd.xlane.f32.xlu0 %v3000
        %v3320 = vpop.xlane.xlu0 %3319
        %3321 = vadd.xlane.f32.xlu0 %v3002
        %v3322 = vpop.xlane.xlu0 %3321
        %3323 = vadd.xlane.f32.xlu0 %v3004
        %v3324 = vpop.xlane.xlu0 %3323
        %3325 = vadd.xlane.f32.xlu0 %v3006
        %v3326 = vpop.xlane.xlu0 %3325
        %3327 = vadd.xlane.f32.xlu0 %v3008
        %v3328 = vpop.xlane.xlu0 %3327
        %3329 = vadd.xlane.f32.xlu0 %v3010
        %v3330 = vpop.xlane.xlu0 %3329
        %3331 = vadd.xlane.f32.xlu0 %v3012
        %v3332 = vpop.xlane.xlu0 %3331
        %3333 = vadd.xlane.f32.xlu0 %v3014
        %v3334 = vpop.xlane.xlu0 %3333
        %3335 = vadd.xlane.f32.xlu0 %v3016
        %v3336 = vpop.xlane.xlu0 %3335
        %3337 = vadd.xlane.f32.xlu0 %v3018
        %v3338 = vpop.xlane.xlu0 %3337
        %3339 = vadd.xlane.f32.xlu0 %v3020
        %v3340 = vpop.xlane.xlu0 %3339
        %3341 = vadd.xlane.f32.xlu0 %v3022
        %v3342 = vpop.xlane.xlu0 %3341
        %3343 = vadd.xlane.f32.xlu0 %v3024
        %v3344 = vpop.xlane.xlu0 %3343
        %3345 = vadd.xlane.f32.xlu0 %v3026
        %v3346 = vpop.xlane.xlu0 %3345
        %3347 = vadd.xlane.f32.xlu0 %v3028
        %v3348 = vpop.xlane.xlu0 %3347
        %3349 = vadd.xlane.f32.xlu0 %v3030
        %v3350 = vpop.xlane.xlu0 %3349
        %3351 = vadd.xlane.f32.xlu0 %v3032
        %v3352 = vpop.xlane.xlu0 %3351
        %3353 = vadd.xlane.f32.xlu0 %v3034
        %v3354 = vpop.xlane.xlu0 %3353
        %3355 = vadd.xlane.f32.xlu0 %v3036
        %v3356 = vpop.xlane.xlu0 %3355
        %3357 = vadd.xlane.f32.xlu0 %v3038
        %v3358 = vpop.xlane.xlu0 %3357
        %3359 = vadd.xlane.f32.xlu0 %v3040
        %v3360 = vpop.xlane.xlu0 %3359
        %3361 = vadd.xlane.f32.xlu0 %v3042
        %v3362 = vpop.xlane.xlu0 %3361
        %3363 = vadd.xlane.f32.xlu0 %v3044
        %v3364 = vpop.xlane.xlu0 %3363
        %3365 = vadd.xlane.f32.xlu0 %v3046
        %v3366 = vpop.xlane.xlu0 %3365
        %3367 = vadd.xlane.f32.xlu0 %v3048
        %v3368 = vpop.xlane.xlu0 %3367
        %3369 = vadd.xlane.f32.xlu0 %v3050
        %v3370 = vpop.xlane.xlu0 %3369
        %3371 = vadd.xlane.f32.xlu0 %v3052
        %v3372 = vpop.xlane.xlu0 %3371
        %3373 = vadd.xlane.f32.xlu0 %v3054
        %v3374 = vpop.xlane.xlu0 %3373
        %3375 = vadd.xlane.f32.xlu0 %v3056
        %v3376 = vpop.xlane.xlu0 %3375
        %3377 = vadd.xlane.f32.xlu0 %v3058
        %v3378 = vpop.xlane.xlu0 %3377
        %3379 = vadd.xlane.f32.xlu0 %v3060
        %v3380 = vpop.xlane.xlu0 %3379
        %3381 = vadd.xlane.f32.xlu0 %v3062
        %v3382 = vpop.xlane.xlu0 %3381
        %3383 = vadd.xlane.f32.xlu0 %v3064
        %v3384 = vpop.xlane.xlu0 %3383
        %3385 = vadd.xlane.f32.xlu0 %v3066
        %v3386 = vpop.xlane.xlu0 %3385
        %3387 = vadd.xlane.f32.xlu0 %v3068
        %v3388 = vpop.xlane.xlu0 %3387
        %3389 = vadd.xlane.f32.xlu0 %v3070
        %v3390 = vpop.xlane.xlu0 %3389
        %3391 = vadd.xlane.f32.xlu0 %v3072
        %v3392 = vpop.xlane.xlu0 %3391
        %3393 = vadd.xlane.f32.xlu0 %v3074
        %v3394 = vpop.xlane.xlu0 %3393
        %3395 = vadd.xlane.f32.xlu0 %v3076
        %v3396 = vpop.xlane.xlu0 %3395
        %3397 = vadd.xlane.f32.xlu0 %v3078
        %v3398 = vpop.xlane.xlu0 %3397
        %3399 = vadd.xlane.f32.xlu0 %v3080
        %v3400 = vpop.xlane.xlu0 %3399
        %3401 = vadd.xlane.f32.xlu0 %v3082
        %v3402 = vpop.xlane.xlu0 %3401
        %3403 = vadd.xlane.f32.xlu0 %v3084
        %v3404 = vpop.xlane.xlu0 %3403
        %3405 = vadd.xlane.f32.xlu0 %v3086
        %v3406 = vpop.xlane.xlu0 %3405
        %3407 = vadd.xlane.f32.xlu0 %v3088
        %v3408 = vpop.xlane.xlu0 %3407
        %3409 = vadd.xlane.f32.xlu0 %v3090
        %v3410 = vpop.xlane.xlu0 %3409
        %3411 = vadd.xlane.f32.xlu0 %v3092
        %v3412 = vpop.xlane.xlu0 %3411
        %3413 = vadd.xlane.f32.xlu0 %v3094
        %v3414 = vpop.xlane.xlu0 %3413
        %3415 = vadd.xlane.f32.xlu0 %v3096
        %v3416 = vpop.xlane.xlu0 %3415
        %3417 = vadd.xlane.f32.xlu0 %v3098
        %v3418 = vpop.xlane.xlu0 %3417
        %3419 = vadd.xlane.f32.xlu0 %v3100
        %v3420 = vpop.xlane.xlu0 %3419
        %3421 = vadd.xlane.f32.xlu0 %v3102
        %v3422 = vpop.xlane.xlu0 %3421
        %3423 = vadd.xlane.f32.xlu0 %v3104
        %v3424 = vpop.xlane.xlu0 %3423
        %3425 = vadd.xlane.f32.xlu0 %v3106
        %v3426 = vpop.xlane.xlu0 %3425
        %3427 = vadd.xlane.f32.xlu0 %v3108
        %v3428 = vpop.xlane.xlu0 %3427
        %3429 = vadd.xlane.f32.xlu0 %v3110
        %v3430 = vpop.xlane.xlu0 %3429
        %3431 = vadd.xlane.f32.xlu0 %v3112
        %v3432 = vpop.xlane.xlu0 %3431
        %3433 = vadd.xlane.f32.xlu0 %v3114
        %v3434 = vpop.xlane.xlu0 %3433
        %3435 = vadd.xlane.f32.xlu0 %v3116
        %v3436 = vpop.xlane.xlu0 %3435
        %3437 = vadd.xlane.f32.xlu0 %v3118
        %v3438 = vpop.xlane.xlu0 %3437
        %3439 = vadd.xlane.f32.xlu0 %v3120
        %v3440 = vpop.xlane.xlu0 %3439
        %3441 = vadd.xlane.f32.xlu0 %v3122
        %v3442 = vpop.xlane.xlu0 %3441
        %3443 = vadd.xlane.f32.xlu0 %v3124
        %v3444 = vpop.xlane.xlu0 %3443
        %3445 = vadd.xlane.f32.xlu0 %v3126
        %v3446 = vpop.xlane.xlu0 %3445
        %3447 = vadd.xlane.f32.xlu0 %v3128
        %v3448 = vpop.xlane.xlu0 %3447
        %3449 = vadd.xlane.f32.xlu0 %v3130
        %v3450 = vpop.xlane.xlu0 %3449
        %3451 = vadd.xlane.f32.xlu0 %v3132
        %v3452 = vpop.xlane.xlu0 %3451
        %3453 = vadd.xlane.f32.xlu0 %v3134
        %v3454 = vpop.xlane.xlu0 %3453
        %3455 = vadd.xlane.f32.xlu0 %v3136
        %v3456 = vpop.xlane.xlu0 %3455
        %3457 = vadd.xlane.f32.xlu0 %v3138
        %v3458 = vpop.xlane.xlu0 %3457
        %3459 = vadd.xlane.f32.xlu0 %v3140
        %v3460 = vpop.xlane.xlu0 %3459
        %3461 = vadd.xlane.f32.xlu0 %v3142
        %v3462 = vpop.xlane.xlu0 %3461
        %3463 = vadd.xlane.f32.xlu0 %v3144
        %v3464 = vpop.xlane.xlu0 %3463
        %3465 = vadd.xlane.f32.xlu0 %v3146
        %v3466 = vpop.xlane.xlu0 %3465
        %3467 = vadd.xlane.f32.xlu0 %v3148
        %v3468 = vpop.xlane.xlu0 %3467
        %3469 = vadd.xlane.f32.xlu0 %v3150
        %v3470 = vpop.xlane.xlu0 %3469
        %3471 = vadd.xlane.f32.xlu0 %v3152
        %v3472 = vpop.xlane.xlu0 %3471
        %3473 = vadd.xlane.f32.xlu0 %v3154
        %v3474 = vpop.xlane.xlu0 %3473
        %3475 = vadd.xlane.f32.xlu0 %v3156
        %v3476 = vpop.xlane.xlu0 %3475
        %3477 = vadd.xlane.f32.xlu0 %v3158
        %v3478 = vpop.xlane.xlu0 %3477
        %3479 = vadd.xlane.f32.xlu0 %v3160
        %v3480 = vpop.xlane.xlu0 %3479
        %3481 = vadd.xlane.f32.xlu0 %v3162
        %v3482 = vpop.xlane.xlu0 %3481
        %3483 = vadd.xlane.f32.xlu0 %v3164
        %v3484 = vpop.xlane.xlu0 %3483
        %3485 = vadd.xlane.f32.xlu0 %v3166
        %v3486 = vpop.xlane.xlu0 %3485
        %3487 = vadd.xlane.f32.xlu0 %v3168
        %v3488 = vpop.xlane.xlu0 %3487
        %3489 = vadd.xlane.f32.xlu0 %v3170
        %v3490 = vpop.xlane.xlu0 %3489
        %3491 = vadd.xlane.f32.xlu0 %v3172
        %v3492 = vpop.xlane.xlu0 %3491
        %3493 = vadd.xlane.f32.xlu0 %v3174
        %v3494 = vpop.xlane.xlu0 %3493
        %3495 = vadd.xlane.f32.xlu0 %v3176
        %v3496 = vpop.xlane.xlu0 %3495
        %3497 = vadd.xlane.f32.xlu0 %v3178
        %v3498 = vpop.xlane.xlu0 %3497
        %3499 = vadd.xlane.f32.xlu0 %v3180
        %v3500 = vpop.xlane.xlu0 %3499
        %v3501 = vlog2.pop %v3182
        %v3502 = vmul.f32 %v3501, 0.6931472
        %v3503 = vlog2.pop %v3184
        %v3504 = vmul.f32 %v3503, 0.6931472
        %v3505 = vlog2.pop %v3186
        %v3506 = vmul.f32 %v3505, 0.6931472
        %v3507 = vlog2.pop %v3188
        %v3508 = vmul.f32 %v3507, 0.6931472
        %v3509 = vlog2.pop %v3190
        %v3510 = vmul.f32 %v3509, 0.6931472
        %v3511 = vlog2.pop %v3192
        %v3512 = vmul.f32 %v3511, 0.6931472
        %v3513 = vlog2.pop %v3194
        %v3514 = vmul.f32 %v3513, 0.6931472
        %v3515 = vlog2.pop %v3196
        %v3516 = vmul.f32 %v3515, 0.6931472
        %v3517 = vlog2.pop %v3198
        %v3518 = vmul.f32 %v3517, 0.6931472
        %v3519 = vlog2.pop %v3200
        %v3520 = vmul.f32 %v3519, 0.6931472
        %v3521 = vlog2.pop %v3202
        %v3522 = vmul.f32 %v3521, 0.6931472
        %v3523 = vlog2.pop %v3204
        %v3524 = vmul.f32 %v3523, 0.6931472
        %v3525 = vlog2.pop %v3206
        %v3526 = vmul.f32 %v3525, 0.6931472
        %v3527 = vlog2.pop %v3208
        %v3528 = vmul.f32 %v3527, 0.6931472
        %v3529 = vlog2.pop %v3210
        %v3530 = vmul.f32 %v3529, 0.6931472
        %v3531 = vlog2.pop %v3212
        %v3532 = vmul.f32 %v3531, 0.6931472
        %v3533 = vlog2.pop %v3214
        %v3534 = vmul.f32 %v3533, 0.6931472
        %v3535 = vlog2.pop %v3216
        %v3536 = vmul.f32 %v3535, 0.6931472
        %v3537 = vlog2.pop %v3218
        %v3538 = vmul.f32 %v3537, 0.6931472
        %v3539 = vlog2.pop %v3220
        %v3540 = vmul.f32 %v3539, 0.6931472
        %v3541 = vlog2.pop %v3222
        %v3542 = vmul.f32 %v3541, 0.6931472
        %v3543 = vlog2.pop %v3224
        %v3544 = vmul.f32 %v3543, 0.6931472
        %v3545 = vlog2.pop %v3226
        %v3546 = vmul.f32 %v3545, 0.6931472
        %v3547 = vlog2.pop %v3228
        %v3548 = vmul.f32 %v3547, 0.6931472
        %v3549 = vlog2.pop %v3230
        %v3550 = vmul.f32 %v3549, 0.6931472
        %v3551 = vlog2.pop %v3232
        %v3552 = vmul.f32 %v3551, 0.6931472
        %v3553 = vlog2.pop %v3234
        %v3554 = vmul.f32 %v3553, 0.6931472
        %v3555 = vlog2.pop %v3236
        %v3556 = vmul.f32 %v3555, 0.6931472
        %v3557 = vlog2.pop %v3238
        %v3558 = vmul.f32 %v3557, 0.6931472
        %v3559 = vlog2.pop %v3240
        %v3560 = vmul.f32 %v3559, 0.6931472
        %v3561 = vlog2.pop %v3242
        %v3562 = vmul.f32 %v3561, 0.6931472
        %v3563 = vlog2.pop %v3244
        %v3564 = vmul.f32 %v3563, 0.6931472
        %v3565 = vlog2.pop %v3246
        %v3566 = vmul.f32 %v3565, 0.6931472
        %v3567 = vlog2.pop %v3248
        %v3568 = vmul.f32 %v3567, 0.6931472
        %v3569 = vlog2.pop %v3250
        %v3570 = vmul.f32 %v3569, 0.6931472
        %v3571 = vlog2.pop %v3252
        %v3572 = vmul.f32 %v3571, 0.6931472
        %v3573 = vlog2.pop %v3254
        %v3574 = vmul.f32 %v3573, 0.6931472
        %v3575 = vlog2.pop %v3256
        %v3576 = vmul.f32 %v3575, 0.6931472
        %v3577 = vlog2.pop %v3258
        %v3578 = vmul.f32 %v3577, 0.6931472
        %v3579 = vlog2.pop %v3260
        %v3580 = vmul.f32 %v3579, 0.6931472
        %v3581 = vlog2.pop %v3262
        %v3582 = vmul.f32 %v3581, 0.6931472
        %v3583 = vlog2.pop %v3264
        %v3584 = vmul.f32 %v3583, 0.6931472
        %v3585 = vlog2.pop %v3266
        %v3586 = vmul.f32 %v3585, 0.6931472
        %v3587 = vlog2.pop %v3268
        %v3588 = vmul.f32 %v3587, 0.6931472
        %v3589 = vlog2.pop %v3270
        %v3590 = vmul.f32 %v3589, 0.6931472
        %v3591 = vlog2.pop %v3272
        %v3592 = vmul.f32 %v3591, 0.6931472
        %v3593 = vlog2.pop %v3274
        %v3594 = vmul.f32 %v3593, 0.6931472
        %v3595 = vlog2.pop %v3276
        %v3596 = vmul.f32 %v3595, 0.6931472
        %v3597 = vlog2.pop %v3278
        %v3598 = vmul.f32 %v3597, 0.6931472
        %v3599 = vlog2.pop %v3280
        %v3600 = vmul.f32 %v3599, 0.6931472
        %v3601 = vlog2.pop %v3282
        %v3602 = vmul.f32 %v3601, 0.6931472
        %v3603 = vlog2.pop %v3284
        %v3604 = vmul.f32 %v3603, 0.6931472
        %v3605 = vlog2.pop %v3286
        %v3606 = vmul.f32 %v3605, 0.6931472
        %v3607 = vlog2.pop %v3288
        %v3608 = vmul.f32 %v3607, 0.6931472
        %v3609 = vlog2.pop %v3290
        %v3610 = vmul.f32 %v3609, 0.6931472
        %v3611 = vlog2.pop %v3292
        %v3612 = vmul.f32 %v3611, 0.6931472
        %v3613 = vlog2.pop %v3294
        %v3614 = vmul.f32 %v3613, 0.6931472
        %v3615 = vlog2.pop %v3296
        %v3616 = vmul.f32 %v3615, 0.6931472
        %v3617 = vlog2.pop %v3298
        %v3618 = vmul.f32 %v3617, 0.6931472
        %v3619 = vlog2.pop %v3300
        %v3620 = vmul.f32 %v3619, 0.6931472
        %v3621 = vlog2.pop %v3302
        %v3622 = vmul.f32 %v3621, 0.6931472
        %v3623 = vlog2.pop %v3304
        %v3624 = vmul.f32 %v3623, 0.6931472
        %v3625 = vlog2.pop %v3306
        %v3626 = vmul.f32 %v3625, 0.6931472
        %v3627 = vlog2.pop %v3308
        %v3628 = vmul.f32 %v3627, 0.6931472
        %v3629 = vlog2.pop %v3310
        %v3630 = vmul.f32 %v3629, 0.6931472
        %v3631 = vlog2.pop %v3312
        %v3632 = vmul.f32 %v3631, 0.6931472
        %v3633 = vlog2.pop %v3314
        %v3634 = vmul.f32 %v3633, 0.6931472
        %v3635 = vlog2.pop %v3316
        %v3636 = vmul.f32 %v3635, 0.6931472
        %v3637 = vlog2.pop %v3318
        %v3638 = vmul.f32 %v3637, 0.6931472
        %v3639 = vlog2.pop %v3320
        %v3640 = vmul.f32 %v3639, 0.6931472
        %v3641 = vlog2.pop %v3322
        %v3642 = vmul.f32 %v3641, 0.6931472
        %v3643 = vlog2.pop %v3324
        %v3644 = vmul.f32 %v3643, 0.6931472
        %v3645 = vlog2.pop %v3326
        %v3646 = vmul.f32 %v3645, 0.6931472
        %v3647 = vlog2.pop %v3328
        %v3648 = vmul.f32 %v3647, 0.6931472
        %v3649 = vlog2.pop %v3330
        %v3650 = vmul.f32 %v3649, 0.6931472
        %v3651 = vlog2.pop %v3332
        %v3652 = vmul.f32 %v3651, 0.6931472
        %v3653 = vlog2.pop %v3334
        %v3654 = vmul.f32 %v3653, 0.6931472
        %v3655 = vlog2.pop %v3336
        %v3656 = vmul.f32 %v3655, 0.6931472
        %v3657 = vlog2.pop %v3338
        %v3658 = vmul.f32 %v3657, 0.6931472
        %v3659 = vlog2.pop %v3340
        %v3660 = vmul.f32 %v3659, 0.6931472
        %v3661 = vlog2.pop %v3342
        %v3662 = vmul.f32 %v3661, 0.6931472
        %v3663 = vlog2.pop %v3344
        %v3664 = vmul.f32 %v3663, 0.6931472
        %v3665 = vlog2.pop %v3346
        %v3666 = vmul.f32 %v3665, 0.6931472
        %v3667 = vlog2.pop %v3348
        %v3668 = vmul.f32 %v3667, 0.6931472
        %v3669 = vlog2.pop %v3350
        %v3670 = vmul.f32 %v3669, 0.6931472
        %v3671 = vlog2.pop %v3352
        %v3672 = vmul.f32 %v3671, 0.6931472
        %v3673 = vlog2.pop %v3354
        %v3674 = vmul.f32 %v3673, 0.6931472
        %v3675 = vlog2.pop %v3356
        %v3676 = vmul.f32 %v3675, 0.6931472
        %v3677 = vlog2.pop %v3358
        %v3678 = vmul.f32 %v3677, 0.6931472
        %v3679 = vlog2.pop %v3360
        %v3680 = vmul.f32 %v3679, 0.6931472
        %v3681 = vlog2.pop %v3362
        %v3682 = vmul.f32 %v3681, 0.6931472
        %v3683 = vlog2.pop %v3364
        %v3684 = vmul.f32 %v3683, 0.6931472
        %v3685 = vlog2.pop %v3366
        %v3686 = vmul.f32 %v3685, 0.6931472
        %v3687 = vlog2.pop %v3368
        %v3688 = vmul.f32 %v3687, 0.6931472
        %v3689 = vlog2.pop %v3370
        %v3690 = vmul.f32 %v3689, 0.6931472
        %v3691 = vlog2.pop %v3372
        %v3692 = vmul.f32 %v3691, 0.6931472
        %v3693 = vlog2.pop %v3374
        %v3694 = vmul.f32 %v3693, 0.6931472
        %v3695 = vlog2.pop %v3376
        %v3696 = vmul.f32 %v3695, 0.6931472
        %v3697 = vlog2.pop %v3378
        %v3698 = vmul.f32 %v3697, 0.6931472
        %v3699 = vlog2.pop %v3380
        %v3700 = vmul.f32 %v3699, 0.6931472
        %v3701 = vlog2.pop %v3382
        %v3702 = vmul.f32 %v3701, 0.6931472
        %v3703 = vlog2.pop %v3384
        %v3704 = vmul.f32 %v3703, 0.6931472
        %v3705 = vlog2.pop %v3386
        %v3706 = vmul.f32 %v3705, 0.6931472
        %v3707 = vlog2.pop %v3388
        %v3708 = vmul.f32 %v3707, 0.6931472
        %v3709 = vlog2.pop %v3390
        %v3710 = vmul.f32 %v3709, 0.6931472
        %v3711 = vlog2.pop %v3392
        %v3712 = vmul.f32 %v3711, 0.6931472
        %v3713 = vlog2.pop %v3394
        %v3714 = vmul.f32 %v3713, 0.6931472
        %v3715 = vlog2.pop %v3396
        %v3716 = vmul.f32 %v3715, 0.6931472
        %v3717 = vlog2.pop %v3398
        %v3718 = vmul.f32 %v3717, 0.6931472
        %v3719 = vlog2.pop %v3400
        %v3720 = vmul.f32 %v3719, 0.6931472
        %v3721 = vlog2.pop %v3402
        %v3722 = vmul.f32 %v3721, 0.6931472
        %v3723 = vlog2.pop %v3404
        %v3724 = vmul.f32 %v3723, 0.6931472
        %v3725 = vlog2.pop %v3406
        %v3726 = vmul.f32 %v3725, 0.6931472
        %v3727 = vlog2.pop %v3408
        %v3728 = vmul.f32 %v3727, 0.6931472
        %v3729 = vlog2.pop %v3410
        %v3730 = vmul.f32 %v3729, 0.6931472
        %v3731 = vlog2.pop %v3412
        %v3732 = vmul.f32 %v3731, 0.6931472
        %v3733 = vlog2.pop %v3414
        %v3734 = vmul.f32 %v3733, 0.6931472
        %v3735 = vlog2.pop %v3416
        %v3736 = vmul.f32 %v3735, 0.6931472
        %v3737 = vlog2.pop %v3418
        %v3738 = vmul.f32 %v3737, 0.6931472
        %v3739 = vlog2.pop %v3420
        %v3740 = vmul.f32 %v3739, 0.6931472
        %v3741 = vlog2.pop %v3422
        %v3742 = vmul.f32 %v3741, 0.6931472
        %v3743 = vlog2.pop %v3424
        %v3744 = vmul.f32 %v3743, 0.6931472
        %v3745 = vlog2.pop %v3426
        %v3746 = vmul.f32 %v3745, 0.6931472
        %v3747 = vlog2.pop %v3428
        %v3748 = vmul.f32 %v3747, 0.6931472
        %v3749 = vlog2.pop %v3430
        %v3750 = vmul.f32 %v3749, 0.6931472
        %v3751 = vlog2.pop %v3432
        %v3752 = vmul.f32 %v3751, 0.6931472
        %v3753 = vlog2.pop %v3434
        %v3754 = vmul.f32 %v3753, 0.6931472
        %v3755 = vlog2.pop %v3436
        %v3756 = vmul.f32 %v3755, 0.6931472
        %v3757 = vlog2.pop %v3438
        %v3758 = vmul.f32 %v3757, 0.6931472
        %v3759 = vlog2.pop %v3440
        %v3760 = vmul.f32 %v3759, 0.6931472
        %v3761 = vlog2.pop %v3442
        %v3762 = vmul.f32 %v3761, 0.6931472
        %v3763 = vlog2.pop %v3444
        %v3764 = vmul.f32 %v3763, 0.6931472
        %v3765 = vlog2.pop %v3446
        %v3766 = vmul.f32 %v3765, 0.6931472
        %v3767 = vlog2.pop %v3448
        %v3768 = vmul.f32 %v3767, 0.6931472
        %v3769 = vlog2.pop %v3450
        %v3770 = vmul.f32 %v3769, 0.6931472
        %v3771 = vlog2.pop %v3452
        %v3772 = vmul.f32 %v3771, 0.6931472
        %v3773 = vlog2.pop %v3454
        %v3774 = vmul.f32 %v3773, 0.6931472
        %v3775 = vlog2.pop %v3456
        %v3776 = vmul.f32 %v3775, 0.6931472
        %v3777 = vlog2.pop %v3458
        %v3778 = vmul.f32 %v3777, 0.6931472
        %v3779 = vlog2.pop %v3460
        %v3780 = vmul.f32 %v3779, 0.6931472
        %v3781 = vlog2.pop %v3462
        %v3782 = vmul.f32 %v3781, 0.6931472
        %v3783 = vlog2.pop %v3464
        %v3784 = vmul.f32 %v3783, 0.6931472
        %v3785 = vlog2.pop %v3466
        %v3786 = vmul.f32 %v3785, 0.6931472
        %v3787 = vlog2.pop %v3468
        %v3788 = vmul.f32 %v3787, 0.6931472
        %v3789 = vlog2.pop %v3470
        %v3790 = vmul.f32 %v3789, 0.6931472
        %v3791 = vlog2.pop %v3472
        %v3792 = vmul.f32 %v3791, 0.6931472
        %v3793 = vlog2.pop %v3474
        %v3794 = vmul.f32 %v3793, 0.6931472
        %v3795 = vlog2.pop %v3476
        %v3796 = vmul.f32 %v3795, 0.6931472
        %v3797 = vlog2.pop %v3478
        %v3798 = vmul.f32 %v3797, 0.6931472
        %v3799 = vlog2.pop %v3480
        %v3800 = vmul.f32 %v3799, 0.6931472
        %v3801 = vlog2.pop %v3482
        %v3802 = vmul.f32 %v3801, 0.6931472
        %v3803 = vlog2.pop %v3484
        %v3804 = vmul.f32 %v3803, 0.6931472
        %v3805 = vlog2.pop %v3486
        %v3806 = vmul.f32 %v3805, 0.6931472
        %v3807 = vlog2.pop %v3488
        %v3808 = vmul.f32 %v3807, 0.6931472
        %v3809 = vlog2.pop %v3490
        %v3810 = vmul.f32 %v3809, 0.6931472
        %v3811 = vlog2.pop %v3492
        %v3812 = vmul.f32 %v3811, 0.6931472
        %v3813 = vlog2.pop %v3494
        %v3814 = vmul.f32 %v3813, 0.6931472
        %v3815 = vlog2.pop %v3496
        %v3816 = vmul.f32 %v3815, 0.6931472
        %v3817 = vlog2.pop %v3498
        %v3818 = vmul.f32 %v3817, 0.6931472
        %v3819 = vlog2.pop %v3500
        %v3820 = vmul.f32 %v3819, 0.6931472
        %v3821 = vsub.f32 %v2701, %v3502
        %v3822 = vsub.f32 %v2702, %v3504
        %v3823 = vsub.f32 %v2703, %v3506
        %v3824 = vsub.f32 %v2704, %v3508
        %v3825 = vsub.f32 %v2705, %v3510
        %v3826 = vsub.f32 %v2706, %v3512
        %v3827 = vsub.f32 %v2707, %v3514
        %v3828 = vsub.f32 %v2708, %v3516
        %v3829 = vsub.f32 %v2709, %v3518
        %v3830 = vsub.f32 %v2710, %v3520
        %v3831 = vsub.f32 %v2711, %v3522
        %v3832 = vsub.f32 %v2712, %v3524
        %v3833 = vsub.f32 %v2713, %v3526
        %v3834 = vsub.f32 %v2714, %v3528
        %v3835 = vsub.f32 %v2715, %v3530
        %v3836 = vsub.f32 %v2716, %v3532
        %v3837 = vsub.f32 %v2717, %v3534
        %v3838 = vsub.f32 %v2718, %v3536
        %v3839 = vsub.f32 %v2719, %v3538
        %v3840 = vsub.f32 %v2720, %v3540
        %v3841 = vsub.f32 %v2721, %v3542
        %v3842 = vsub.f32 %v2722, %v3544
        %v3843 = vsub.f32 %v2723, %v3546
        %v3844 = vsub.f32 %v2724, %v3548
        %v3845 = vsub.f32 %v2725, %v3550
        %v3846 = vsub.f32 %v2726, %v3552
        %v3847 = vsub.f32 %v2727, %v3554
        %v3848 = vsub.f32 %v2728, %v3556
        %v3849 = vsub.f32 %v2729, %v3558
        %v3850 = vsub.f32 %v2730, %v3560
        %v3851 = vsub.f32 %v2731, %v3562
        %v3852 = vsub.f32 %v2732, %v3564
        %v3853 = vsub.f32 %v2733, %v3566
        %v3854 = vsub.f32 %v2734, %v3568
        %v3855 = vsub.f32 %v2735, %v3570
        %v3856 = vsub.f32 %v2736, %v3572
        %v3857 = vsub.f32 %v2737, %v3574
        %v3858 = vsub.f32 %v2738, %v3576
        %v3859 = vsub.f32 %v2739, %v3578
        %v3860 = vsub.f32 %v2740, %v3580
        %v3861 = vsub.f32 %v2741, %v3582
        %v3862 = vsub.f32 %v2742, %v3584
        %v3863 = vsub.f32 %v2743, %v3586
        %v3864 = vsub.f32 %v2744, %v3588
        %v3865 = vsub.f32 %v2745, %v3590
        %v3866 = vsub.f32 %v2746, %v3592
        %v3867 = vsub.f32 %v2747, %v3594
        %v3868 = vsub.f32 %v2748, %v3596
        %v3869 = vsub.f32 %v2749, %v3598
        %v3870 = vsub.f32 %v2750, %v3600
        %v3871 = vsub.f32 %v2751, %v3602
        %v3872 = vsub.f32 %v2752, %v3604
        %v3873 = vsub.f32 %v2753, %v3606
        %v3874 = vsub.f32 %v2754, %v3608
        %v3875 = vsub.f32 %v2755, %v3610
        %v3876 = vsub.f32 %v2756, %v3612
        %v3877 = vsub.f32 %v2757, %v3614
        %v3878 = vsub.f32 %v2758, %v3616
        %v3879 = vsub.f32 %v2759, %v3618
        %v3880 = vsub.f32 %v2760, %v3620
        %v3881 = vsub.f32 %v2761, %v3622
        %v3882 = vsub.f32 %v2762, %v3624
        %v3883 = vsub.f32 %v2763, %v3626
        %v3884 = vsub.f32 %v2764, %v3628
        %v3885 = vsub.f32 %v2765, %v3630
        %v3886 = vsub.f32 %v2766, %v3632
        %v3887 = vsub.f32 %v2767, %v3634
        %v3888 = vsub.f32 %v2768, %v3636
        %v3889 = vsub.f32 %v2769, %v3638
        %v3890 = vsub.f32 %v2770, %v3640
        %v3891 = vsub.f32 %v2771, %v3642
        %v3892 = vsub.f32 %v2772, %v3644
        %v3893 = vsub.f32 %v2773, %v3646
        %v3894 = vsub.f32 %v2774, %v3648
        %v3895 = vsub.f32 %v2775, %v3650
        %v3896 = vsub.f32 %v2776, %v3652
        %v3897 = vsub.f32 %v2777, %v3654
        %v3898 = vsub.f32 %v2778, %v3656
        %v3899 = vsub.f32 %v2779, %v3658
        %v3900 = vsub.f32 %v2780, %v3660
        %v3901 = vsub.f32 %v2781, %v3662
        %v3902 = vsub.f32 %v2782, %v3664
        %v3903 = vsub.f32 %v2783, %v3666
        %v3904 = vsub.f32 %v2784, %v3668
        %v3905 = vsub.f32 %v2785, %v3670
        %v3906 = vsub.f32 %v2786, %v3672
        %v3907 = vsub.f32 %v2787, %v3674
        %v3908 = vsub.f32 %v2788, %v3676
        %v3909 = vsub.f32 %v2789, %v3678
        %v3910 = vsub.f32 %v2790, %v3680
        %v3911 = vsub.f32 %v2791, %v3682
        %v3912 = vsub.f32 %v2792, %v3684
        %v3913 = vsub.f32 %v2793, %v3686
        %v3914 = vsub.f32 %v2794, %v3688
        %v3915 = vsub.f32 %v2795, %v3690
        %v3916 = vsub.f32 %v2796, %v3692
        %v3917 = vsub.f32 %v2797, %v3694
        %v3918 = vsub.f32 %v2798, %v3696
        %v3919 = vsub.f32 %v2799, %v3698
        %v3920 = vsub.f32 %v2800, %v3700
        %v3921 = vsub.f32 %v2801, %v3702
        %v3922 = vsub.f32 %v2802, %v3704
        %v3923 = vsub.f32 %v2803, %v3706
        %v3924 = vsub.f32 %v2804, %v3708
        %v3925 = vsub.f32 %v2805, %v3710
        %v3926 = vsub.f32 %v2806, %v3712
        %v3927 = vsub.f32 %v2807, %v3714
        %v3928 = vsub.f32 %v2808, %v3716
        %v3929 = vsub.f32 %v2809, %v3718
        %v3930 = vsub.f32 %v2810, %v3720
        %v3931 = vsub.f32 %v2811, %v3722
        %v3932 = vsub.f32 %v2812, %v3724
        %v3933 = vsub.f32 %v2813, %v3726
        %v3934 = vsub.f32 %v2814, %v3728
        %v3935 = vsub.f32 %v2815, %v3730
        %v3936 = vsub.f32 %v2816, %v3732
        %v3937 = vsub.f32 %v2817, %v3734
        %v3938 = vsub.f32 %v2818, %v3736
        %v3939 = vsub.f32 %v2819, %v3738
        %v3940 = vsub.f32 %v2820, %v3740
        %v3941 = vsub.f32 %v2821, %v3742
        %v3942 = vsub.f32 %v2822, %v3744
        %v3943 = vsub.f32 %v2823, %v3746
        %v3944 = vsub.f32 %v2824, %v3748
        %v3945 = vsub.f32 %v2825, %v3750
        %v3946 = vsub.f32 %v2826, %v3752
        %v3947 = vsub.f32 %v2827, %v3754
        %v3948 = vsub.f32 %v2828, %v3756
        %v3949 = vsub.f32 %v2829, %v3758
        %v3950 = vsub.f32 %v2830, %v3760
        %v3951 = vsub.f32 %v2831, %v3762
        %v3952 = vsub.f32 %v2832, %v3764
        %v3953 = vsub.f32 %v2833, %v3766
        %v3954 = vsub.f32 %v2834, %v3768
        %v3955 = vsub.f32 %v2835, %v3770
        %v3956 = vsub.f32 %v2836, %v3772
        %v3957 = vsub.f32 %v2837, %v3774
        %v3958 = vsub.f32 %v2838, %v3776
        %v3959 = vsub.f32 %v2839, %v3778
        %v3960 = vsub.f32 %v2840, %v3780
        %v3961 = vsub.f32 %v2841, %v3782
        %v3962 = vsub.f32 %v2842, %v3784
        %v3963 = vsub.f32 %v2843, %v3786
        %v3964 = vsub.f32 %v2844, %v3788
        %v3965 = vsub.f32 %v2845, %v3790
        %v3966 = vsub.f32 %v2846, %v3792
        %v3967 = vsub.f32 %v2847, %v3794
        %v3968 = vsub.f32 %v2848, %v3796
        %v3969 = vsub.f32 %v2849, %v3798
        %v3970 = vsub.f32 %v2850, %v3800
        %v3971 = vsub.f32 %v2851, %v3802
        %v3972 = vsub.f32 %v2852, %v3804
        %v3973 = vsub.f32 %v2853, %v3806
        %v3974 = vsub.f32 %v2854, %v3808
        %v3975 = vsub.f32 %v2855, %v3810
        %v3976 = vsub.f32 %v2856, %v3812
        %v3977 = vsub.f32 %v2857, %v3814
        %v3978 = vsub.f32 %v2858, %v3816
        %v3979 = vsub.f32 %v2859, %v3818
        %v3980 = vsub.f32 %v2860, %v3820
        %v3981 = vmax.f32 %v3821, %v3837
        %v3982 = vmax.f32 %v3981, %v3853
        %v3983 = vmax.f32 %v3982, %v3869
        %v3984 = vmax.f32 %v3983, %v3885
        %v3985 = vmax.f32 %v3984, %v3901
        %v3986 = vmax.f32 %v3985, %v3917
        %v3987 = vmax.f32 %v3986, %v3933
        %v3988 = vmax.f32 %v3987, %v3949
        %v3989 = vmax.f32 %v3988, %v3965
        %v3990 = vmax.f32 %v3822, %v3838
        %v3991 = vmax.f32 %v3990, %v3854
        %v3992 = vmax.f32 %v3991, %v3870
        %v3993 = vmax.f32 %v3992, %v3886
        %v3994 = vmax.f32 %v3993, %v3902
        %v3995 = vmax.f32 %v3994, %v3918
        %v3996 = vmax.f32 %v3995, %v3934
        %v3997 = vmax.f32 %v3996, %v3950
        %v3998 = vmax.f32 %v3997, %v3966
        %v3999 = vmax.f32 %v3823, %v3839
        %v4000 = vmax.f32 %v3999, %v3855
        %v4001 = vmax.f32 %v4000, %v3871
        %v4002 = vmax.f32 %v4001, %v3887
        %v4003 = vmax.f32 %v4002, %v3903
        %v4004 = vmax.f32 %v4003, %v3919
        %v4005 = vmax.f32 %v4004, %v3935
        %v4006 = vmax.f32 %v4005, %v3951
        %v4007 = vmax.f32 %v4006, %v3967
        %v4008 = vmax.f32 %v3824, %v3840
        %v4009 = vmax.f32 %v4008, %v3856
        %v4010 = vmax.f32 %v4009, %v3872
        %v4011 = vmax.f32 %v4010, %v3888
        %v4012 = vmax.f32 %v4011, %v3904
        %v4013 = vmax.f32 %v4012, %v3920
        %v4014 = vmax.f32 %v4013, %v3936
        %v4015 = vmax.f32 %v4014, %v3952
        %v4016 = vmax.f32 %v4015, %v3968
        %v4017 = vmax.f32 %v3825, %v3841
        %v4018 = vmax.f32 %v4017, %v3857
        %v4019 = vmax.f32 %v4018, %v3873
        %v4020 = vmax.f32 %v4019, %v3889
        %v4021 = vmax.f32 %v4020, %v3905
        %v4022 = vmax.f32 %v4021, %v3921
        %v4023 = vmax.f32 %v4022, %v3937
        %v4024 = vmax.f32 %v4023, %v3953
        %v4025 = vmax.f32 %v4024, %v3969
        %v4026 = vmax.f32 %v3826, %v3842
        %v4027 = vmax.f32 %v4026, %v3858
        %v4028 = vmax.f32 %v4027, %v3874
        %v4029 = vmax.f32 %v4028, %v3890
        %v4030 = vmax.f32 %v4029, %v3906
        %v4031 = vmax.f32 %v4030, %v3922
        %v4032 = vmax.f32 %v4031, %v3938
        %v4033 = vmax.f32 %v4032, %v3954
        %v4034 = vmax.f32 %v4033, %v3970
        %v4035 = vmax.f32 %v3827, %v3843
        %v4036 = vmax.f32 %v4035, %v3859
        %v4037 = vmax.f32 %v4036, %v3875
        %v4038 = vmax.f32 %v4037, %v3891
        %v4039 = vmax.f32 %v4038, %v3907
        %v4040 = vmax.f32 %v4039, %v3923
        %v4041 = vmax.f32 %v4040, %v3939
        %v4042 = vmax.f32 %v4041, %v3955
        %v4043 = vmax.f32 %v4042, %v3971
        %v4044 = vmax.f32 %v3828, %v3844
        %v4045 = vmax.f32 %v4044, %v3860
        %v4046 = vmax.f32 %v4045, %v3876
        %v4047 = vmax.f32 %v4046, %v3892
        %v4048 = vmax.f32 %v4047, %v3908
        %v4049 = vmax.f32 %v4048, %v3924
        %v4050 = vmax.f32 %v4049, %v3940
        %v4051 = vmax.f32 %v4050, %v3956
        %v4052 = vmax.f32 %v4051, %v3972
        %v4053 = vmax.f32 %v3829, %v3845
        %v4054 = vmax.f32 %v4053, %v3861
        %v4055 = vmax.f32 %v4054, %v3877
        %v4056 = vmax.f32 %v4055, %v3893
        %v4057 = vmax.f32 %v4056, %v3909
        %v4058 = vmax.f32 %v4057, %v3925
        %v4059 = vmax.f32 %v4058, %v3941
        %v4060 = vmax.f32 %v4059, %v3957
        %v4061 = vmax.f32 %v4060, %v3973
        %v4062 = vmax.f32 %v3830, %v3846
        %v4063 = vmax.f32 %v4062, %v3862
        %v4064 = vmax.f32 %v4063, %v3878
        %v4065 = vmax.f32 %v4064, %v3894
        %v4066 = vmax.f32 %v4065, %v3910
        %v4067 = vmax.f32 %v4066, %v3926
        %v4068 = vmax.f32 %v4067, %v3942
        %v4069 = vmax.f32 %v4068, %v3958
        %v4070 = vmax.f32 %v4069, %v3974
        %v4071 = vmax.f32 %v3831, %v3847
        %v4072 = vmax.f32 %v4071, %v3863
        %v4073 = vmax.f32 %v4072, %v3879
        %v4074 = vmax.f32 %v4073, %v3895
        %v4075 = vmax.f32 %v4074, %v3911
        %v4076 = vmax.f32 %v4075, %v3927
        %v4077 = vmax.f32 %v4076, %v3943
        %v4078 = vmax.f32 %v4077, %v3959
        %v4079 = vmax.f32 %v4078, %v3975
        %v4080 = vmax.f32 %v3832, %v3848
        %v4081 = vmax.f32 %v4080, %v3864
        %v4082 = vmax.f32 %v4081, %v3880
        %v4083 = vmax.f32 %v4082, %v3896
        %v4084 = vmax.f32 %v4083, %v3912
        %v4085 = vmax.f32 %v4084, %v3928
        %v4086 = vmax.f32 %v4085, %v3944
        %v4087 = vmax.f32 %v4086, %v3960
        %v4088 = vmax.f32 %v4087, %v3976
        %v4089 = vmax.f32 %v3833, %v3849
        %v4090 = vmax.f32 %v4089, %v3865
        %v4091 = vmax.f32 %v4090, %v3881
        %v4092 = vmax.f32 %v4091, %v3897
        %v4093 = vmax.f32 %v4092, %v3913
        %v4094 = vmax.f32 %v4093, %v3929
        %v4095 = vmax.f32 %v4094, %v3945
        %v4096 = vmax.f32 %v4095, %v3961
        %v4097 = vmax.f32 %v4096, %v3977
        %v4098 = vmax.f32 %v3834, %v3850
        %v4099 = vmax.f32 %v4098, %v3866
        %v4100 = vmax.f32 %v4099, %v3882
        %v4101 = vmax.f32 %v4100, %v3898
        %v4102 = vmax.f32 %v4101, %v3914
        %v4103 = vmax.f32 %v4102, %v3930
        %v4104 = vmax.f32 %v4103, %v3946
        %v4105 = vmax.f32 %v4104, %v3962
        %v4106 = vmax.f32 %v4105, %v3978
        %v4107 = vmax.f32 %v3835, %v3851
        %v4108 = vmax.f32 %v4107, %v3867
        %v4109 = vmax.f32 %v4108, %v3883
        %v4110 = vmax.f32 %v4109, %v3899
        %v4111 = vmax.f32 %v4110, %v3915
        %v4112 = vmax.f32 %v4111, %v3931
        %v4113 = vmax.f32 %v4112, %v3947
        %v4114 = vmax.f32 %v4113, %v3963
        %v4115 = vmax.f32 %v4114, %v3979
        %v4116 = vmax.f32 %v3836, %v3852
        %v4117 = vmax.f32 %v4116, %v3868
        %v4118 = vmax.f32 %v4117, %v3884
        %v4119 = vmax.f32 %v4118, %v3900
        %v4120 = vmax.f32 %v4119, %v3916
        %v4121 = vmax.f32 %v4120, %v3932
        %v4122 = vmax.f32 %v4121, %v3948
        %v4123 = vmax.f32 %v4122, %v3964
        %v4124 = vmax.f32 %v4123, %v3980
        %v4125 = vlaneseq
        %v4126 = vand.u32 %v4125, 127
        %vm4127 = vcmp.lt.s32.totalorder %v4126, 64
        %v4128 = vsel %vm4127, %v3989, 0.0
        %v4129 = vsel %vm4127, %v3998, 0.0
        %v4130 = vsel %vm4127, %v4007, 0.0
        %v4131 = vsel %vm4127, %v4016, 0.0
        %v4132 = vsel %vm4127, %v4025, 0.0
        %v4133 = vsel %vm4127, %v4034, 0.0
        %v4134 = vsel %vm4127, %v4043, 0.0
        %v4135 = vsel %vm4127, %v4052, 0.0
        %v4136 = vsel %vm4127, %v4061, 0.0
        %v4137 = vsel %vm4127, %v4070, 0.0
        %v4138 = vsel %vm4127, %v4079, 0.0
        %v4139 = vsel %vm4127, %v4088, 0.0
        %v4140 = vsel %vm4127, %v4097, 0.0
        %v4141 = vsel %vm4127, %v4106, 0.0
        %v4142 = vsel %vm4127, %v4115, 0.0
        %v4143 = vsel %vm4127, %v4124, 0.0
        %v4144 = vpack.c.bf16 %v4129, %v4128
        %v4145 = vpack.c.bf16 %v4131, %v4130
        %v4146 = vpack.c.bf16 %v4133, %v4132
        %v4147 = vpack.c.bf16 %v4135, %v4134
        %v4148 = vpack.c.bf16 %v4137, %v4136
        %v4149 = vpack.c.bf16 %v4139, %v4138
        %v4150 = vpack.c.bf16 %v4141, %v4140
        %v4151 = vpack.c.bf16 %v4143, %v4142
        %v4160 = vunpack.c.l.b16 %v4144
        %v4161 = vunpack.c.h.b16 %v4144
        %v4162 = vunpack.c.l.b16 %v4145
        %v4163 = vunpack.c.h.b16 %v4145
        %v4164 = vunpack.c.l.b16 %v4146
        %v4165 = vunpack.c.h.b16 %v4146
        %v4166 = vunpack.c.l.b16 %v4147
        %v4167 = vunpack.c.h.b16 %v4147
        %v4168 = vunpack.c.l.b16 %v4148
        %v4169 = vunpack.c.h.b16 %v4148
        %v4170 = vunpack.c.l.b16 %v4149
        %v4171 = vunpack.c.h.b16 %v4149
        %v4172 = vunpack.c.l.b16 %v4150
        %v4173 = vunpack.c.h.b16 %v4150
        %v4174 = vunpack.c.l.b16 %v4151
        %v4175 = vunpack.c.h.b16 %v4151
        %v4176 = vpack.c.b16 %v4160, %v4160
        %v4177 = vpack.c.b16 %v4161, %v4161
        %v4178 = vpack.c.b16 %v4162, %v4162
        %v4179 = vpack.c.b16 %v4163, %v4163
        %v4180 = vpack.c.b16 %v4164, %v4164
        %v4181 = vpack.c.b16 %v4165, %v4165
        %v4182 = vpack.c.b16 %v4166, %v4166
        %v4183 = vpack.c.b16 %v4167, %v4167
        %v4184 = vpack.c.b16 %v4168, %v4168
        %v4185 = vpack.c.b16 %v4169, %v4169
        %v4186 = vpack.c.b16 %v4170, %v4170
        %v4187 = vpack.c.b16 %v4171, %v4171
        %v4188 = vpack.c.b16 %v4172, %v4172
        %v4189 = vpack.c.b16 %v4173, %v4173
        %v4190 = vpack.c.b16 %v4174, %v4174
        %v4191 = vpack.c.b16 %v4175, %v4175
        %4208 = vst [vmem:[%s898] sm:$0xf] %v4176
        %4209 = vst [vmem:[%s898 + $0x4] sm:$0xf] %v4177
        %4210 = vst [vmem:[%s898 + $0x8] sm:$0xf] %v4178
        %4211 = vst [vmem:[%s898 + $0xc] sm:$0xf] %v4179
        %4212 = vst [vmem:[%s898 + $0x10] sm:$0xf] %v4180
        %4213 = vst [vmem:[%s898 + $0x14] sm:$0xf] %v4181
        %4214 = vst [vmem:[%s898 + $0x18] sm:$0xf] %v4182
        %4215 = vst [vmem:[%s898 + $0x1c] sm:$0xf] %v4183
        %4216 = vst [vmem:[%s898 + $0x20] sm:$0xf] %v4184
        %4217 = vst [vmem:[%s898 + $0x24] sm:$0xf] %v4185
        %4218 = vst [vmem:[%s898 + $0x28] sm:$0xf] %v4186
        %4219 = vst [vmem:[%s898 + $0x2c] sm:$0xf] %v4187
        %4220 = vst [vmem:[%s898 + $0x30] sm:$0xf] %v4188
        %4221 = vst [vmem:[%s898 + $0x34] sm:$0xf] %v4189
        %4222 = vst [vmem:[%s898 + $0x38] sm:$0xf] %v4190
        %4223 = vst [vmem:[%s898 + $0x3c] sm:$0xf] %v4191
        %s4224 = smul.u32 16, %s15
        %p4225 = scmp.lt.s32.totalorder %s4224, 31
        %s4226 = scalar_select %p4225, %s4224, 31
        %s4227 = smul.addr %s4226, 4
        %s4228 = scalar_lea.vmem %s4, %s4227
        // Predicated region
        $region78: #{gnn_combo_forward.2} parent=72 // pred_check
          %p4229 = pneg %p127
        $region79: #{gnn_combo_forward.2} parent=72 // pred_check_branch
          %4231 = sbr.rel (%p4229) target = $region81
        $region80: #{gnn_combo_forward.2} parent=72 // pred_region
          %s4232 = smul.u32 16, %s15
        $region81: #{gnn_combo_forward.2} parent=72 // pred_fallthru
          _
      $region73: #{gnn_combo_forward.2} parent=5 // pred_fallthru
        _
      %p4233 = scmp.le.s32.totalorder 2, %s10
      // Predicated region
      $region82: #{gnn_combo_forward.2} parent=5 // pred_check
        %p4234 = pneg %p4233
      $region83: #{gnn_combo_forward.2} parent=5 // pred_check_branch
        %4236 = sbr.rel (%p4234) target = $region85
      $region84: #{gnn_combo_forward.2} parent=5 // pred_region
        %s4237 = ssub.s32 %s10, 2
        // Predicated region
        $region86: #{gnn_combo_forward.2} parent=84 // pred_check
          %p4238 = pneg %p133
        $region87: #{gnn_combo_forward.2} parent=84 // pred_check_branch
          %4240 = sbr.rel (%p4238) target = $region89
        $region88: #{gnn_combo_forward.2} parent=84 // pred_region
          %s4241 = smul.u32 16, %s16
          %p4242 = scmp.lt.s32.totalorder %s4241, 31
          %s4243 = scalar_select %p4242, %s4241, 31
          %s4244 = smul.addr %s4243, 4
          %s4245 = scalar_lea.vmem %s4, %s4244
        $region89: #{gnn_combo_forward.2} parent=84 // pred_fallthru
          _
      $region85: #{gnn_combo_forward.2} parent=5 // pred_fallthru
        _
    $region6: #{gnn_combo_forward.2} parent=1 // loop_footer
      %s14 = sadd.s32 1, %s10
    $region7: #{gnn_combo_forward.2} parent=1 // loop_footer_branch
      %9 = sbr.rel target = $region3
    $region8: #{gnn_combo_forward.2} parent=1 // loop_exit
      _

</llo_original>
